<compile_context>
chip_gen: v5e
topology: v5e:2x2
jax: 0.10.0
libtpu: 0.0.40
codegen_flags: <defaults>
</compile_context>

<pallas_src>
import functools

import jax
import jax.numpy as jnp
import numpy as np
from jax.experimental import pallas as pl
from jax.experimental.pallas import tpu as pltpu

NZ, NGF, NC = 100, 64, 3
KSIZE = 4
BN_EPS = 1e-5

LAYER_CHANNELS = ((NGF * 8, NGF * 4), (NGF * 4, NGF * 2),
                  (NGF * 2, NGF), (NGF, NC))


def _round_up(x, m):
    return ((x + m - 1) // m) * m


# ----------------------------------------------------------------------------
# Pallas kernels
# ----------------------------------------------------------------------------
def _matmul_kernel_noacc(x_ref, w_ref, o_ref, *, activation):
    """Single-K-block matmul (no scratch accumulator); optional tanh epilogue."""
    r = jnp.dot(x_ref[0], w_ref[0], preferred_element_type=jnp.float32)
    if activation == "tanh":
        r = jnp.tanh(r)
    o_ref[0] = r.astype(o_ref.dtype)


def _matmul_kernel_acc(x_ref, w_ref, o_ref, acc_ref, *, activation):
    """K-tiled matmul with f32 VMEM accumulator; optional tanh epilogue."""
    @pl.when(pl.program_id(3) == 0)
    def _():
        acc_ref[...] = jnp.zeros_like(acc_ref)

    acc_ref[...] += jnp.dot(x_ref[0], w_ref[0],
                            preferred_element_type=jnp.float32)

    @pl.when(pl.program_id(3) == pl.num_programs(3) - 1)
    def _():
        r = acc_ref[...]
        if activation == "tanh":
            r = jnp.tanh(r)
        o_ref[0] = r.astype(o_ref.dtype)


def _bn_stats_kernel(y_ref, sum_ref, ssq_ref):
    """Pass 1: accumulate per-lane sum / sum-of-squares over row tiles."""
    @pl.when(pl.program_id(0) == 0)
    def _():
        sum_ref[...] = jnp.zeros_like(sum_ref)
        ssq_ref[...] = jnp.zeros_like(ssq_ref)

    y = y_ref[...]
    sum_ref[...] += jnp.sum(y, axis=0, keepdims=True)
    ssq_ref[...] += jnp.sum(y * y, axis=0, keepdims=True)


def _bn_apply_kernel(y_ref, sc_ref, sh_ref, o_ref):
    """Pass 2: y * scale + shift, then ReLU (scale/shift fold mean/var/gamma/beta)."""
    o_ref[...] = jnp.maximum(y_ref[...] * sc_ref[...] + sh_ref[...], 0.0)


# ----------------------------------------------------------------------------
# Pallas wrappers
# ----------------------------------------------------------------------------
def pallas_matmul(x, w, activation="none", out_cols=None):
    """Batched matmul: x (G, M, K) @ w (G, Kw, Nw) -> (G, M, out_cols).

    The weight is expected K/N-padded to multiples of 128 (done once at
    parameter-prep time). x is padded here (M to the row tile, K to Kw).
    """
    G, M, K = x.shape
    Gw, Kw, Nw = w.shape
    assert G == Gw and Kw >= K and Kw % 128 == 0 and Nw % 128 == 0

    Mp = _round_up(M, 8)
    tm = Mp if Mp <= 256 else 256
    Mp = _round_up(Mp, tm)

    tn = Nw if Nw <= 256 else 256
    Np = _round_up(Nw, tn)

    tk = Kw if Kw <= 2048 else 2048          # full-K block whenever it fits
    Kp = _round_up(Kw, tk)

    if (Mp, Kp) != (M, K):
        x = jnp.pad(x, ((0, 0), (0, Mp - M), (0, Kp - K)))
    if (Kp, Np) != (Kw, Nw):
        w = jnp.pad(w, ((0, 0), (0, Kp - Kw), (0, Np - Nw)))

    n_k = Kp // tk
    grid = (G, Mp // tm, Np // tn, n_k)

    if n_k == 1:
        kernel = functools.partial(_matmul_kernel_noacc, activation=activation)
        scratch = ()
    else:
        kernel = functools.partial(_matmul_kernel_acc, activation=activation)
        scratch = (pltpu.VMEM((tm, tn), jnp.float32),)

    out = pl.pallas_call(
        kernel,
        out_shape=jax.ShapeDtypeStruct((G, Mp, Np), jnp.float32),
        grid_spec=pltpu.PrefetchScalarGridSpec(
            num_scalar_prefetch=0,
            grid=grid,
            in_specs=[
                pl.BlockSpec((1, tm, tk), lambda g, i, j, k: (g, i, k)),
                pl.BlockSpec((1, tk, tn), lambda g, i, j, k: (g, k, j)),
            ],
            out_specs=pl.BlockSpec((1, tm, tn), lambda g, i, j, k: (g, i, j)),
            scratch_shapes=scratch,
        ),
        compiler_params=pltpu.CompilerParams(
            dimension_semantics=("parallel", "parallel", "parallel",
                                 "arbitrary")),
    )(x, w)

    nc = Nw if out_cols is None else out_cols
    return out[:, :M, :nc]


def pallas_bn_relu(y, gamma, beta, eps=BN_EPS):
    """Training-mode BatchNorm (biased batch variance) + ReLU on (M, C) rows.

    Two row-tiled passes: (1) per-channel sum/sumsq accumulation,
    (2) normalize + ReLU. When C < 128 (layer 4), rows are folded so the lane
    dimension is 128 and stores stay lane-dense.
    """
    M, C = y.shape
    g = gamma.astype(jnp.float32)
    b = beta.astype(jnp.float32)

    fold = 1
    if C < 128 and 128 % C == 0 and M % (128 // C) == 0:
        fold = 128 // C
    Mv, Cv = M // fold, C * fold
    yv = y.reshape(Mv, Cv)

    Cvp = _round_up(Cv, 128)
    if Cvp != Cv:
        yv = jnp.pad(yv, ((0, 0), (0, Cvp - Cv)))

    tm = Mv if Mv <= 512 else 512
    Mvp = _round_up(Mv, tm)
    if Mvp != Mv:
        yv = jnp.pad(yv, ((0, Mvp - Mv), (0, 0)))     # zero rows: benign for sums
    n_rows = Mvp // tm

    # ---- pass 1: per-lane sum / sum-of-squares (row axis = reduction) ----
    s, ss = pl.pallas_call(
        _bn_stats_kernel,
        out_shape=(jax.ShapeDtypeStruct((1, Cvp), jnp.float32),
                   jax.ShapeDtypeStruct((1, Cvp), jnp.float32)),
        grid_spec=pltpu.PrefetchScalarGridSpec(
            num_scalar_prefetch=0,
            grid=(n_rows,),
            in_specs=[pl.BlockSpec((tm, Cvp), lambda i: (i, 0))],
            out_specs=(pl.BlockSpec((1, Cvp), lambda i: (0, 0)),
                       pl.BlockSpec((1, Cvp), lambda i: (0, 0))),
        ),
        compiler_params=pltpu.CompilerParams(
            dimension_semantics=("arbitrary",)),
    )(yv)

    # ---- tiny O(C) glue: fold stats back per channel, build scale/shift ----
    s = s[0, :Cv].reshape(fold, C).sum(axis=0)
    ss = ss[0, :Cv].reshape(fold, C).sum(axis=0)
    mean = s / M
    var = jnp.maximum(ss / M - mean * mean, 0.0)       # biased (training) var
    inv = jax.lax.rsqrt(var + eps)
    scale = g * inv
    shift = b - mean * scale

    scale_v = jnp.tile(scale, fold)
    shift_v = jnp.tile(shift, fold)
    if Cvp != Cv:
        scale_v = jnp.pad(scale_v, (0, Cvp - Cv))
        shift_v = jnp.pad(shift_v, (0, Cvp - Cv))
    scale_v = scale_v.reshape(1, Cvp)
    shift_v = shift_v.reshape(1, Cvp)

    # ---- pass 2: normalize + ReLU, fully parallel over row tiles ----
    out = pl.pallas_call(
        _bn_apply_kernel,
        out_shape=jax.ShapeDtypeStruct((Mvp, Cvp), jnp.float32),
        grid_spec=pltpu.PrefetchScalarGridSpec(
            num_scalar_prefetch=0,
            grid=(n_rows,),
            in_specs=[
                pl.BlockSpec((tm, Cvp), lambda i: (i, 0)),
                pl.BlockSpec((1, Cvp), lambda i: (0, 0)),
                pl.BlockSpec((1, Cvp), lambda i: (0, 0)),
            ],
            out_specs=pl.BlockSpec((tm, Cvp), lambda i: (i, 0)),
        ),
        compiler_params=pltpu.CompilerParams(
            dimension_semantics=("parallel",)),
    )(yv, scale_v, shift_v)

    return out[:Mv, :Cv].reshape(M, C)


# ----------------------------------------------------------------------------
# ConvTranspose2d(k=4, s=2, p=1) parity decomposition (JAX glue, data movement)
# ----------------------------------------------------------------------------
def _split_deconv_weight(w):
    """ConvTranspose2d weight (Cin, Cout, 4, 4) -> per-parity matmul slabs
    (4, 4*Cin, Cout); parity p = 2*ry + rx, row = (dy*2+dx)*Cin + cin."""
    cin, cout, k, _ = w.shape
    assert k == KSIZE
    w_flip = w[:, :, ::-1, ::-1]                     # flipped -> regular conv
    wt = jnp.transpose(w_flip, (2, 3, 0, 1))         # (ky, kx, cin, cout)
    wt = wt.reshape(2, 2, 2, 2, cin, cout)           # ky = 2*dy+ry, kx = 2*dx+rx
    wt = jnp.transpose(wt, (1, 3, 0, 2, 4, 5))       # (ry, rx, dy, dx, cin, cout)
    return wt.reshape(4, 4 * cin, cout)


def _parity_patches(x_nhwc):
    """im2col for the 4-parity split: (4, B*H*W, 4*C) from undilated input."""
    B, H, W, C = x_nhwc.shape
    xp = jnp.pad(x_nhwc, ((0, 0), (1, 1), (1, 1), (0, 0)))
    slabs = []
    for ry in range(2):
        for rx in range(2):
            taps = [xp[:, ry + dy:ry + dy + H, rx + dx:rx + dx + W, :]
                    for dy in range(2) for dx in range(2)]
            t = jnp.stack(taps, axis=3)              # (B, H, W, 4, C)
            slabs.append(t.reshape(B * H * W, 4 * C))
    return jnp.stack(slabs, axis=0)


def _interleave_parity(y_par, B, H, W, C):
    """(4, B*H*W, C), parity p = 2*ry+rx -> NHWC (B, 2H, 2W, C)."""
    y = y_par.reshape(2, 2, B, H, W, C)              # (ry, rx, b, iy, ix, c)
    y = jnp.transpose(y, (2, 3, 0, 4, 1, 5))         # (b, iy, ry, ix, rx, c)
    return y.reshape(B, 2 * H, 2 * W, C)


# ----------------------------------------------------------------------------
# Parameter prep (one-time) + Generator forward (Pallas)
# ----------------------------------------------------------------------------
def prepare_params(params):
    """One-time re-layout of weights into matmul-ready, K/N-padded slabs."""
    pp = {}
    w1m = jnp.transpose(params["w1"], (0, 2, 3, 1)).reshape(NZ, 16 * NGF * 8)
    pp["w1"] = jnp.pad(w1m, ((0, _round_up(NZ, 128) - NZ), (0, 0)))[None]
    for li, (_, cout) in zip(range(2, 6), LAYER_CHANNELS):
        wp = _split_deconv_weight(params[f"w{li}"])          # (4, 4*cin, cout)
        coutp = _round_up(cout, 128)
        if coutp != cout:
            wp = jnp.pad(wp, ((0, 0), (0, 0), (0, coutp - cout)))
        pp[f"w{li}"] = wp
    for li in range(1, 5):
        pp[f"g{li}"] = params[f"g{li}"]
        pp[f"b{li}"] = params[f"b{li}"]
    return pp


@jax.jit
def generator_forward(z, prepped):
    B = z.shape[0]

    # --- layer 1: ConvTranspose2d(nz, 512, 4, 1, 0) on a 1x1 input == matmul
    y = pallas_matmul(z[None], prepped["w1"], out_cols=16 * NGF * 8)[0]
    y = pallas_bn_relu(y.reshape(B * 16, NGF * 8), prepped["g1"], prepped["b1"])
    x = y.reshape(B, 4, 4, NGF * 8)                          # NHWC

    # --- layers 2-5: stride-2 transposed convs via 4-parity sub-pixel split
    for li, (_, cout) in zip(range(2, 6), LAYER_CHANNELS):
        _, H, W, _ = x.shape
        patches = _parity_patches(x)                         # (4, B*H*W, 4*cin)
        act = "tanh" if li == 5 else "none"
        y = pallas_matmul(patches, prepped[f"w{li}"], activation=act,
                          out_cols=cout)                     # (4, B*H*W, cout)
        if li < 5:
            yb = pallas_bn_relu(y.reshape(4 * B * H * W, cout),
                                prepped[f"g{li}"], prepped[f"b{li}"])
            y = yb.reshape(4, B * H * W, cout)
        x = _interleave_parity(y, B, H, W, cout)             # (B, 2H, 2W, cout)

    return jnp.transpose(x, (0, 3, 1, 2))                    # NCHW (B, 3, 64, 64)


# ----------------------------------------------------------------------------
# Pure-JAX reference (lax conv) for correctness check
# ----------------------------------------------------------------------------
def _ref_conv_t(x_nchw, w, stride, pad):
    k = w.shape[-1]
    w_conv = jnp.transpose(w[:, :, ::-1, ::-1], (1, 0, 2, 3))  # (co, ci, kh, kw)
    return jax.lax.conv_general_dilated(
        x_nchw, w_conv, window_strides=(1, 1),
        padding=[(k - 1 - pad, k - 1 - pad)] * 2,
        lhs_dilation=(stride, stride),
        dimension_numbers=("NCHW", "OIHW", "NCHW"))


def _ref_bn_relu(x, g, b, eps=BN_EPS):
    mean = x.mean(axis=(0, 2, 3), keepdims=True)
    var = ((x - mean) ** 2).mean(axis=(0, 2, 3), keepdims=True)
    y = (x - mean) / jnp.sqrt(var + eps) * g.reshape(1, -1, 1, 1) + b.reshape(1, -1, 1, 1)
    return jnp.maximum(y, 0.0)


def reference_forward(z, params):
    x = z[:, :, None, None]
    x = _ref_bn_relu(_ref_conv_t(x, params["w1"], 1, 0), params["g1"], params["b1"])
    x = _ref_bn_relu(_ref_conv_t(x, params["w2"], 2, 1), params["g2"], params["b2"])
    x = _ref_bn_relu(_ref_conv_t(x, params["w3"], 2, 1), params["g3"], params["b3"])
    x = _ref_bn_relu(_ref_conv_t(x, params["w4"], 2, 1), params["g4"], params["b4"])
    return jnp.tanh(_ref_conv_t(x, params["w5"], 2, 1))


# ----------------------------------------------------------------------------
def init_params(key):
    chans = [(NZ, NGF * 8), (NGF * 8, NGF * 4), (NGF * 4, NGF * 2),
             (NGF * 2, NGF), (NGF, NC)]
    params = {}
    for i, (cin, cout) in enumerate(chans, start=1):
        key, kw, kg, kb = jax.random.split(key, 4)
        params[f"w{i}"] = 0.05 * jax.random.normal(kw, (cin, cout, KSIZE, KSIZE),
                                                   jnp.float32)
        if i < 5:  # BatchNorm affine params for layers 1..4
            params[f"g{i}"] = 1.0 + 0.1 * jax.random.normal(kg, (cout,), jnp.float32)
            params[f"b{i}"] = 0.1 * jax.random.normal(kb, (cout,), jnp.float32)
    return params


if __name__ == "__main__":
    key = jax.random.PRNGKey(0)
    kz, kp = jax.random.split(key)
    B = 2
    z = jax.random.normal(kz, (B, NZ), jnp.float32)      # latent code (B, 100)
    params = init_params(kp)

    prepped = prepare_params(params)                     # one-time weight prep
    out = generator_forward(z, prepped)
    out = jax.block_until_ready(out)
    assert out.shape == (B, NC, 64, 64), out.shape

    ref = jax.block_until_ready(reference_forward(z, params))
    err = float(np.max(np.abs(np.asarray(out) - np.asarray(ref))))
    assert np.allclose(np.asarray(out), np.asarray(ref), atol=3e-3, rtol=3e-3), err

    print("KERNEL_OK")
</pallas_src>

<mosaic_0001>
module attributes {stable_mosaic.version = 11 : i64} {
  func.func @_matmul_kernel_noacc(%arg0: i32, %arg1: i32, %arg2: i32, %arg3: i32, %arg4: memref<1x8x128xf32, #tpu.memory_space<vmem>>, %arg5: memref<1x128x256xf32, #tpu.memory_space<vmem>>, %arg6: memref<1x8x256xf32, #tpu.memory_space<vmem>>) attributes {dimension_semantics = [#tpu.dimension_semantics<parallel>, #tpu.dimension_semantics<parallel>, #tpu.dimension_semantics<parallel>, #tpu.dimension_semantics<arbitrary>], iteration_bounds = array<i64: 1, 1, 32, 1>, scalar_prefetch = 0 : i64, scratch_operands = 0 : i64, tpu.core_type = #tpu.core_type<tc>, window_params = [{transform_indices = @transform_0, window_bounds = array<i64: 1, 8, 128>}, {transform_indices = @transform_1, window_bounds = array<i64: 1, 128, 256>}, {transform_indices = @transform_2, window_bounds = array<i64: 1, 8, 256>}]} {
    %c0 = arith.constant 0 : index
    %c0_0 = arith.constant 0 : index
    %c0_1 = arith.constant 0 : index
    %0 = vector.load %arg4[%c0, %c0_0, %c0_1] : memref<1x8x128xf32, #tpu.memory_space<vmem>>, vector<1x8x128xf32>
    %1 = vector.shape_cast %0 : vector<1x8x128xf32> to vector<8x128xf32>
    %c0_2 = arith.constant 0 : index
    %c0_3 = arith.constant 0 : index
    %c0_4 = arith.constant 0 : index
    %2 = vector.load %arg5[%c0_2, %c0_3, %c0_4] : memref<1x128x256xf32, #tpu.memory_space<vmem>>, vector<1x128x256xf32>
    %3 = vector.shape_cast %2 : vector<1x128x256xf32> to vector<128x256xf32>
    %cst = arith.constant dense<0.000000e+00> : vector<8x256xf32>
    %4 = tpu.matmul %1, %3, %cst {dimension_numbers = #tpu.dot_dimension_numbers<[1], [0], [0], [1], [0, 0, 1, 1], [], []>} : vector<8x128xf32>, vector<128x256xf32>, vector<8x256xf32> -> vector<8x256xf32>
    %c0_5 = arith.constant 0 : index
    %c0_6 = arith.constant 0 : index
    %c0_7 = arith.constant 0 : index
    %5 = vector.load %arg6[%c0_5, %c0_6, %c0_7] : memref<1x8x256xf32, #tpu.memory_space<vmem>>, vector<1x8x256xf32>
    %6 = vector.shape_cast %5 : vector<1x8x256xf32> to vector<8x256xf32>
    %7 = vector.shape_cast %4 : vector<8x256xf32> to vector<1x8x256xf32>
    tpu.vector_store %arg6[%c0_5, %c0_6, %c0_7], %7 {strides = array<i32>} : memref<1x8x256xf32, #tpu.memory_space<vmem>>, vector<1x8x256xf32>,
    return
  }
  func.func @transform_0(%arg0: i32, %arg1: i32, %arg2: i32, %arg3: i32) -> (i32, i32, i32) {
    %c0_i32 = arith.constant 0 : i32
    return %arg0, %arg1, %arg3 : i32, i32, i32
  }
  func.func @transform_1(%arg0: i32, %arg1: i32, %arg2: i32, %arg3: i32) -> (i32, i32, i32) {
    %c0_i32 = arith.constant 0 : i32
    return %arg0, %arg3, %arg2 : i32, i32, i32
  }
  func.func @transform_2(%arg0: i32, %arg1: i32, %arg2: i32, %arg3: i32) -> (i32, i32, i32) {
    %c0_i32 = arith.constant 0 : i32
    return %arg0, %arg1, %arg2 : i32, i32, i32
  }
}

module attributes {stable_mosaic.version = 11 : i64} {
  func.func @_bn_stats_kernel(%arg0: i32, %arg1: memref<32x512xf32, #tpu.memory_space<vmem>>, %arg2: memref<1x512xf32, #tpu.memory_space<vmem>>, %arg3: memref<1x512xf32, #tpu.memory_space<vmem>>) attributes {dimension_semantics = [#tpu.dimension_semantics<arbitrary>], iteration_bounds = array<i64: 1>, scalar_prefetch = 0 : i64, scratch_operands = 0 : i64, tpu.core_type = #tpu.core_type<tc>, window_params = [{transform_indices = @transform_0, window_bounds = array<i64: 32, 512>}, {pipeline_mode = #tpu.pipeline_mode<synchronous>, transform_indices = @transform_1, window_bounds = array<i64: 1, 512>}, {pipeline_mode = #tpu.pipeline_mode<synchronous>, transform_indices = @transform_2, window_bounds = array<i64: 1, 512>}]} {
    %c0_i32 = arith.constant 0 : i32
    %0 = arith.cmpi eq, %arg0, %c0_i32 : i32
    %1 = arith.extui %0 : i1 to i32
    %c0_i32_0 = arith.constant 0 : i32
    %2 = arith.cmpi ne, %1, %c0_i32_0 : i32
    scf.if %2 {
      %cst_11 = arith.constant 0.000000e+00 : f32
      %15 = vector.broadcast %cst_11 : f32 to vector<1x512xf32>
      %c0_12 = arith.constant 0 : index
      %c0_13 = arith.constant 0 : index
      %16 = vector.load %arg2[%c0_12, %c0_13] : memref<1x512xf32, #tpu.memory_space<vmem>>, vector<1x512xf32>
      tpu.vector_store %arg2[%c0_12, %c0_13], %15 {strides = array<i32>} : memref<1x512xf32, #tpu.memory_space<vmem>>, vector<1x512xf32>,
      %cst_14 = arith.constant 0.000000e+00 : f32
      %17 = vector.broadcast %cst_14 : f32 to vector<1x512xf32>
      %c0_15 = arith.constant 0 : index
      %c0_16 = arith.constant 0 : index
      %18 = vector.load %arg3[%c0_15, %c0_16] : memref<1x512xf32, #tpu.memory_space<vmem>>, vector<1x512xf32>
      tpu.vector_store %arg3[%c0_15, %c0_16], %17 {strides = array<i32>} : memref<1x512xf32, #tpu.memory_space<vmem>>, vector<1x512xf32>,
    } else {
    }
    %c0 = arith.constant 0 : index
    %c0_1 = arith.constant 0 : index
    %3 = vector.load %arg1[%c0, %c0_1] : memref<32x512xf32, #tpu.memory_space<vmem>>, vector<32x512xf32>
    %c0_2 = arith.constant 0 : index
    %c0_3 = arith.constant 0 : index
    %4 = vector.load %arg2[%c0_2, %c0_3] : memref<1x512xf32, #tpu.memory_space<vmem>>, vector<1x512xf32>
    %cst = arith.constant dense<0.000000e+00> : vector<512xf32>
    %5 = vector.multi_reduction <add>, %3, %cst [0] : vector<32x512xf32> to vector<512xf32>
    %6 = vector.shape_cast %5 : vector<512xf32> to vector<1x512xf32>
    %7 = arith.addf %4, %6 : vector<1x512xf32>
    %c0_4 = arith.constant 0 : index
    %c0_5 = arith.constant 0 : index
    %8 = vector.load %arg2[%c0_4, %c0_5] : memref<1x512xf32, #tpu.memory_space<vmem>>, vector<1x512xf32>
    tpu.vector_store %arg2[%c0_4, %c0_5], %7 {strides = array<i32>} : memref<1x512xf32, #tpu.memory_space<vmem>>, vector<1x512xf32>,
    %c0_6 = arith.constant 0 : index
    %c0_7 = arith.constant 0 : index
    %9 = vector.load %arg3[%c0_6, %c0_7] : memref<1x512xf32, #tpu.memory_space<vmem>>, vector<1x512xf32>
    %10 = arith.mulf %3, %3 : vector<32x512xf32>
    %cst_8 = arith.constant dense<0.000000e+00> : vector<512xf32>
    %11 = vector.multi_reduction <add>, %10, %cst_8 [0] : vector<32x512xf32> to vector<512xf32>
    %12 = vector.shape_cast %11 : vector<512xf32> to vector<1x512xf32>
    %13 = arith.addf %9, %12 : vector<1x512xf32>
    %c0_9 = arith.constant 0 : index
    %c0_10 = arith.constant 0 : index
    %14 = vector.load %arg3[%c0_9, %c0_10] : memref<1x512xf32, #tpu.memory_space<vmem>>, vector<1x512xf32>
    tpu.vector_store %arg3[%c0_9, %c0_10], %13 {strides = array<i32>} : memref<1x512xf32, #tpu.memory_space<vmem>>, vector<1x512xf32>,
    return
  }
  func.func @transform_0(%arg0: i32) -> (i32, i32) {
    %c0_i32 = arith.constant 0 : i32
    %c0_i32_0 = arith.constant 0 : i32
    return %arg0, %c0_i32 : i32, i32
  }
  func.func @transform_1(%arg0: i32) -> (i32, i32) {
    %c0_i32 = arith.constant 0 : i32
    %c0_i32_0 = arith.constant 0 : i32
    %c0_i32_1 = arith.constant 0 : i32
    return %c0_i32, %c0_i32_0 : i32, i32
  }
  func.func @transform_2(%arg0: i32) -> (i32, i32) {
    %c0_i32 = arith.constant 0 : i32
    %c0_i32_0 = arith.constant 0 : i32
    %c0_i32_1 = arith.constant 0 : i32
    return %c0_i32, %c0_i32_0 : i32, i32
  }
}

module attributes {stable_mosaic.version = 11 : i64} {
  func.func @_bn_apply_kernel(%arg0: i32, %arg1: memref<32x512xf32, #tpu.memory_space<vmem>>, %arg2: memref<1x512xf32, #tpu.memory_space<vmem>>, %arg3: memref<1x512xf32, #tpu.memory_space<vmem>>, %arg4: memref<32x512xf32, #tpu.memory_space<vmem>>) attributes {dimension_semantics = [#tpu.dimension_semantics<parallel>], iteration_bounds = array<i64: 1>, scalar_prefetch = 0 : i64, scratch_operands = 0 : i64, tpu.core_type = #tpu.core_type<tc>, window_params = [{transform_indices = @transform_0, window_bounds = array<i64: 32, 512>}, {pipeline_mode = #tpu.pipeline_mode<synchronous>, transform_indices = @transform_1, window_bounds = array<i64: 1, 512>}, {pipeline_mode = #tpu.pipeline_mode<synchronous>, transform_indices = @transform_2, window_bounds = array<i64: 1, 512>}, {transform_indices = @transform_3, window_bounds = array<i64: 32, 512>}]} {
    %c0 = arith.constant 0 : index
    %c0_0 = arith.constant 0 : index
    %0 = vector.load %arg1[%c0, %c0_0] : memref<32x512xf32, #tpu.memory_space<vmem>>, vector<32x512xf32>
    %c0_1 = arith.constant 0 : index
    %c0_2 = arith.constant 0 : index
    %1 = vector.load %arg2[%c0_1, %c0_2] : memref<1x512xf32, #tpu.memory_space<vmem>>, vector<1x512xf32>
    %2 = vector.broadcast %1 : vector<1x512xf32> to vector<32x512xf32>
    %3 = arith.mulf %0, %2 : vector<32x512xf32>
    %c0_3 = arith.constant 0 : index
    %c0_4 = arith.constant 0 : index
    %4 = vector.load %arg3[%c0_3, %c0_4] : memref<1x512xf32, #tpu.memory_space<vmem>>, vector<1x512xf32>
    %5 = vector.broadcast %4 : vector<1x512xf32> to vector<32x512xf32>
    %6 = arith.addf %3, %5 : vector<32x512xf32>
    %cst = arith.constant 0.000000e+00 : f32
    %7 = vector.broadcast %cst : f32 to vector<32x512xf32>
    %8 = arith.maximumf %6, %7 : vector<32x512xf32>
    %c0_5 = arith.constant 0 : index
    %c0_6 = arith.constant 0 : index
    %9 = vector.load %arg4[%c0_5, %c0_6] : memref<32x512xf32, #tpu.memory_space<vmem>>, vector<32x512xf32>
    tpu.vector_store %arg4[%c0_5, %c0_6], %8 {strides = array<i32>} : memref<32x512xf32, #tpu.memory_space<vmem>>, vector<32x512xf32>,
    return
  }
  func.func @transform_0(%arg0: i32) -> (i32, i32) {
    %c0_i32 = arith.constant 0 : i32
    %c0_i32_0 = arith.constant 0 : i32
    return %arg0, %c0_i32 : i32, i32
  }
  func.func @transform_1(%arg0: i32) -> (i32, i32) {
    %c0_i32 = arith.constant 0 : i32
    %c0_i32_0 = arith.constant 0 : i32
    %c0_i32_1 = arith.constant 0 : i32
    return %c0_i32, %c0_i32_0 : i32, i32
  }
  func.func @transform_2(%arg0: i32) -> (i32, i32) {
    %c0_i32 = arith.constant 0 : i32
    %c0_i32_0 = arith.constant 0 : i32
    %c0_i32_1 = arith.constant 0 : i32
    return %c0_i32, %c0_i32_0 : i32, i32
  }
  func.func @transform_3(%arg0: i32) -> (i32, i32) {
    %c0_i32 = arith.constant 0 : i32
    %c0_i32_0 = arith.constant 0 : i32
    return %arg0, %c0_i32 : i32, i32
  }
}

module attributes {stable_mosaic.version = 11 : i64} {
  func.func @_matmul_kernel_noacc(%arg0: i32, %arg1: i32, %arg2: i32, %arg3: i32, %arg4: memref<1x32x2048xf32, #tpu.memory_space<vmem>>, %arg5: memref<1x2048x256xf32, #tpu.memory_space<vmem>>, %arg6: memref<1x32x256xf32, #tpu.memory_space<vmem>>) attributes {dimension_semantics = [#tpu.dimension_semantics<parallel>, #tpu.dimension_semantics<parallel>, #tpu.dimension_semantics<parallel>, #tpu.dimension_semantics<arbitrary>], iteration_bounds = array<i64: 4, 1, 1, 1>, scalar_prefetch = 0 : i64, scratch_operands = 0 : i64, tpu.core_type = #tpu.core_type<tc>, window_params = [{transform_indices = @transform_0, window_bounds = array<i64: 1, 32, 2048>}, {transform_indices = @transform_1, window_bounds = array<i64: 1, 2048, 256>}, {transform_indices = @transform_2, window_bounds = array<i64: 1, 32, 256>}]} {
    %c0 = arith.constant 0 : index
    %c0_0 = arith.constant 0 : index
    %c0_1 = arith.constant 0 : index
    %0 = vector.load %arg4[%c0, %c0_0, %c0_1] : memref<1x32x2048xf32, #tpu.memory_space<vmem>>, vector<1x32x2048xf32>
    %1 = vector.shape_cast %0 : vector<1x32x2048xf32> to vector<32x2048xf32>
    %c0_2 = arith.constant 0 : index
    %c0_3 = arith.constant 0 : index
    %c0_4 = arith.constant 0 : index
    %2 = vector.load %arg5[%c0_2, %c0_3, %c0_4] : memref<1x2048x256xf32, #tpu.memory_space<vmem>>, vector<1x2048x256xf32>
    %3 = vector.shape_cast %2 : vector<1x2048x256xf32> to vector<2048x256xf32>
    %cst = arith.constant dense<0.000000e+00> : vector<32x256xf32>
    %4 = tpu.matmul %1, %3, %cst {dimension_numbers = #tpu.dot_dimension_numbers<[1], [0], [0], [1], [0, 0, 1, 1], [], []>} : vector<32x2048xf32>, vector<2048x256xf32>, vector<32x256xf32> -> vector<32x256xf32>
    %c0_5 = arith.constant 0 : index
    %c0_6 = arith.constant 0 : index
    %c0_7 = arith.constant 0 : index
    %5 = vector.load %arg6[%c0_5, %c0_6, %c0_7] : memref<1x32x256xf32, #tpu.memory_space<vmem>>, vector<1x32x256xf32>
    %6 = vector.shape_cast %5 : vector<1x32x256xf32> to vector<32x256xf32>
    %7 = vector.shape_cast %4 : vector<32x256xf32> to vector<1x32x256xf32>
    tpu.vector_store %arg6[%c0_5, %c0_6, %c0_7], %7 {strides = array<i32>} : memref<1x32x256xf32, #tpu.memory_space<vmem>>, vector<1x32x256xf32>,
    return
  }
  func.func @transform_0(%arg0: i32, %arg1: i32, %arg2: i32, %arg3: i32) -> (i32, i32, i32) {
    %c0_i32 = arith.constant 0 : i32
    return %arg0, %arg1, %arg3 : i32, i32, i32
  }
  func.func @transform_1(%arg0: i32, %arg1: i32, %arg2: i32, %arg3: i32) -> (i32, i32, i32) {
    %c0_i32 = arith.constant 0 : i32
    return %arg0, %arg3, %arg2 : i32, i32, i32
  }
  func.func @transform_2(%arg0: i32, %arg1: i32, %arg2: i32, %arg3: i32) -> (i32, i32, i32) {
    %c0_i32 = arith.constant 0 : i32
    return %arg0, %arg1, %arg2 : i32, i32, i32
  }
}

module attributes {stable_mosaic.version = 11 : i64} {
  func.func @_bn_stats_kernel(%arg0: i32, %arg1: memref<128x256xf32, #tpu.memory_space<vmem>>, %arg2: memref<1x256xf32, #tpu.memory_space<vmem>>, %arg3: memref<1x256xf32, #tpu.memory_space<vmem>>) attributes {dimension_semantics = [#tpu.dimension_semantics<arbitrary>], iteration_bounds = array<i64: 1>, scalar_prefetch = 0 : i64, scratch_operands = 0 : i64, tpu.core_type = #tpu.core_type<tc>, window_params = [{transform_indices = @transform_0, window_bounds = array<i64: 128, 256>}, {pipeline_mode = #tpu.pipeline_mode<synchronous>, transform_indices = @transform_1, window_bounds = array<i64: 1, 256>}, {pipeline_mode = #tpu.pipeline_mode<synchronous>, transform_indices = @transform_2, window_bounds = array<i64: 1, 256>}]} {
    %c0_i32 = arith.constant 0 : i32
    %0 = arith.cmpi eq, %arg0, %c0_i32 : i32
    %1 = arith.extui %0 : i1 to i32
    %c0_i32_0 = arith.constant 0 : i32
    %2 = arith.cmpi ne, %1, %c0_i32_0 : i32
    scf.if %2 {
      %cst_11 = arith.constant 0.000000e+00 : f32
      %15 = vector.broadcast %cst_11 : f32 to vector<1x256xf32>
      %c0_12 = arith.constant 0 : index
      %c0_13 = arith.constant 0 : index
      %16 = vector.load %arg2[%c0_12, %c0_13] : memref<1x256xf32, #tpu.memory_space<vmem>>, vector<1x256xf32>
      tpu.vector_store %arg2[%c0_12, %c0_13], %15 {strides = array<i32>} : memref<1x256xf32, #tpu.memory_space<vmem>>, vector<1x256xf32>,
      %cst_14 = arith.constant 0.000000e+00 : f32
      %17 = vector.broadcast %cst_14 : f32 to vector<1x256xf32>
      %c0_15 = arith.constant 0 : index
      %c0_16 = arith.constant 0 : index
      %18 = vector.load %arg3[%c0_15, %c0_16] : memref<1x256xf32, #tpu.memory_space<vmem>>, vector<1x256xf32>
      tpu.vector_store %arg3[%c0_15, %c0_16], %17 {strides = array<i32>} : memref<1x256xf32, #tpu.memory_space<vmem>>, vector<1x256xf32>,
    } else {
    }
    %c0 = arith.constant 0 : index
    %c0_1 = arith.constant 0 : index
    %3 = vector.load %arg1[%c0, %c0_1] : memref<128x256xf32, #tpu.memory_space<vmem>>, vector<128x256xf32>
    %c0_2 = arith.constant 0 : index
    %c0_3 = arith.constant 0 : index
    %4 = vector.load %arg2[%c0_2, %c0_3] : memref<1x256xf32, #tpu.memory_space<vmem>>, vector<1x256xf32>
    %cst = arith.constant dense<0.000000e+00> : vector<256xf32>
    %5 = vector.multi_reduction <add>, %3, %cst [0] : vector<128x256xf32> to vector<256xf32>
    %6 = vector.shape_cast %5 : vector<256xf32> to vector<1x256xf32>
    %7 = arith.addf %4, %6 : vector<1x256xf32>
    %c0_4 = arith.constant 0 : index
    %c0_5 = arith.constant 0 : index
    %8 = vector.load %arg2[%c0_4, %c0_5] : memref<1x256xf32, #tpu.memory_space<vmem>>, vector<1x256xf32>
    tpu.vector_store %arg2[%c0_4, %c0_5], %7 {strides = array<i32>} : memref<1x256xf32, #tpu.memory_space<vmem>>, vector<1x256xf32>,
    %c0_6 = arith.constant 0 : index
    %c0_7 = arith.constant 0 : index
    %9 = vector.load %arg3[%c0_6, %c0_7] : memref<1x256xf32, #tpu.memory_space<vmem>>, vector<1x256xf32>
    %10 = arith.mulf %3, %3 : vector<128x256xf32>
    %cst_8 = arith.constant dense<0.000000e+00> : vector<256xf32>
    %11 = vector.multi_reduction <add>, %10, %cst_8 [0] : vector<128x256xf32> to vector<256xf32>
    %12 = vector.shape_cast %11 : vector<256xf32> to vector<1x256xf32>
    %13 = arith.addf %9, %12 : vector<1x256xf32>
    %c0_9 = arith.constant 0 : index
    %c0_10 = arith.constant 0 : index
    %14 = vector.load %arg3[%c0_9, %c0_10] : memref<1x256xf32, #tpu.memory_space<vmem>>, vector<1x256xf32>
    tpu.vector_store %arg3[%c0_9, %c0_10], %13 {strides = array<i32>} : memref<1x256xf32, #tpu.memory_space<vmem>>, vector<1x256xf32>,
    return
  }
  func.func @transform_0(%arg0: i32) -> (i32, i32) {
    %c0_i32 = arith.constant 0 : i32
    %c0_i32_0 = arith.constant 0 : i32
    return %arg0, %c0_i32 : i32, i32
  }
  func.func @transform_1(%arg0: i32) -> (i32, i32) {
    %c0_i32 = arith.constant 0 : i32
    %c0_i32_0 = arith.constant 0 : i32
    %c0_i32_1 = arith.constant 0 : i32
    return %c0_i32, %c0_i32_0 : i32, i32
  }
  func.func @transform_2(%arg0: i32) -> (i32, i32) {
    %c0_i32 = arith.constant 0 : i32
    %c0_i32_0 = arith.constant 0 : i32
    %c0_i32_1 = arith.constant 0 : i32
    return %c0_i32, %c0_i32_0 : i32, i32
  }
}

module attributes {stable_mosaic.version = 11 : i64} {
  func.func @_bn_apply_kernel(%arg0: i32, %arg1: memref<128x256xf32, #tpu.memory_space<vmem>>, %arg2: memref<1x256xf32, #tpu.memory_space<vmem>>, %arg3: memref<1x256xf32, #tpu.memory_space<vmem>>, %arg4: memref<128x256xf32, #tpu.memory_space<vmem>>) attributes {dimension_semantics = [#tpu.dimension_semantics<parallel>], iteration_bounds = array<i64: 1>, scalar_prefetch = 0 : i64, scratch_operands = 0 : i64, tpu.core_type = #tpu.core_type<tc>, window_params = [{transform_indices = @transform_0, window_bounds = array<i64: 128, 256>}, {pipeline_mode = #tpu.pipeline_mode<synchronous>, transform_indices = @transform_1, window_bounds = array<i64: 1, 256>}, {pipeline_mode = #tpu.pipeline_mode<synchronous>, transform_indices = @transform_2, window_bounds = array<i64: 1, 256>}, {transform_indices = @transform_3, window_bounds = array<i64: 128, 256>}]} {
    %c0 = arith.constant 0 : index
    %c0_0 = arith.constant 0 : index
    %0 = vector.load %arg1[%c0, %c0_0] : memref<128x256xf32, #tpu.memory_space<vmem>>, vector<128x256xf32>
    %c0_1 = arith.constant 0 : index
    %c0_2 = arith.constant 0 : index
    %1 = vector.load %arg2[%c0_1, %c0_2] : memref<1x256xf32, #tpu.memory_space<vmem>>, vector<1x256xf32>
    %2 = vector.broadcast %1 : vector<1x256xf32> to vector<128x256xf32>
    %3 = arith.mulf %0, %2 : vector<128x256xf32>
    %c0_3 = arith.constant 0 : index
    %c0_4 = arith.constant 0 : index
    %4 = vector.load %arg3[%c0_3, %c0_4] : memref<1x256xf32, #tpu.memory_space<vmem>>, vector<1x256xf32>
    %5 = vector.broadcast %4 : vector<1x256xf32> to vector<128x256xf32>
    %6 = arith.addf %3, %5 : vector<128x256xf32>
    %cst = arith.constant 0.000000e+00 : f32
    %7 = vector.broadcast %cst : f32 to vector<128x256xf32>
    %8 = arith.maximumf %6, %7 : vector<128x256xf32>
    %c0_5 = arith.constant 0 : index
    %c0_6 = arith.constant 0 : index
    %9 = vector.load %arg4[%c0_5, %c0_6] : memref<128x256xf32, #tpu.memory_space<vmem>>, vector<128x256xf32>
    tpu.vector_store %arg4[%c0_5, %c0_6], %8 {strides = array<i32>} : memref<128x256xf32, #tpu.memory_space<vmem>>, vector<128x256xf32>,
    return
  }
  func.func @transform_0(%arg0: i32) -> (i32, i32) {
    %c0_i32 = arith.constant 0 : i32
    %c0_i32_0 = arith.constant 0 : i32
    return %arg0, %c0_i32 : i32, i32
  }
  func.func @transform_1(%arg0: i32) -> (i32, i32) {
    %c0_i32 = arith.constant 0 : i32
    %c0_i32_0 = arith.constant 0 : i32
    %c0_i32_1 = arith.constant 0 : i32
    return %c0_i32, %c0_i32_0 : i32, i32
  }
  func.func @transform_2(%arg0: i32) -> (i32, i32) {
    %c0_i32 = arith.constant 0 : i32
    %c0_i32_0 = arith.constant 0 : i32
    %c0_i32_1 = arith.constant 0 : i32
    return %c0_i32, %c0_i32_0 : i32, i32
  }
  func.func @transform_3(%arg0: i32) -> (i32, i32) {
    %c0_i32 = arith.constant 0 : i32
    %c0_i32_0 = arith.constant 0 : i32
    return %arg0, %c0_i32 : i32, i32
  }
}

module attributes {stable_mosaic.version = 11 : i64} {
  func.func @_matmul_kernel_noacc(%arg0: i32, %arg1: i32, %arg2: i32, %arg3: i32, %arg4: memref<1x128x1024xf32, #tpu.memory_space<vmem>>, %arg5: memref<1x1024x128xf32, #tpu.memory_space<vmem>>, %arg6: memref<1x128x128xf32, #tpu.memory_space<vmem>>) attributes {dimension_semantics = [#tpu.dimension_semantics<parallel>, #tpu.dimension_semantics<parallel>, #tpu.dimension_semantics<parallel>, #tpu.dimension_semantics<arbitrary>], iteration_bounds = array<i64: 4, 1, 1, 1>, scalar_prefetch = 0 : i64, scratch_operands = 0 : i64, tpu.core_type = #tpu.core_type<tc>, window_params = [{transform_indices = @transform_0, window_bounds = array<i64: 1, 128, 1024>}, {transform_indices = @transform_1, window_bounds = array<i64: 1, 1024, 128>}, {transform_indices = @transform_2, window_bounds = array<i64: 1, 128, 128>}]} {
    %c0 = arith.constant 0 : index
    %c0_0 = arith.constant 0 : index
    %c0_1 = arith.constant 0 : index
    %0 = vector.load %arg4[%c0, %c0_0, %c0_1] : memref<1x128x1024xf32, #tpu.memory_space<vmem>>, vector<1x128x1024xf32>
    %1 = vector.shape_cast %0 : vector<1x128x1024xf32> to vector<128x1024xf32>
    %c0_2 = arith.constant 0 : index
    %c0_3 = arith.constant 0 : index
    %c0_4 = arith.constant 0 : index
    %2 = vector.load %arg5[%c0_2, %c0_3, %c0_4] : memref<1x1024x128xf32, #tpu.memory_space<vmem>>, vector<1x1024x128xf32>
    %3 = vector.shape_cast %2 : vector<1x1024x128xf32> to vector<1024x128xf32>
    %cst = arith.constant dense<0.000000e+00> : vector<128x128xf32>
    %4 = tpu.matmul %1, %3, %cst {dimension_numbers = #tpu.dot_dimension_numbers<[1], [0], [0], [1], [0, 0, 1, 1], [], []>} : vector<128x1024xf32>, vector<1024x128xf32>, vector<128x128xf32> -> vector<128x128xf32>
    %c0_5 = arith.constant 0 : index
    %c0_6 = arith.constant 0 : index
    %c0_7 = arith.constant 0 : index
    %5 = vector.load %arg6[%c0_5, %c0_6, %c0_7] : memref<1x128x128xf32, #tpu.memory_space<vmem>>, vector<1x128x128xf32>
    %6 = vector.shape_cast %5 : vector<1x128x128xf32> to vector<128x128xf32>
    %7 = vector.shape_cast %4 : vector<128x128xf32> to vector<1x128x128xf32>
    tpu.vector_store %arg6[%c0_5, %c0_6, %c0_7], %7 {strides = array<i32>} : memref<1x128x128xf32, #tpu.memory_space<vmem>>, vector<1x128x128xf32>,
    return
  }
  func.func @transform_0(%arg0: i32, %arg1: i32, %arg2: i32, %arg3: i32) -> (i32, i32, i32) {
    %c0_i32 = arith.constant 0 : i32
    return %arg0, %arg1, %arg3 : i32, i32, i32
  }
  func.func @transform_1(%arg0: i32, %arg1: i32, %arg2: i32, %arg3: i32) -> (i32, i32, i32) {
    %c0_i32 = arith.constant 0 : i32
    return %arg0, %arg3, %arg2 : i32, i32, i32
  }
  func.func @transform_2(%arg0: i32, %arg1: i32, %arg2: i32, %arg3: i32) -> (i32, i32, i32) {
    %c0_i32 = arith.constant 0 : i32
    return %arg0, %arg1, %arg2 : i32, i32, i32
  }
}

module attributes {stable_mosaic.version = 11 : i64} {
  func.func @_bn_stats_kernel(%arg0: i32, %arg1: memref<512x128xf32, #tpu.memory_space<vmem>>, %arg2: memref<1x128xf32, #tpu.memory_space<vmem>>, %arg3: memref<1x128xf32, #tpu.memory_space<vmem>>) attributes {dimension_semantics = [#tpu.dimension_semantics<arbitrary>], iteration_bounds = array<i64: 1>, scalar_prefetch = 0 : i64, scratch_operands = 0 : i64, tpu.core_type = #tpu.core_type<tc>, window_params = [{transform_indices = @transform_0, window_bounds = array<i64: 512, 128>}, {pipeline_mode = #tpu.pipeline_mode<synchronous>, transform_indices = @transform_1, window_bounds = array<i64: 1, 128>}, {pipeline_mode = #tpu.pipeline_mode<synchronous>, transform_indices = @transform_2, window_bounds = array<i64: 1, 128>}]} {
    %c0_i32 = arith.constant 0 : i32
    %0 = arith.cmpi eq, %arg0, %c0_i32 : i32
    %1 = arith.extui %0 : i1 to i32
    %c0_i32_0 = arith.constant 0 : i32
    %2 = arith.cmpi ne, %1, %c0_i32_0 : i32
    scf.if %2 {
      %cst_11 = arith.constant 0.000000e+00 : f32
      %15 = vector.broadcast %cst_11 : f32 to vector<1x128xf32>
      %c0_12 = arith.constant 0 : index
      %c0_13 = arith.constant 0 : index
      %16 = vector.load %arg2[%c0_12, %c0_13] : memref<1x128xf32, #tpu.memory_space<vmem>>, vector<1x128xf32>
      tpu.vector_store %arg2[%c0_12, %c0_13], %15 {strides = array<i32>} : memref<1x128xf32, #tpu.memory_space<vmem>>, vector<1x128xf32>,
      %cst_14 = arith.constant 0.000000e+00 : f32
      %17 = vector.broadcast %cst_14 : f32 to vector<1x128xf32>
      %c0_15 = arith.constant 0 : index
      %c0_16 = arith.constant 0 : index
      %18 = vector.load %arg3[%c0_15, %c0_16] : memref<1x128xf32, #tpu.memory_space<vmem>>, vector<1x128xf32>
      tpu.vector_store %arg3[%c0_15, %c0_16], %17 {strides = array<i32>} : memref<1x128xf32, #tpu.memory_space<vmem>>, vector<1x128xf32>,
    } else {
    }
    %c0 = arith.constant 0 : index
    %c0_1 = arith.constant 0 : index
    %3 = vector.load %arg1[%c0, %c0_1] : memref<512x128xf32, #tpu.memory_space<vmem>>, vector<512x128xf32>
    %c0_2 = arith.constant 0 : index
    %c0_3 = arith.constant 0 : index
    %4 = vector.load %arg2[%c0_2, %c0_3] : memref<1x128xf32, #tpu.memory_space<vmem>>, vector<1x128xf32>
    %cst = arith.constant dense<0.000000e+00> : vector<128xf32>
    %5 = vector.multi_reduction <add>, %3, %cst [0] : vector<512x128xf32> to vector<128xf32>
    %6 = vector.shape_cast %5 : vector<128xf32> to vector<1x128xf32>
    %7 = arith.addf %4, %6 : vector<1x128xf32>
    %c0_4 = arith.constant 0 : index
    %c0_5 = arith.constant 0 : index
    %8 = vector.load %arg2[%c0_4, %c0_5] : memref<1x128xf32, #tpu.memory_space<vmem>>, vector<1x128xf32>
    tpu.vector_store %arg2[%c0_4, %c0_5], %7 {strides = array<i32>} : memref<1x128xf32, #tpu.memory_space<vmem>>, vector<1x128xf32>,
    %c0_6 = arith.constant 0 : index
    %c0_7 = arith.constant 0 : index
    %9 = vector.load %arg3[%c0_6, %c0_7] : memref<1x128xf32, #tpu.memory_space<vmem>>, vector<1x128xf32>
    %10 = arith.mulf %3, %3 : vector<512x128xf32>
    %cst_8 = arith.constant dense<0.000000e+00> : vector<128xf32>
    %11 = vector.multi_reduction <add>, %10, %cst_8 [0] : vector<512x128xf32> to vector<128xf32>
    %12 = vector.shape_cast %11 : vector<128xf32> to vector<1x128xf32>
    %13 = arith.addf %9, %12 : vector<1x128xf32>
    %c0_9 = arith.constant 0 : index
    %c0_10 = arith.constant 0 : index
    %14 = vector.load %arg3[%c0_9, %c0_10] : memref<1x128xf32, #tpu.memory_space<vmem>>, vector<1x128xf32>
    tpu.vector_store %arg3[%c0_9, %c0_10], %13 {strides = array<i32>} : memref<1x128xf32, #tpu.memory_space<vmem>>, vector<1x128xf32>,
    return
  }
  func.func @transform_0(%arg0: i32) -> (i32, i32) {
    %c0_i32 = arith.constant 0 : i32
    %c0_i32_0 = arith.constant 0 : i32
    return %arg0, %c0_i32 : i32, i32
  }
  func.func @transform_1(%arg0: i32) -> (i32, i32) {
    %c0_i32 = arith.constant 0 : i32
    %c0_i32_0 = arith.constant 0 : i32
    %c0_i32_1 = arith.constant 0 : i32
    return %c0_i32, %c0_i32_0 : i32, i32
  }
  func.func @transform_2(%arg0: i32) -> (i32, i32) {
    %c0_i32 = arith.constant 0 : i32
    %c0_i32_0 = arith.constant 0 : i32
    %c0_i32_1 = arith.constant 0 : i32
    return %c0_i32, %c0_i32_0 : i32, i32
  }
}

module attributes {stable_mosaic.version = 11 : i64} {
  func.func @_bn_apply_kernel(%arg0: i32, %arg1: memref<512x128xf32, #tpu.memory_space<vmem>>, %arg2: memref<1x128xf32, #tpu.memory_space<vmem>>, %arg3: memref<1x128xf32, #tpu.memory_space<vmem>>, %arg4: memref<512x128xf32, #tpu.memory_space<vmem>>) attributes {dimension_semantics = [#tpu.dimension_semantics<parallel>], iteration_bounds = array<i64: 1>, scalar_prefetch = 0 : i64, scratch_operands = 0 : i64, tpu.core_type = #tpu.core_type<tc>, window_params = [{transform_indices = @transform_0, window_bounds = array<i64: 512, 128>}, {pipeline_mode = #tpu.pipeline_mode<synchronous>, transform_indices = @transform_1, window_bounds = array<i64: 1, 128>}, {pipeline_mode = #tpu.pipeline_mode<synchronous>, transform_indices = @transform_2, window_bounds = array<i64: 1, 128>}, {transform_indices = @transform_3, window_bounds = array<i64: 512, 128>}]} {
    %c0 = arith.constant 0 : index
    %c0_0 = arith.constant 0 : index
    %0 = vector.load %arg1[%c0, %c0_0] : memref<512x128xf32, #tpu.memory_space<vmem>>, vector<512x128xf32>
    %c0_1 = arith.constant 0 : index
    %c0_2 = arith.constant 0 : index
    %1 = vector.load %arg2[%c0_1, %c0_2] : memref<1x128xf32, #tpu.memory_space<vmem>>, vector<1x128xf32>
    %2 = vector.broadcast %1 : vector<1x128xf32> to vector<512x128xf32>
    %3 = arith.mulf %0, %2 : vector<512x128xf32>
    %c0_3 = arith.constant 0 : index
    %c0_4 = arith.constant 0 : index
    %4 = vector.load %arg3[%c0_3, %c0_4] : memref<1x128xf32, #tpu.memory_space<vmem>>, vector<1x128xf32>
    %5 = vector.broadcast %4 : vector<1x128xf32> to vector<512x128xf32>
    %6 = arith.addf %3, %5 : vector<512x128xf32>
    %cst = arith.constant 0.000000e+00 : f32
    %7 = vector.broadcast %cst : f32 to vector<512x128xf32>
    %8 = arith.maximumf %6, %7 : vector<512x128xf32>
    %c0_5 = arith.constant 0 : index
    %c0_6 = arith.constant 0 : index
    %9 = vector.load %arg4[%c0_5, %c0_6] : memref<512x128xf32, #tpu.memory_space<vmem>>, vector<512x128xf32>
    tpu.vector_store %arg4[%c0_5, %c0_6], %8 {strides = array<i32>} : memref<512x128xf32, #tpu.memory_space<vmem>>, vector<512x128xf32>,
    return
  }
  func.func @transform_0(%arg0: i32) -> (i32, i32) {
    %c0_i32 = arith.constant 0 : i32
    %c0_i32_0 = arith.constant 0 : i32
    return %arg0, %c0_i32 : i32, i32
  }
  func.func @transform_1(%arg0: i32) -> (i32, i32) {
    %c0_i32 = arith.constant 0 : i32
    %c0_i32_0 = arith.constant 0 : i32
    %c0_i32_1 = arith.constant 0 : i32
    return %c0_i32, %c0_i32_0 : i32, i32
  }
  func.func @transform_2(%arg0: i32) -> (i32, i32) {
    %c0_i32 = arith.constant 0 : i32
    %c0_i32_0 = arith.constant 0 : i32
    %c0_i32_1 = arith.constant 0 : i32
    return %c0_i32, %c0_i32_0 : i32, i32
  }
  func.func @transform_3(%arg0: i32) -> (i32, i32) {
    %c0_i32 = arith.constant 0 : i32
    %c0_i32_0 = arith.constant 0 : i32
    return %arg0, %c0_i32 : i32, i32
  }
}

module attributes {stable_mosaic.version = 11 : i64} {
  func.func @_matmul_kernel_noacc(%arg0: i32, %arg1: i32, %arg2: i32, %arg3: i32, %arg4: memref<1x256x512xf32, #tpu.memory_space<vmem>>, %arg5: memref<1x512x128xf32, #tpu.memory_space<vmem>>, %arg6: memref<1x256x128xf32, #tpu.memory_space<vmem>>) attributes {dimension_semantics = [#tpu.dimension_semantics<parallel>, #tpu.dimension_semantics<parallel>, #tpu.dimension_semantics<parallel>, #tpu.dimension_semantics<arbitrary>], iteration_bounds = array<i64: 4, 2, 1, 1>, scalar_prefetch = 0 : i64, scratch_operands = 0 : i64, tpu.core_type = #tpu.core_type<tc>, window_params = [{transform_indices = @transform_0, window_bounds = array<i64: 1, 256, 512>}, {transform_indices = @transform_1, window_bounds = array<i64: 1, 512, 128>}, {transform_indices = @transform_2, window_bounds = array<i64: 1, 256, 128>}]} {
    %c0 = arith.constant 0 : index
    %c0_0 = arith.constant 0 : index
    %c0_1 = arith.constant 0 : index
    %0 = vector.load %arg4[%c0, %c0_0, %c0_1] : memref<1x256x512xf32, #tpu.memory_space<vmem>>, vector<1x256x512xf32>
    %1 = vector.shape_cast %0 : vector<1x256x512xf32> to vector<256x512xf32>
    %c0_2 = arith.constant 0 : index
    %c0_3 = arith.constant 0 : index
    %c0_4 = arith.constant 0 : index
    %2 = vector.load %arg5[%c0_2, %c0_3, %c0_4] : memref<1x512x128xf32, #tpu.memory_space<vmem>>, vector<1x512x128xf32>
    %3 = vector.shape_cast %2 : vector<1x512x128xf32> to vector<512x128xf32>
    %cst = arith.constant dense<0.000000e+00> : vector<256x128xf32>
    %4 = tpu.matmul %1, %3, %cst {dimension_numbers = #tpu.dot_dimension_numbers<[1], [0], [0], [1], [0, 0, 1, 1], [], []>} : vector<256x512xf32>, vector<512x128xf32>, vector<256x128xf32> -> vector<256x128xf32>
    %c0_5 = arith.constant 0 : index
    %c0_6 = arith.constant 0 : index
    %c0_7 = arith.constant 0 : index
    %5 = vector.load %arg6[%c0_5, %c0_6, %c0_7] : memref<1x256x128xf32, #tpu.memory_space<vmem>>, vector<1x256x128xf32>
    %6 = vector.shape_cast %5 : vector<1x256x128xf32> to vector<256x128xf32>
    %7 = vector.shape_cast %4 : vector<256x128xf32> to vector<1x256x128xf32>
    tpu.vector_store %arg6[%c0_5, %c0_6, %c0_7], %7 {strides = array<i32>} : memref<1x256x128xf32, #tpu.memory_space<vmem>>, vector<1x256x128xf32>,
    return
  }
  func.func @transform_0(%arg0: i32, %arg1: i32, %arg2: i32, %arg3: i32) -> (i32, i32, i32) {
    %c0_i32 = arith.constant 0 : i32
    return %arg0, %arg1, %arg3 : i32, i32, i32
  }
  func.func @transform_1(%arg0: i32, %arg1: i32, %arg2: i32, %arg3: i32) -> (i32, i32, i32) {
    %c0_i32 = arith.constant 0 : i32
    return %arg0, %arg3, %arg2 : i32, i32, i32
  }
  func.func @transform_2(%arg0: i32, %arg1: i32, %arg2: i32, %arg3: i32) -> (i32, i32, i32) {
    %c0_i32 = arith.constant 0 : i32
    return %arg0, %arg1, %arg2 : i32, i32, i32
  }
}

module attributes {stable_mosaic.version = 11 : i64} {
  func.func @_bn_stats_kernel(%arg0: i32, %arg1: memref<512x128xf32, #tpu.memory_space<vmem>>, %arg2: memref<1x128xf32, #tpu.memory_space<vmem>>, %arg3: memref<1x128xf32, #tpu.memory_space<vmem>>) attributes {dimension_semantics = [#tpu.dimension_semantics<arbitrary>], iteration_bounds = array<i64: 2>, scalar_prefetch = 0 : i64, scratch_operands = 0 : i64, tpu.core_type = #tpu.core_type<tc>, window_params = [{transform_indices = @transform_0, window_bounds = array<i64: 512, 128>}, {pipeline_mode = #tpu.pipeline_mode<synchronous>, transform_indices = @transform_1, window_bounds = array<i64: 1, 128>}, {pipeline_mode = #tpu.pipeline_mode<synchronous>, transform_indices = @transform_2, window_bounds = array<i64: 1, 128>}]} {
    %c0_i32 = arith.constant 0 : i32
    %0 = arith.cmpi eq, %arg0, %c0_i32 : i32
    %1 = arith.extui %0 : i1 to i32
    %c0_i32_0 = arith.constant 0 : i32
    %2 = arith.cmpi ne, %1, %c0_i32_0 : i32
    scf.if %2 {
      %cst_11 = arith.constant 0.000000e+00 : f32
      %15 = vector.broadcast %cst_11 : f32 to vector<1x128xf32>
      %c0_12 = arith.constant 0 : index
      %c0_13 = arith.constant 0 : index
      %16 = vector.load %arg2[%c0_12, %c0_13] : memref<1x128xf32, #tpu.memory_space<vmem>>, vector<1x128xf32>
      tpu.vector_store %arg2[%c0_12, %c0_13], %15 {strides = array<i32>} : memref<1x128xf32, #tpu.memory_space<vmem>>, vector<1x128xf32>,
      %cst_14 = arith.constant 0.000000e+00 : f32
      %17 = vector.broadcast %cst_14 : f32 to vector<1x128xf32>
      %c0_15 = arith.constant 0 : index
      %c0_16 = arith.constant 0 : index
      %18 = vector.load %arg3[%c0_15, %c0_16] : memref<1x128xf32, #tpu.memory_space<vmem>>, vector<1x128xf32>
      tpu.vector_store %arg3[%c0_15, %c0_16], %17 {strides = array<i32>} : memref<1x128xf32, #tpu.memory_space<vmem>>, vector<1x128xf32>,
    } else {
    }
    %c0 = arith.constant 0 : index
    %c0_1 = arith.constant 0 : index
    %3 = vector.load %arg1[%c0, %c0_1] : memref<512x128xf32, #tpu.memory_space<vmem>>, vector<512x128xf32>
    %c0_2 = arith.constant 0 : index
    %c0_3 = arith.constant 0 : index
    %4 = vector.load %arg2[%c0_2, %c0_3] : memref<1x128xf32, #tpu.memory_space<vmem>>, vector<1x128xf32>
    %cst = arith.constant dense<0.000000e+00> : vector<128xf32>
    %5 = vector.multi_reduction <add>, %3, %cst [0] : vector<512x128xf32> to vector<128xf32>
    %6 = vector.shape_cast %5 : vector<128xf32> to vector<1x128xf32>
    %7 = arith.addf %4, %6 : vector<1x128xf32>
    %c0_4 = arith.constant 0 : index
    %c0_5 = arith.constant 0 : index
    %8 = vector.load %arg2[%c0_4, %c0_5] : memref<1x128xf32, #tpu.memory_space<vmem>>, vector<1x128xf32>
    tpu.vector_store %arg2[%c0_4, %c0_5], %7 {strides = array<i32>} : memref<1x128xf32, #tpu.memory_space<vmem>>, vector<1x128xf32>,
    %c0_6 = arith.constant 0 : index
    %c0_7 = arith.constant 0 : index
    %9 = vector.load %arg3[%c0_6, %c0_7] : memref<1x128xf32, #tpu.memory_space<vmem>>, vector<1x128xf32>
    %10 = arith.mulf %3, %3 : vector<512x128xf32>
    %cst_8 = arith.constant dense<0.000000e+00> : vector<128xf32>
    %11 = vector.multi_reduction <add>, %10, %cst_8 [0] : vector<512x128xf32> to vector<128xf32>
    %12 = vector.shape_cast %11 : vector<128xf32> to vector<1x128xf32>
    %13 = arith.addf %9, %12 : vector<1x128xf32>
    %c0_9 = arith.constant 0 : index
    %c0_10 = arith.constant 0 : index
    %14 = vector.load %arg3[%c0_9, %c0_10] : memref<1x128xf32, #tpu.memory_space<vmem>>, vector<1x128xf32>
    tpu.vector_store %arg3[%c0_9, %c0_10], %13 {strides = array<i32>} : memref<1x128xf32, #tpu.memory_space<vmem>>, vector<1x128xf32>,
    return
  }
  func.func @transform_0(%arg0: i32) -> (i32, i32) {
    %c0_i32 = arith.constant 0 : i32
    %c0_i32_0 = arith.constant 0 : i32
    return %arg0, %c0_i32 : i32, i32
  }
  func.func @transform_1(%arg0: i32) -> (i32, i32) {
    %c0_i32 = arith.constant 0 : i32
    %c0_i32_0 = arith.constant 0 : i32
    %c0_i32_1 = arith.constant 0 : i32
    return %c0_i32, %c0_i32_0 : i32, i32
  }
  func.func @transform_2(%arg0: i32) -> (i32, i32) {
    %c0_i32 = arith.constant 0 : i32
    %c0_i32_0 = arith.constant 0 : i32
    %c0_i32_1 = arith.constant 0 : i32
    return %c0_i32, %c0_i32_0 : i32, i32
  }
}

module attributes {stable_mosaic.version = 11 : i64} {
  func.func @_bn_apply_kernel(%arg0: i32, %arg1: memref<512x128xf32, #tpu.memory_space<vmem>>, %arg2: memref<1x128xf32, #tpu.memory_space<vmem>>, %arg3: memref<1x128xf32, #tpu.memory_space<vmem>>, %arg4: memref<512x128xf32, #tpu.memory_space<vmem>>) attributes {dimension_semantics = [#tpu.dimension_semantics<parallel>], iteration_bounds = array<i64: 2>, scalar_prefetch = 0 : i64, scratch_operands = 0 : i64, tpu.core_type = #tpu.core_type<tc>, window_params = [{transform_indices = @transform_0, window_bounds = array<i64: 512, 128>}, {pipeline_mode = #tpu.pipeline_mode<synchronous>, transform_indices = @transform_1, window_bounds = array<i64: 1, 128>}, {pipeline_mode = #tpu.pipeline_mode<synchronous>, transform_indices = @transform_2, window_bounds = array<i64: 1, 128>}, {transform_indices = @transform_3, window_bounds = array<i64: 512, 128>}]} {
    %c0 = arith.constant 0 : index
    %c0_0 = arith.constant 0 : index
    %0 = vector.load %arg1[%c0, %c0_0] : memref<512x128xf32, #tpu.memory_space<vmem>>, vector<512x128xf32>
    %c0_1 = arith.constant 0 : index
    %c0_2 = arith.constant 0 : index
    %1 = vector.load %arg2[%c0_1, %c0_2] : memref<1x128xf32, #tpu.memory_space<vmem>>, vector<1x128xf32>
    %2 = vector.broadcast %1 : vector<1x128xf32> to vector<512x128xf32>
    %3 = arith.mulf %0, %2 : vector<512x128xf32>
    %c0_3 = arith.constant 0 : index
    %c0_4 = arith.constant 0 : index
    %4 = vector.load %arg3[%c0_3, %c0_4] : memref<1x128xf32, #tpu.memory_space<vmem>>, vector<1x128xf32>
    %5 = vector.broadcast %4 : vector<1x128xf32> to vector<512x128xf32>
    %6 = arith.addf %3, %5 : vector<512x128xf32>
    %cst = arith.constant 0.000000e+00 : f32
    %7 = vector.broadcast %cst : f32 to vector<512x128xf32>
    %8 = arith.maximumf %6, %7 : vector<512x128xf32>
    %c0_5 = arith.constant 0 : index
    %c0_6 = arith.constant 0 : index
    %9 = vector.load %arg4[%c0_5, %c0_6] : memref<512x128xf32, #tpu.memory_space<vmem>>, vector<512x128xf32>
    tpu.vector_store %arg4[%c0_5, %c0_6], %8 {strides = array<i32>} : memref<512x128xf32, #tpu.memory_space<vmem>>, vector<512x128xf32>,
    return
  }
  func.func @transform_0(%arg0: i32) -> (i32, i32) {
    %c0_i32 = arith.constant 0 : i32
    %c0_i32_0 = arith.constant 0 : i32
    return %arg0, %c0_i32 : i32, i32
  }
  func.func @transform_1(%arg0: i32) -> (i32, i32) {
    %c0_i32 = arith.constant 0 : i32
    %c0_i32_0 = arith.constant 0 : i32
    %c0_i32_1 = arith.constant 0 : i32
    return %c0_i32, %c0_i32_0 : i32, i32
  }
  func.func @transform_2(%arg0: i32) -> (i32, i32) {
    %c0_i32 = arith.constant 0 : i32
    %c0_i32_0 = arith.constant 0 : i32
    %c0_i32_1 = arith.constant 0 : i32
    return %c0_i32, %c0_i32_0 : i32, i32
  }
  func.func @transform_3(%arg0: i32) -> (i32, i32) {
    %c0_i32 = arith.constant 0 : i32
    %c0_i32_0 = arith.constant 0 : i32
    return %arg0, %c0_i32 : i32, i32
  }
}

module attributes {stable_mosaic.version = 11 : i64} {
  func.func @_matmul_kernel_noacc(%arg0: i32, %arg1: i32, %arg2: i32, %arg3: i32, %arg4: memref<1x256x256xf32, #tpu.memory_space<vmem>>, %arg5: memref<1x256x128xf32, #tpu.memory_space<vmem>>, %arg6: memref<1x256x128xf32, #tpu.memory_space<vmem>>) attributes {dimension_semantics = [#tpu.dimension_semantics<parallel>, #tpu.dimension_semantics<parallel>, #tpu.dimension_semantics<parallel>, #tpu.dimension_semantics<arbitrary>], iteration_bounds = array<i64: 4, 8, 1, 1>, scalar_prefetch = 0 : i64, scratch_operands = 0 : i64, tpu.core_type = #tpu.core_type<tc>, window_params = [{transform_indices = @transform_0, window_bounds = array<i64: 1, 256, 256>}, {transform_indices = @transform_1, window_bounds = array<i64: 1, 256, 128>}, {transform_indices = @transform_2, window_bounds = array<i64: 1, 256, 128>}]} {
    %c0 = arith.constant 0 : index
    %c0_0 = arith.constant 0 : index
    %c0_1 = arith.constant 0 : index
    %0 = vector.load %arg4[%c0, %c0_0, %c0_1] : memref<1x256x256xf32, #tpu.memory_space<vmem>>, vector<1x256x256xf32>
    %1 = vector.shape_cast %0 : vector<1x256x256xf32> to vector<256x256xf32>
    %c0_2 = arith.constant 0 : index
    %c0_3 = arith.constant 0 : index
    %c0_4 = arith.constant 0 : index
    %2 = vector.load %arg5[%c0_2, %c0_3, %c0_4] : memref<1x256x128xf32, #tpu.memory_space<vmem>>, vector<1x256x128xf32>
    %3 = vector.shape_cast %2 : vector<1x256x128xf32> to vector<256x128xf32>
    %cst = arith.constant dense<0.000000e+00> : vector<256x128xf32>
    %4 = tpu.matmul %1, %3, %cst {dimension_numbers = #tpu.dot_dimension_numbers<[1], [0], [0], [1], [0, 0, 1, 1], [], []>} : vector<256x256xf32>, vector<256x128xf32>, vector<256x128xf32> -> vector<256x128xf32>
    %5 = math.tanh %4 : vector<256x128xf32>
    %c0_5 = arith.constant 0 : index
    %c0_6 = arith.constant 0 : index
    %c0_7 = arith.constant 0 : index
    %6 = vector.load %arg6[%c0_5, %c0_6, %c0_7] : memref<1x256x128xf32, #tpu.memory_space<vmem>>, vector<1x256x128xf32>
    %7 = vector.shape_cast %6 : vector<1x256x128xf32> to vector<256x128xf32>
    %8 = vector.shape_cast %5 : vector<256x128xf32> to vector<1x256x128xf32>
    tpu.vector_store %arg6[%c0_5, %c0_6, %c0_7], %8 {strides = array<i32>} : memref<1x256x128xf32, #tpu.memory_space<vmem>>, vector<1x256x128xf32>,
    return
  }
  func.func @transform_0(%arg0: i32, %arg1: i32, %arg2: i32, %arg3: i32) -> (i32, i32, i32) {
    %c0_i32 = arith.constant 0 : i32
    return %arg0, %arg1, %arg3 : i32, i32, i32
  }
  func.func @transform_1(%arg0: i32, %arg1: i32, %arg2: i32, %arg3: i32) -> (i32, i32, i32) {
    %c0_i32 = arith.constant 0 : i32
    return %arg0, %arg3, %arg2 : i32, i32, i32
  }
  func.func @transform_2(%arg0: i32, %arg1: i32, %arg2: i32, %arg3: i32) -> (i32, i32, i32) {
    %c0_i32 = arith.constant 0 : i32
    return %arg0, %arg1, %arg2 : i32, i32, i32
  }
}

</mosaic_0001>

<llo_original>
// kernel: squeeze.3
$region0: #{squeeze.3}
  %s0 = inlined_call_operand.vmem [shape: f32[1,2,8192], index: 0, kind: input, shape index: {}]
  %s1 = inlined_call_operand.vmem [shape: f32[32,512], index: 1, kind: output, shape index: {}]
  $region1: #{squeeze.3} parent=0
    #allocation0 [shape = 'u8[262144]{0}', space=vmem, size = 0x40000, scoped, tag = 'scoped mem for input reshape']
    %s3 = ssub.s32 4, 1
    %s4 = scalar_lea.vmem %s0, 126
    %v5 = vld [vmem:[%s4] sm:%s3]
    %s6 = scalar_lea.vmem [#allocation0], 504
    %7 = vst [vmem:[%s6] sm:%s3] %v5
    %s8 = scalar_lea.vmem %s0, 124
    %v9 = vld [vmem:[%s8] sm:%s3]
    %s10 = scalar_lea.vmem [#allocation0], 496
    %11 = vst [vmem:[%s10] sm:%s3] %v9
    %s12 = scalar_lea.vmem %s0, 122
    %v13 = vld [vmem:[%s12] sm:%s3]
    %s14 = scalar_lea.vmem [#allocation0], 488
    %15 = vst [vmem:[%s14] sm:%s3] %v13
    %s16 = scalar_lea.vmem %s0, 120
    %v17 = vld [vmem:[%s16] sm:%s3]
    %s18 = scalar_lea.vmem [#allocation0], 480
    %19 = vst [vmem:[%s18] sm:%s3] %v17
    %s20 = scalar_lea.vmem %s0, 118
    %v21 = vld [vmem:[%s20] sm:%s3]
    %s22 = scalar_lea.vmem [#allocation0], 472
    %23 = vst [vmem:[%s22] sm:%s3] %v21
    %s24 = scalar_lea.vmem %s0, 116
    %v25 = vld [vmem:[%s24] sm:%s3]
    %s26 = scalar_lea.vmem [#allocation0], 464
    %27 = vst [vmem:[%s26] sm:%s3] %v25
    %s28 = scalar_lea.vmem %s0, 114
    %v29 = vld [vmem:[%s28] sm:%s3]
    %s30 = scalar_lea.vmem [#allocation0], 456
    %31 = vst [vmem:[%s30] sm:%s3] %v29
    %s32 = scalar_lea.vmem %s0, 112
    %v33 = vld [vmem:[%s32] sm:%s3]
    %s34 = scalar_lea.vmem [#allocation0], 448
    %35 = vst [vmem:[%s34] sm:%s3] %v33
    %s36 = scalar_lea.vmem %s0, 110
    %v37 = vld [vmem:[%s36] sm:%s3]
    %s38 = scalar_lea.vmem [#allocation0], 440
    %39 = vst [vmem:[%s38] sm:%s3] %v37
    %s40 = scalar_lea.vmem %s0, 108
    %v41 = vld [vmem:[%s40] sm:%s3]
    %s42 = scalar_lea.vmem [#allocation0], 432
    %43 = vst [vmem:[%s42] sm:%s3] %v41
    %s44 = scalar_lea.vmem %s0, 106
    %v45 = vld [vmem:[%s44] sm:%s3]
    %s46 = scalar_lea.vmem [#allocation0], 424
    %47 = vst [vmem:[%s46] sm:%s3] %v45
    %s48 = scalar_lea.vmem %s0, 104
    %v49 = vld [vmem:[%s48] sm:%s3]
    %s50 = scalar_lea.vmem [#allocation0], 416
    %51 = vst [vmem:[%s50] sm:%s3] %v49
    %s52 = scalar_lea.vmem %s0, 102
    %v53 = vld [vmem:[%s52] sm:%s3]
    %s54 = scalar_lea.vmem [#allocation0], 408
    %55 = vst [vmem:[%s54] sm:%s3] %v53
    %s56 = scalar_lea.vmem %s0, 100
    %v57 = vld [vmem:[%s56] sm:%s3]
    %s58 = scalar_lea.vmem [#allocation0], 400
    %59 = vst [vmem:[%s58] sm:%s3] %v57
    %s60 = scalar_lea.vmem %s0, 98
    %v61 = vld [vmem:[%s60] sm:%s3]
    %s62 = scalar_lea.vmem [#allocation0], 392
    %63 = vst [vmem:[%s62] sm:%s3] %v61
    %s64 = scalar_lea.vmem %s0, 96
    %v65 = vld [vmem:[%s64] sm:%s3]
    %s66 = scalar_lea.vmem [#allocation0], 384
    %67 = vst [vmem:[%s66] sm:%s3] %v65
    %s68 = scalar_lea.vmem %s0, 94
    %v69 = vld [vmem:[%s68] sm:%s3]
    %s70 = scalar_lea.vmem [#allocation0], 376
    %71 = vst [vmem:[%s70] sm:%s3] %v69
    %s72 = scalar_lea.vmem %s0, 92
    %v73 = vld [vmem:[%s72] sm:%s3]
    %s74 = scalar_lea.vmem [#allocation0], 368
    %75 = vst [vmem:[%s74] sm:%s3] %v73
    %s76 = scalar_lea.vmem %s0, 90
    %v77 = vld [vmem:[%s76] sm:%s3]
    %s78 = scalar_lea.vmem [#allocation0], 360
    %79 = vst [vmem:[%s78] sm:%s3] %v77
    %s80 = scalar_lea.vmem %s0, 88
    %v81 = vld [vmem:[%s80] sm:%s3]
    %s82 = scalar_lea.vmem [#allocation0], 352
    %83 = vst [vmem:[%s82] sm:%s3] %v81
    %s84 = scalar_lea.vmem %s0, 86
    %v85 = vld [vmem:[%s84] sm:%s3]
    %s86 = scalar_lea.vmem [#allocation0], 344
    %87 = vst [vmem:[%s86] sm:%s3] %v85
    %s88 = scalar_lea.vmem %s0, 84
    %v89 = vld [vmem:[%s88] sm:%s3]
    %s90 = scalar_lea.vmem [#allocation0], 336
    %91 = vst [vmem:[%s90] sm:%s3] %v89
    %s92 = scalar_lea.vmem %s0, 82
    %v93 = vld [vmem:[%s92] sm:%s3]
    %s94 = scalar_lea.vmem [#allocation0], 328
    %95 = vst [vmem:[%s94] sm:%s3] %v93
    %s96 = scalar_lea.vmem %s0, 80
    %v97 = vld [vmem:[%s96] sm:%s3]
    %s98 = scalar_lea.vmem [#allocation0], 320
    %99 = vst [vmem:[%s98] sm:%s3] %v97
    %s100 = scalar_lea.vmem %s0, 78
    %v101 = vld [vmem:[%s100] sm:%s3]
    %s102 = scalar_lea.vmem [#allocation0], 312
    %103 = vst [vmem:[%s102] sm:%s3] %v101
    %s104 = scalar_lea.vmem %s0, 76
    %v105 = vld [vmem:[%s104] sm:%s3]
    %s106 = scalar_lea.vmem [#allocation0], 304
    %107 = vst [vmem:[%s106] sm:%s3] %v105
    %s108 = scalar_lea.vmem %s0, 74
    %v109 = vld [vmem:[%s108] sm:%s3]
    %s110 = scalar_lea.vmem [#allocation0], 296
    %111 = vst [vmem:[%s110] sm:%s3] %v109
    %s112 = scalar_lea.vmem %s0, 72
    %v113 = vld [vmem:[%s112] sm:%s3]
    %s114 = scalar_lea.vmem [#allocation0], 288
    %115 = vst [vmem:[%s114] sm:%s3] %v113
    %s116 = scalar_lea.vmem %s0, 70
    %v117 = vld [vmem:[%s116] sm:%s3]
    %s118 = scalar_lea.vmem [#allocation0], 280
    %119 = vst [vmem:[%s118] sm:%s3] %v117
    %s120 = scalar_lea.vmem %s0, 68
    %v121 = vld [vmem:[%s120] sm:%s3]
    %s122 = scalar_lea.vmem [#allocation0], 272
    %123 = vst [vmem:[%s122] sm:%s3] %v121
    %s124 = scalar_lea.vmem %s0, 66
    %v125 = vld [vmem:[%s124] sm:%s3]
    %s126 = scalar_lea.vmem [#allocation0], 264
    %127 = vst [vmem:[%s126] sm:%s3] %v125
    %s128 = scalar_lea.vmem %s0, 64
    %v129 = vld [vmem:[%s128] sm:%s3]
    %s130 = scalar_lea.vmem [#allocation0], 256
    %131 = vst [vmem:[%s130] sm:%s3] %v129
    %s132 = scalar_lea.vmem %s0, 62
    %v133 = vld [vmem:[%s132] sm:%s3]
    %s134 = scalar_lea.vmem [#allocation0], 248
    %135 = vst [vmem:[%s134] sm:%s3] %v133
    %s136 = scalar_lea.vmem %s0, 60
    %v137 = vld [vmem:[%s136] sm:%s3]
    %s138 = scalar_lea.vmem [#allocation0], 240
    %139 = vst [vmem:[%s138] sm:%s3] %v137
    %s140 = scalar_lea.vmem %s0, 58
    %v141 = vld [vmem:[%s140] sm:%s3]
    %s142 = scalar_lea.vmem [#allocation0], 232
    %143 = vst [vmem:[%s142] sm:%s3] %v141
    %s144 = scalar_lea.vmem %s0, 56
    %v145 = vld [vmem:[%s144] sm:%s3]
    %s146 = scalar_lea.vmem [#allocation0], 224
    %147 = vst [vmem:[%s146] sm:%s3] %v145
    %s148 = scalar_lea.vmem %s0, 54
    %v149 = vld [vmem:[%s148] sm:%s3]
    %s150 = scalar_lea.vmem [#allocation0], 216
    %151 = vst [vmem:[%s150] sm:%s3] %v149
    %s152 = scalar_lea.vmem %s0, 52
    %v153 = vld [vmem:[%s152] sm:%s3]
    %s154 = scalar_lea.vmem [#allocation0], 208
    %155 = vst [vmem:[%s154] sm:%s3] %v153
    %s156 = scalar_lea.vmem %s0, 50
    %v157 = vld [vmem:[%s156] sm:%s3]
    %s158 = scalar_lea.vmem [#allocation0], 200
    %159 = vst [vmem:[%s158] sm:%s3] %v157
    %s160 = scalar_lea.vmem %s0, 48
    %v161 = vld [vmem:[%s160] sm:%s3]
    %s162 = scalar_lea.vmem [#allocation0], 192
    %163 = vst [vmem:[%s162] sm:%s3] %v161
    %s164 = scalar_lea.vmem %s0, 46
    %v165 = vld [vmem:[%s164] sm:%s3]
    %s166 = scalar_lea.vmem [#allocation0], 184
    %167 = vst [vmem:[%s166] sm:%s3] %v165
    %s168 = scalar_lea.vmem %s0, 44
    %v169 = vld [vmem:[%s168] sm:%s3]
    %s170 = scalar_lea.vmem [#allocation0], 176
    %171 = vst [vmem:[%s170] sm:%s3] %v169
    %s172 = scalar_lea.vmem %s0, 42
    %v173 = vld [vmem:[%s172] sm:%s3]
    %s174 = scalar_lea.vmem [#allocation0], 168
    %175 = vst [vmem:[%s174] sm:%s3] %v173
    %s176 = scalar_lea.vmem %s0, 40
    %v177 = vld [vmem:[%s176] sm:%s3]
    %s178 = scalar_lea.vmem [#allocation0], 160
    %179 = vst [vmem:[%s178] sm:%s3] %v177
    %s180 = scalar_lea.vmem %s0, 38
    %v181 = vld [vmem:[%s180] sm:%s3]
    %s182 = scalar_lea.vmem [#allocation0], 152
    %183 = vst [vmem:[%s182] sm:%s3] %v181
    %s184 = scalar_lea.vmem %s0, 36
    %v185 = vld [vmem:[%s184] sm:%s3]
    %s186 = scalar_lea.vmem [#allocation0], 144
    %187 = vst [vmem:[%s186] sm:%s3] %v185
    %s188 = scalar_lea.vmem %s0, 34
    %v189 = vld [vmem:[%s188] sm:%s3]
    %s190 = scalar_lea.vmem [#allocation0], 136
    %191 = vst [vmem:[%s190] sm:%s3] %v189
    %s192 = scalar_lea.vmem %s0, 32
    %v193 = vld [vmem:[%s192] sm:%s3]
    %s194 = scalar_lea.vmem [#allocation0], 128
    %195 = vst [vmem:[%s194] sm:%s3] %v193
    %s196 = scalar_lea.vmem %s0, 30
    %v197 = vld [vmem:[%s196] sm:%s3]
    %s198 = scalar_lea.vmem [#allocation0], 120
    %199 = vst [vmem:[%s198] sm:%s3] %v197
    %s200 = scalar_lea.vmem %s0, 28
    %v201 = vld [vmem:[%s200] sm:%s3]
    %s202 = scalar_lea.vmem [#allocation0], 112
    %203 = vst [vmem:[%s202] sm:%s3] %v201
    %s204 = scalar_lea.vmem %s0, 26
    %v205 = vld [vmem:[%s204] sm:%s3]
    %s206 = scalar_lea.vmem [#allocation0], 104
    %207 = vst [vmem:[%s206] sm:%s3] %v205
    %s208 = scalar_lea.vmem %s0, 24
    %v209 = vld [vmem:[%s208] sm:%s3]
    %s210 = scalar_lea.vmem [#allocation0], 96
    %211 = vst [vmem:[%s210] sm:%s3] %v209
    %s212 = scalar_lea.vmem %s0, 22
    %v213 = vld [vmem:[%s212] sm:%s3]
    %s214 = scalar_lea.vmem [#allocation0], 88
    %215 = vst [vmem:[%s214] sm:%s3] %v213
    %s216 = scalar_lea.vmem %s0, 20
    %v217 = vld [vmem:[%s216] sm:%s3]
    %s218 = scalar_lea.vmem [#allocation0], 80
    %219 = vst [vmem:[%s218] sm:%s3] %v217
    %s220 = scalar_lea.vmem %s0, 18
    %v221 = vld [vmem:[%s220] sm:%s3]
    %s222 = scalar_lea.vmem [#allocation0], 72
    %223 = vst [vmem:[%s222] sm:%s3] %v221
    %s224 = scalar_lea.vmem %s0, 16
    %v225 = vld [vmem:[%s224] sm:%s3]
    %s226 = scalar_lea.vmem [#allocation0], 64
    %227 = vst [vmem:[%s226] sm:%s3] %v225
    %s228 = scalar_lea.vmem %s0, 14
    %v229 = vld [vmem:[%s228] sm:%s3]
    %s230 = scalar_lea.vmem [#allocation0], 56
    %231 = vst [vmem:[%s230] sm:%s3] %v229
    %s232 = scalar_lea.vmem %s0, 12
    %v233 = vld [vmem:[%s232] sm:%s3]
    %s234 = scalar_lea.vmem [#allocation0], 48
    %235 = vst [vmem:[%s234] sm:%s3] %v233
    %s236 = scalar_lea.vmem %s0, 10
    %v237 = vld [vmem:[%s236] sm:%s3]
    %s238 = scalar_lea.vmem [#allocation0], 40
    %239 = vst [vmem:[%s238] sm:%s3] %v237
    %s240 = scalar_lea.vmem %s0, 8
    %v241 = vld [vmem:[%s240] sm:%s3]
    %s242 = scalar_lea.vmem [#allocation0], 32
    %243 = vst [vmem:[%s242] sm:%s3] %v241
    %s244 = scalar_lea.vmem %s0, 6
    %v245 = vld [vmem:[%s244] sm:%s3]
    %s246 = scalar_lea.vmem [#allocation0], 24
    %247 = vst [vmem:[%s246] sm:%s3] %v245
    %s248 = scalar_lea.vmem %s0, 4
    %v249 = vld [vmem:[%s248] sm:%s3]
    %s250 = scalar_lea.vmem [#allocation0], 16
    %251 = vst [vmem:[%s250] sm:%s3] %v249
    %s252 = scalar_lea.vmem %s0, 2
    %v253 = vld [vmem:[%s252] sm:%s3]
    %s254 = scalar_lea.vmem [#allocation0], 8
    %255 = vst [vmem:[%s254] sm:%s3] %v253
    %v256 = vld [vmem:[%s0] sm:%s3]
    %257 = vst [vmem:[#allocation0] sm:%s3] %v256
    %v258 = vld [vmem:[#allocation0] sm:$0x3]
    %259 = vst [vmem:[%s1] sm:$0x1] %v258
    %s260 = scalar_lea.vmem %s1, 63
    %261 = vst [vmem:[%s260] sm:$0x2] %v258
    %s262 = scalar_lea.vmem [#allocation0], 8
    %v263 = vld [vmem:[%s262] sm:$0x3]
    %s264 = scalar_lea.vmem %s1, 8
    %265 = vst [vmem:[%s264] sm:$0x1] %v263
    %s266 = scalar_lea.vmem %s1, 71
    %267 = vst [vmem:[%s266] sm:$0x2] %v263
    %s268 = scalar_lea.vmem [#allocation0], 16
    %v269 = vld [vmem:[%s268] sm:$0x3]
    %s270 = scalar_lea.vmem %s1, 16
    %271 = vst [vmem:[%s270] sm:$0x1] %v269
    %s272 = scalar_lea.vmem %s1, 79
    %273 = vst [vmem:[%s272] sm:$0x2] %v269
    %s274 = scalar_lea.vmem [#allocation0], 24
    %v275 = vld [vmem:[%s274] sm:$0x3]
    %s276 = scalar_lea.vmem %s1, 24
    %277 = vst [vmem:[%s276] sm:$0x1] %v275
    %s278 = scalar_lea.vmem %s1, 87
    %279 = vst [vmem:[%s278] sm:$0x2] %v275
    %s280 = scalar_lea.vmem [#allocation0], 32
    %v281 = vld [vmem:[%s280] sm:$0x3]
    %s282 = scalar_lea.vmem %s1, 1
    %283 = vst [vmem:[%s282] sm:$0x1] %v281
    %s284 = scalar_lea.vmem %s1, 64
    %285 = vst [vmem:[%s284] sm:$0x2] %v281
    %s286 = scalar_lea.vmem [#allocation0], 40
    %v287 = vld [vmem:[%s286] sm:$0x3]
    %s288 = scalar_lea.vmem %s1, 9
    %289 = vst [vmem:[%s288] sm:$0x1] %v287
    %s290 = scalar_lea.vmem %s1, 72
    %291 = vst [vmem:[%s290] sm:$0x2] %v287
    %s292 = scalar_lea.vmem [#allocation0], 48
    %v293 = vld [vmem:[%s292] sm:$0x3]
    %s294 = scalar_lea.vmem %s1, 17
    %295 = vst [vmem:[%s294] sm:$0x1] %v293
    %s296 = scalar_lea.vmem %s1, 80
    %297 = vst [vmem:[%s296] sm:$0x2] %v293
    %s298 = scalar_lea.vmem [#allocation0], 56
    %v299 = vld [vmem:[%s298] sm:$0x3]
    %s300 = scalar_lea.vmem %s1, 25
    %301 = vst [vmem:[%s300] sm:$0x1] %v299
    %s302 = scalar_lea.vmem %s1, 88
    %303 = vst [vmem:[%s302] sm:$0x2] %v299
    %s304 = scalar_lea.vmem [#allocation0], 64
    %v305 = vld [vmem:[%s304] sm:$0x3]
    %s306 = scalar_lea.vmem %s1, 2
    %307 = vst [vmem:[%s306] sm:$0x1] %v305
    %s308 = scalar_lea.vmem %s1, 65
    %309 = vst [vmem:[%s308] sm:$0x2] %v305
    %s310 = scalar_lea.vmem [#allocation0], 72
    %v311 = vld [vmem:[%s310] sm:$0x3]
    %s312 = scalar_lea.vmem %s1, 10
    %313 = vst [vmem:[%s312] sm:$0x1] %v311
    %s314 = scalar_lea.vmem %s1, 73
    %315 = vst [vmem:[%s314] sm:$0x2] %v311
    %s316 = scalar_lea.vmem [#allocation0], 80
    %v317 = vld [vmem:[%s316] sm:$0x3]
    %s318 = scalar_lea.vmem %s1, 18
    %319 = vst [vmem:[%s318] sm:$0x1] %v317
    %s320 = scalar_lea.vmem %s1, 81
    %321 = vst [vmem:[%s320] sm:$0x2] %v317
    %s322 = scalar_lea.vmem [#allocation0], 88
    %v323 = vld [vmem:[%s322] sm:$0x3]
    %s324 = scalar_lea.vmem %s1, 26
    %325 = vst [vmem:[%s324] sm:$0x1] %v323
    %s326 = scalar_lea.vmem %s1, 89
    %327 = vst [vmem:[%s326] sm:$0x2] %v323
    %s328 = scalar_lea.vmem [#allocation0], 96
    %v329 = vld [vmem:[%s328] sm:$0x3]
    %s330 = scalar_lea.vmem %s1, 3
    %331 = vst [vmem:[%s330] sm:$0x1] %v329
    %s332 = scalar_lea.vmem %s1, 66
    %333 = vst [vmem:[%s332] sm:$0x2] %v329
    %s334 = scalar_lea.vmem [#allocation0], 104
    %v335 = vld [vmem:[%s334] sm:$0x3]
    %s336 = scalar_lea.vmem %s1, 11
    %337 = vst [vmem:[%s336] sm:$0x1] %v335
    %s338 = scalar_lea.vmem %s1, 74
    %339 = vst [vmem:[%s338] sm:$0x2] %v335
    %s340 = scalar_lea.vmem [#allocation0], 112
    %v341 = vld [vmem:[%s340] sm:$0x3]
    %s342 = scalar_lea.vmem %s1, 19
    %343 = vst [vmem:[%s342] sm:$0x1] %v341
    %s344 = scalar_lea.vmem %s1, 82
    %345 = vst [vmem:[%s344] sm:$0x2] %v341
    %s346 = scalar_lea.vmem [#allocation0], 120
    %v347 = vld [vmem:[%s346] sm:$0x3]
    %s348 = scalar_lea.vmem %s1, 27
    %349 = vst [vmem:[%s348] sm:$0x1] %v347
    %s350 = scalar_lea.vmem %s1, 90
    %351 = vst [vmem:[%s350] sm:$0x2] %v347
    %s352 = scalar_lea.vmem [#allocation0], 128
    %v353 = vld [vmem:[%s352] sm:$0x3]
    %s354 = scalar_lea.vmem %s1, 4
    %355 = vst [vmem:[%s354] sm:$0x1] %v353
    %s356 = scalar_lea.vmem %s1, 67
    %357 = vst [vmem:[%s356] sm:$0x2] %v353
    %s358 = scalar_lea.vmem [#allocation0], 136
    %v359 = vld [vmem:[%s358] sm:$0x3]
    %s360 = scalar_lea.vmem %s1, 12
    %361 = vst [vmem:[%s360] sm:$0x1] %v359
    %s362 = scalar_lea.vmem %s1, 75
    %363 = vst [vmem:[%s362] sm:$0x2] %v359
    %s364 = scalar_lea.vmem [#allocation0], 144
    %v365 = vld [vmem:[%s364] sm:$0x3]
    %s366 = scalar_lea.vmem %s1, 20
    %367 = vst [vmem:[%s366] sm:$0x1] %v365
    %s368 = scalar_lea.vmem %s1, 83
    %369 = vst [vmem:[%s368] sm:$0x2] %v365
    %s370 = scalar_lea.vmem [#allocation0], 152
    %v371 = vld [vmem:[%s370] sm:$0x3]
    %s372 = scalar_lea.vmem %s1, 28
    %373 = vst [vmem:[%s372] sm:$0x1] %v371
    %s374 = scalar_lea.vmem %s1, 91
    %375 = vst [vmem:[%s374] sm:$0x2] %v371
    %s376 = scalar_lea.vmem [#allocation0], 160
    %v377 = vld [vmem:[%s376] sm:$0x3]
    %s378 = scalar_lea.vmem %s1, 5
    %379 = vst [vmem:[%s378] sm:$0x1] %v377
    %s380 = scalar_lea.vmem %s1, 68
    %381 = vst [vmem:[%s380] sm:$0x2] %v377
    %s382 = scalar_lea.vmem [#allocation0], 168
    %v383 = vld [vmem:[%s382] sm:$0x3]
    %s384 = scalar_lea.vmem %s1, 13
    %385 = vst [vmem:[%s384] sm:$0x1] %v383
    %s386 = scalar_lea.vmem %s1, 76
    %387 = vst [vmem:[%s386] sm:$0x2] %v383
    %s388 = scalar_lea.vmem [#allocation0], 176
    %v389 = vld [vmem:[%s388] sm:$0x3]
    %s390 = scalar_lea.vmem %s1, 21
    %391 = vst [vmem:[%s390] sm:$0x1] %v389
    %s392 = scalar_lea.vmem %s1, 84
    %393 = vst [vmem:[%s392] sm:$0x2] %v389
    %s394 = scalar_lea.vmem [#allocation0], 184
    %v395 = vld [vmem:[%s394] sm:$0x3]
    %s396 = scalar_lea.vmem %s1, 29
    %397 = vst [vmem:[%s396] sm:$0x1] %v395
    %s398 = scalar_lea.vmem %s1, 92
    %399 = vst [vmem:[%s398] sm:$0x2] %v395
    %s400 = scalar_lea.vmem [#allocation0], 192
    %v401 = vld [vmem:[%s400] sm:$0x3]
    %s402 = scalar_lea.vmem %s1, 6
    %403 = vst [vmem:[%s402] sm:$0x1] %v401
    %s404 = scalar_lea.vmem %s1, 69
    %405 = vst [vmem:[%s404] sm:$0x2] %v401
    %s406 = scalar_lea.vmem [#allocation0], 200
    %v407 = vld [vmem:[%s406] sm:$0x3]
    %s408 = scalar_lea.vmem %s1, 14
    %409 = vst [vmem:[%s408] sm:$0x1] %v407
    %s410 = scalar_lea.vmem %s1, 77
    %411 = vst [vmem:[%s410] sm:$0x2] %v407
    %s412 = scalar_lea.vmem [#allocation0], 208
    %v413 = vld [vmem:[%s412] sm:$0x3]
    %s414 = scalar_lea.vmem %s1, 22
    %415 = vst [vmem:[%s414] sm:$0x1] %v413
    %s416 = scalar_lea.vmem %s1, 85
    %417 = vst [vmem:[%s416] sm:$0x2] %v413
    %s418 = scalar_lea.vmem [#allocation0], 216
    %v419 = vld [vmem:[%s418] sm:$0x3]
    %s420 = scalar_lea.vmem %s1, 30
    %421 = vst [vmem:[%s420] sm:$0x1] %v419
    %s422 = scalar_lea.vmem %s1, 93
    %423 = vst [vmem:[%s422] sm:$0x2] %v419
    %s424 = scalar_lea.vmem [#allocation0], 224
    %v425 = vld [vmem:[%s424] sm:$0x3]
    %s426 = scalar_lea.vmem %s1, 7
    %427 = vst [vmem:[%s426] sm:$0x1] %v425
    %s428 = scalar_lea.vmem %s1, 70
    %429 = vst [vmem:[%s428] sm:$0x2] %v425
    %s430 = scalar_lea.vmem [#allocation0], 232
    %v431 = vld [vmem:[%s430] sm:$0x3]
    %s432 = scalar_lea.vmem %s1, 15
    %433 = vst [vmem:[%s432] sm:$0x1] %v431
    %s434 = scalar_lea.vmem %s1, 78
    %435 = vst [vmem:[%s434] sm:$0x2] %v431
    %s436 = scalar_lea.vmem [#allocation0], 240
    %v437 = vld [vmem:[%s436] sm:$0x3]
    %s438 = scalar_lea.vmem %s1, 23
    %439 = vst [vmem:[%s438] sm:$0x1] %v437
    %s440 = scalar_lea.vmem %s1, 86
    %441 = vst [vmem:[%s440] sm:$0x2] %v437
    %s442 = scalar_lea.vmem [#allocation0], 248
    %v443 = vld [vmem:[%s442] sm:$0x3]
    %s444 = scalar_lea.vmem %s1, 31
    %445 = vst [vmem:[%s444] sm:$0x1] %v443
    %s446 = scalar_lea.vmem %s1, 94
    %447 = vst [vmem:[%s446] sm:$0x2] %v443
    %s448 = scalar_lea.vmem [#allocation0], 256
    %v449 = vld [vmem:[%s448] sm:$0x3]
    %s450 = scalar_lea.vmem %s1, 32
    %451 = vst [vmem:[%s450] sm:$0x1] %v449
    %s452 = scalar_lea.vmem %s1, 95
    %453 = vst [vmem:[%s452] sm:$0x2] %v449
    %s454 = scalar_lea.vmem [#allocation0], 264
    %v455 = vld [vmem:[%s454] sm:$0x3]
    %s456 = scalar_lea.vmem %s1, 40
    %457 = vst [vmem:[%s456] sm:$0x1] %v455
    %s458 = scalar_lea.vmem %s1, 103
    %459 = vst [vmem:[%s458] sm:$0x2] %v455
    %s460 = scalar_lea.vmem [#allocation0], 272
    %v461 = vld [vmem:[%s460] sm:$0x3]
    %s462 = scalar_lea.vmem %s1, 48
    %463 = vst [vmem:[%s462] sm:$0x1] %v461
    %s464 = scalar_lea.vmem %s1, 111
    %465 = vst [vmem:[%s464] sm:$0x2] %v461
    %s466 = scalar_lea.vmem [#allocation0], 280
    %v467 = vld [vmem:[%s466] sm:$0x3]
    %s468 = scalar_lea.vmem %s1, 56
    %469 = vst [vmem:[%s468] sm:$0x1] %v467
    %s470 = scalar_lea.vmem %s1, 119
    %471 = vst [vmem:[%s470] sm:$0x2] %v467
    %s472 = scalar_lea.vmem [#allocation0], 288
    %v473 = vld [vmem:[%s472] sm:$0x3]
    %s474 = scalar_lea.vmem %s1, 33
    %475 = vst [vmem:[%s474] sm:$0x1] %v473
    %s476 = scalar_lea.vmem %s1, 96
    %477 = vst [vmem:[%s476] sm:$0x2] %v473
    %s478 = scalar_lea.vmem [#allocation0], 296
    %v479 = vld [vmem:[%s478] sm:$0x3]
    %s480 = scalar_lea.vmem %s1, 41
    %481 = vst [vmem:[%s480] sm:$0x1] %v479
    %s482 = scalar_lea.vmem %s1, 104
    %483 = vst [vmem:[%s482] sm:$0x2] %v479
    %s484 = scalar_lea.vmem [#allocation0], 304
    %v485 = vld [vmem:[%s484] sm:$0x3]
    %s486 = scalar_lea.vmem %s1, 49
    %487 = vst [vmem:[%s486] sm:$0x1] %v485
    %s488 = scalar_lea.vmem %s1, 112
    %489 = vst [vmem:[%s488] sm:$0x2] %v485
    %s490 = scalar_lea.vmem [#allocation0], 312
    %v491 = vld [vmem:[%s490] sm:$0x3]
    %s492 = scalar_lea.vmem %s1, 57
    %493 = vst [vmem:[%s492] sm:$0x1] %v491
    %s494 = scalar_lea.vmem %s1, 120
    %495 = vst [vmem:[%s494] sm:$0x2] %v491
    %s496 = scalar_lea.vmem [#allocation0], 320
    %v497 = vld [vmem:[%s496] sm:$0x3]
    %s498 = scalar_lea.vmem %s1, 34
    %499 = vst [vmem:[%s498] sm:$0x1] %v497
    %s500 = scalar_lea.vmem %s1, 97
    %501 = vst [vmem:[%s500] sm:$0x2] %v497
    %s502 = scalar_lea.vmem [#allocation0], 328
    %v503 = vld [vmem:[%s502] sm:$0x3]
    %s504 = scalar_lea.vmem %s1, 42
    %505 = vst [vmem:[%s504] sm:$0x1] %v503
    %s506 = scalar_lea.vmem %s1, 105
    %507 = vst [vmem:[%s506] sm:$0x2] %v503
    %s508 = scalar_lea.vmem [#allocation0], 336
    %v509 = vld [vmem:[%s508] sm:$0x3]
    %s510 = scalar_lea.vmem %s1, 50
    %511 = vst [vmem:[%s510] sm:$0x1] %v509
    %s512 = scalar_lea.vmem %s1, 113
    %513 = vst [vmem:[%s512] sm:$0x2] %v509
    %s514 = scalar_lea.vmem [#allocation0], 344
    %v515 = vld [vmem:[%s514] sm:$0x3]
    %s516 = scalar_lea.vmem %s1, 58
    %517 = vst [vmem:[%s516] sm:$0x1] %v515
    %s518 = scalar_lea.vmem %s1, 121
    %519 = vst [vmem:[%s518] sm:$0x2] %v515
    %s520 = scalar_lea.vmem [#allocation0], 352
    %v521 = vld [vmem:[%s520] sm:$0x3]
    %s522 = scalar_lea.vmem %s1, 35
    %523 = vst [vmem:[%s522] sm:$0x1] %v521
    %s524 = scalar_lea.vmem %s1, 98
    %525 = vst [vmem:[%s524] sm:$0x2] %v521
    %s526 = scalar_lea.vmem [#allocation0], 360
    %v527 = vld [vmem:[%s526] sm:$0x3]
    %s528 = scalar_lea.vmem %s1, 43
    %529 = vst [vmem:[%s528] sm:$0x1] %v527
    %s530 = scalar_lea.vmem %s1, 106
    %531 = vst [vmem:[%s530] sm:$0x2] %v527
    %s532 = scalar_lea.vmem [#allocation0], 368
    %v533 = vld [vmem:[%s532] sm:$0x3]
    %s534 = scalar_lea.vmem %s1, 51
    %535 = vst [vmem:[%s534] sm:$0x1] %v533
    %s536 = scalar_lea.vmem %s1, 114
    %537 = vst [vmem:[%s536] sm:$0x2] %v533
    %s538 = scalar_lea.vmem [#allocation0], 376
    %v539 = vld [vmem:[%s538] sm:$0x3]
    %s540 = scalar_lea.vmem %s1, 59
    %541 = vst [vmem:[%s540] sm:$0x1] %v539
    %s542 = scalar_lea.vmem %s1, 122
    %543 = vst [vmem:[%s542] sm:$0x2] %v539
    %s544 = scalar_lea.vmem [#allocation0], 384
    %v545 = vld [vmem:[%s544] sm:$0x3]
    %s546 = scalar_lea.vmem %s1, 36
    %547 = vst [vmem:[%s546] sm:$0x1] %v545
    %s548 = scalar_lea.vmem %s1, 99
    %549 = vst [vmem:[%s548] sm:$0x2] %v545
    %s550 = scalar_lea.vmem [#allocation0], 392
    %v551 = vld [vmem:[%s550] sm:$0x3]
    %s552 = scalar_lea.vmem %s1, 44
    %553 = vst [vmem:[%s552] sm:$0x1] %v551
    %s554 = scalar_lea.vmem %s1, 107
    %555 = vst [vmem:[%s554] sm:$0x2] %v551
    %s556 = scalar_lea.vmem [#allocation0], 400
    %v557 = vld [vmem:[%s556] sm:$0x3]
    %s558 = scalar_lea.vmem %s1, 52
    %559 = vst [vmem:[%s558] sm:$0x1] %v557
    %s560 = scalar_lea.vmem %s1, 115
    %561 = vst [vmem:[%s560] sm:$0x2] %v557
    %s562 = scalar_lea.vmem [#allocation0], 408
    %v563 = vld [vmem:[%s562] sm:$0x3]
    %s564 = scalar_lea.vmem %s1, 60
    %565 = vst [vmem:[%s564] sm:$0x1] %v563
    %s566 = scalar_lea.vmem %s1, 123
    %567 = vst [vmem:[%s566] sm:$0x2] %v563
    %s568 = scalar_lea.vmem [#allocation0], 416
    %v569 = vld [vmem:[%s568] sm:$0x3]
    %s570 = scalar_lea.vmem %s1, 37
    %571 = vst [vmem:[%s570] sm:$0x1] %v569
    %s572 = scalar_lea.vmem %s1, 100
    %573 = vst [vmem:[%s572] sm:$0x2] %v569
    %s574 = scalar_lea.vmem [#allocation0], 424
    %v575 = vld [vmem:[%s574] sm:$0x3]
    %s576 = scalar_lea.vmem %s1, 45
    %577 = vst [vmem:[%s576] sm:$0x1] %v575
    %s578 = scalar_lea.vmem %s1, 108
    %579 = vst [vmem:[%s578] sm:$0x2] %v575
    %s580 = scalar_lea.vmem [#allocation0], 432
    %v581 = vld [vmem:[%s580] sm:$0x3]
    %s582 = scalar_lea.vmem %s1, 53
    %583 = vst [vmem:[%s582] sm:$0x1] %v581
    %s584 = scalar_lea.vmem %s1, 116
    %585 = vst [vmem:[%s584] sm:$0x2] %v581
    %s586 = scalar_lea.vmem [#allocation0], 440
    %v587 = vld [vmem:[%s586] sm:$0x3]
    %s588 = scalar_lea.vmem %s1, 61
    %589 = vst [vmem:[%s588] sm:$0x1] %v587
    %s590 = scalar_lea.vmem %s1, 124
    %591 = vst [vmem:[%s590] sm:$0x2] %v587
    %s592 = scalar_lea.vmem [#allocation0], 448
    %v593 = vld [vmem:[%s592] sm:$0x3]
    %s594 = scalar_lea.vmem %s1, 38
    %595 = vst [vmem:[%s594] sm:$0x1] %v593
    %s596 = scalar_lea.vmem %s1, 101
    %597 = vst [vmem:[%s596] sm:$0x2] %v593
    %s598 = scalar_lea.vmem [#allocation0], 456
    %v599 = vld [vmem:[%s598] sm:$0x3]
    %s600 = scalar_lea.vmem %s1, 46
    %601 = vst [vmem:[%s600] sm:$0x1] %v599
    %s602 = scalar_lea.vmem %s1, 109
    %603 = vst [vmem:[%s602] sm:$0x2] %v599
    %s604 = scalar_lea.vmem [#allocation0], 464
    %v605 = vld [vmem:[%s604] sm:$0x3]
    %s606 = scalar_lea.vmem %s1, 54
    %607 = vst [vmem:[%s606] sm:$0x1] %v605
    %s608 = scalar_lea.vmem %s1, 117
    %609 = vst [vmem:[%s608] sm:$0x2] %v605
    %s610 = scalar_lea.vmem [#allocation0], 472
    %v611 = vld [vmem:[%s610] sm:$0x3]
    %s612 = scalar_lea.vmem %s1, 62
    %613 = vst [vmem:[%s612] sm:$0x1] %v611
    %s614 = scalar_lea.vmem %s1, 125
    %615 = vst [vmem:[%s614] sm:$0x2] %v611
    %s616 = scalar_lea.vmem [#allocation0], 480
    %v617 = vld [vmem:[%s616] sm:$0x3]
    %s618 = scalar_lea.vmem %s1, 39
    %619 = vst [vmem:[%s618] sm:$0x1] %v617
    %s620 = scalar_lea.vmem %s1, 102
    %621 = vst [vmem:[%s620] sm:$0x2] %v617
    %s622 = scalar_lea.vmem [#allocation0], 488
    %v623 = vld [vmem:[%s622] sm:$0x3]
    %s624 = scalar_lea.vmem %s1, 47
    %625 = vst [vmem:[%s624] sm:$0x1] %v623
    %s626 = scalar_lea.vmem %s1, 110
    %627 = vst [vmem:[%s626] sm:$0x2] %v623
    %s628 = scalar_lea.vmem [#allocation0], 496
    %v629 = vld [vmem:[%s628] sm:$0x3]
    %s630 = scalar_lea.vmem %s1, 55
    %631 = vst [vmem:[%s630] sm:$0x1] %v629
    %s632 = scalar_lea.vmem %s1, 118
    %633 = vst [vmem:[%s632] sm:$0x2] %v629
    %s634 = scalar_lea.vmem [#allocation0], 504
    %v635 = vld [vmem:[%s634] sm:$0x3]
    %s636 = scalar_lea.vmem %s1, 63
    %637 = vst [vmem:[%s636] sm:$0x1] %v635
    %s638 = scalar_lea.vmem %s1, 126
    %639 = vst [vmem:[%s638] sm:$0x2] %v635

// kernel: generator_forward.13
$region0: #{generator_forward.13}
  #allocation0 [shape = 'u32[]', space=smem, size = 0x4, offset = 0x4, fixed_abs, tag = 'smem constant byte address 0x4 - core index']
  #allocation1 [shape = 'u32[72,128]{1,0:T(1,128)}', space=vmem, size = 0x9000, scoped, tag = 'internal scratch']
  %s0 = inlined_call_operand.vmem [shape: f32[1,8,128], index: 0, kind: input, shape index: {}]
  %s1 = inlined_call_operand.hbm [shape: f32[1,128,8192], index: 1, kind: input, shape index: {}]
  %s2 = inlined_call_operand.vmem [shape: f32[1,8,8192], index: 2, kind: output, shape index: {}]
  %s3 = sld [smem:[#allocation0]]
  $region45: #{generator_forward.13} parent=0
    _
  %s5 = ssub.s32 1, %s3
  %s6 = scalar_select 0, %s5, %s3
  $region1: #{generator_forward.13} parent=0
    #allocation2 [shape = 'u8[262144]{0}', space=vmem, size = 0x40000, scoped, tag = 'input window, operand 1']
    #allocation3 [shape = 's32[2]{0}', space=sflag, size = 0x8, scoped, tag = 'scoped memory for generator_forward.13']
    %7 = vsyncpa [#allocation3], 0
    %s8 = scalar_lea.sflag [#allocation3], 1
    %9 = vsyncpa %s8, 0
    loop: start=0, step=1, limit=34
    $region2: #{generator_forward.13} parent=1 // loop_pre_header
      _
    $region3: #{generator_forward.13} parent=1 // loop_header
      %s11 = sphi 0, %s15
      %p12 = scmp.ge.s32.totalorder %s11, 34
      %s18 = sphi 0, %s44
      %s19 = sphi 0, %s40
      %s20 = sphi 0, %s36
      %s21 = sphi 0, %s32
      %s22 = sphi 0, %s18
      %s23 = sphi 0, %s19
      %s24 = sphi 0, %s20
      %s25 = sphi 0, %s21
      %s26 = sphi 0, %s22
      %s27 = sphi 0, %s23
      %s28 = sphi 0, %s24
      %s29 = sphi 0, %s25
      %s51 = sphi 0, %s53
      %s54 = sphi 0, %s51
      %s55 = sphi 0, %s54
      %s71 = sphi 0, %s55
      %s81 = sphi 0, %s83
      %s84 = sphi 0, %s81
      %s85 = sphi 0, %s84
      %s101 = sphi 0, %s85
      %s111 = sphi 0, %s113
      %s114 = sphi 0, %s111
      %s115 = sphi 0, %s114
      %s131 = sphi 0, %s115
    $region4: #{generator_forward.13} parent=1 // loop_header_branch
      %14 = sbr.rel (%p12) target = $region8
    $region5: #{generator_forward.13} parent=1 // loop_body
      %s16 = ssub.s32 %s11, 1
      %s17 = ssub.s32 %s11, 2
      %s30 = sadd.s32 1, %s21
      %p31 = scmp.ge.s32.totalorder %s30, 1
      %s32 = scalar_select %p31, 0, %s30
      %s33 = sadd.s32 1, %s20
      %s34 = scalar_select %p31, %s33, %s20
      %p35 = scmp.ge.s32.totalorder %s34, 32
      %s36 = scalar_select %p35, 0, %s34
      %s37 = sadd.s32 1, %s19
      %s38 = scalar_select %p35, %s37, %s19
      %p39 = scmp.ge.s32.totalorder %s38, 1
      %s40 = scalar_select %p39, 0, %s38
      %s41 = sadd.s32 1, %s18
      %s42 = scalar_select %p39, %s41, %s18
      %p43 = scmp.ge.s32.totalorder %s42, 1
      %s44 = scalar_select %p43, 0, %s42
      %s45 = ssub.s32 %s18, %s44
      %s46 = ssub.s32 %s19, %s40
      %s47 = sor.u32 %s45, %s46
      %s48 = ssub.s32 %s21, %s32
      %s49 = sor.u32 %s47, %s48
      %p50 = scmp.eq.s32.totalorder %s49, 0
      %s52 = sadd.s32 %s51, 1
      %s53 = scalar_select %p50, %s51, %s52
      %p56 = pneg %p50
      %p57 = scmp.eq.s32.totalorder %s11, 31
      %p58 = por %p56, %p57
      %p59 = scmp.ne.s32.totalorder %s51, %s54
      %p60 = scmp.eq.s32.totalorder %s11, 0
      %p61 = por %p59, %p60
      %p62 = scmp.ne.s32.totalorder %s51, %s54
      %p63 = scmp.eq.s32.totalorder %s16, 31
      %p64 = por %p62, %p63
      %p65 = scmp.ne.s32.totalorder %s54, %s55
      %p66 = scmp.eq.s32.totalorder %s16, 0
      %p67 = por %p65, %p66
      %p68 = scmp.ne.s32.totalorder %s54, %s55
      %p69 = scmp.eq.s32.totalorder %s17, 31
      %p70 = por %p68, %p69
      %p72 = scmp.ne.s32.totalorder %s55, %s71
      %p73 = scmp.eq.s32.totalorder %s17, 0
      %p74 = por %p72, %p73
      %s75 = ssub.s32 %s18, %s44
      %s76 = ssub.s32 %s21, %s32
      %s77 = sor.u32 %s75, %s76
      %s78 = ssub.s32 %s20, %s36
      %s79 = sor.u32 %s77, %s78
      %p80 = scmp.eq.s32.totalorder %s79, 0
      %s82 = sadd.s32 %s81, 1
      %s83 = scalar_select %p80, %s81, %s82
      %p86 = pneg %p80
      %p87 = scmp.eq.s32.totalorder %s11, 31
      %p88 = por %p86, %p87
      %p89 = scmp.ne.s32.totalorder %s81, %s84
      %p90 = scmp.eq.s32.totalorder %s11, 0
      %p91 = por %p89, %p90
      %p92 = scmp.ne.s32.totalorder %s81, %s84
      %p93 = scmp.eq.s32.totalorder %s16, 31
      %p94 = por %p92, %p93
      %p95 = scmp.ne.s32.totalorder %s84, %s85
      %p96 = scmp.eq.s32.totalorder %s16, 0
      %p97 = por %p95, %p96
      %p98 = scmp.ne.s32.totalorder %s84, %s85
      %p99 = scmp.eq.s32.totalorder %s17, 31
      %p100 = por %p98, %p99
      %p102 = scmp.ne.s32.totalorder %s85, %s101
      %p103 = scmp.eq.s32.totalorder %s17, 0
      %p104 = por %p102, %p103
      %s105 = ssub.s32 %s18, %s44
      %s106 = ssub.s32 %s19, %s40
      %s107 = sor.u32 %s105, %s106
      %s108 = ssub.s32 %s20, %s36
      %s109 = sor.u32 %s107, %s108
      %p110 = scmp.eq.s32.totalorder %s109, 0
      %s112 = sadd.s32 %s111, 1
      %s113 = scalar_select %p110, %s111, %s112
      %p116 = pneg %p110
      %p117 = scmp.eq.s32.totalorder %s11, 31
      %p118 = por %p116, %p117
      %p119 = scmp.ne.s32.totalorder %s111, %s114
      %p120 = scmp.eq.s32.totalorder %s11, 0
      %p121 = por %p119, %p120
      %p122 = scmp.ne.s32.totalorder %s111, %s114
      %p123 = scmp.eq.s32.totalorder %s16, 31
      %p124 = por %p122, %p123
      %p125 = scmp.ne.s32.totalorder %s114, %s115
      %p126 = scmp.eq.s32.totalorder %s16, 0
      %p127 = por %p125, %p126
      %p128 = scmp.ne.s32.totalorder %s114, %s115
      %p129 = scmp.eq.s32.totalorder %s17, 31
      %p130 = por %p128, %p129
      %p132 = scmp.ne.s32.totalorder %s115, %s131
      %p133 = scmp.eq.s32.totalorder %s17, 0
      %p134 = por %p132, %p133
      %p135 = scmp.le.s32.totalorder 1, %s11
      %p136 = scmp.lt.s32.totalorder %s11, 33
      %p137 = pnand %p135, %p136
      %p138 = pneg %p137
      // Predicated region
      $region9: #{generator_forward.13} parent=5 // pred_check
        _
      $region10: #{generator_forward.13} parent=5 // pred_check_branch
        %140 = sbr.rel (%p137) target = $region12
      $region11: #{generator_forward.13} parent=5 // pred_region
        %s141 = ssub.s32 %s11, 1
        // Predicated region
        $region13: #{generator_forward.13} parent=11 // pred_check
          %p142 = pneg %p67
        $region14: #{generator_forward.13} parent=11 // pred_check_branch
          %144 = sbr.rel (%p142) target = $region16
        $region15: #{generator_forward.13} parent=11 // pred_region
          %p145 = scmp.lt.s32.totalorder %s22, 0
          %s146 = scalar_select %p145, %s22, 0
          %p147 = scmp.lt.s32.totalorder %s23, 0
          %s148 = scalar_select %p147, %s23, 0
          %p149 = scmp.lt.s32.totalorder %s25, 0
          %s150 = scalar_select %p149, %s25, 0
          %s151 = sadd.s32 %s150, %s148
          %s152 = sadd.s32 %s151, %s146
          %s153 = smul.addr %s152, 8
          %s154 = scalar_lea.vmem %s0, %s153
        $region16: #{generator_forward.13} parent=11 // pred_fallthru
          _
      $region12: #{generator_forward.13} parent=5 // pred_fallthru
        _
      %p155 = scmp.lt.s32.totalorder %s11, 32
      // Predicated region
      $region17: #{generator_forward.13} parent=5 // pred_check
        %p156 = pneg %p155
      $region18: #{generator_forward.13} parent=5 // pred_check_branch
        %158 = sbr.rel (%p156) target = $region20
      $region19: #{generator_forward.13} parent=5 // pred_region
        // Predicated region
        $region21: #{generator_forward.13} parent=19 // pred_check
          %p159 = pneg %p91
        $region22: #{generator_forward.13} parent=19 // pred_check_branch
          %161 = sbr.rel (%p159) target = $region24
        $region23: #{generator_forward.13} parent=19 // pred_region
          %s162 = sand.u32 %s81, 1
          %s163 = scalar_lea.sflag [#allocation3], %s162
          %s164 = sand.u32 %s81, 1
          %s165 = smul.addr %s164, 256
          %s166 = scalar_lea.vmem [#allocation2], %s165
          %s167 = smul.u32 16, %s21
          %s168 = smul.u32 2, %s20
          %170 = vsyncadd %s163, 0
          %s171 = smul.addr %s167, 64
          %s172 = sadd.s32 %s168, %s171
          %s173 = smul.addr %s18, 1024
          %s174 = sadd.s32 %s172, %s173
          %s175 = smul.addr %s174, 8
          %s176 = scalar_lea.hbm %s1, %s175
          %s177 = sshll.u32 %s176, 4
          %s178 = int_to_ptr.hbm [resolvable:$true] %s177
          %s179 = sshll.u32 %s166, 4
          %s180 = int_to_ptr.vmem [resolvable:$true] %s179
          %185 = dma.hbm_to_vmem [thread:$0]  %s178, 4096, %s180, %s163, 8192, 256, 16
        $region24: #{generator_forward.13} parent=19 // pred_fallthru
          _
      $region20: #{generator_forward.13} parent=5 // pred_fallthru
        _
      %p186 = scmp.le.s32.totalorder 1, %s11
      %p187 = scmp.lt.s32.totalorder %s11, 33
      %p188 = pnand %p186, %p187
      %p189 = pneg %p188
      // Predicated region
      $region25: #{generator_forward.13} parent=5 // pred_check
        _
      $region26: #{generator_forward.13} parent=5 // pred_check_branch
        %191 = sbr.rel (%p188) target = $region28
      $region27: #{generator_forward.13} parent=5 // pred_region
        %s192 = ssub.s32 %s11, 1
        %s193 = sand.u32 %s84, 1
        %s194 = scalar_lea.sflag [#allocation3], %s193
        %s195 = sand.u32 %s84, 1
        %s196 = smul.addr %s195, 256
        %s197 = scalar_lea.vmem [#allocation2], %s196
        // Predicated region
        $region29: #{generator_forward.13} parent=27 // pred_check
          %p198 = pneg %p97
        $region30: #{generator_forward.13} parent=27 // pred_check_branch
          %200 = sbr.rel (%p198) target = $region32
        $region31: #{generator_forward.13} parent=27 // pred_region
          %202 = dma.done %s194, 4096
        $region32: #{generator_forward.13} parent=27 // pred_fallthru
          _
        %p203 = scmp.lt.s32.totalorder %s22, 0
        %s204 = scalar_select %p203, %s22, 0
        %p205 = scmp.lt.s32.totalorder %s23, 0
        %s206 = scalar_select %p205, %s23, 0
        %p207 = scmp.lt.s32.totalorder %s25, 0
        %s208 = scalar_select %p207, %s25, 0
        %s209 = sadd.s32 %s208, %s206
        %s210 = sadd.s32 %s209, %s204
        %s211 = smul.addr %s210, 8
        %s212 = scalar_lea.vmem %s0, %s211
        %p213 = pneg %p67
        %p214 = pneg %p64
        %s215 = sand.u32 %s84, 1
        %s216 = scalar_lea.sflag [#allocation3], %s215
        %s217 = sand.u32 %s84, 1
        %s218 = smul.addr %s217, 256
        %s219 = scalar_lea.vmem [#allocation2], %s218
        %p220 = pneg %p97
        %p221 = pneg %p94
        %p222 = pneg %p127
        %p223 = pneg %p124
        %s224 = smul.u32 2, %s24
        %p225 = scmp.lt.s32.totalorder %s22, 0
        %s226 = scalar_select %p225, %s22, 0
        %p227 = scmp.lt.s32.totalorder %s23, 0
        %s228 = scalar_select %p227, %s23, 0
        %p229 = scmp.lt.s32.totalorder %s224, 63
        %s230 = scalar_select %p229, %s224, 63
        %s231 = smul.addr %s228, 64
        %s232 = sadd.s32 %s230, %s231
        %s233 = smul.addr %s226, 64
        %s234 = sadd.s32 %s232, %s233
        %s235 = smul.addr %s234, 8
        %s236 = scalar_lea.vmem %s2, %s235
        %p237 = scmp.lt.s32.totalorder %s22, 0
        %s238 = scalar_select %p237, %s22, 0
        %p239 = scmp.lt.s32.totalorder %s23, 0
        %s240 = scalar_select %p239, %s23, 0
        %p241 = scmp.lt.s32.totalorder %s25, 0
        %s242 = scalar_select %p241, %s25, 0
        %s243 = sadd.s32 %s242, %s240
        %s244 = sadd.s32 %s243, %s238
        %s245 = smul.addr %s244, 8
        %s246 = scalar_lea.vmem %s0, %s245
        %s247 = smul.u32 16, %s25
        %s248 = smul.u32 2, %s24
        %s249 = smul.u32 2, %s24
        %p250 = scmp.lt.s32.totalorder %s22, 0
        %s251 = scalar_select %p250, %s22, 0
        %p252 = scmp.lt.s32.totalorder %s23, 0
        %s253 = scalar_select %p252, %s23, 0
        %p254 = scmp.lt.s32.totalorder %s249, 63
        %s255 = scalar_select %p254, %s249, 63
        %s256 = smul.addr %s253, 64
        %s257 = sadd.s32 %s255, %s256
        %s258 = smul.addr %s251, 64
        %s259 = sadd.s32 %s257, %s258
        %s260 = smul.addr %s259, 8
        %s261 = scalar_lea.vmem %s2, %s260
        %s262 = smul.u32 2, %s24
        %v263 = vld [vmem:[%s246] sm:$0xff]
        %v264 = vld [vmem:[%s197] sm:$0xff]
        %v265 = vld [vmem:[%s197 + $0x8] sm:$0xff]
        %v266 = vld [vmem:[%s197 + $0x10] sm:$0xff]
        %v267 = vld [vmem:[%s197 + $0x18] sm:$0xff]
        %v268 = vld [vmem:[%s197 + $0x20] sm:$0xff]
        %v269 = vld [vmem:[%s197 + $0x28] sm:$0xff]
        %v270 = vld [vmem:[%s197 + $0x30] sm:$0xff]
        %v271 = vld [vmem:[%s197 + $0x38] sm:$0xff]
        %v272 = vld [vmem:[%s197 + $0x40] sm:$0xff]
        %v273 = vld [vmem:[%s197 + $0x48] sm:$0xff]
        %v274 = vld [vmem:[%s197 + $0x50] sm:$0xff]
        %v275 = vld [vmem:[%s197 + $0x58] sm:$0xff]
        %v276 = vld [vmem:[%s197 + $0x60] sm:$0xff]
        %v277 = vld [vmem:[%s197 + $0x68] sm:$0xff]
        %v278 = vld [vmem:[%s197 + $0x70] sm:$0xff]
        %v279 = vld [vmem:[%s197 + $0x78] sm:$0xff]
        %v280 = vld [vmem:[%s197 + $0x80] sm:$0xff]
        %v281 = vld [vmem:[%s197 + $0x88] sm:$0xff]
        %v282 = vld [vmem:[%s197 + $0x90] sm:$0xff]
        %v283 = vld [vmem:[%s197 + $0x98] sm:$0xff]
        %v284 = vld [vmem:[%s197 + $0xa0] sm:$0xff]
        %v285 = vld [vmem:[%s197 + $0xa8] sm:$0xff]
        %v286 = vld [vmem:[%s197 + $0xb0] sm:$0xff]
        %v287 = vld [vmem:[%s197 + $0xb8] sm:$0xff]
        %v288 = vld [vmem:[%s197 + $0xc0] sm:$0xff]
        %v289 = vld [vmem:[%s197 + $0xc8] sm:$0xff]
        %v290 = vld [vmem:[%s197 + $0xd0] sm:$0xff]
        %v291 = vld [vmem:[%s197 + $0xd8] sm:$0xff]
        %v292 = vld [vmem:[%s197 + $0xe0] sm:$0xff]
        %v293 = vld [vmem:[%s197 + $0xe8] sm:$0xff]
        %v294 = vld [vmem:[%s197 + $0xf0] sm:$0xff]
        %v295 = vld [vmem:[%s197 + $0xf8] sm:$0xff]
        %296 = vmatpush.msra.mxu0 %v294
        %297 = vmatpush.msra.mxu0 %v292
        %298 = vmatpush.msra.mxu0 %v290
        %299 = vmatpush.msra.mxu0 %v288
        %300 = vmatpush.msra.mxu0 %v286
        %301 = vmatpush.msra.mxu0 %v284
        %302 = vmatpush.msra.mxu0 %v282
        %303 = vmatpush.msra.mxu0 %v280
        %304 = vmatpush.msra.mxu0 %v278
        %305 = vmatpush.msra.mxu0 %v276
        %306 = vmatpush.msra.mxu0 %v274
        %307 = vmatpush.msra.mxu0 %v272
        %308 = vmatpush.msra.mxu0 %v270
        %309 = vmatpush.msra.mxu0 %v268
        %310 = vmatpush.msra.mxu0 %v266
        %311 = vmatpush.msra.mxu0 %v264
        %312 = vmatmul.f32.gmra.mxu0 %v263
        %v313 = vpop.f32.mrf.mxu0
        %v314 = vadd.f32 0.0, %v313
        %315 = vdwg.mxu0
        %316 = vmatpush.msra.mxu0 %v295
        %317 = vmatpush.msra.mxu0 %v293
        %318 = vmatpush.msra.mxu0 %v291
        %319 = vmatpush.msra.mxu0 %v289
        %320 = vmatpush.msra.mxu0 %v287
        %321 = vmatpush.msra.mxu0 %v285
        %322 = vmatpush.msra.mxu0 %v283
        %323 = vmatpush.msra.mxu0 %v281
        %324 = vmatpush.msra.mxu0 %v279
        %325 = vmatpush.msra.mxu0 %v277
        %326 = vmatpush.msra.mxu0 %v275
        %327 = vmatpush.msra.mxu0 %v273
        %328 = vmatpush.msra.mxu0 %v271
        %329 = vmatpush.msra.mxu0 %v269
        %330 = vmatpush.msra.mxu0 %v267
        %331 = vmatpush.msra.mxu0 %v265
        %332 = vmatmul.f32.gmra.mxu0 %v263
        %v333 = vpop.f32.mrf.mxu0
        %v334 = vadd.f32 0.0, %v333
        %335 = vdwg.mxu0
        %336 = vst [vmem:[%s261] sm:$0xff] %v314
        %337 = vst [vmem:[%s261 + $0x8] sm:$0xff] %v334
        %s338 = smul.u32 2, %s24
        %p339 = scmp.lt.s32.totalorder %s22, 0
        %s340 = scalar_select %p339, %s22, 0
        %p341 = scmp.lt.s32.totalorder %s23, 0
        %s342 = scalar_select %p341, %s23, 0
        %p343 = scmp.lt.s32.totalorder %s338, 63
        %s344 = scalar_select %p343, %s338, 63
        %s345 = smul.addr %s342, 64
        %s346 = sadd.s32 %s344, %s345
        %s347 = smul.addr %s340, 64
        %s348 = sadd.s32 %s346, %s347
        %s349 = smul.addr %s348, 8
        %s350 = scalar_lea.vmem %s2, %s349
        // Predicated region
        $region33: #{generator_forward.13} parent=27 // pred_check
          %p351 = pneg %p124
        $region34: #{generator_forward.13} parent=27 // pred_check_branch
          %353 = sbr.rel (%p351) target = $region36
        $region35: #{generator_forward.13} parent=27 // pred_region
          %s354 = smul.u32 2, %s24
        $region36: #{generator_forward.13} parent=27 // pred_fallthru
          _
      $region28: #{generator_forward.13} parent=5 // pred_fallthru
        _
      %p355 = scmp.le.s32.totalorder 2, %s11
      // Predicated region
      $region37: #{generator_forward.13} parent=5 // pred_check
        %p356 = pneg %p355
      $region38: #{generator_forward.13} parent=5 // pred_check_branch
        %358 = sbr.rel (%p356) target = $region40
      $region39: #{generator_forward.13} parent=5 // pred_region
        %s359 = ssub.s32 %s11, 2
        // Predicated region
        $region41: #{generator_forward.13} parent=39 // pred_check
          %p360 = pneg %p130
        $region42: #{generator_forward.13} parent=39 // pred_check_branch
          %362 = sbr.rel (%p360) target = $region44
        $region43: #{generator_forward.13} parent=39 // pred_region
          %s363 = smul.u32 2, %s28
          %p364 = scmp.lt.s32.totalorder %s26, 0
          %s365 = scalar_select %p364, %s26, 0
          %p366 = scmp.lt.s32.totalorder %s27, 0
          %s367 = scalar_select %p366, %s27, 0
          %p368 = scmp.lt.s32.totalorder %s363, 63
          %s369 = scalar_select %p368, %s363, 63
          %s370 = smul.addr %s367, 64
          %s371 = sadd.s32 %s369, %s370
          %s372 = smul.addr %s365, 64
          %s373 = sadd.s32 %s371, %s372
          %s374 = smul.addr %s373, 8
          %s375 = scalar_lea.vmem %s2, %s374
        $region44: #{generator_forward.13} parent=39 // pred_fallthru
          _
      $region40: #{generator_forward.13} parent=5 // pred_fallthru
        _
    $region6: #{generator_forward.13} parent=1 // loop_footer
      %s15 = sadd.s32 1, %s11
    $region7: #{generator_forward.13} parent=1 // loop_footer_branch
      %10 = sbr.rel target = $region3
    $region8: #{generator_forward.13} parent=1 // loop_exit
      _
    %376 = vsyncpa [#allocation3], 1
    %s377 = scalar_lea.sflag [#allocation3], 1
    %378 = vsyncpa %s377, 1

// kernel: generator_forward.15
$region0: #{generator_forward.15}
  #allocation0 [shape = 'u32[]', space=smem, size = 0x4, offset = 0x4, fixed_abs, tag = 'smem constant byte address 0x4 - core index']
  #allocation1 [shape = 'u32[72,128]{1,0:T(1,128)}', space=vmem, size = 0x9000, scoped, tag = 'internal scratch']
  %s0 = inlined_call_operand.vmem [shape: f32[32,512], index: 0, kind: input, shape index: {}]
  %s1 = inlined_call_operand.vmem [shape: f32[1,512], index: 1, kind: input, shape index: {}]
  %s2 = inlined_call_operand.vmem [shape: f32[1,512], index: 2, kind: input, shape index: {}]
  %s3 = inlined_call_operand.vmem [shape: f32[32,512], index: 3, kind: output, shape index: {}]
  %s4 = sld [smem:[#allocation0]]
  $region22: #{generator_forward.15} parent=0
    _
  %s6 = ssub.s32 1, %s4
  %s7 = scalar_select 0, %s6, %s4
  // Predicated region
  $region2: #{generator_forward.15} parent=0 // pred_check
    _
  $region3: #{generator_forward.15} parent=0 // pred_check_branch
    %9 = sbr.rel (0) target = $region5
  $region4: #{generator_forward.15} parent=0 // pred_region
    _
  $region5: #{generator_forward.15} parent=0 // pred_fallthru
    _
  // Predicated region
  $region6: #{generator_forward.15} parent=0 // pred_check
    _
  $region7: #{generator_forward.15} parent=0 // pred_check_branch
    %11 = sbr.rel (0) target = $region9
  $region8: #{generator_forward.15} parent=0 // pred_region
    _
  $region9: #{generator_forward.15} parent=0 // pred_fallthru
    _
  // Predicated region
  $region10: #{generator_forward.15} parent=0 // pred_check
    _
  $region11: #{generator_forward.15} parent=0 // pred_check_branch
    %13 = sbr.rel (0) target = $region13
  $region12: #{generator_forward.15} parent=0 // pred_region
    _
  $region13: #{generator_forward.15} parent=0 // pred_fallthru
    _
  %v14 = vld [vmem:[%s0] sm:$0xff]
  %v15 = vld [vmem:[%s0 + $0x8] sm:$0xff]
  %v16 = vld [vmem:[%s0 + $0x10] sm:$0xff]
  %v17 = vld [vmem:[%s0 + $0x18] sm:$0xff]
  %v18 = vld [vmem:[%s0 + $0x20] sm:$0xff]
  %v19 = vld [vmem:[%s0 + $0x28] sm:$0xff]
  %v20 = vld [vmem:[%s0 + $0x30] sm:$0xff]
  %v21 = vld [vmem:[%s0 + $0x38] sm:$0xff]
  %v22 = vld [vmem:[%s0 + $0x40] sm:$0xff]
  %v23 = vld [vmem:[%s0 + $0x48] sm:$0xff]
  %v24 = vld [vmem:[%s0 + $0x50] sm:$0xff]
  %v25 = vld [vmem:[%s0 + $0x58] sm:$0xff]
  %v26 = vld [vmem:[%s0 + $0x60] sm:$0xff]
  %v27 = vld [vmem:[%s0 + $0x68] sm:$0xff]
  %v28 = vld [vmem:[%s0 + $0x70] sm:$0xff]
  %v29 = vld [vmem:[%s0 + $0x78] sm:$0xff]
  %v30 = vld [vmem:[%s1] sm:$0xf]
  %v32 = vperm.slane %v30, 0
  %v33 = vperm.slane %v30, 1
  %v34 = vperm.slane %v30, 2
  %v35 = vperm.slane %v30, 3
  %v40 = vmul.f32 %v14, %v32
  %v41 = vmul.f32 %v15, %v33
  %v42 = vmul.f32 %v16, %v34
  %v43 = vmul.f32 %v17, %v35
  %v44 = vmul.f32 %v18, %v32
  %v45 = vmul.f32 %v19, %v33
  %v46 = vmul.f32 %v20, %v34
  %v47 = vmul.f32 %v21, %v35
  %v48 = vmul.f32 %v22, %v32
  %v49 = vmul.f32 %v23, %v33
  %v50 = vmul.f32 %v24, %v34
  %v51 = vmul.f32 %v25, %v35
  %v52 = vmul.f32 %v26, %v32
  %v53 = vmul.f32 %v27, %v33
  %v54 = vmul.f32 %v28, %v34
  %v55 = vmul.f32 %v29, %v35
  %v56 = vld [vmem:[%s2] sm:$0xf]
  %v58 = vperm.slane %v56, 0
  %v59 = vperm.slane %v56, 1
  %v60 = vperm.slane %v56, 2
  %v61 = vperm.slane %v56, 3
  %v66 = vadd.f32 %v40, %v58
  %v67 = vadd.f32 %v41, %v59
  %v68 = vadd.f32 %v42, %v60
  %v69 = vadd.f32 %v43, %v61
  %v70 = vadd.f32 %v44, %v58
  %v71 = vadd.f32 %v45, %v59
  %v72 = vadd.f32 %v46, %v60
  %v73 = vadd.f32 %v47, %v61
  %v74 = vadd.f32 %v48, %v58
  %v75 = vadd.f32 %v49, %v59
  %v76 = vadd.f32 %v50, %v60
  %v77 = vadd.f32 %v51, %v61
  %v78 = vadd.f32 %v52, %v58
  %v79 = vadd.f32 %v53, %v59
  %v80 = vadd.f32 %v54, %v60
  %v81 = vadd.f32 %v55, %v61
  %v82 = vmax.f32 %v66, 0.0
  %v83 = vmax.f32 %v67, 0.0
  %v84 = vmax.f32 %v68, 0.0
  %v85 = vmax.f32 %v69, 0.0
  %v86 = vmax.f32 %v70, 0.0
  %v87 = vmax.f32 %v71, 0.0
  %v88 = vmax.f32 %v72, 0.0
  %v89 = vmax.f32 %v73, 0.0
  %v90 = vmax.f32 %v74, 0.0
  %v91 = vmax.f32 %v75, 0.0
  %v92 = vmax.f32 %v76, 0.0
  %v93 = vmax.f32 %v77, 0.0
  %v94 = vmax.f32 %v78, 0.0
  %v95 = vmax.f32 %v79, 0.0
  %v96 = vmax.f32 %v80, 0.0
  %v97 = vmax.f32 %v81, 0.0
  %98 = vst [vmem:[%s3] sm:$0xff] %v82
  %99 = vst [vmem:[%s3 + $0x8] sm:$0xff] %v83
  %100 = vst [vmem:[%s3 + $0x10] sm:$0xff] %v84
  %101 = vst [vmem:[%s3 + $0x18] sm:$0xff] %v85
  %102 = vst [vmem:[%s3 + $0x20] sm:$0xff] %v86
  %103 = vst [vmem:[%s3 + $0x28] sm:$0xff] %v87
  %104 = vst [vmem:[%s3 + $0x30] sm:$0xff] %v88
  %105 = vst [vmem:[%s3 + $0x38] sm:$0xff] %v89
  %106 = vst [vmem:[%s3 + $0x40] sm:$0xff] %v90
  %107 = vst [vmem:[%s3 + $0x48] sm:$0xff] %v91
  %108 = vst [vmem:[%s3 + $0x50] sm:$0xff] %v92
  %109 = vst [vmem:[%s3 + $0x58] sm:$0xff] %v93
  %110 = vst [vmem:[%s3 + $0x60] sm:$0xff] %v94
  %111 = vst [vmem:[%s3 + $0x68] sm:$0xff] %v95
  %112 = vst [vmem:[%s3 + $0x70] sm:$0xff] %v96
  %113 = vst [vmem:[%s3 + $0x78] sm:$0xff] %v97
  // Predicated region
  $region14: #{generator_forward.15} parent=0 // pred_check
    _
  $region15: #{generator_forward.15} parent=0 // pred_check_branch
    %115 = sbr.rel (0) target = $region17
  $region16: #{generator_forward.15} parent=0 // pred_region
    _
  $region17: #{generator_forward.15} parent=0 // pred_fallthru
    _
  // Predicated region
  $region18: #{generator_forward.15} parent=0 // pred_check
    _
  $region19: #{generator_forward.15} parent=0 // pred_check_branch
    %117 = sbr.rel (0) target = $region21
  $region20: #{generator_forward.15} parent=0 // pred_region
    _
  $region21: #{generator_forward.15} parent=0 // pred_fallthru
    _

// kernel: generator_forward.14
$region0: #{generator_forward.14}
  #allocation0 [shape = 'u32[]', space=smem, size = 0x4, offset = 0x4, fixed_abs, tag = 'smem constant byte address 0x4 - core index']
  #allocation1 [shape = 'u32[72,128]{1,0:T(1,128)}', space=vmem, size = 0x9000, scoped, tag = 'internal scratch']
  %s0 = inlined_call_operand.vmem [shape: f32[32,512], index: 0, kind: input, shape index: {}]
  %s1 = inlined_call_operand.vmem [shape: f32[1,512], index: 1, kind: output, shape index: {0}]
  %s2 = inlined_call_operand.vmem [shape: f32[1,512], index: 2, kind: output, shape index: {1}]
  %3 = xla_tuple %s1, %s2
  %s4 = sld [smem:[#allocation0]]
  $region26: #{generator_forward.14} parent=0
    _
  %s6 = ssub.s32 1, %s4
  %s7 = scalar_select 0, %s6, %s4
  // Predicated region
  $region2: #{generator_forward.14} parent=0 // pred_check
    _
  $region3: #{generator_forward.14} parent=0 // pred_check_branch
    %9 = sbr.rel (0) target = $region5
  $region4: #{generator_forward.14} parent=0 // pred_region
    _
  $region5: #{generator_forward.14} parent=0 // pred_fallthru
    _
  %p10 = scmp.eq.s32.totalorder 0, 0
  // Predicated region
  $region6: #{generator_forward.14} parent=0 // pred_check
    %p11 = pneg %p10
  $region7: #{generator_forward.14} parent=0 // pred_check_branch
    %13 = sbr.rel (%p11) target = $region9
  $region8: #{generator_forward.14} parent=0 // pred_region
    %v14 = vlaneseq
    %vm15 = vcmp.ge.s32.totalorder %v14, 0
    %vm16 = vcmp.lt.s32.totalorder %v14, 512
    %vm17 = vmand %vm15, %vm16
    %18 = vst.msk [vmem:[%s1] sm:$0xf] %vm17, 0.0
    %19 = vst.msk [vmem:[%s2] sm:$0xf] %vm17, 0.0
  $region9: #{generator_forward.14} parent=0 // pred_fallthru
    _
  %v20 = vld [vmem:[%s0] sm:$0xff]
  %v21 = vld [vmem:[%s0 + $0x8] sm:$0xff]
  %v22 = vld [vmem:[%s0 + $0x10] sm:$0xff]
  %v23 = vld [vmem:[%s0 + $0x18] sm:$0xff]
  %v24 = vld [vmem:[%s0 + $0x20] sm:$0xff]
  %v25 = vld [vmem:[%s0 + $0x28] sm:$0xff]
  %v26 = vld [vmem:[%s0 + $0x30] sm:$0xff]
  %v27 = vld [vmem:[%s0 + $0x38] sm:$0xff]
  %v28 = vld [vmem:[%s0 + $0x40] sm:$0xff]
  %v29 = vld [vmem:[%s0 + $0x48] sm:$0xff]
  %v30 = vld [vmem:[%s0 + $0x50] sm:$0xff]
  %v31 = vld [vmem:[%s0 + $0x58] sm:$0xff]
  %v32 = vld [vmem:[%s0 + $0x60] sm:$0xff]
  %v33 = vld [vmem:[%s0 + $0x68] sm:$0xff]
  %v34 = vld [vmem:[%s0 + $0x70] sm:$0xff]
  %v35 = vld [vmem:[%s0 + $0x78] sm:$0xff]
  %v36 = vld [vmem:[%s1] sm:$0xf]
  %v37 = vadd.f32 %v20, %v24
  %v38 = vadd.f32 %v37, %v28
  %v39 = vadd.f32 %v38, %v32
  %v40 = vrot.slane %v39, 4
  %v41 = vadd.f32 %v39, %v40
  %v42 = vrot.slane %v41, 2
  %v43 = vadd.f32 %v41, %v42
  %v44 = vrot.slane %v43, 1
  %v45 = vadd.f32 %v43, %v44
  %v46 = vadd.f32 %v21, %v25
  %v47 = vadd.f32 %v46, %v29
  %v48 = vadd.f32 %v47, %v33
  %v49 = vrot.slane %v48, 4
  %v50 = vadd.f32 %v48, %v49
  %v51 = vrot.slane %v50, 2
  %v52 = vadd.f32 %v50, %v51
  %v53 = vrot.slane %v52, 1
  %v54 = vadd.f32 %v52, %v53
  %v55 = vadd.f32 %v22, %v26
  %v56 = vadd.f32 %v55, %v30
  %v57 = vadd.f32 %v56, %v34
  %v58 = vrot.slane %v57, 4
  %v59 = vadd.f32 %v57, %v58
  %v60 = vrot.slane %v59, 2
  %v61 = vadd.f32 %v59, %v60
  %v62 = vrot.slane %v61, 1
  %v63 = vadd.f32 %v61, %v62
  %v64 = vadd.f32 %v23, %v27
  %v65 = vadd.f32 %v64, %v31
  %v66 = vadd.f32 %v65, %v35
  %v67 = vrot.slane %v66, 4
  %v68 = vadd.f32 %v66, %v67
  %v69 = vrot.slane %v68, 2
  %v70 = vadd.f32 %v68, %v69
  %v71 = vrot.slane %v70, 1
  %v72 = vadd.f32 %v70, %v71
  %v77 = vrot.slane %v54, 7
  %v78 = vrot.slane %v63, 6
  %v79 = vrot.slane %v72, 5
  %vm80 = vcmask 1040384
  %v81 = vsel %vm80, %v45, %v77
  %vm82 = vcmask 1042434
  %v83 = vsel %vm82, %v78, %v79
  %vm84 = vcmask 1041408
  %v85 = vsel %vm84, %v81, %v83
  %v87 = vadd.f32 %v36, %v85
  %v88 = vlaneseq
  %vm89 = vcmp.ge.s32.totalorder %v88, 0
  %vm90 = vcmp.lt.s32.totalorder %v88, 512
  %vm91 = vmand %vm89, %vm90
  %92 = vst.msk [vmem:[%s1] sm:$0xf] %vm91, %v87
  %v93 = vld [vmem:[%s2] sm:$0xf]
  %v94 = vmul.f32 %v20, %v20
  %v95 = vmul.f32 %v21, %v21
  %v96 = vmul.f32 %v22, %v22
  %v97 = vmul.f32 %v23, %v23
  %v98 = vmul.f32 %v24, %v24
  %v99 = vmul.f32 %v25, %v25
  %v100 = vmul.f32 %v26, %v26
  %v101 = vmul.f32 %v27, %v27
  %v102 = vmul.f32 %v28, %v28
  %v103 = vmul.f32 %v29, %v29
  %v104 = vmul.f32 %v30, %v30
  %v105 = vmul.f32 %v31, %v31
  %v106 = vmul.f32 %v32, %v32
  %v107 = vmul.f32 %v33, %v33
  %v108 = vmul.f32 %v34, %v34
  %v109 = vmul.f32 %v35, %v35
  %v110 = vadd.f32 %v94, %v98
  %v111 = vadd.f32 %v110, %v102
  %v112 = vadd.f32 %v111, %v106
  %v113 = vrot.slane %v112, 4
  %v114 = vadd.f32 %v112, %v113
  %v115 = vrot.slane %v114, 2
  %v116 = vadd.f32 %v114, %v115
  %v117 = vrot.slane %v116, 1
  %v118 = vadd.f32 %v116, %v117
  %v119 = vadd.f32 %v95, %v99
  %v120 = vadd.f32 %v119, %v103
  %v121 = vadd.f32 %v120, %v107
  %v122 = vrot.slane %v121, 4
  %v123 = vadd.f32 %v121, %v122
  %v124 = vrot.slane %v123, 2
  %v125 = vadd.f32 %v123, %v124
  %v126 = vrot.slane %v125, 1
  %v127 = vadd.f32 %v125, %v126
  %v128 = vadd.f32 %v96, %v100
  %v129 = vadd.f32 %v128, %v104
  %v130 = vadd.f32 %v129, %v108
  %v131 = vrot.slane %v130, 4
  %v132 = vadd.f32 %v130, %v131
  %v133 = vrot.slane %v132, 2
  %v134 = vadd.f32 %v132, %v133
  %v135 = vrot.slane %v134, 1
  %v136 = vadd.f32 %v134, %v135
  %v137 = vadd.f32 %v97, %v101
  %v138 = vadd.f32 %v137, %v105
  %v139 = vadd.f32 %v138, %v109
  %v140 = vrot.slane %v139, 4
  %v141 = vadd.f32 %v139, %v140
  %v142 = vrot.slane %v141, 2
  %v143 = vadd.f32 %v141, %v142
  %v144 = vrot.slane %v143, 1
  %v145 = vadd.f32 %v143, %v144
  %v150 = vrot.slane %v127, 7
  %v151 = vrot.slane %v136, 6
  %v152 = vrot.slane %v145, 5
  %v153 = vsel %vm80, %v118, %v150
  %v154 = vsel %vm82, %v151, %v152
  %v155 = vsel %vm84, %v153, %v154
  %v157 = vadd.f32 %v93, %v155
  %158 = vst.msk [vmem:[%s2] sm:$0xf] %vm91, %v157
  // Predicated region
  $region10: #{generator_forward.14} parent=0 // pred_check
    _
  $region11: #{generator_forward.14} parent=0 // pred_check_branch
    %160 = sbr.rel (0) target = $region13
  $region12: #{generator_forward.14} parent=0 // pred_region
    _
  $region13: #{generator_forward.14} parent=0 // pred_fallthru
    _
  // Predicated region
  $region14: #{generator_forward.14} parent=0 // pred_check
    _
  $region15: #{generator_forward.14} parent=0 // pred_check_branch
    %162 = sbr.rel (0) target = $region17
  $region16: #{generator_forward.14} parent=0 // pred_region
    _
  $region17: #{generator_forward.14} parent=0 // pred_fallthru
    _
  // Predicated region
  $region18: #{generator_forward.14} parent=0 // pred_check
    _
  $region19: #{generator_forward.14} parent=0 // pred_check_branch
    %164 = sbr.rel (0) target = $region21
  $region20: #{generator_forward.14} parent=0 // pred_region
    _
  $region21: #{generator_forward.14} parent=0 // pred_fallthru
    _
  // Predicated region
  $region22: #{generator_forward.14} parent=0 // pred_check
    _
  $region23: #{generator_forward.14} parent=0 // pred_check_branch
    %166 = sbr.rel (0) target = $region25
  $region24: #{generator_forward.14} parent=0 // pred_region
    _
  $region25: #{generator_forward.14} parent=0 // pred_fallthru
    _

// kernel: generator_forward.17
$region0: #{generator_forward.17}
  #allocation0 [shape = 'u32[]', space=smem, size = 0x4, offset = 0x4, fixed_abs, tag = 'smem constant byte address 0x4 - core index']
  #allocation1 [shape = 'u32[72,128]{1,0:T(1,128)}', space=vmem, size = 0x9000, scoped, tag = 'internal scratch']
  %s0 = inlined_call_operand.vmem [shape: f32[128,256], index: 0, kind: input, shape index: {}]
  %s1 = inlined_call_operand.vmem [shape: f32[1,256], index: 1, kind: output, shape index: {0}]
  %s2 = inlined_call_operand.vmem [shape: f32[1,256], index: 2, kind: output, shape index: {1}]
  %3 = xla_tuple %s1, %s2
  %s4 = sld [smem:[#allocation0]]
  $region26: #{generator_forward.17} parent=0
    _
  %s6 = ssub.s32 1, %s4
  %s7 = scalar_select 0, %s6, %s4
  // Predicated region
  $region2: #{generator_forward.17} parent=0 // pred_check
    _
  $region3: #{generator_forward.17} parent=0 // pred_check_branch
    %9 = sbr.rel (0) target = $region5
  $region4: #{generator_forward.17} parent=0 // pred_region
    _
  $region5: #{generator_forward.17} parent=0 // pred_fallthru
    _
  %p10 = scmp.eq.s32.totalorder 0, 0
  // Predicated region
  $region6: #{generator_forward.17} parent=0 // pred_check
    %p11 = pneg %p10
  $region7: #{generator_forward.17} parent=0 // pred_check_branch
    %13 = sbr.rel (%p11) target = $region9
  $region8: #{generator_forward.17} parent=0 // pred_region
    %v14 = vlaneseq
    %vm15 = vcmp.ge.s32.totalorder %v14, 0
    %vm16 = vcmp.lt.s32.totalorder %v14, 256
    %vm17 = vmand %vm15, %vm16
    %18 = vst.msk [vmem:[%s1] sm:$0x3] %vm17, 0.0
    %19 = vst.msk [vmem:[%s2] sm:$0x3] %vm17, 0.0
  $region9: #{generator_forward.17} parent=0 // pred_fallthru
    _
  %v20 = vld [vmem:[%s0] sm:$0xff]
  %v21 = vld [vmem:[%s0 + $0x8] sm:$0xff]
  %v22 = vld [vmem:[%s0 + $0x10] sm:$0xff]
  %v23 = vld [vmem:[%s0 + $0x18] sm:$0xff]
  %v24 = vld [vmem:[%s0 + $0x20] sm:$0xff]
  %v25 = vld [vmem:[%s0 + $0x28] sm:$0xff]
  %v26 = vld [vmem:[%s0 + $0x30] sm:$0xff]
  %v27 = vld [vmem:[%s0 + $0x38] sm:$0xff]
  %v28 = vld [vmem:[%s0 + $0x40] sm:$0xff]
  %v29 = vld [vmem:[%s0 + $0x48] sm:$0xff]
  %v30 = vld [vmem:[%s0 + $0x50] sm:$0xff]
  %v31 = vld [vmem:[%s0 + $0x58] sm:$0xff]
  %v32 = vld [vmem:[%s0 + $0x60] sm:$0xff]
  %v33 = vld [vmem:[%s0 + $0x68] sm:$0xff]
  %v34 = vld [vmem:[%s0 + $0x70] sm:$0xff]
  %v35 = vld [vmem:[%s0 + $0x78] sm:$0xff]
  %v36 = vld [vmem:[%s0 + $0x80] sm:$0xff]
  %v37 = vld [vmem:[%s0 + $0x88] sm:$0xff]
  %v38 = vld [vmem:[%s0 + $0x90] sm:$0xff]
  %v39 = vld [vmem:[%s0 + $0x98] sm:$0xff]
  %v40 = vld [vmem:[%s0 + $0xa0] sm:$0xff]
  %v41 = vld [vmem:[%s0 + $0xa8] sm:$0xff]
  %v42 = vld [vmem:[%s0 + $0xb0] sm:$0xff]
  %v43 = vld [vmem:[%s0 + $0xb8] sm:$0xff]
  %v44 = vld [vmem:[%s0 + $0xc0] sm:$0xff]
  %v45 = vld [vmem:[%s0 + $0xc8] sm:$0xff]
  %v46 = vld [vmem:[%s0 + $0xd0] sm:$0xff]
  %v47 = vld [vmem:[%s0 + $0xd8] sm:$0xff]
  %v48 = vld [vmem:[%s0 + $0xe0] sm:$0xff]
  %v49 = vld [vmem:[%s0 + $0xe8] sm:$0xff]
  %v50 = vld [vmem:[%s0 + $0xf0] sm:$0xff]
  %v51 = vld [vmem:[%s0 + $0xf8] sm:$0xff]
  %v52 = vld [vmem:[%s1] sm:$0x3]
  %v53 = vadd.f32 %v20, %v22
  %v54 = vadd.f32 %v53, %v24
  %v55 = vadd.f32 %v54, %v26
  %v56 = vadd.f32 %v55, %v28
  %v57 = vadd.f32 %v56, %v30
  %v58 = vadd.f32 %v57, %v32
  %v59 = vadd.f32 %v58, %v34
  %v60 = vadd.f32 %v59, %v36
  %v61 = vadd.f32 %v60, %v38
  %v62 = vadd.f32 %v61, %v40
  %v63 = vadd.f32 %v62, %v42
  %v64 = vadd.f32 %v63, %v44
  %v65 = vadd.f32 %v64, %v46
  %v66 = vadd.f32 %v65, %v48
  %v67 = vadd.f32 %v66, %v50
  %v68 = vrot.slane %v67, 4
  %v69 = vadd.f32 %v67, %v68
  %v70 = vrot.slane %v69, 2
  %v71 = vadd.f32 %v69, %v70
  %v72 = vrot.slane %v71, 1
  %v73 = vadd.f32 %v71, %v72
  %v74 = vadd.f32 %v21, %v23
  %v75 = vadd.f32 %v74, %v25
  %v76 = vadd.f32 %v75, %v27
  %v77 = vadd.f32 %v76, %v29
  %v78 = vadd.f32 %v77, %v31
  %v79 = vadd.f32 %v78, %v33
  %v80 = vadd.f32 %v79, %v35
  %v81 = vadd.f32 %v80, %v37
  %v82 = vadd.f32 %v81, %v39
  %v83 = vadd.f32 %v82, %v41
  %v84 = vadd.f32 %v83, %v43
  %v85 = vadd.f32 %v84, %v45
  %v86 = vadd.f32 %v85, %v47
  %v87 = vadd.f32 %v86, %v49
  %v88 = vadd.f32 %v87, %v51
  %v89 = vrot.slane %v88, 4
  %v90 = vadd.f32 %v88, %v89
  %v91 = vrot.slane %v90, 2
  %v92 = vadd.f32 %v90, %v91
  %v93 = vrot.slane %v92, 1
  %v94 = vadd.f32 %v92, %v93
  %v97 = vrot.slane %v94, 7
  %vm98 = vcmask 1040384
  %v99 = vsel %vm98, %v73, %v97
  %v101 = vadd.f32 %v52, %v99
  %v102 = vlaneseq
  %vm103 = vcmp.ge.s32.totalorder %v102, 0
  %vm104 = vcmp.lt.s32.totalorder %v102, 256
  %vm105 = vmand %vm103, %vm104
  %106 = vst.msk [vmem:[%s1] sm:$0x3] %vm105, %v101
  %v107 = vld [vmem:[%s2] sm:$0x3]
  %v108 = vmul.f32 %v20, %v20
  %v109 = vmul.f32 %v21, %v21
  %v110 = vmul.f32 %v22, %v22
  %v111 = vmul.f32 %v23, %v23
  %v112 = vmul.f32 %v24, %v24
  %v113 = vmul.f32 %v25, %v25
  %v114 = vmul.f32 %v26, %v26
  %v115 = vmul.f32 %v27, %v27
  %v116 = vmul.f32 %v28, %v28
  %v117 = vmul.f32 %v29, %v29
  %v118 = vmul.f32 %v30, %v30
  %v119 = vmul.f32 %v31, %v31
  %v120 = vmul.f32 %v32, %v32
  %v121 = vmul.f32 %v33, %v33
  %v122 = vmul.f32 %v34, %v34
  %v123 = vmul.f32 %v35, %v35
  %v124 = vmul.f32 %v36, %v36
  %v125 = vmul.f32 %v37, %v37
  %v126 = vmul.f32 %v38, %v38
  %v127 = vmul.f32 %v39, %v39
  %v128 = vmul.f32 %v40, %v40
  %v129 = vmul.f32 %v41, %v41
  %v130 = vmul.f32 %v42, %v42
  %v131 = vmul.f32 %v43, %v43
  %v132 = vmul.f32 %v44, %v44
  %v133 = vmul.f32 %v45, %v45
  %v134 = vmul.f32 %v46, %v46
  %v135 = vmul.f32 %v47, %v47
  %v136 = vmul.f32 %v48, %v48
  %v137 = vmul.f32 %v49, %v49
  %v138 = vmul.f32 %v50, %v50
  %v139 = vmul.f32 %v51, %v51
  %v140 = vadd.f32 %v108, %v110
  %v141 = vadd.f32 %v140, %v112
  %v142 = vadd.f32 %v141, %v114
  %v143 = vadd.f32 %v142, %v116
  %v144 = vadd.f32 %v143, %v118
  %v145 = vadd.f32 %v144, %v120
  %v146 = vadd.f32 %v145, %v122
  %v147 = vadd.f32 %v146, %v124
  %v148 = vadd.f32 %v147, %v126
  %v149 = vadd.f32 %v148, %v128
  %v150 = vadd.f32 %v149, %v130
  %v151 = vadd.f32 %v150, %v132
  %v152 = vadd.f32 %v151, %v134
  %v153 = vadd.f32 %v152, %v136
  %v154 = vadd.f32 %v153, %v138
  %v155 = vrot.slane %v154, 4
  %v156 = vadd.f32 %v154, %v155
  %v157 = vrot.slane %v156, 2
  %v158 = vadd.f32 %v156, %v157
  %v159 = vrot.slane %v158, 1
  %v160 = vadd.f32 %v158, %v159
  %v161 = vadd.f32 %v109, %v111
  %v162 = vadd.f32 %v161, %v113
  %v163 = vadd.f32 %v162, %v115
  %v164 = vadd.f32 %v163, %v117
  %v165 = vadd.f32 %v164, %v119
  %v166 = vadd.f32 %v165, %v121
  %v167 = vadd.f32 %v166, %v123
  %v168 = vadd.f32 %v167, %v125
  %v169 = vadd.f32 %v168, %v127
  %v170 = vadd.f32 %v169, %v129
  %v171 = vadd.f32 %v170, %v131
  %v172 = vadd.f32 %v171, %v133
  %v173 = vadd.f32 %v172, %v135
  %v174 = vadd.f32 %v173, %v137
  %v175 = vadd.f32 %v174, %v139
  %v176 = vrot.slane %v175, 4
  %v177 = vadd.f32 %v175, %v176
  %v178 = vrot.slane %v177, 2
  %v179 = vadd.f32 %v177, %v178
  %v180 = vrot.slane %v179, 1
  %v181 = vadd.f32 %v179, %v180
  %v184 = vrot.slane %v181, 7
  %v185 = vsel %vm98, %v160, %v184
  %v187 = vadd.f32 %v107, %v185
  %188 = vst.msk [vmem:[%s2] sm:$0x3] %vm105, %v187
  // Predicated region
  $region10: #{generator_forward.17} parent=0 // pred_check
    _
  $region11: #{generator_forward.17} parent=0 // pred_check_branch
    %190 = sbr.rel (0) target = $region13
  $region12: #{generator_forward.17} parent=0 // pred_region
    _
  $region13: #{generator_forward.17} parent=0 // pred_fallthru
    _
  // Predicated region
  $region14: #{generator_forward.17} parent=0 // pred_check
    _
  $region15: #{generator_forward.17} parent=0 // pred_check_branch
    %192 = sbr.rel (0) target = $region17
  $region16: #{generator_forward.17} parent=0 // pred_region
    _
  $region17: #{generator_forward.17} parent=0 // pred_fallthru
    _
  // Predicated region
  $region18: #{generator_forward.17} parent=0 // pred_check
    _
  $region19: #{generator_forward.17} parent=0 // pred_check_branch
    %194 = sbr.rel (0) target = $region21
  $region20: #{generator_forward.17} parent=0 // pred_region
    _
  $region21: #{generator_forward.17} parent=0 // pred_fallthru
    _
  // Predicated region
  $region22: #{generator_forward.17} parent=0 // pred_check
    _
  $region23: #{generator_forward.17} parent=0 // pred_check_branch
    %196 = sbr.rel (0) target = $region25
  $region24: #{generator_forward.17} parent=0 // pred_region
    _
  $region25: #{generator_forward.17} parent=0 // pred_fallthru
    _

// kernel: generator_forward.18
$region0: #{generator_forward.18}
  #allocation0 [shape = 'u32[]', space=smem, size = 0x4, offset = 0x4, fixed_abs, tag = 'smem constant byte address 0x4 - core index']
  #allocation1 [shape = 'u32[72,128]{1,0:T(1,128)}', space=vmem, size = 0x9000, scoped, tag = 'internal scratch']
  %s0 = inlined_call_operand.vmem [shape: f32[128,256], index: 0, kind: input, shape index: {}]
  %s1 = inlined_call_operand.vmem [shape: f32[1,256], index: 1, kind: input, shape index: {}]
  %s2 = inlined_call_operand.vmem [shape: f32[1,256], index: 2, kind: input, shape index: {}]
  %s3 = inlined_call_operand.vmem [shape: f32[128,256], index: 3, kind: output, shape index: {}]
  %s4 = sld [smem:[#allocation0]]
  $region22: #{generator_forward.18} parent=0
    _
  %s6 = ssub.s32 1, %s4
  %s7 = scalar_select 0, %s6, %s4
  // Predicated region
  $region2: #{generator_forward.18} parent=0 // pred_check
    _
  $region3: #{generator_forward.18} parent=0 // pred_check_branch
    %9 = sbr.rel (0) target = $region5
  $region4: #{generator_forward.18} parent=0 // pred_region
    _
  $region5: #{generator_forward.18} parent=0 // pred_fallthru
    _
  // Predicated region
  $region6: #{generator_forward.18} parent=0 // pred_check
    _
  $region7: #{generator_forward.18} parent=0 // pred_check_branch
    %11 = sbr.rel (0) target = $region9
  $region8: #{generator_forward.18} parent=0 // pred_region
    _
  $region9: #{generator_forward.18} parent=0 // pred_fallthru
    _
  // Predicated region
  $region10: #{generator_forward.18} parent=0 // pred_check
    _
  $region11: #{generator_forward.18} parent=0 // pred_check_branch
    %13 = sbr.rel (0) target = $region13
  $region12: #{generator_forward.18} parent=0 // pred_region
    _
  $region13: #{generator_forward.18} parent=0 // pred_fallthru
    _
  %v14 = vld [vmem:[%s0] sm:$0xff]
  %v15 = vld [vmem:[%s0 + $0x8] sm:$0xff]
  %v16 = vld [vmem:[%s0 + $0x10] sm:$0xff]
  %v17 = vld [vmem:[%s0 + $0x18] sm:$0xff]
  %v18 = vld [vmem:[%s0 + $0x20] sm:$0xff]
  %v19 = vld [vmem:[%s0 + $0x28] sm:$0xff]
  %v20 = vld [vmem:[%s0 + $0x30] sm:$0xff]
  %v21 = vld [vmem:[%s0 + $0x38] sm:$0xff]
  %v22 = vld [vmem:[%s0 + $0x40] sm:$0xff]
  %v23 = vld [vmem:[%s0 + $0x48] sm:$0xff]
  %v24 = vld [vmem:[%s0 + $0x50] sm:$0xff]
  %v25 = vld [vmem:[%s0 + $0x58] sm:$0xff]
  %v26 = vld [vmem:[%s0 + $0x60] sm:$0xff]
  %v27 = vld [vmem:[%s0 + $0x68] sm:$0xff]
  %v28 = vld [vmem:[%s0 + $0x70] sm:$0xff]
  %v29 = vld [vmem:[%s0 + $0x78] sm:$0xff]
  %v30 = vld [vmem:[%s0 + $0x80] sm:$0xff]
  %v31 = vld [vmem:[%s0 + $0x88] sm:$0xff]
  %v32 = vld [vmem:[%s0 + $0x90] sm:$0xff]
  %v33 = vld [vmem:[%s0 + $0x98] sm:$0xff]
  %v34 = vld [vmem:[%s0 + $0xa0] sm:$0xff]
  %v35 = vld [vmem:[%s0 + $0xa8] sm:$0xff]
  %v36 = vld [vmem:[%s0 + $0xb0] sm:$0xff]
  %v37 = vld [vmem:[%s0 + $0xb8] sm:$0xff]
  %v38 = vld [vmem:[%s0 + $0xc0] sm:$0xff]
  %v39 = vld [vmem:[%s0 + $0xc8] sm:$0xff]
  %v40 = vld [vmem:[%s0 + $0xd0] sm:$0xff]
  %v41 = vld [vmem:[%s0 + $0xd8] sm:$0xff]
  %v42 = vld [vmem:[%s0 + $0xe0] sm:$0xff]
  %v43 = vld [vmem:[%s0 + $0xe8] sm:$0xff]
  %v44 = vld [vmem:[%s0 + $0xf0] sm:$0xff]
  %v45 = vld [vmem:[%s0 + $0xf8] sm:$0xff]
  %v46 = vld [vmem:[%s1] sm:$0x3]
  %v48 = vperm.slane %v46, 0
  %v49 = vperm.slane %v46, 1
  %v52 = vmul.f32 %v14, %v48
  %v53 = vmul.f32 %v15, %v49
  %v54 = vmul.f32 %v16, %v48
  %v55 = vmul.f32 %v17, %v49
  %v56 = vmul.f32 %v18, %v48
  %v57 = vmul.f32 %v19, %v49
  %v58 = vmul.f32 %v20, %v48
  %v59 = vmul.f32 %v21, %v49
  %v60 = vmul.f32 %v22, %v48
  %v61 = vmul.f32 %v23, %v49
  %v62 = vmul.f32 %v24, %v48
  %v63 = vmul.f32 %v25, %v49
  %v64 = vmul.f32 %v26, %v48
  %v65 = vmul.f32 %v27, %v49
  %v66 = vmul.f32 %v28, %v48
  %v67 = vmul.f32 %v29, %v49
  %v68 = vmul.f32 %v30, %v48
  %v69 = vmul.f32 %v31, %v49
  %v70 = vmul.f32 %v32, %v48
  %v71 = vmul.f32 %v33, %v49
  %v72 = vmul.f32 %v34, %v48
  %v73 = vmul.f32 %v35, %v49
  %v74 = vmul.f32 %v36, %v48
  %v75 = vmul.f32 %v37, %v49
  %v76 = vmul.f32 %v38, %v48
  %v77 = vmul.f32 %v39, %v49
  %v78 = vmul.f32 %v40, %v48
  %v79 = vmul.f32 %v41, %v49
  %v80 = vmul.f32 %v42, %v48
  %v81 = vmul.f32 %v43, %v49
  %v82 = vmul.f32 %v44, %v48
  %v83 = vmul.f32 %v45, %v49
  %v84 = vld [vmem:[%s2] sm:$0x3]
  %v86 = vperm.slane %v84, 0
  %v87 = vperm.slane %v84, 1
  %v90 = vadd.f32 %v52, %v86
  %v91 = vadd.f32 %v53, %v87
  %v92 = vadd.f32 %v54, %v86
  %v93 = vadd.f32 %v55, %v87
  %v94 = vadd.f32 %v56, %v86
  %v95 = vadd.f32 %v57, %v87
  %v96 = vadd.f32 %v58, %v86
  %v97 = vadd.f32 %v59, %v87
  %v98 = vadd.f32 %v60, %v86
  %v99 = vadd.f32 %v61, %v87
  %v100 = vadd.f32 %v62, %v86
  %v101 = vadd.f32 %v63, %v87
  %v102 = vadd.f32 %v64, %v86
  %v103 = vadd.f32 %v65, %v87
  %v104 = vadd.f32 %v66, %v86
  %v105 = vadd.f32 %v67, %v87
  %v106 = vadd.f32 %v68, %v86
  %v107 = vadd.f32 %v69, %v87
  %v108 = vadd.f32 %v70, %v86
  %v109 = vadd.f32 %v71, %v87
  %v110 = vadd.f32 %v72, %v86
  %v111 = vadd.f32 %v73, %v87
  %v112 = vadd.f32 %v74, %v86
  %v113 = vadd.f32 %v75, %v87
  %v114 = vadd.f32 %v76, %v86
  %v115 = vadd.f32 %v77, %v87
  %v116 = vadd.f32 %v78, %v86
  %v117 = vadd.f32 %v79, %v87
  %v118 = vadd.f32 %v80, %v86
  %v119 = vadd.f32 %v81, %v87
  %v120 = vadd.f32 %v82, %v86
  %v121 = vadd.f32 %v83, %v87
  %v122 = vmax.f32 %v90, 0.0
  %v123 = vmax.f32 %v91, 0.0
  %v124 = vmax.f32 %v92, 0.0
  %v125 = vmax.f32 %v93, 0.0
  %v126 = vmax.f32 %v94, 0.0
  %v127 = vmax.f32 %v95, 0.0
  %v128 = vmax.f32 %v96, 0.0
  %v129 = vmax.f32 %v97, 0.0
  %v130 = vmax.f32 %v98, 0.0
  %v131 = vmax.f32 %v99, 0.0
  %v132 = vmax.f32 %v100, 0.0
  %v133 = vmax.f32 %v101, 0.0
  %v134 = vmax.f32 %v102, 0.0
  %v135 = vmax.f32 %v103, 0.0
  %v136 = vmax.f32 %v104, 0.0
  %v137 = vmax.f32 %v105, 0.0
  %v138 = vmax.f32 %v106, 0.0
  %v139 = vmax.f32 %v107, 0.0
  %v140 = vmax.f32 %v108, 0.0
  %v141 = vmax.f32 %v109, 0.0
  %v142 = vmax.f32 %v110, 0.0
  %v143 = vmax.f32 %v111, 0.0
  %v144 = vmax.f32 %v112, 0.0
  %v145 = vmax.f32 %v113, 0.0
  %v146 = vmax.f32 %v114, 0.0
  %v147 = vmax.f32 %v115, 0.0
  %v148 = vmax.f32 %v116, 0.0
  %v149 = vmax.f32 %v117, 0.0
  %v150 = vmax.f32 %v118, 0.0
  %v151 = vmax.f32 %v119, 0.0
  %v152 = vmax.f32 %v120, 0.0
  %v153 = vmax.f32 %v121, 0.0
  %154 = vst [vmem:[%s3] sm:$0xff] %v122
  %155 = vst [vmem:[%s3 + $0x8] sm:$0xff] %v123
  %156 = vst [vmem:[%s3 + $0x10] sm:$0xff] %v124
  %157 = vst [vmem:[%s3 + $0x18] sm:$0xff] %v125
  %158 = vst [vmem:[%s3 + $0x20] sm:$0xff] %v126
  %159 = vst [vmem:[%s3 + $0x28] sm:$0xff] %v127
  %160 = vst [vmem:[%s3 + $0x30] sm:$0xff] %v128
  %161 = vst [vmem:[%s3 + $0x38] sm:$0xff] %v129
  %162 = vst [vmem:[%s3 + $0x40] sm:$0xff] %v130
  %163 = vst [vmem:[%s3 + $0x48] sm:$0xff] %v131
  %164 = vst [vmem:[%s3 + $0x50] sm:$0xff] %v132
  %165 = vst [vmem:[%s3 + $0x58] sm:$0xff] %v133
  %166 = vst [vmem:[%s3 + $0x60] sm:$0xff] %v134
  %167 = vst [vmem:[%s3 + $0x68] sm:$0xff] %v135
  %168 = vst [vmem:[%s3 + $0x70] sm:$0xff] %v136
  %169 = vst [vmem:[%s3 + $0x78] sm:$0xff] %v137
  %170 = vst [vmem:[%s3 + $0x80] sm:$0xff] %v138
  %171 = vst [vmem:[%s3 + $0x88] sm:$0xff] %v139
  %172 = vst [vmem:[%s3 + $0x90] sm:$0xff] %v140
  %173 = vst [vmem:[%s3 + $0x98] sm:$0xff] %v141
  %174 = vst [vmem:[%s3 + $0xa0] sm:$0xff] %v142
  %175 = vst [vmem:[%s3 + $0xa8] sm:$0xff] %v143
  %176 = vst [vmem:[%s3 + $0xb0] sm:$0xff] %v144
  %177 = vst [vmem:[%s3 + $0xb8] sm:$0xff] %v145
  %178 = vst [vmem:[%s3 + $0xc0] sm:$0xff] %v146
  %179 = vst [vmem:[%s3 + $0xc8] sm:$0xff] %v147
  %180 = vst [vmem:[%s3 + $0xd0] sm:$0xff] %v148
  %181 = vst [vmem:[%s3 + $0xd8] sm:$0xff] %v149
  %182 = vst [vmem:[%s3 + $0xe0] sm:$0xff] %v150
  %183 = vst [vmem:[%s3 + $0xe8] sm:$0xff] %v151
  %184 = vst [vmem:[%s3 + $0xf0] sm:$0xff] %v152
  %185 = vst [vmem:[%s3 + $0xf8] sm:$0xff] %v153
  // Predicated region
  $region14: #{generator_forward.18} parent=0 // pred_check
    _
  $region15: #{generator_forward.18} parent=0 // pred_check_branch
    %187 = sbr.rel (0) target = $region17
  $region16: #{generator_forward.18} parent=0 // pred_region
    _
  $region17: #{generator_forward.18} parent=0 // pred_fallthru
    _
  // Predicated region
  $region18: #{generator_forward.18} parent=0 // pred_check
    _
  $region19: #{generator_forward.18} parent=0 // pred_check_branch
    %189 = sbr.rel (0) target = $region21
  $region20: #{generator_forward.18} parent=0 // pred_region
    _
  $region21: #{generator_forward.18} parent=0 // pred_fallthru
    _

// kernel: generator_forward.16
$region0: #{generator_forward.16}
  #allocation0 [shape = 'u32[]', space=smem, size = 0x4, offset = 0x4, fixed_abs, tag = 'smem constant byte address 0x4 - core index']
  #allocation1 [shape = 'u32[72,128]{1,0:T(1,128)}', space=vmem, size = 0x9000, scoped, tag = 'internal scratch']
  %s0 = inlined_call_operand.vmem [shape: f32[4,32,2048], index: 0, kind: input, shape index: {}]
  %s1 = inlined_call_operand.vmem [shape: f32[4,2048,256], index: 1, kind: input, shape index: {}]
  %s2 = inlined_call_operand.vmem [shape: f32[4,32,256], index: 2, kind: output, shape index: {}]
  %s3 = sld [smem:[#allocation0]]
  $region41: #{generator_forward.16} parent=0
    _
  %s5 = ssub.s32 1, %s3
  %s6 = scalar_select 0, %s5, %s3
  loop: start=0, step=1, limit=6
  $region2: #{generator_forward.16} parent=0 // loop_pre_header
    _
  $region3: #{generator_forward.16} parent=0 // loop_header
    %s8 = sphi 0, %s12
    %p9 = scmp.ge.s32.totalorder %s8, 6
    %s15 = sphi 0, %s41
    %s16 = sphi 0, %s37
    %s17 = sphi 0, %s33
    %s18 = sphi 0, %s29
    %s19 = sphi 0, %s15
    %s20 = sphi 0, %s16
    %s21 = sphi 0, %s17
    %s22 = sphi 0, %s18
    %s23 = sphi 0, %s19
    %s24 = sphi 0, %s20
    %s25 = sphi 0, %s21
    %s26 = sphi 0, %s22
    %s48 = sphi 0, %s50
    %s51 = sphi 0, %s48
    %s52 = sphi 0, %s51
    %s68 = sphi 0, %s52
    %s78 = sphi 0, %s80
    %s81 = sphi 0, %s78
    %s82 = sphi 0, %s81
    %s98 = sphi 0, %s82
    %s108 = sphi 0, %s110
    %s111 = sphi 0, %s108
    %s112 = sphi 0, %s111
    %s128 = sphi 0, %s112
  $region4: #{generator_forward.16} parent=0 // loop_header_branch
    %11 = sbr.rel (%p9) target = $region8
  $region5: #{generator_forward.16} parent=0 // loop_body
    %s13 = ssub.s32 %s8, 1
    %s14 = ssub.s32 %s8, 2
    %s27 = sadd.s32 1, %s18
    %p28 = scmp.ge.s32.totalorder %s27, 1
    %s29 = scalar_select %p28, 0, %s27
    %s30 = sadd.s32 1, %s17
    %s31 = scalar_select %p28, %s30, %s17
    %p32 = scmp.ge.s32.totalorder %s31, 1
    %s33 = scalar_select %p32, 0, %s31
    %s34 = sadd.s32 1, %s16
    %s35 = scalar_select %p32, %s34, %s16
    %p36 = scmp.ge.s32.totalorder %s35, 1
    %s37 = scalar_select %p36, 0, %s35
    %s38 = sadd.s32 1, %s15
    %s39 = scalar_select %p36, %s38, %s15
    %p40 = scmp.ge.s32.totalorder %s39, 4
    %s41 = scalar_select %p40, 0, %s39
    %s42 = ssub.s32 %s15, %s41
    %s43 = ssub.s32 %s16, %s37
    %s44 = sor.u32 %s42, %s43
    %s45 = ssub.s32 %s18, %s29
    %s46 = sor.u32 %s44, %s45
    %p47 = scmp.eq.s32.totalorder %s46, 0
    %s49 = sadd.s32 %s48, 1
    %s50 = scalar_select %p47, %s48, %s49
    %p53 = pneg %p47
    %p54 = scmp.eq.s32.totalorder %s8, 3
    %p55 = por %p53, %p54
    %p56 = scmp.ne.s32.totalorder %s48, %s51
    %p57 = scmp.eq.s32.totalorder %s8, 0
    %p58 = por %p56, %p57
    %p59 = scmp.ne.s32.totalorder %s48, %s51
    %p60 = scmp.eq.s32.totalorder %s13, 3
    %p61 = por %p59, %p60
    %p62 = scmp.ne.s32.totalorder %s51, %s52
    %p63 = scmp.eq.s32.totalorder %s13, 0
    %p64 = por %p62, %p63
    %p65 = scmp.ne.s32.totalorder %s51, %s52
    %p66 = scmp.eq.s32.totalorder %s14, 3
    %p67 = por %p65, %p66
    %p69 = scmp.ne.s32.totalorder %s52, %s68
    %p70 = scmp.eq.s32.totalorder %s14, 0
    %p71 = por %p69, %p70
    %s72 = ssub.s32 %s15, %s41
    %s73 = ssub.s32 %s18, %s29
    %s74 = sor.u32 %s72, %s73
    %s75 = ssub.s32 %s17, %s33
    %s76 = sor.u32 %s74, %s75
    %p77 = scmp.eq.s32.totalorder %s76, 0
    %s79 = sadd.s32 %s78, 1
    %s80 = scalar_select %p77, %s78, %s79
    %p83 = pneg %p77
    %p84 = scmp.eq.s32.totalorder %s8, 3
    %p85 = por %p83, %p84
    %p86 = scmp.ne.s32.totalorder %s78, %s81
    %p87 = scmp.eq.s32.totalorder %s8, 0
    %p88 = por %p86, %p87
    %p89 = scmp.ne.s32.totalorder %s78, %s81
    %p90 = scmp.eq.s32.totalorder %s13, 3
    %p91 = por %p89, %p90
    %p92 = scmp.ne.s32.totalorder %s81, %s82
    %p93 = scmp.eq.s32.totalorder %s13, 0
    %p94 = por %p92, %p93
    %p95 = scmp.ne.s32.totalorder %s81, %s82
    %p96 = scmp.eq.s32.totalorder %s14, 3
    %p97 = por %p95, %p96
    %p99 = scmp.ne.s32.totalorder %s82, %s98
    %p100 = scmp.eq.s32.totalorder %s14, 0
    %p101 = por %p99, %p100
    %s102 = ssub.s32 %s15, %s41
    %s103 = ssub.s32 %s16, %s37
    %s104 = sor.u32 %s102, %s103
    %s105 = ssub.s32 %s17, %s33
    %s106 = sor.u32 %s104, %s105
    %p107 = scmp.eq.s32.totalorder %s106, 0
    %s109 = sadd.s32 %s108, 1
    %s110 = scalar_select %p107, %s108, %s109
    %p113 = pneg %p107
    %p114 = scmp.eq.s32.totalorder %s8, 3
    %p115 = por %p113, %p114
    %p116 = scmp.ne.s32.totalorder %s108, %s111
    %p117 = scmp.eq.s32.totalorder %s8, 0
    %p118 = por %p116, %p117
    %p119 = scmp.ne.s32.totalorder %s108, %s111
    %p120 = scmp.eq.s32.totalorder %s13, 3
    %p121 = por %p119, %p120
    %p122 = scmp.ne.s32.totalorder %s111, %s112
    %p123 = scmp.eq.s32.totalorder %s13, 0
    %p124 = por %p122, %p123
    %p125 = scmp.ne.s32.totalorder %s111, %s112
    %p126 = scmp.eq.s32.totalorder %s14, 3
    %p127 = por %p125, %p126
    %p129 = scmp.ne.s32.totalorder %s112, %s128
    %p130 = scmp.eq.s32.totalorder %s14, 0
    %p131 = por %p129, %p130
    %p132 = scmp.le.s32.totalorder 1, %s8
    %p133 = scmp.lt.s32.totalorder %s8, 5
    %p134 = pnand %p132, %p133
    %p135 = pneg %p134
    // Predicated region
    $region9: #{generator_forward.16} parent=5 // pred_check
      _
    $region10: #{generator_forward.16} parent=5 // pred_check_branch
      %137 = sbr.rel (%p134) target = $region12
    $region11: #{generator_forward.16} parent=5 // pred_region
      %s138 = ssub.s32 %s8, 1
    $region12: #{generator_forward.16} parent=5 // pred_fallthru
      _
    %p139 = scmp.lt.s32.totalorder %s8, 4
    // Predicated region
    $region13: #{generator_forward.16} parent=5 // pred_check
      %p140 = pneg %p139
    $region14: #{generator_forward.16} parent=5 // pred_check_branch
      %142 = sbr.rel (%p140) target = $region16
    $region15: #{generator_forward.16} parent=5 // pred_region
      // Predicated region
      $region17: #{generator_forward.16} parent=15 // pred_check
        %p143 = pneg %p58
      $region18: #{generator_forward.16} parent=15 // pred_check_branch
        %145 = sbr.rel (%p143) target = $region20
      $region19: #{generator_forward.16} parent=15 // pred_region
        %s146 = smul.u32 4, %s16
        %s147 = smul.u32 16, %s18
        %p148 = scmp.lt.s32.totalorder %s15, 3
        %s149 = scalar_select %p148, %s15, 3
        %p150 = scmp.lt.s32.totalorder %s146, 3
        %s151 = scalar_select %p150, %s146, 3
        %p152 = scmp.lt.s32.totalorder %s147, 15
        %s153 = scalar_select %p152, %s147, 15
        %s154 = smul.addr %s151, 16
        %s155 = sadd.s32 %s153, %s154
        %s156 = smul.addr %s149, 64
        %s157 = sadd.s32 %s155, %s156
        %s158 = smul.addr %s157, 8
        %s159 = scalar_lea.vmem %s0, %s158
        %s160 = smul.u32 4, %s16
        %s161 = smul.u32 16, %s18
      $region20: #{generator_forward.16} parent=15 // pred_fallthru
        _
      // Predicated region
      $region21: #{generator_forward.16} parent=15 // pred_check
        %p162 = pneg %p88
      $region22: #{generator_forward.16} parent=15 // pred_check_branch
        %164 = sbr.rel (%p162) target = $region24
      $region23: #{generator_forward.16} parent=15 // pred_region
        %s165 = smul.u32 256, %s18
        %s166 = smul.u32 2, %s17
        %p167 = scmp.lt.s32.totalorder %s15, 3
        %s168 = scalar_select %p167, %s15, 3
        %p169 = scmp.lt.s32.totalorder %s165, 255
        %s170 = scalar_select %p169, %s165, 255
        %p171 = scmp.lt.s32.totalorder %s166, 1
        %s172 = scalar_select %p171, %s166, 1
        %s173 = smul.addr %s170, 2
        %s174 = sadd.s32 %s172, %s173
        %s175 = smul.addr %s168, 512
        %s176 = sadd.s32 %s174, %s175
        %s177 = smul.addr %s176, 8
        %s178 = scalar_lea.vmem %s1, %s177
        %s179 = smul.u32 256, %s18
        %s180 = smul.u32 2, %s17
      $region24: #{generator_forward.16} parent=15 // pred_fallthru
        _
    $region16: #{generator_forward.16} parent=5 // pred_fallthru
      _
    %p181 = scmp.le.s32.totalorder 1, %s8
    %p182 = scmp.lt.s32.totalorder %s8, 5
    %p183 = pnand %p181, %p182
    %p184 = pneg %p183
    // Predicated region
    $region25: #{generator_forward.16} parent=5 // pred_check
      _
    $region26: #{generator_forward.16} parent=5 // pred_check_branch
      %186 = sbr.rel (%p183) target = $region28
    $region27: #{generator_forward.16} parent=5 // pred_region
      %s187 = ssub.s32 %s8, 1
      %s188 = smul.u32 4, %s20
      %s189 = smul.u32 16, %s22
      %p190 = scmp.lt.s32.totalorder %s19, 3
      %s191 = scalar_select %p190, %s19, 3
      %p192 = scmp.lt.s32.totalorder %s188, 3
      %s193 = scalar_select %p192, %s188, 3
      %p194 = scmp.lt.s32.totalorder %s189, 15
      %s195 = scalar_select %p194, %s189, 15
      %s196 = smul.addr %s193, 16
      %s197 = sadd.s32 %s195, %s196
      %s198 = smul.addr %s191, 64
      %s199 = sadd.s32 %s197, %s198
      %s200 = smul.addr %s199, 8
      %s201 = scalar_lea.vmem %s0, %s200
      %p202 = pneg %p64
      %p203 = pneg %p61
      %s204 = smul.u32 256, %s22
      %s205 = smul.u32 2, %s21
      %p206 = scmp.lt.s32.totalorder %s19, 3
      %s207 = scalar_select %p206, %s19, 3
      %p208 = scmp.lt.s32.totalorder %s204, 255
      %s209 = scalar_select %p208, %s204, 255
      %p210 = scmp.lt.s32.totalorder %s205, 1
      %s211 = scalar_select %p210, %s205, 1
      %s212 = smul.addr %s209, 2
      %s213 = sadd.s32 %s211, %s212
      %s214 = smul.addr %s207, 512
      %s215 = sadd.s32 %s213, %s214
      %s216 = smul.addr %s215, 8
      %s217 = scalar_lea.vmem %s1, %s216
      %p218 = pneg %p94
      %p219 = pneg %p91
      %p220 = pneg %p124
      %p221 = pneg %p121
      %s222 = smul.u32 4, %s20
      %s223 = smul.u32 2, %s21
      %p224 = scmp.lt.s32.totalorder %s19, 3
      %s225 = scalar_select %p224, %s19, 3
      %p226 = scmp.lt.s32.totalorder %s222, 3
      %s227 = scalar_select %p226, %s222, 3
      %p228 = scmp.lt.s32.totalorder %s223, 1
      %s229 = scalar_select %p228, %s223, 1
      %s230 = smul.addr %s227, 2
      %s231 = sadd.s32 %s229, %s230
      %s232 = smul.addr %s225, 8
      %s233 = sadd.s32 %s231, %s232
      %s234 = smul.addr %s233, 8
      %s235 = scalar_lea.vmem %s2, %s234
      %s236 = smul.u32 4, %s20
      %s237 = smul.u32 16, %s22
      %p238 = scmp.lt.s32.totalorder %s19, 3
      %s239 = scalar_select %p238, %s19, 3
      %p240 = scmp.lt.s32.totalorder %s236, 3
      %s241 = scalar_select %p240, %s236, 3
      %p242 = scmp.lt.s32.totalorder %s237, 15
      %s243 = scalar_select %p242, %s237, 15
      %s244 = smul.addr %s241, 16
      %s245 = sadd.s32 %s243, %s244
      %s246 = smul.addr %s239, 64
      %s247 = sadd.s32 %s245, %s246
      %s248 = smul.addr %s247, 8
      %s249 = scalar_lea.vmem %s0, %s248
      %s250 = smul.u32 4, %s20
      %s251 = smul.u32 16, %s22
      %s252 = smul.u32 256, %s22
      %s253 = smul.u32 2, %s21
      %p254 = scmp.lt.s32.totalorder %s19, 3
      %s255 = scalar_select %p254, %s19, 3
      %p256 = scmp.lt.s32.totalorder %s252, 255
      %s257 = scalar_select %p256, %s252, 255
      %p258 = scmp.lt.s32.totalorder %s253, 1
      %s259 = scalar_select %p258, %s253, 1
      %s260 = smul.addr %s257, 2
      %s261 = sadd.s32 %s259, %s260
      %s262 = smul.addr %s255, 512
      %s263 = sadd.s32 %s261, %s262
      %s264 = smul.addr %s263, 8
      %s265 = scalar_lea.vmem %s1, %s264
      %s266 = smul.u32 256, %s22
      %s267 = smul.u32 2, %s21
      %s268 = smul.u32 4, %s20
      %s269 = smul.u32 2, %s21
      %p270 = scmp.lt.s32.totalorder %s19, 3
      %s271 = scalar_select %p270, %s19, 3
      %p272 = scmp.lt.s32.totalorder %s268, 3
      %s273 = scalar_select %p272, %s268, 3
      %p274 = scmp.lt.s32.totalorder %s269, 1
      %s275 = scalar_select %p274, %s269, 1
      %s276 = smul.addr %s273, 2
      %s277 = sadd.s32 %s275, %s276
      %s278 = smul.addr %s271, 8
      %s279 = sadd.s32 %s277, %s278
      %s280 = smul.addr %s279, 8
      %s281 = scalar_lea.vmem %s2, %s280
      %s282 = smul.u32 4, %s20
      %s283 = smul.u32 2, %s21
      %v284 = vld [vmem:[%s249] sm:$0xff]
      %v285 = vld [vmem:[%s249 + $0x8] sm:$0xff]
      %v286 = vld [vmem:[%s249 + $0x10] sm:$0xff]
      %v287 = vld [vmem:[%s249 + $0x18] sm:$0xff]
      %v288 = vld [vmem:[%s249 + $0x20] sm:$0xff]
      %v289 = vld [vmem:[%s249 + $0x28] sm:$0xff]
      %v290 = vld [vmem:[%s249 + $0x30] sm:$0xff]
      %v291 = vld [vmem:[%s249 + $0x38] sm:$0xff]
      %v292 = vld [vmem:[%s249 + $0x40] sm:$0xff]
      %v293 = vld [vmem:[%s249 + $0x48] sm:$0xff]
      %v294 = vld [vmem:[%s249 + $0x50] sm:$0xff]
      %v295 = vld [vmem:[%s249 + $0x58] sm:$0xff]
      %v296 = vld [vmem:[%s249 + $0x60] sm:$0xff]
      %v297 = vld [vmem:[%s249 + $0x68] sm:$0xff]
      %v298 = vld [vmem:[%s249 + $0x70] sm:$0xff]
      %v299 = vld [vmem:[%s249 + $0x78] sm:$0xff]
      %v300 = vld [vmem:[%s249 + $0x80] sm:$0xff]
      %v301 = vld [vmem:[%s249 + $0x88] sm:$0xff]
      %v302 = vld [vmem:[%s249 + $0x90] sm:$0xff]
      %v303 = vld [vmem:[%s249 + $0x98] sm:$0xff]
      %v304 = vld [vmem:[%s249 + $0xa0] sm:$0xff]
      %v305 = vld [vmem:[%s249 + $0xa8] sm:$0xff]
      %v306 = vld [vmem:[%s249 + $0xb0] sm:$0xff]
      %v307 = vld [vmem:[%s249 + $0xb8] sm:$0xff]
      %v308 = vld [vmem:[%s249 + $0xc0] sm:$0xff]
      %v309 = vld [vmem:[%s249 + $0xc8] sm:$0xff]
      %v310 = vld [vmem:[%s249 + $0xd0] sm:$0xff]
      %v311 = vld [vmem:[%s249 + $0xd8] sm:$0xff]
      %v312 = vld [vmem:[%s249 + $0xe0] sm:$0xff]
      %v313 = vld [vmem:[%s249 + $0xe8] sm:$0xff]
      %v314 = vld [vmem:[%s249 + $0xf0] sm:$0xff]
      %v315 = vld [vmem:[%s249 + $0xf8] sm:$0xff]
      %v316 = vld [vmem:[%s249 + $0x100] sm:$0xff]
      %v317 = vld [vmem:[%s249 + $0x108] sm:$0xff]
      %v318 = vld [vmem:[%s249 + $0x110] sm:$0xff]
      %v319 = vld [vmem:[%s249 + $0x118] sm:$0xff]
      %v320 = vld [vmem:[%s249 + $0x120] sm:$0xff]
      %v321 = vld [vmem:[%s249 + $0x128] sm:$0xff]
      %v322 = vld [vmem:[%s249 + $0x130] sm:$0xff]
      %v323 = vld [vmem:[%s249 + $0x138] sm:$0xff]
      %v324 = vld [vmem:[%s249 + $0x140] sm:$0xff]
      %v325 = vld [vmem:[%s249 + $0x148] sm:$0xff]
      %v326 = vld [vmem:[%s249 + $0x150] sm:$0xff]
      %v327 = vld [vmem:[%s249 + $0x158] sm:$0xff]
      %v328 = vld [vmem:[%s249 + $0x160] sm:$0xff]
      %v329 = vld [vmem:[%s249 + $0x168] sm:$0xff]
      %v330 = vld [vmem:[%s249 + $0x170] sm:$0xff]
      %v331 = vld [vmem:[%s249 + $0x178] sm:$0xff]
      %v332 = vld [vmem:[%s249 + $0x180] sm:$0xff]
      %v333 = vld [vmem:[%s249 + $0x188] sm:$0xff]
      %v334 = vld [vmem:[%s249 + $0x190] sm:$0xff]
      %v335 = vld [vmem:[%s249 + $0x198] sm:$0xff]
      %v336 = vld [vmem:[%s249 + $0x1a0] sm:$0xff]
      %v337 = vld [vmem:[%s249 + $0x1a8] sm:$0xff]
      %v338 = vld [vmem:[%s249 + $0x1b0] sm:$0xff]
      %v339 = vld [vmem:[%s249 + $0x1b8] sm:$0xff]
      %v340 = vld [vmem:[%s249 + $0x1c0] sm:$0xff]
      %v341 = vld [vmem:[%s249 + $0x1c8] sm:$0xff]
      %v342 = vld [vmem:[%s249 + $0x1d0] sm:$0xff]
      %v343 = vld [vmem:[%s249 + $0x1d8] sm:$0xff]
      %v344 = vld [vmem:[%s249 + $0x1e0] sm:$0xff]
      %v345 = vld [vmem:[%s249 + $0x1e8] sm:$0xff]
      %v346 = vld [vmem:[%s249 + $0x1f0] sm:$0xff]
      %v347 = vld [vmem:[%s249 + $0x1f8] sm:$0xff]
      %v348 = vld [vmem:[%s265] sm:$0xff]
      %v349 = vld [vmem:[%s265 + $0x8] sm:$0xff]
      %v350 = vld [vmem:[%s265 + $0x10] sm:$0xff]
      %v351 = vld [vmem:[%s265 + $0x18] sm:$0xff]
      %v352 = vld [vmem:[%s265 + $0x20] sm:$0xff]
      %v353 = vld [vmem:[%s265 + $0x28] sm:$0xff]
      %v354 = vld [vmem:[%s265 + $0x30] sm:$0xff]
      %v355 = vld [vmem:[%s265 + $0x38] sm:$0xff]
      %v356 = vld [vmem:[%s265 + $0x40] sm:$0xff]
      %v357 = vld [vmem:[%s265 + $0x48] sm:$0xff]
      %v358 = vld [vmem:[%s265 + $0x50] sm:$0xff]
      %v359 = vld [vmem:[%s265 + $0x58] sm:$0xff]
      %v360 = vld [vmem:[%s265 + $0x60] sm:$0xff]
      %v361 = vld [vmem:[%s265 + $0x68] sm:$0xff]
      %v362 = vld [vmem:[%s265 + $0x70] sm:$0xff]
      %v363 = vld [vmem:[%s265 + $0x78] sm:$0xff]
      %v364 = vld [vmem:[%s265 + $0x80] sm:$0xff]
      %v365 = vld [vmem:[%s265 + $0x88] sm:$0xff]
      %v366 = vld [vmem:[%s265 + $0x90] sm:$0xff]
      %v367 = vld [vmem:[%s265 + $0x98] sm:$0xff]
      %v368 = vld [vmem:[%s265 + $0xa0] sm:$0xff]
      %v369 = vld [vmem:[%s265 + $0xa8] sm:$0xff]
      %v370 = vld [vmem:[%s265 + $0xb0] sm:$0xff]
      %v371 = vld [vmem:[%s265 + $0xb8] sm:$0xff]
      %v372 = vld [vmem:[%s265 + $0xc0] sm:$0xff]
      %v373 = vld [vmem:[%s265 + $0xc8] sm:$0xff]
      %v374 = vld [vmem:[%s265 + $0xd0] sm:$0xff]
      %v375 = vld [vmem:[%s265 + $0xd8] sm:$0xff]
      %v376 = vld [vmem:[%s265 + $0xe0] sm:$0xff]
      %v377 = vld [vmem:[%s265 + $0xe8] sm:$0xff]
      %v378 = vld [vmem:[%s265 + $0xf0] sm:$0xff]
      %v379 = vld [vmem:[%s265 + $0xf8] sm:$0xff]
      %v380 = vld [vmem:[%s265 + $0x100] sm:$0xff]
      %v381 = vld [vmem:[%s265 + $0x108] sm:$0xff]
      %v382 = vld [vmem:[%s265 + $0x110] sm:$0xff]
      %v383 = vld [vmem:[%s265 + $0x118] sm:$0xff]
      %v384 = vld [vmem:[%s265 + $0x120] sm:$0xff]
      %v385 = vld [vmem:[%s265 + $0x128] sm:$0xff]
      %v386 = vld [vmem:[%s265 + $0x130] sm:$0xff]
      %v387 = vld [vmem:[%s265 + $0x138] sm:$0xff]
      %v388 = vld [vmem:[%s265 + $0x140] sm:$0xff]
      %v389 = vld [vmem:[%s265 + $0x148] sm:$0xff]
      %v390 = vld [vmem:[%s265 + $0x150] sm:$0xff]
      %v391 = vld [vmem:[%s265 + $0x158] sm:$0xff]
      %v392 = vld [vmem:[%s265 + $0x160] sm:$0xff]
      %v393 = vld [vmem:[%s265 + $0x168] sm:$0xff]
      %v394 = vld [vmem:[%s265 + $0x170] sm:$0xff]
      %v395 = vld [vmem:[%s265 + $0x178] sm:$0xff]
      %v396 = vld [vmem:[%s265 + $0x180] sm:$0xff]
      %v397 = vld [vmem:[%s265 + $0x188] sm:$0xff]
      %v398 = vld [vmem:[%s265 + $0x190] sm:$0xff]
      %v399 = vld [vmem:[%s265 + $0x198] sm:$0xff]
      %v400 = vld [vmem:[%s265 + $0x1a0] sm:$0xff]
      %v401 = vld [vmem:[%s265 + $0x1a8] sm:$0xff]
      %v402 = vld [vmem:[%s265 + $0x1b0] sm:$0xff]
      %v403 = vld [vmem:[%s265 + $0x1b8] sm:$0xff]
      %v404 = vld [vmem:[%s265 + $0x1c0] sm:$0xff]
      %v405 = vld [vmem:[%s265 + $0x1c8] sm:$0xff]
      %v406 = vld [vmem:[%s265 + $0x1d0] sm:$0xff]
      %v407 = vld [vmem:[%s265 + $0x1d8] sm:$0xff]
      %v408 = vld [vmem:[%s265 + $0x1e0] sm:$0xff]
      %v409 = vld [vmem:[%s265 + $0x1e8] sm:$0xff]
      %v410 = vld [vmem:[%s265 + $0x1f0] sm:$0xff]
      %v411 = vld [vmem:[%s265 + $0x1f8] sm:$0xff]
      %v412 = vld [vmem:[%s265 + $0x200] sm:$0xff]
      %v413 = vld [vmem:[%s265 + $0x208] sm:$0xff]
      %v414 = vld [vmem:[%s265 + $0x210] sm:$0xff]
      %v415 = vld [vmem:[%s265 + $0x218] sm:$0xff]
      %v416 = vld [vmem:[%s265 + $0x220] sm:$0xff]
      %v417 = vld [vmem:[%s265 + $0x228] sm:$0xff]
      %v418 = vld [vmem:[%s265 + $0x230] sm:$0xff]
      %v419 = vld [vmem:[%s265 + $0x238] sm:$0xff]
      %v420 = vld [vmem:[%s265 + $0x240] sm:$0xff]
      %v421 = vld [vmem:[%s265 + $0x248] sm:$0xff]
      %v422 = vld [vmem:[%s265 + $0x250] sm:$0xff]
      %v423 = vld [vmem:[%s265 + $0x258] sm:$0xff]
      %v424 = vld [vmem:[%s265 + $0x260] sm:$0xff]
      %v425 = vld [vmem:[%s265 + $0x268] sm:$0xff]
      %v426 = vld [vmem:[%s265 + $0x270] sm:$0xff]
      %v427 = vld [vmem:[%s265 + $0x278] sm:$0xff]
      %v428 = vld [vmem:[%s265 + $0x280] sm:$0xff]
      %v429 = vld [vmem:[%s265 + $0x288] sm:$0xff]
      %v430 = vld [vmem:[%s265 + $0x290] sm:$0xff]
      %v431 = vld [vmem:[%s265 + $0x298] sm:$0xff]
      %v432 = vld [vmem:[%s265 + $0x2a0] sm:$0xff]
      %v433 = vld [vmem:[%s265 + $0x2a8] sm:$0xff]
      %v434 = vld [vmem:[%s265 + $0x2b0] sm:$0xff]
      %v435 = vld [vmem:[%s265 + $0x2b8] sm:$0xff]
      %v436 = vld [vmem:[%s265 + $0x2c0] sm:$0xff]
      %v437 = vld [vmem:[%s265 + $0x2c8] sm:$0xff]
      %v438 = vld [vmem:[%s265 + $0x2d0] sm:$0xff]
      %v439 = vld [vmem:[%s265 + $0x2d8] sm:$0xff]
      %v440 = vld [vmem:[%s265 + $0x2e0] sm:$0xff]
      %v441 = vld [vmem:[%s265 + $0x2e8] sm:$0xff]
      %v442 = vld [vmem:[%s265 + $0x2f0] sm:$0xff]
      %v443 = vld [vmem:[%s265 + $0x2f8] sm:$0xff]
      %v444 = vld [vmem:[%s265 + $0x300] sm:$0xff]
      %v445 = vld [vmem:[%s265 + $0x308] sm:$0xff]
      %v446 = vld [vmem:[%s265 + $0x310] sm:$0xff]
      %v447 = vld [vmem:[%s265 + $0x318] sm:$0xff]
      %v448 = vld [vmem:[%s265 + $0x320] sm:$0xff]
      %v449 = vld [vmem:[%s265 + $0x328] sm:$0xff]
      %v450 = vld [vmem:[%s265 + $0x330] sm:$0xff]
      %v451 = vld [vmem:[%s265 + $0x338] sm:$0xff]
      %v452 = vld [vmem:[%s265 + $0x340] sm:$0xff]
      %v453 = vld [vmem:[%s265 + $0x348] sm:$0xff]
      %v454 = vld [vmem:[%s265 + $0x350] sm:$0xff]
      %v455 = vld [vmem:[%s265 + $0x358] sm:$0xff]
      %v456 = vld [vmem:[%s265 + $0x360] sm:$0xff]
      %v457 = vld [vmem:[%s265 + $0x368] sm:$0xff]
      %v458 = vld [vmem:[%s265 + $0x370] sm:$0xff]
      %v459 = vld [vmem:[%s265 + $0x378] sm:$0xff]
      %v460 = vld [vmem:[%s265 + $0x380] sm:$0xff]
      %v461 = vld [vmem:[%s265 + $0x388] sm:$0xff]
      %v462 = vld [vmem:[%s265 + $0x390] sm:$0xff]
      %v463 = vld [vmem:[%s265 + $0x398] sm:$0xff]
      %v464 = vld [vmem:[%s265 + $0x3a0] sm:$0xff]
      %v465 = vld [vmem:[%s265 + $0x3a8] sm:$0xff]
      %v466 = vld [vmem:[%s265 + $0x3b0] sm:$0xff]
      %v467 = vld [vmem:[%s265 + $0x3b8] sm:$0xff]
      %v468 = vld [vmem:[%s265 + $0x3c0] sm:$0xff]
      %v469 = vld [vmem:[%s265 + $0x3c8] sm:$0xff]
      %v470 = vld [vmem:[%s265 + $0x3d0] sm:$0xff]
      %v471 = vld [vmem:[%s265 + $0x3d8] sm:$0xff]
      %v472 = vld [vmem:[%s265 + $0x3e0] sm:$0xff]
      %v473 = vld [vmem:[%s265 + $0x3e8] sm:$0xff]
      %v474 = vld [vmem:[%s265 + $0x3f0] sm:$0xff]
      %v475 = vld [vmem:[%s265 + $0x3f8] sm:$0xff]
      %v476 = vld [vmem:[%s265 + $0x400] sm:$0xff]
      %v477 = vld [vmem:[%s265 + $0x408] sm:$0xff]
      %v478 = vld [vmem:[%s265 + $0x410] sm:$0xff]
      %v479 = vld [vmem:[%s265 + $0x418] sm:$0xff]
      %v480 = vld [vmem:[%s265 + $0x420] sm:$0xff]
      %v481 = vld [vmem:[%s265 + $0x428] sm:$0xff]
      %v482 = vld [vmem:[%s265 + $0x430] sm:$0xff]
      %v483 = vld [vmem:[%s265 + $0x438] sm:$0xff]
      %v484 = vld [vmem:[%s265 + $0x440] sm:$0xff]
      %v485 = vld [vmem:[%s265 + $0x448] sm:$0xff]
      %v486 = vld [vmem:[%s265 + $0x450] sm:$0xff]
      %v487 = vld [vmem:[%s265 + $0x458] sm:$0xff]
      %v488 = vld [vmem:[%s265 + $0x460] sm:$0xff]
      %v489 = vld [vmem:[%s265 + $0x468] sm:$0xff]
      %v490 = vld [vmem:[%s265 + $0x470] sm:$0xff]
      %v491 = vld [vmem:[%s265 + $0x478] sm:$0xff]
      %v492 = vld [vmem:[%s265 + $0x480] sm:$0xff]
      %v493 = vld [vmem:[%s265 + $0x488] sm:$0xff]
      %v494 = vld [vmem:[%s265 + $0x490] sm:$0xff]
      %v495 = vld [vmem:[%s265 + $0x498] sm:$0xff]
      %v496 = vld [vmem:[%s265 + $0x4a0] sm:$0xff]
      %v497 = vld [vmem:[%s265 + $0x4a8] sm:$0xff]
      %v498 = vld [vmem:[%s265 + $0x4b0] sm:$0xff]
      %v499 = vld [vmem:[%s265 + $0x4b8] sm:$0xff]
      %v500 = vld [vmem:[%s265 + $0x4c0] sm:$0xff]
      %v501 = vld [vmem:[%s265 + $0x4c8] sm:$0xff]
      %v502 = vld [vmem:[%s265 + $0x4d0] sm:$0xff]
      %v503 = vld [vmem:[%s265 + $0x4d8] sm:$0xff]
      %v504 = vld [vmem:[%s265 + $0x4e0] sm:$0xff]
      %v505 = vld [vmem:[%s265 + $0x4e8] sm:$0xff]
      %v506 = vld [vmem:[%s265 + $0x4f0] sm:$0xff]
      %v507 = vld [vmem:[%s265 + $0x4f8] sm:$0xff]
      %v508 = vld [vmem:[%s265 + $0x500] sm:$0xff]
      %v509 = vld [vmem:[%s265 + $0x508] sm:$0xff]
      %v510 = vld [vmem:[%s265 + $0x510] sm:$0xff]
      %v511 = vld [vmem:[%s265 + $0x518] sm:$0xff]
      %v512 = vld [vmem:[%s265 + $0x520] sm:$0xff]
      %v513 = vld [vmem:[%s265 + $0x528] sm:$0xff]
      %v514 = vld [vmem:[%s265 + $0x530] sm:$0xff]
      %v515 = vld [vmem:[%s265 + $0x538] sm:$0xff]
      %v516 = vld [vmem:[%s265 + $0x540] sm:$0xff]
      %v517 = vld [vmem:[%s265 + $0x548] sm:$0xff]
      %v518 = vld [vmem:[%s265 + $0x550] sm:$0xff]
      %v519 = vld [vmem:[%s265 + $0x558] sm:$0xff]
      %v520 = vld [vmem:[%s265 + $0x560] sm:$0xff]
      %v521 = vld [vmem:[%s265 + $0x568] sm:$0xff]
      %v522 = vld [vmem:[%s265 + $0x570] sm:$0xff]
      %v523 = vld [vmem:[%s265 + $0x578] sm:$0xff]
      %v524 = vld [vmem:[%s265 + $0x580] sm:$0xff]
      %v525 = vld [vmem:[%s265 + $0x588] sm:$0xff]
      %v526 = vld [vmem:[%s265 + $0x590] sm:$0xff]
      %v527 = vld [vmem:[%s265 + $0x598] sm:$0xff]
      %v528 = vld [vmem:[%s265 + $0x5a0] sm:$0xff]
      %v529 = vld [vmem:[%s265 + $0x5a8] sm:$0xff]
      %v530 = vld [vmem:[%s265 + $0x5b0] sm:$0xff]
      %v531 = vld [vmem:[%s265 + $0x5b8] sm:$0xff]
      %v532 = vld [vmem:[%s265 + $0x5c0] sm:$0xff]
      %v533 = vld [vmem:[%s265 + $0x5c8] sm:$0xff]
      %v534 = vld [vmem:[%s265 + $0x5d0] sm:$0xff]
      %v535 = vld [vmem:[%s265 + $0x5d8] sm:$0xff]
      %v536 = vld [vmem:[%s265 + $0x5e0] sm:$0xff]
      %v537 = vld [vmem:[%s265 + $0x5e8] sm:$0xff]
      %v538 = vld [vmem:[%s265 + $0x5f0] sm:$0xff]
      %v539 = vld [vmem:[%s265 + $0x5f8] sm:$0xff]
      %v540 = vld [vmem:[%s265 + $0x600] sm:$0xff]
      %v541 = vld [vmem:[%s265 + $0x608] sm:$0xff]
      %v542 = vld [vmem:[%s265 + $0x610] sm:$0xff]
      %v543 = vld [vmem:[%s265 + $0x618] sm:$0xff]
      %v544 = vld [vmem:[%s265 + $0x620] sm:$0xff]
      %v545 = vld [vmem:[%s265 + $0x628] sm:$0xff]
      %v546 = vld [vmem:[%s265 + $0x630] sm:$0xff]
      %v547 = vld [vmem:[%s265 + $0x638] sm:$0xff]
      %v548 = vld [vmem:[%s265 + $0x640] sm:$0xff]
      %v549 = vld [vmem:[%s265 + $0x648] sm:$0xff]
      %v550 = vld [vmem:[%s265 + $0x650] sm:$0xff]
      %v551 = vld [vmem:[%s265 + $0x658] sm:$0xff]
      %v552 = vld [vmem:[%s265 + $0x660] sm:$0xff]
      %v553 = vld [vmem:[%s265 + $0x668] sm:$0xff]
      %v554 = vld [vmem:[%s265 + $0x670] sm:$0xff]
      %v555 = vld [vmem:[%s265 + $0x678] sm:$0xff]
      %v556 = vld [vmem:[%s265 + $0x680] sm:$0xff]
      %v557 = vld [vmem:[%s265 + $0x688] sm:$0xff]
      %v558 = vld [vmem:[%s265 + $0x690] sm:$0xff]
      %v559 = vld [vmem:[%s265 + $0x698] sm:$0xff]
      %v560 = vld [vmem:[%s265 + $0x6a0] sm:$0xff]
      %v561 = vld [vmem:[%s265 + $0x6a8] sm:$0xff]
      %v562 = vld [vmem:[%s265 + $0x6b0] sm:$0xff]
      %v563 = vld [vmem:[%s265 + $0x6b8] sm:$0xff]
      %v564 = vld [vmem:[%s265 + $0x6c0] sm:$0xff]
      %v565 = vld [vmem:[%s265 + $0x6c8] sm:$0xff]
      %v566 = vld [vmem:[%s265 + $0x6d0] sm:$0xff]
      %v567 = vld [vmem:[%s265 + $0x6d8] sm:$0xff]
      %v568 = vld [vmem:[%s265 + $0x6e0] sm:$0xff]
      %v569 = vld [vmem:[%s265 + $0x6e8] sm:$0xff]
      %v570 = vld [vmem:[%s265 + $0x6f0] sm:$0xff]
      %v571 = vld [vmem:[%s265 + $0x6f8] sm:$0xff]
      %v572 = vld [vmem:[%s265 + $0x700] sm:$0xff]
      %v573 = vld [vmem:[%s265 + $0x708] sm:$0xff]
      %v574 = vld [vmem:[%s265 + $0x710] sm:$0xff]
      %v575 = vld [vmem:[%s265 + $0x718] sm:$0xff]
      %v576 = vld [vmem:[%s265 + $0x720] sm:$0xff]
      %v577 = vld [vmem:[%s265 + $0x728] sm:$0xff]
      %v578 = vld [vmem:[%s265 + $0x730] sm:$0xff]
      %v579 = vld [vmem:[%s265 + $0x738] sm:$0xff]
      %v580 = vld [vmem:[%s265 + $0x740] sm:$0xff]
      %v581 = vld [vmem:[%s265 + $0x748] sm:$0xff]
      %v582 = vld [vmem:[%s265 + $0x750] sm:$0xff]
      %v583 = vld [vmem:[%s265 + $0x758] sm:$0xff]
      %v584 = vld [vmem:[%s265 + $0x760] sm:$0xff]
      %v585 = vld [vmem:[%s265 + $0x768] sm:$0xff]
      %v586 = vld [vmem:[%s265 + $0x770] sm:$0xff]
      %v587 = vld [vmem:[%s265 + $0x778] sm:$0xff]
      %v588 = vld [vmem:[%s265 + $0x780] sm:$0xff]
      %v589 = vld [vmem:[%s265 + $0x788] sm:$0xff]
      %v590 = vld [vmem:[%s265 + $0x790] sm:$0xff]
      %v591 = vld [vmem:[%s265 + $0x798] sm:$0xff]
      %v592 = vld [vmem:[%s265 + $0x7a0] sm:$0xff]
      %v593 = vld [vmem:[%s265 + $0x7a8] sm:$0xff]
      %v594 = vld [vmem:[%s265 + $0x7b0] sm:$0xff]
      %v595 = vld [vmem:[%s265 + $0x7b8] sm:$0xff]
      %v596 = vld [vmem:[%s265 + $0x7c0] sm:$0xff]
      %v597 = vld [vmem:[%s265 + $0x7c8] sm:$0xff]
      %v598 = vld [vmem:[%s265 + $0x7d0] sm:$0xff]
      %v599 = vld [vmem:[%s265 + $0x7d8] sm:$0xff]
      %v600 = vld [vmem:[%s265 + $0x7e0] sm:$0xff]
      %v601 = vld [vmem:[%s265 + $0x7e8] sm:$0xff]
      %v602 = vld [vmem:[%s265 + $0x7f0] sm:$0xff]
      %v603 = vld [vmem:[%s265 + $0x7f8] sm:$0xff]
      %v604 = vld [vmem:[%s265 + $0x800] sm:$0xff]
      %v605 = vld [vmem:[%s265 + $0x808] sm:$0xff]
      %v606 = vld [vmem:[%s265 + $0x810] sm:$0xff]
      %v607 = vld [vmem:[%s265 + $0x818] sm:$0xff]
      %v608 = vld [vmem:[%s265 + $0x820] sm:$0xff]
      %v609 = vld [vmem:[%s265 + $0x828] sm:$0xff]
      %v610 = vld [vmem:[%s265 + $0x830] sm:$0xff]
      %v611 = vld [vmem:[%s265 + $0x838] sm:$0xff]
      %v612 = vld [vmem:[%s265 + $0x840] sm:$0xff]
      %v613 = vld [vmem:[%s265 + $0x848] sm:$0xff]
      %v614 = vld [vmem:[%s265 + $0x850] sm:$0xff]
      %v615 = vld [vmem:[%s265 + $0x858] sm:$0xff]
      %v616 = vld [vmem:[%s265 + $0x860] sm:$0xff]
      %v617 = vld [vmem:[%s265 + $0x868] sm:$0xff]
      %v618 = vld [vmem:[%s265 + $0x870] sm:$0xff]
      %v619 = vld [vmem:[%s265 + $0x878] sm:$0xff]
      %v620 = vld [vmem:[%s265 + $0x880] sm:$0xff]
      %v621 = vld [vmem:[%s265 + $0x888] sm:$0xff]
      %v622 = vld [vmem:[%s265 + $0x890] sm:$0xff]
      %v623 = vld [vmem:[%s265 + $0x898] sm:$0xff]
      %v624 = vld [vmem:[%s265 + $0x8a0] sm:$0xff]
      %v625 = vld [vmem:[%s265 + $0x8a8] sm:$0xff]
      %v626 = vld [vmem:[%s265 + $0x8b0] sm:$0xff]
      %v627 = vld [vmem:[%s265 + $0x8b8] sm:$0xff]
      %v628 = vld [vmem:[%s265 + $0x8c0] sm:$0xff]
      %v629 = vld [vmem:[%s265 + $0x8c8] sm:$0xff]
      %v630 = vld [vmem:[%s265 + $0x8d0] sm:$0xff]
      %v631 = vld [vmem:[%s265 + $0x8d8] sm:$0xff]
      %v632 = vld [vmem:[%s265 + $0x8e0] sm:$0xff]
      %v633 = vld [vmem:[%s265 + $0x8e8] sm:$0xff]
      %v634 = vld [vmem:[%s265 + $0x8f0] sm:$0xff]
      %v635 = vld [vmem:[%s265 + $0x8f8] sm:$0xff]
      %v636 = vld [vmem:[%s265 + $0x900] sm:$0xff]
      %v637 = vld [vmem:[%s265 + $0x908] sm:$0xff]
      %v638 = vld [vmem:[%s265 + $0x910] sm:$0xff]
      %v639 = vld [vmem:[%s265 + $0x918] sm:$0xff]
      %v640 = vld [vmem:[%s265 + $0x920] sm:$0xff]
      %v641 = vld [vmem:[%s265 + $0x928] sm:$0xff]
      %v642 = vld [vmem:[%s265 + $0x930] sm:$0xff]
      %v643 = vld [vmem:[%s265 + $0x938] sm:$0xff]
      %v644 = vld [vmem:[%s265 + $0x940] sm:$0xff]
      %v645 = vld [vmem:[%s265 + $0x948] sm:$0xff]
      %v646 = vld [vmem:[%s265 + $0x950] sm:$0xff]
      %v647 = vld [vmem:[%s265 + $0x958] sm:$0xff]
      %v648 = vld [vmem:[%s265 + $0x960] sm:$0xff]
      %v649 = vld [vmem:[%s265 + $0x968] sm:$0xff]
      %v650 = vld [vmem:[%s265 + $0x970] sm:$0xff]
      %v651 = vld [vmem:[%s265 + $0x978] sm:$0xff]
      %v652 = vld [vmem:[%s265 + $0x980] sm:$0xff]
      %v653 = vld [vmem:[%s265 + $0x988] sm:$0xff]
      %v654 = vld [vmem:[%s265 + $0x990] sm:$0xff]
      %v655 = vld [vmem:[%s265 + $0x998] sm:$0xff]
      %v656 = vld [vmem:[%s265 + $0x9a0] sm:$0xff]
      %v657 = vld [vmem:[%s265 + $0x9a8] sm:$0xff]
      %v658 = vld [vmem:[%s265 + $0x9b0] sm:$0xff]
      %v659 = vld [vmem:[%s265 + $0x9b8] sm:$0xff]
      %v660 = vld [vmem:[%s265 + $0x9c0] sm:$0xff]
      %v661 = vld [vmem:[%s265 + $0x9c8] sm:$0xff]
      %v662 = vld [vmem:[%s265 + $0x9d0] sm:$0xff]
      %v663 = vld [vmem:[%s265 + $0x9d8] sm:$0xff]
      %v664 = vld [vmem:[%s265 + $0x9e0] sm:$0xff]
      %v665 = vld [vmem:[%s265 + $0x9e8] sm:$0xff]
      %v666 = vld [vmem:[%s265 + $0x9f0] sm:$0xff]
      %v667 = vld [vmem:[%s265 + $0x9f8] sm:$0xff]
      %v668 = vld [vmem:[%s265 + $0xa00] sm:$0xff]
      %v669 = vld [vmem:[%s265 + $0xa08] sm:$0xff]
      %v670 = vld [vmem:[%s265 + $0xa10] sm:$0xff]
      %v671 = vld [vmem:[%s265 + $0xa18] sm:$0xff]
      %v672 = vld [vmem:[%s265 + $0xa20] sm:$0xff]
      %v673 = vld [vmem:[%s265 + $0xa28] sm:$0xff]
      %v674 = vld [vmem:[%s265 + $0xa30] sm:$0xff]
      %v675 = vld [vmem:[%s265 + $0xa38] sm:$0xff]
      %v676 = vld [vmem:[%s265 + $0xa40] sm:$0xff]
      %v677 = vld [vmem:[%s265 + $0xa48] sm:$0xff]
      %v678 = vld [vmem:[%s265 + $0xa50] sm:$0xff]
      %v679 = vld [vmem:[%s265 + $0xa58] sm:$0xff]
      %v680 = vld [vmem:[%s265 + $0xa60] sm:$0xff]
      %v681 = vld [vmem:[%s265 + $0xa68] sm:$0xff]
      %v682 = vld [vmem:[%s265 + $0xa70] sm:$0xff]
      %v683 = vld [vmem:[%s265 + $0xa78] sm:$0xff]
      %v684 = vld [vmem:[%s265 + $0xa80] sm:$0xff]
      %v685 = vld [vmem:[%s265 + $0xa88] sm:$0xff]
      %v686 = vld [vmem:[%s265 + $0xa90] sm:$0xff]
      %v687 = vld [vmem:[%s265 + $0xa98] sm:$0xff]
      %v688 = vld [vmem:[%s265 + $0xaa0] sm:$0xff]
      %v689 = vld [vmem:[%s265 + $0xaa8] sm:$0xff]
      %v690 = vld [vmem:[%s265 + $0xab0] sm:$0xff]
      %v691 = vld [vmem:[%s265 + $0xab8] sm:$0xff]
      %v692 = vld [vmem:[%s265 + $0xac0] sm:$0xff]
      %v693 = vld [vmem:[%s265 + $0xac8] sm:$0xff]
      %v694 = vld [vmem:[%s265 + $0xad0] sm:$0xff]
      %v695 = vld [vmem:[%s265 + $0xad8] sm:$0xff]
      %v696 = vld [vmem:[%s265 + $0xae0] sm:$0xff]
      %v697 = vld [vmem:[%s265 + $0xae8] sm:$0xff]
      %v698 = vld [vmem:[%s265 + $0xaf0] sm:$0xff]
      %v699 = vld [vmem:[%s265 + $0xaf8] sm:$0xff]
      %v700 = vld [vmem:[%s265 + $0xb00] sm:$0xff]
      %v701 = vld [vmem:[%s265 + $0xb08] sm:$0xff]
      %v702 = vld [vmem:[%s265 + $0xb10] sm:$0xff]
      %v703 = vld [vmem:[%s265 + $0xb18] sm:$0xff]
      %v704 = vld [vmem:[%s265 + $0xb20] sm:$0xff]
      %v705 = vld [vmem:[%s265 + $0xb28] sm:$0xff]
      %v706 = vld [vmem:[%s265 + $0xb30] sm:$0xff]
      %v707 = vld [vmem:[%s265 + $0xb38] sm:$0xff]
      %v708 = vld [vmem:[%s265 + $0xb40] sm:$0xff]
      %v709 = vld [vmem:[%s265 + $0xb48] sm:$0xff]
      %v710 = vld [vmem:[%s265 + $0xb50] sm:$0xff]
      %v711 = vld [vmem:[%s265 + $0xb58] sm:$0xff]
      %v712 = vld [vmem:[%s265 + $0xb60] sm:$0xff]
      %v713 = vld [vmem:[%s265 + $0xb68] sm:$0xff]
      %v714 = vld [vmem:[%s265 + $0xb70] sm:$0xff]
      %v715 = vld [vmem:[%s265 + $0xb78] sm:$0xff]
      %v716 = vld [vmem:[%s265 + $0xb80] sm:$0xff]
      %v717 = vld [vmem:[%s265 + $0xb88] sm:$0xff]
      %v718 = vld [vmem:[%s265 + $0xb90] sm:$0xff]
      %v719 = vld [vmem:[%s265 + $0xb98] sm:$0xff]
      %v720 = vld [vmem:[%s265 + $0xba0] sm:$0xff]
      %v721 = vld [vmem:[%s265 + $0xba8] sm:$0xff]
      %v722 = vld [vmem:[%s265 + $0xbb0] sm:$0xff]
      %v723 = vld [vmem:[%s265 + $0xbb8] sm:$0xff]
      %v724 = vld [vmem:[%s265 + $0xbc0] sm:$0xff]
      %v725 = vld [vmem:[%s265 + $0xbc8] sm:$0xff]
      %v726 = vld [vmem:[%s265 + $0xbd0] sm:$0xff]
      %v727 = vld [vmem:[%s265 + $0xbd8] sm:$0xff]
      %v728 = vld [vmem:[%s265 + $0xbe0] sm:$0xff]
      %v729 = vld [vmem:[%s265 + $0xbe8] sm:$0xff]
      %v730 = vld [vmem:[%s265 + $0xbf0] sm:$0xff]
      %v731 = vld [vmem:[%s265 + $0xbf8] sm:$0xff]
      %v732 = vld [vmem:[%s265 + $0xc00] sm:$0xff]
      %v733 = vld [vmem:[%s265 + $0xc08] sm:$0xff]
      %v734 = vld [vmem:[%s265 + $0xc10] sm:$0xff]
      %v735 = vld [vmem:[%s265 + $0xc18] sm:$0xff]
      %v736 = vld [vmem:[%s265 + $0xc20] sm:$0xff]
      %v737 = vld [vmem:[%s265 + $0xc28] sm:$0xff]
      %v738 = vld [vmem:[%s265 + $0xc30] sm:$0xff]
      %v739 = vld [vmem:[%s265 + $0xc38] sm:$0xff]
      %v740 = vld [vmem:[%s265 + $0xc40] sm:$0xff]
      %v741 = vld [vmem:[%s265 + $0xc48] sm:$0xff]
      %v742 = vld [vmem:[%s265 + $0xc50] sm:$0xff]
      %v743 = vld [vmem:[%s265 + $0xc58] sm:$0xff]
      %v744 = vld [vmem:[%s265 + $0xc60] sm:$0xff]
      %v745 = vld [vmem:[%s265 + $0xc68] sm:$0xff]
      %v746 = vld [vmem:[%s265 + $0xc70] sm:$0xff]
      %v747 = vld [vmem:[%s265 + $0xc78] sm:$0xff]
      %v748 = vld [vmem:[%s265 + $0xc80] sm:$0xff]
      %v749 = vld [vmem:[%s265 + $0xc88] sm:$0xff]
      %v750 = vld [vmem:[%s265 + $0xc90] sm:$0xff]
      %v751 = vld [vmem:[%s265 + $0xc98] sm:$0xff]
      %v752 = vld [vmem:[%s265 + $0xca0] sm:$0xff]
      %v753 = vld [vmem:[%s265 + $0xca8] sm:$0xff]
      %v754 = vld [vmem:[%s265 + $0xcb0] sm:$0xff]
      %v755 = vld [vmem:[%s265 + $0xcb8] sm:$0xff]
      %v756 = vld [vmem:[%s265 + $0xcc0] sm:$0xff]
      %v757 = vld [vmem:[%s265 + $0xcc8] sm:$0xff]
      %v758 = vld [vmem:[%s265 + $0xcd0] sm:$0xff]
      %v759 = vld [vmem:[%s265 + $0xcd8] sm:$0xff]
      %v760 = vld [vmem:[%s265 + $0xce0] sm:$0xff]
      %v761 = vld [vmem:[%s265 + $0xce8] sm:$0xff]
      %v762 = vld [vmem:[%s265 + $0xcf0] sm:$0xff]
      %v763 = vld [vmem:[%s265 + $0xcf8] sm:$0xff]
      %v764 = vld [vmem:[%s265 + $0xd00] sm:$0xff]
      %v765 = vld [vmem:[%s265 + $0xd08] sm:$0xff]
      %v766 = vld [vmem:[%s265 + $0xd10] sm:$0xff]
      %v767 = vld [vmem:[%s265 + $0xd18] sm:$0xff]
      %v768 = vld [vmem:[%s265 + $0xd20] sm:$0xff]
      %v769 = vld [vmem:[%s265 + $0xd28] sm:$0xff]
      %v770 = vld [vmem:[%s265 + $0xd30] sm:$0xff]
      %v771 = vld [vmem:[%s265 + $0xd38] sm:$0xff]
      %v772 = vld [vmem:[%s265 + $0xd40] sm:$0xff]
      %v773 = vld [vmem:[%s265 + $0xd48] sm:$0xff]
      %v774 = vld [vmem:[%s265 + $0xd50] sm:$0xff]
      %v775 = vld [vmem:[%s265 + $0xd58] sm:$0xff]
      %v776 = vld [vmem:[%s265 + $0xd60] sm:$0xff]
      %v777 = vld [vmem:[%s265 + $0xd68] sm:$0xff]
      %v778 = vld [vmem:[%s265 + $0xd70] sm:$0xff]
      %v779 = vld [vmem:[%s265 + $0xd78] sm:$0xff]
      %v780 = vld [vmem:[%s265 + $0xd80] sm:$0xff]
      %v781 = vld [vmem:[%s265 + $0xd88] sm:$0xff]
      %v782 = vld [vmem:[%s265 + $0xd90] sm:$0xff]
      %v783 = vld [vmem:[%s265 + $0xd98] sm:$0xff]
      %v784 = vld [vmem:[%s265 + $0xda0] sm:$0xff]
      %v785 = vld [vmem:[%s265 + $0xda8] sm:$0xff]
      %v786 = vld [vmem:[%s265 + $0xdb0] sm:$0xff]
      %v787 = vld [vmem:[%s265 + $0xdb8] sm:$0xff]
      %v788 = vld [vmem:[%s265 + $0xdc0] sm:$0xff]
      %v789 = vld [vmem:[%s265 + $0xdc8] sm:$0xff]
      %v790 = vld [vmem:[%s265 + $0xdd0] sm:$0xff]
      %v791 = vld [vmem:[%s265 + $0xdd8] sm:$0xff]
      %v792 = vld [vmem:[%s265 + $0xde0] sm:$0xff]
      %v793 = vld [vmem:[%s265 + $0xde8] sm:$0xff]
      %v794 = vld [vmem:[%s265 + $0xdf0] sm:$0xff]
      %v795 = vld [vmem:[%s265 + $0xdf8] sm:$0xff]
      %v796 = vld [vmem:[%s265 + $0xe00] sm:$0xff]
      %v797 = vld [vmem:[%s265 + $0xe08] sm:$0xff]
      %v798 = vld [vmem:[%s265 + $0xe10] sm:$0xff]
      %v799 = vld [vmem:[%s265 + $0xe18] sm:$0xff]
      %v800 = vld [vmem:[%s265 + $0xe20] sm:$0xff]
      %v801 = vld [vmem:[%s265 + $0xe28] sm:$0xff]
      %v802 = vld [vmem:[%s265 + $0xe30] sm:$0xff]
      %v803 = vld [vmem:[%s265 + $0xe38] sm:$0xff]
      %v804 = vld [vmem:[%s265 + $0xe40] sm:$0xff]
      %v805 = vld [vmem:[%s265 + $0xe48] sm:$0xff]
      %v806 = vld [vmem:[%s265 + $0xe50] sm:$0xff]
      %v807 = vld [vmem:[%s265 + $0xe58] sm:$0xff]
      %v808 = vld [vmem:[%s265 + $0xe60] sm:$0xff]
      %v809 = vld [vmem:[%s265 + $0xe68] sm:$0xff]
      %v810 = vld [vmem:[%s265 + $0xe70] sm:$0xff]
      %v811 = vld [vmem:[%s265 + $0xe78] sm:$0xff]
      %v812 = vld [vmem:[%s265 + $0xe80] sm:$0xff]
      %v813 = vld [vmem:[%s265 + $0xe88] sm:$0xff]
      %v814 = vld [vmem:[%s265 + $0xe90] sm:$0xff]
      %v815 = vld [vmem:[%s265 + $0xe98] sm:$0xff]
      %v816 = vld [vmem:[%s265 + $0xea0] sm:$0xff]
      %v817 = vld [vmem:[%s265 + $0xea8] sm:$0xff]
      %v818 = vld [vmem:[%s265 + $0xeb0] sm:$0xff]
      %v819 = vld [vmem:[%s265 + $0xeb8] sm:$0xff]
      %v820 = vld [vmem:[%s265 + $0xec0] sm:$0xff]
      %v821 = vld [vmem:[%s265 + $0xec8] sm:$0xff]
      %v822 = vld [vmem:[%s265 + $0xed0] sm:$0xff]
      %v823 = vld [vmem:[%s265 + $0xed8] sm:$0xff]
      %v824 = vld [vmem:[%s265 + $0xee0] sm:$0xff]
      %v825 = vld [vmem:[%s265 + $0xee8] sm:$0xff]
      %v826 = vld [vmem:[%s265 + $0xef0] sm:$0xff]
      %v827 = vld [vmem:[%s265 + $0xef8] sm:$0xff]
      %v828 = vld [vmem:[%s265 + $0xf00] sm:$0xff]
      %v829 = vld [vmem:[%s265 + $0xf08] sm:$0xff]
      %v830 = vld [vmem:[%s265 + $0xf10] sm:$0xff]
      %v831 = vld [vmem:[%s265 + $0xf18] sm:$0xff]
      %v832 = vld [vmem:[%s265 + $0xf20] sm:$0xff]
      %v833 = vld [vmem:[%s265 + $0xf28] sm:$0xff]
      %v834 = vld [vmem:[%s265 + $0xf30] sm:$0xff]
      %v835 = vld [vmem:[%s265 + $0xf38] sm:$0xff]
      %v836 = vld [vmem:[%s265 + $0xf40] sm:$0xff]
      %v837 = vld [vmem:[%s265 + $0xf48] sm:$0xff]
      %v838 = vld [vmem:[%s265 + $0xf50] sm:$0xff]
      %v839 = vld [vmem:[%s265 + $0xf58] sm:$0xff]
      %v840 = vld [vmem:[%s265 + $0xf60] sm:$0xff]
      %v841 = vld [vmem:[%s265 + $0xf68] sm:$0xff]
      %v842 = vld [vmem:[%s265 + $0xf70] sm:$0xff]
      %v843 = vld [vmem:[%s265 + $0xf78] sm:$0xff]
      %v844 = vld [vmem:[%s265 + $0xf80] sm:$0xff]
      %v845 = vld [vmem:[%s265 + $0xf88] sm:$0xff]
      %v846 = vld [vmem:[%s265 + $0xf90] sm:$0xff]
      %v847 = vld [vmem:[%s265 + $0xf98] sm:$0xff]
      %v848 = vld [vmem:[%s265 + $0xfa0] sm:$0xff]
      %v849 = vld [vmem:[%s265 + $0xfa8] sm:$0xff]
      %v850 = vld [vmem:[%s265 + $0xfb0] sm:$0xff]
      %v851 = vld [vmem:[%s265 + $0xfb8] sm:$0xff]
      %v852 = vld [vmem:[%s265 + $0xfc0] sm:$0xff]
      %v853 = vld [vmem:[%s265 + $0xfc8] sm:$0xff]
      %v854 = vld [vmem:[%s265 + $0xfd0] sm:$0xff]
      %v855 = vld [vmem:[%s265 + $0xfd8] sm:$0xff]
      %v856 = vld [vmem:[%s265 + $0xfe0] sm:$0xff]
      %v857 = vld [vmem:[%s265 + $0xfe8] sm:$0xff]
      %v858 = vld [vmem:[%s265 + $0xff0] sm:$0xff]
      %v859 = vld [vmem:[%s265 + $0xff8] sm:$0xff]
      %860 = vmatpush.msra.mxu0 %v378
      %861 = vmatpush.msra.mxu0 %v376
      %862 = vmatpush.msra.mxu0 %v374
      %863 = vmatpush.msra.mxu0 %v372
      %864 = vmatpush.msra.mxu0 %v370
      %865 = vmatpush.msra.mxu0 %v368
      %866 = vmatpush.msra.mxu0 %v366
      %867 = vmatpush.msra.mxu0 %v364
      %868 = vmatpush.msra.mxu0 %v362
      %869 = vmatpush.msra.mxu0 %v360
      %870 = vmatpush.msra.mxu0 %v358
      %871 = vmatpush.msra.mxu0 %v356
      %872 = vmatpush.msra.mxu0 %v354
      %873 = vmatpush.msra.mxu0 %v352
      %874 = vmatpush.msra.mxu0 %v350
      %875 = vmatpush.msra.mxu0 %v348
      %876 = vmatmul.f32.gmra.mxu0 %v284
      %v877 = vpop.f32.mrf.mxu0
      %v878 = vadd.f32 0.0, %v877
      %879 = vmatmul.f32.gmra.mxu0 %v300
      %v880 = vpop.f32.mrf.mxu0
      %v881 = vadd.f32 0.0, %v880
      %882 = vmatmul.f32.gmra.mxu0 %v316
      %v883 = vpop.f32.mrf.mxu0
      %v884 = vadd.f32 0.0, %v883
      %885 = vmatmul.f32.gmra.mxu0 %v332
      %v886 = vpop.f32.mrf.mxu0
      %v887 = vadd.f32 0.0, %v886
      %888 = vdwg.mxu0
      %889 = vmatpush.msra.mxu0 %v410
      %890 = vmatpush.msra.mxu0 %v408
      %891 = vmatpush.msra.mxu0 %v406
      %892 = vmatpush.msra.mxu0 %v404
      %893 = vmatpush.msra.mxu0 %v402
      %894 = vmatpush.msra.mxu0 %v400
      %895 = vmatpush.msra.mxu0 %v398
      %896 = vmatpush.msra.mxu0 %v396
      %897 = vmatpush.msra.mxu0 %v394
      %898 = vmatpush.msra.mxu0 %v392
      %899 = vmatpush.msra.mxu0 %v390
      %900 = vmatpush.msra.mxu0 %v388
      %901 = vmatpush.msra.mxu0 %v386
      %902 = vmatpush.msra.mxu0 %v384
      %903 = vmatpush.msra.mxu0 %v382
      %904 = vmatpush.msra.mxu0 %v380
      %905 = vmatmul.f32.gmra.mxu0 %v285
      %v906 = vpop.f32.mrf.mxu0
      %v907 = vadd.f32 %v878, %v906
      %908 = vmatmul.f32.gmra.mxu0 %v301
      %v909 = vpop.f32.mrf.mxu0
      %v910 = vadd.f32 %v881, %v909
      %911 = vmatmul.f32.gmra.mxu0 %v317
      %v912 = vpop.f32.mrf.mxu0
      %v913 = vadd.f32 %v884, %v912
      %914 = vmatmul.f32.gmra.mxu0 %v333
      %v915 = vpop.f32.mrf.mxu0
      %v916 = vadd.f32 %v887, %v915
      %917 = vdwg.mxu0
      %918 = vmatpush.msra.mxu0 %v442
      %919 = vmatpush.msra.mxu0 %v440
      %920 = vmatpush.msra.mxu0 %v438
      %921 = vmatpush.msra.mxu0 %v436
      %922 = vmatpush.msra.mxu0 %v434
      %923 = vmatpush.msra.mxu0 %v432
      %924 = vmatpush.msra.mxu0 %v430
      %925 = vmatpush.msra.mxu0 %v428
      %926 = vmatpush.msra.mxu0 %v426
      %927 = vmatpush.msra.mxu0 %v424
      %928 = vmatpush.msra.mxu0 %v422
      %929 = vmatpush.msra.mxu0 %v420
      %930 = vmatpush.msra.mxu0 %v418
      %931 = vmatpush.msra.mxu0 %v416
      %932 = vmatpush.msra.mxu0 %v414
      %933 = vmatpush.msra.mxu0 %v412
      %934 = vmatmul.f32.gmra.mxu0 %v286
      %v935 = vpop.f32.mrf.mxu0
      %v936 = vadd.f32 %v907, %v935
      %937 = vmatmul.f32.gmra.mxu0 %v302
      %v938 = vpop.f32.mrf.mxu0
      %v939 = vadd.f32 %v910, %v938
      %940 = vmatmul.f32.gmra.mxu0 %v318
      %v941 = vpop.f32.mrf.mxu0
      %v942 = vadd.f32 %v913, %v941
      %943 = vmatmul.f32.gmra.mxu0 %v334
      %v944 = vpop.f32.mrf.mxu0
      %v945 = vadd.f32 %v916, %v944
      %946 = vdwg.mxu0
      %947 = vmatpush.msra.mxu0 %v474
      %948 = vmatpush.msra.mxu0 %v472
      %949 = vmatpush.msra.mxu0 %v470
      %950 = vmatpush.msra.mxu0 %v468
      %951 = vmatpush.msra.mxu0 %v466
      %952 = vmatpush.msra.mxu0 %v464
      %953 = vmatpush.msra.mxu0 %v462
      %954 = vmatpush.msra.mxu0 %v460
      %955 = vmatpush.msra.mxu0 %v458
      %956 = vmatpush.msra.mxu0 %v456
      %957 = vmatpush.msra.mxu0 %v454
      %958 = vmatpush.msra.mxu0 %v452
      %959 = vmatpush.msra.mxu0 %v450
      %960 = vmatpush.msra.mxu0 %v448
      %961 = vmatpush.msra.mxu0 %v446
      %962 = vmatpush.msra.mxu0 %v444
      %963 = vmatmul.f32.gmra.mxu0 %v287
      %v964 = vpop.f32.mrf.mxu0
      %v965 = vadd.f32 %v936, %v964
      %966 = vmatmul.f32.gmra.mxu0 %v303
      %v967 = vpop.f32.mrf.mxu0
      %v968 = vadd.f32 %v939, %v967
      %969 = vmatmul.f32.gmra.mxu0 %v319
      %v970 = vpop.f32.mrf.mxu0
      %v971 = vadd.f32 %v942, %v970
      %972 = vmatmul.f32.gmra.mxu0 %v335
      %v973 = vpop.f32.mrf.mxu0
      %v974 = vadd.f32 %v945, %v973
      %975 = vdwg.mxu0
      %976 = vmatpush.msra.mxu0 %v506
      %977 = vmatpush.msra.mxu0 %v504
      %978 = vmatpush.msra.mxu0 %v502
      %979 = vmatpush.msra.mxu0 %v500
      %980 = vmatpush.msra.mxu0 %v498
      %981 = vmatpush.msra.mxu0 %v496
      %982 = vmatpush.msra.mxu0 %v494
      %983 = vmatpush.msra.mxu0 %v492
      %984 = vmatpush.msra.mxu0 %v490
      %985 = vmatpush.msra.mxu0 %v488
      %986 = vmatpush.msra.mxu0 %v486
      %987 = vmatpush.msra.mxu0 %v484
      %988 = vmatpush.msra.mxu0 %v482
      %989 = vmatpush.msra.mxu0 %v480
      %990 = vmatpush.msra.mxu0 %v478
      %991 = vmatpush.msra.mxu0 %v476
      %992 = vmatmul.f32.gmra.mxu0 %v288
      %v993 = vpop.f32.mrf.mxu0
      %v994 = vadd.f32 %v965, %v993
      %995 = vmatmul.f32.gmra.mxu0 %v304
      %v996 = vpop.f32.mrf.mxu0
      %v997 = vadd.f32 %v968, %v996
      %998 = vmatmul.f32.gmra.mxu0 %v320
      %v999 = vpop.f32.mrf.mxu0
      %v1000 = vadd.f32 %v971, %v999
      %1001 = vmatmul.f32.gmra.mxu0 %v336
      %v1002 = vpop.f32.mrf.mxu0
      %v1003 = vadd.f32 %v974, %v1002
      %1004 = vdwg.mxu0
      %1005 = vmatpush.msra.mxu0 %v538
      %1006 = vmatpush.msra.mxu0 %v536
      %1007 = vmatpush.msra.mxu0 %v534
      %1008 = vmatpush.msra.mxu0 %v532
      %1009 = vmatpush.msra.mxu0 %v530
      %1010 = vmatpush.msra.mxu0 %v528
      %1011 = vmatpush.msra.mxu0 %v526
      %1012 = vmatpush.msra.mxu0 %v524
      %1013 = vmatpush.msra.mxu0 %v522
      %1014 = vmatpush.msra.mxu0 %v520
      %1015 = vmatpush.msra.mxu0 %v518
      %1016 = vmatpush.msra.mxu0 %v516
      %1017 = vmatpush.msra.mxu0 %v514
      %1018 = vmatpush.msra.mxu0 %v512
      %1019 = vmatpush.msra.mxu0 %v510
      %1020 = vmatpush.msra.mxu0 %v508
      %1021 = vmatmul.f32.gmra.mxu0 %v289
      %v1022 = vpop.f32.mrf.mxu0
      %v1023 = vadd.f32 %v994, %v1022
      %1024 = vmatmul.f32.gmra.mxu0 %v305
      %v1025 = vpop.f32.mrf.mxu0
      %v1026 = vadd.f32 %v997, %v1025
      %1027 = vmatmul.f32.gmra.mxu0 %v321
      %v1028 = vpop.f32.mrf.mxu0
      %v1029 = vadd.f32 %v1000, %v1028
      %1030 = vmatmul.f32.gmra.mxu0 %v337
      %v1031 = vpop.f32.mrf.mxu0
      %v1032 = vadd.f32 %v1003, %v1031
      %1033 = vdwg.mxu0
      %1034 = vmatpush.msra.mxu0 %v570
      %1035 = vmatpush.msra.mxu0 %v568
      %1036 = vmatpush.msra.mxu0 %v566
      %1037 = vmatpush.msra.mxu0 %v564
      %1038 = vmatpush.msra.mxu0 %v562
      %1039 = vmatpush.msra.mxu0 %v560
      %1040 = vmatpush.msra.mxu0 %v558
      %1041 = vmatpush.msra.mxu0 %v556
      %1042 = vmatpush.msra.mxu0 %v554
      %1043 = vmatpush.msra.mxu0 %v552
      %1044 = vmatpush.msra.mxu0 %v550
      %1045 = vmatpush.msra.mxu0 %v548
      %1046 = vmatpush.msra.mxu0 %v546
      %1047 = vmatpush.msra.mxu0 %v544
      %1048 = vmatpush.msra.mxu0 %v542
      %1049 = vmatpush.msra.mxu0 %v540
      %1050 = vmatmul.f32.gmra.mxu0 %v290
      %v1051 = vpop.f32.mrf.mxu0
      %v1052 = vadd.f32 %v1023, %v1051
      %1053 = vmatmul.f32.gmra.mxu0 %v306
      %v1054 = vpop.f32.mrf.mxu0
      %v1055 = vadd.f32 %v1026, %v1054
      %1056 = vmatmul.f32.gmra.mxu0 %v322
      %v1057 = vpop.f32.mrf.mxu0
      %v1058 = vadd.f32 %v1029, %v1057
      %1059 = vmatmul.f32.gmra.mxu0 %v338
      %v1060 = vpop.f32.mrf.mxu0
      %v1061 = vadd.f32 %v1032, %v1060
      %1062 = vdwg.mxu0
      %1063 = vmatpush.msra.mxu0 %v602
      %1064 = vmatpush.msra.mxu0 %v600
      %1065 = vmatpush.msra.mxu0 %v598
      %1066 = vmatpush.msra.mxu0 %v596
      %1067 = vmatpush.msra.mxu0 %v594
      %1068 = vmatpush.msra.mxu0 %v592
      %1069 = vmatpush.msra.mxu0 %v590
      %1070 = vmatpush.msra.mxu0 %v588
      %1071 = vmatpush.msra.mxu0 %v586
      %1072 = vmatpush.msra.mxu0 %v584
      %1073 = vmatpush.msra.mxu0 %v582
      %1074 = vmatpush.msra.mxu0 %v580
      %1075 = vmatpush.msra.mxu0 %v578
      %1076 = vmatpush.msra.mxu0 %v576
      %1077 = vmatpush.msra.mxu0 %v574
      %1078 = vmatpush.msra.mxu0 %v572
      %1079 = vmatmul.f32.gmra.mxu0 %v291
      %v1080 = vpop.f32.mrf.mxu0
      %v1081 = vadd.f32 %v1052, %v1080
      %1082 = vmatmul.f32.gmra.mxu0 %v307
      %v1083 = vpop.f32.mrf.mxu0
      %v1084 = vadd.f32 %v1055, %v1083
      %1085 = vmatmul.f32.gmra.mxu0 %v323
      %v1086 = vpop.f32.mrf.mxu0
      %v1087 = vadd.f32 %v1058, %v1086
      %1088 = vmatmul.f32.gmra.mxu0 %v339
      %v1089 = vpop.f32.mrf.mxu0
      %v1090 = vadd.f32 %v1061, %v1089
      %1091 = vdwg.mxu0
      %1092 = vmatpush.msra.mxu0 %v634
      %1093 = vmatpush.msra.mxu0 %v632
      %1094 = vmatpush.msra.mxu0 %v630
      %1095 = vmatpush.msra.mxu0 %v628
      %1096 = vmatpush.msra.mxu0 %v626
      %1097 = vmatpush.msra.mxu0 %v624
      %1098 = vmatpush.msra.mxu0 %v622
      %1099 = vmatpush.msra.mxu0 %v620
      %1100 = vmatpush.msra.mxu0 %v618
      %1101 = vmatpush.msra.mxu0 %v616
      %1102 = vmatpush.msra.mxu0 %v614
      %1103 = vmatpush.msra.mxu0 %v612
      %1104 = vmatpush.msra.mxu0 %v610
      %1105 = vmatpush.msra.mxu0 %v608
      %1106 = vmatpush.msra.mxu0 %v606
      %1107 = vmatpush.msra.mxu0 %v604
      %1108 = vmatmul.f32.gmra.mxu0 %v292
      %v1109 = vpop.f32.mrf.mxu0
      %v1110 = vadd.f32 %v1081, %v1109
      %1111 = vmatmul.f32.gmra.mxu0 %v308
      %v1112 = vpop.f32.mrf.mxu0
      %v1113 = vadd.f32 %v1084, %v1112
      %1114 = vmatmul.f32.gmra.mxu0 %v324
      %v1115 = vpop.f32.mrf.mxu0
      %v1116 = vadd.f32 %v1087, %v1115
      %1117 = vmatmul.f32.gmra.mxu0 %v340
      %v1118 = vpop.f32.mrf.mxu0
      %v1119 = vadd.f32 %v1090, %v1118
      %1120 = vdwg.mxu0
      %1121 = vmatpush.msra.mxu0 %v666
      %1122 = vmatpush.msra.mxu0 %v664
      %1123 = vmatpush.msra.mxu0 %v662
      %1124 = vmatpush.msra.mxu0 %v660
      %1125 = vmatpush.msra.mxu0 %v658
      %1126 = vmatpush.msra.mxu0 %v656
      %1127 = vmatpush.msra.mxu0 %v654
      %1128 = vmatpush.msra.mxu0 %v652
      %1129 = vmatpush.msra.mxu0 %v650
      %1130 = vmatpush.msra.mxu0 %v648
      %1131 = vmatpush.msra.mxu0 %v646
      %1132 = vmatpush.msra.mxu0 %v644
      %1133 = vmatpush.msra.mxu0 %v642
      %1134 = vmatpush.msra.mxu0 %v640
      %1135 = vmatpush.msra.mxu0 %v638
      %1136 = vmatpush.msra.mxu0 %v636
      %1137 = vmatmul.f32.gmra.mxu0 %v293
      %v1138 = vpop.f32.mrf.mxu0
      %v1139 = vadd.f32 %v1110, %v1138
      %1140 = vmatmul.f32.gmra.mxu0 %v309
      %v1141 = vpop.f32.mrf.mxu0
      %v1142 = vadd.f32 %v1113, %v1141
      %1143 = vmatmul.f32.gmra.mxu0 %v325
      %v1144 = vpop.f32.mrf.mxu0
      %v1145 = vadd.f32 %v1116, %v1144
      %1146 = vmatmul.f32.gmra.mxu0 %v341
      %v1147 = vpop.f32.mrf.mxu0
      %v1148 = vadd.f32 %v1119, %v1147
      %1149 = vdwg.mxu0
      %1150 = vmatpush.msra.mxu0 %v698
      %1151 = vmatpush.msra.mxu0 %v696
      %1152 = vmatpush.msra.mxu0 %v694
      %1153 = vmatpush.msra.mxu0 %v692
      %1154 = vmatpush.msra.mxu0 %v690
      %1155 = vmatpush.msra.mxu0 %v688
      %1156 = vmatpush.msra.mxu0 %v686
      %1157 = vmatpush.msra.mxu0 %v684
      %1158 = vmatpush.msra.mxu0 %v682
      %1159 = vmatpush.msra.mxu0 %v680
      %1160 = vmatpush.msra.mxu0 %v678
      %1161 = vmatpush.msra.mxu0 %v676
      %1162 = vmatpush.msra.mxu0 %v674
      %1163 = vmatpush.msra.mxu0 %v672
      %1164 = vmatpush.msra.mxu0 %v670
      %1165 = vmatpush.msra.mxu0 %v668
      %1166 = vmatmul.f32.gmra.mxu0 %v294
      %v1167 = vpop.f32.mrf.mxu0
      %v1168 = vadd.f32 %v1139, %v1167
      %1169 = vmatmul.f32.gmra.mxu0 %v310
      %v1170 = vpop.f32.mrf.mxu0
      %v1171 = vadd.f32 %v1142, %v1170
      %1172 = vmatmul.f32.gmra.mxu0 %v326
      %v1173 = vpop.f32.mrf.mxu0
      %v1174 = vadd.f32 %v1145, %v1173
      %1175 = vmatmul.f32.gmra.mxu0 %v342
      %v1176 = vpop.f32.mrf.mxu0
      %v1177 = vadd.f32 %v1148, %v1176
      %1178 = vdwg.mxu0
      %1179 = vmatpush.msra.mxu0 %v730
      %1180 = vmatpush.msra.mxu0 %v728
      %1181 = vmatpush.msra.mxu0 %v726
      %1182 = vmatpush.msra.mxu0 %v724
      %1183 = vmatpush.msra.mxu0 %v722
      %1184 = vmatpush.msra.mxu0 %v720
      %1185 = vmatpush.msra.mxu0 %v718
      %1186 = vmatpush.msra.mxu0 %v716
      %1187 = vmatpush.msra.mxu0 %v714
      %1188 = vmatpush.msra.mxu0 %v712
      %1189 = vmatpush.msra.mxu0 %v710
      %1190 = vmatpush.msra.mxu0 %v708
      %1191 = vmatpush.msra.mxu0 %v706
      %1192 = vmatpush.msra.mxu0 %v704
      %1193 = vmatpush.msra.mxu0 %v702
      %1194 = vmatpush.msra.mxu0 %v700
      %1195 = vmatmul.f32.gmra.mxu0 %v295
      %v1196 = vpop.f32.mrf.mxu0
      %v1197 = vadd.f32 %v1168, %v1196
      %1198 = vmatmul.f32.gmra.mxu0 %v311
      %v1199 = vpop.f32.mrf.mxu0
      %v1200 = vadd.f32 %v1171, %v1199
      %1201 = vmatmul.f32.gmra.mxu0 %v327
      %v1202 = vpop.f32.mrf.mxu0
      %v1203 = vadd.f32 %v1174, %v1202
      %1204 = vmatmul.f32.gmra.mxu0 %v343
      %v1205 = vpop.f32.mrf.mxu0
      %v1206 = vadd.f32 %v1177, %v1205
      %1207 = vdwg.mxu0
      %1208 = vmatpush.msra.mxu0 %v762
      %1209 = vmatpush.msra.mxu0 %v760
      %1210 = vmatpush.msra.mxu0 %v758
      %1211 = vmatpush.msra.mxu0 %v756
      %1212 = vmatpush.msra.mxu0 %v754
      %1213 = vmatpush.msra.mxu0 %v752
      %1214 = vmatpush.msra.mxu0 %v750
      %1215 = vmatpush.msra.mxu0 %v748
      %1216 = vmatpush.msra.mxu0 %v746
      %1217 = vmatpush.msra.mxu0 %v744
      %1218 = vmatpush.msra.mxu0 %v742
      %1219 = vmatpush.msra.mxu0 %v740
      %1220 = vmatpush.msra.mxu0 %v738
      %1221 = vmatpush.msra.mxu0 %v736
      %1222 = vmatpush.msra.mxu0 %v734
      %1223 = vmatpush.msra.mxu0 %v732
      %1224 = vmatmul.f32.gmra.mxu0 %v296
      %v1225 = vpop.f32.mrf.mxu0
      %v1226 = vadd.f32 %v1197, %v1225
      %1227 = vmatmul.f32.gmra.mxu0 %v312
      %v1228 = vpop.f32.mrf.mxu0
      %v1229 = vadd.f32 %v1200, %v1228
      %1230 = vmatmul.f32.gmra.mxu0 %v328
      %v1231 = vpop.f32.mrf.mxu0
      %v1232 = vadd.f32 %v1203, %v1231
      %1233 = vmatmul.f32.gmra.mxu0 %v344
      %v1234 = vpop.f32.mrf.mxu0
      %v1235 = vadd.f32 %v1206, %v1234
      %1236 = vdwg.mxu0
      %1237 = vmatpush.msra.mxu0 %v794
      %1238 = vmatpush.msra.mxu0 %v792
      %1239 = vmatpush.msra.mxu0 %v790
      %1240 = vmatpush.msra.mxu0 %v788
      %1241 = vmatpush.msra.mxu0 %v786
      %1242 = vmatpush.msra.mxu0 %v784
      %1243 = vmatpush.msra.mxu0 %v782
      %1244 = vmatpush.msra.mxu0 %v780
      %1245 = vmatpush.msra.mxu0 %v778
      %1246 = vmatpush.msra.mxu0 %v776
      %1247 = vmatpush.msra.mxu0 %v774
      %1248 = vmatpush.msra.mxu0 %v772
      %1249 = vmatpush.msra.mxu0 %v770
      %1250 = vmatpush.msra.mxu0 %v768
      %1251 = vmatpush.msra.mxu0 %v766
      %1252 = vmatpush.msra.mxu0 %v764
      %1253 = vmatmul.f32.gmra.mxu0 %v297
      %v1254 = vpop.f32.mrf.mxu0
      %v1255 = vadd.f32 %v1226, %v1254
      %1256 = vmatmul.f32.gmra.mxu0 %v313
      %v1257 = vpop.f32.mrf.mxu0
      %v1258 = vadd.f32 %v1229, %v1257
      %1259 = vmatmul.f32.gmra.mxu0 %v329
      %v1260 = vpop.f32.mrf.mxu0
      %v1261 = vadd.f32 %v1232, %v1260
      %1262 = vmatmul.f32.gmra.mxu0 %v345
      %v1263 = vpop.f32.mrf.mxu0
      %v1264 = vadd.f32 %v1235, %v1263
      %1265 = vdwg.mxu0
      %1266 = vmatpush.msra.mxu0 %v826
      %1267 = vmatpush.msra.mxu0 %v824
      %1268 = vmatpush.msra.mxu0 %v822
      %1269 = vmatpush.msra.mxu0 %v820
      %1270 = vmatpush.msra.mxu0 %v818
      %1271 = vmatpush.msra.mxu0 %v816
      %1272 = vmatpush.msra.mxu0 %v814
      %1273 = vmatpush.msra.mxu0 %v812
      %1274 = vmatpush.msra.mxu0 %v810
      %1275 = vmatpush.msra.mxu0 %v808
      %1276 = vmatpush.msra.mxu0 %v806
      %1277 = vmatpush.msra.mxu0 %v804
      %1278 = vmatpush.msra.mxu0 %v802
      %1279 = vmatpush.msra.mxu0 %v800
      %1280 = vmatpush.msra.mxu0 %v798
      %1281 = vmatpush.msra.mxu0 %v796
      %1282 = vmatmul.f32.gmra.mxu0 %v298
      %v1283 = vpop.f32.mrf.mxu0
      %v1284 = vadd.f32 %v1255, %v1283
      %1285 = vmatmul.f32.gmra.mxu0 %v314
      %v1286 = vpop.f32.mrf.mxu0
      %v1287 = vadd.f32 %v1258, %v1286
      %1288 = vmatmul.f32.gmra.mxu0 %v330
      %v1289 = vpop.f32.mrf.mxu0
      %v1290 = vadd.f32 %v1261, %v1289
      %1291 = vmatmul.f32.gmra.mxu0 %v346
      %v1292 = vpop.f32.mrf.mxu0
      %v1293 = vadd.f32 %v1264, %v1292
      %1294 = vdwg.mxu0
      %1295 = vmatpush.msra.mxu0 %v858
      %1296 = vmatpush.msra.mxu0 %v856
      %1297 = vmatpush.msra.mxu0 %v854
      %1298 = vmatpush.msra.mxu0 %v852
      %1299 = vmatpush.msra.mxu0 %v850
      %1300 = vmatpush.msra.mxu0 %v848
      %1301 = vmatpush.msra.mxu0 %v846
      %1302 = vmatpush.msra.mxu0 %v844
      %1303 = vmatpush.msra.mxu0 %v842
      %1304 = vmatpush.msra.mxu0 %v840
      %1305 = vmatpush.msra.mxu0 %v838
      %1306 = vmatpush.msra.mxu0 %v836
      %1307 = vmatpush.msra.mxu0 %v834
      %1308 = vmatpush.msra.mxu0 %v832
      %1309 = vmatpush.msra.mxu0 %v830
      %1310 = vmatpush.msra.mxu0 %v828
      %1311 = vmatmul.f32.gmra.mxu0 %v299
      %v1312 = vpop.f32.mrf.mxu0
      %v1313 = vadd.f32 %v1284, %v1312
      %1314 = vmatmul.f32.gmra.mxu0 %v315
      %v1315 = vpop.f32.mrf.mxu0
      %v1316 = vadd.f32 %v1287, %v1315
      %1317 = vmatmul.f32.gmra.mxu0 %v331
      %v1318 = vpop.f32.mrf.mxu0
      %v1319 = vadd.f32 %v1290, %v1318
      %1320 = vmatmul.f32.gmra.mxu0 %v347
      %v1321 = vpop.f32.mrf.mxu0
      %v1322 = vadd.f32 %v1293, %v1321
      %1323 = vdwg.mxu0
      %1324 = vmatpush.msra.mxu0 %v379
      %1325 = vmatpush.msra.mxu0 %v377
      %1326 = vmatpush.msra.mxu0 %v375
      %1327 = vmatpush.msra.mxu0 %v373
      %1328 = vmatpush.msra.mxu0 %v371
      %1329 = vmatpush.msra.mxu0 %v369
      %1330 = vmatpush.msra.mxu0 %v367
      %1331 = vmatpush.msra.mxu0 %v365
      %1332 = vmatpush.msra.mxu0 %v363
      %1333 = vmatpush.msra.mxu0 %v361
      %1334 = vmatpush.msra.mxu0 %v359
      %1335 = vmatpush.msra.mxu0 %v357
      %1336 = vmatpush.msra.mxu0 %v355
      %1337 = vmatpush.msra.mxu0 %v353
      %1338 = vmatpush.msra.mxu0 %v351
      %1339 = vmatpush.msra.mxu0 %v349
      %1340 = vmatmul.f32.gmra.mxu0 %v284
      %v1341 = vpop.f32.mrf.mxu0
      %v1342 = vadd.f32 0.0, %v1341
      %1343 = vmatmul.f32.gmra.mxu0 %v300
      %v1344 = vpop.f32.mrf.mxu0
      %v1345 = vadd.f32 0.0, %v1344
      %1346 = vmatmul.f32.gmra.mxu0 %v316
      %v1347 = vpop.f32.mrf.mxu0
      %v1348 = vadd.f32 0.0, %v1347
      %1349 = vmatmul.f32.gmra.mxu0 %v332
      %v1350 = vpop.f32.mrf.mxu0
      %v1351 = vadd.f32 0.0, %v1350
      %1352 = vdwg.mxu0
      %1353 = vmatpush.msra.mxu0 %v411
      %1354 = vmatpush.msra.mxu0 %v409
      %1355 = vmatpush.msra.mxu0 %v407
      %1356 = vmatpush.msra.mxu0 %v405
      %1357 = vmatpush.msra.mxu0 %v403
      %1358 = vmatpush.msra.mxu0 %v401
      %1359 = vmatpush.msra.mxu0 %v399
      %1360 = vmatpush.msra.mxu0 %v397
      %1361 = vmatpush.msra.mxu0 %v395
      %1362 = vmatpush.msra.mxu0 %v393
      %1363 = vmatpush.msra.mxu0 %v391
      %1364 = vmatpush.msra.mxu0 %v389
      %1365 = vmatpush.msra.mxu0 %v387
      %1366 = vmatpush.msra.mxu0 %v385
      %1367 = vmatpush.msra.mxu0 %v383
      %1368 = vmatpush.msra.mxu0 %v381
      %1369 = vmatmul.f32.gmra.mxu0 %v285
      %v1370 = vpop.f32.mrf.mxu0
      %v1371 = vadd.f32 %v1342, %v1370
      %1372 = vmatmul.f32.gmra.mxu0 %v301
      %v1373 = vpop.f32.mrf.mxu0
      %v1374 = vadd.f32 %v1345, %v1373
      %1375 = vmatmul.f32.gmra.mxu0 %v317
      %v1376 = vpop.f32.mrf.mxu0
      %v1377 = vadd.f32 %v1348, %v1376
      %1378 = vmatmul.f32.gmra.mxu0 %v333
      %v1379 = vpop.f32.mrf.mxu0
      %v1380 = vadd.f32 %v1351, %v1379
      %1381 = vdwg.mxu0
      %1382 = vmatpush.msra.mxu0 %v443
      %1383 = vmatpush.msra.mxu0 %v441
      %1384 = vmatpush.msra.mxu0 %v439
      %1385 = vmatpush.msra.mxu0 %v437
      %1386 = vmatpush.msra.mxu0 %v435
      %1387 = vmatpush.msra.mxu0 %v433
      %1388 = vmatpush.msra.mxu0 %v431
      %1389 = vmatpush.msra.mxu0 %v429
      %1390 = vmatpush.msra.mxu0 %v427
      %1391 = vmatpush.msra.mxu0 %v425
      %1392 = vmatpush.msra.mxu0 %v423
      %1393 = vmatpush.msra.mxu0 %v421
      %1394 = vmatpush.msra.mxu0 %v419
      %1395 = vmatpush.msra.mxu0 %v417
      %1396 = vmatpush.msra.mxu0 %v415
      %1397 = vmatpush.msra.mxu0 %v413
      %1398 = vmatmul.f32.gmra.mxu0 %v286
      %v1399 = vpop.f32.mrf.mxu0
      %v1400 = vadd.f32 %v1371, %v1399
      %1401 = vmatmul.f32.gmra.mxu0 %v302
      %v1402 = vpop.f32.mrf.mxu0
      %v1403 = vadd.f32 %v1374, %v1402
      %1404 = vmatmul.f32.gmra.mxu0 %v318
      %v1405 = vpop.f32.mrf.mxu0
      %v1406 = vadd.f32 %v1377, %v1405
      %1407 = vmatmul.f32.gmra.mxu0 %v334
      %v1408 = vpop.f32.mrf.mxu0
      %v1409 = vadd.f32 %v1380, %v1408
      %1410 = vdwg.mxu0
      %1411 = vmatpush.msra.mxu0 %v475
      %1412 = vmatpush.msra.mxu0 %v473
      %1413 = vmatpush.msra.mxu0 %v471
      %1414 = vmatpush.msra.mxu0 %v469
      %1415 = vmatpush.msra.mxu0 %v467
      %1416 = vmatpush.msra.mxu0 %v465
      %1417 = vmatpush.msra.mxu0 %v463
      %1418 = vmatpush.msra.mxu0 %v461
      %1419 = vmatpush.msra.mxu0 %v459
      %1420 = vmatpush.msra.mxu0 %v457
      %1421 = vmatpush.msra.mxu0 %v455
      %1422 = vmatpush.msra.mxu0 %v453
      %1423 = vmatpush.msra.mxu0 %v451
      %1424 = vmatpush.msra.mxu0 %v449
      %1425 = vmatpush.msra.mxu0 %v447
      %1426 = vmatpush.msra.mxu0 %v445
      %1427 = vmatmul.f32.gmra.mxu0 %v287
      %v1428 = vpop.f32.mrf.mxu0
      %v1429 = vadd.f32 %v1400, %v1428
      %1430 = vmatmul.f32.gmra.mxu0 %v303
      %v1431 = vpop.f32.mrf.mxu0
      %v1432 = vadd.f32 %v1403, %v1431
      %1433 = vmatmul.f32.gmra.mxu0 %v319
      %v1434 = vpop.f32.mrf.mxu0
      %v1435 = vadd.f32 %v1406, %v1434
      %1436 = vmatmul.f32.gmra.mxu0 %v335
      %v1437 = vpop.f32.mrf.mxu0
      %v1438 = vadd.f32 %v1409, %v1437
      %1439 = vdwg.mxu0
      %1440 = vmatpush.msra.mxu0 %v507
      %1441 = vmatpush.msra.mxu0 %v505
      %1442 = vmatpush.msra.mxu0 %v503
      %1443 = vmatpush.msra.mxu0 %v501
      %1444 = vmatpush.msra.mxu0 %v499
      %1445 = vmatpush.msra.mxu0 %v497
      %1446 = vmatpush.msra.mxu0 %v495
      %1447 = vmatpush.msra.mxu0 %v493
      %1448 = vmatpush.msra.mxu0 %v491
      %1449 = vmatpush.msra.mxu0 %v489
      %1450 = vmatpush.msra.mxu0 %v487
      %1451 = vmatpush.msra.mxu0 %v485
      %1452 = vmatpush.msra.mxu0 %v483
      %1453 = vmatpush.msra.mxu0 %v481
      %1454 = vmatpush.msra.mxu0 %v479
      %1455 = vmatpush.msra.mxu0 %v477
      %1456 = vmatmul.f32.gmra.mxu0 %v288
      %v1457 = vpop.f32.mrf.mxu0
      %v1458 = vadd.f32 %v1429, %v1457
      %1459 = vmatmul.f32.gmra.mxu0 %v304
      %v1460 = vpop.f32.mrf.mxu0
      %v1461 = vadd.f32 %v1432, %v1460
      %1462 = vmatmul.f32.gmra.mxu0 %v320
      %v1463 = vpop.f32.mrf.mxu0
      %v1464 = vadd.f32 %v1435, %v1463
      %1465 = vmatmul.f32.gmra.mxu0 %v336
      %v1466 = vpop.f32.mrf.mxu0
      %v1467 = vadd.f32 %v1438, %v1466
      %1468 = vdwg.mxu0
      %1469 = vmatpush.msra.mxu0 %v539
      %1470 = vmatpush.msra.mxu0 %v537
      %1471 = vmatpush.msra.mxu0 %v535
      %1472 = vmatpush.msra.mxu0 %v533
      %1473 = vmatpush.msra.mxu0 %v531
      %1474 = vmatpush.msra.mxu0 %v529
      %1475 = vmatpush.msra.mxu0 %v527
      %1476 = vmatpush.msra.mxu0 %v525
      %1477 = vmatpush.msra.mxu0 %v523
      %1478 = vmatpush.msra.mxu0 %v521
      %1479 = vmatpush.msra.mxu0 %v519
      %1480 = vmatpush.msra.mxu0 %v517
      %1481 = vmatpush.msra.mxu0 %v515
      %1482 = vmatpush.msra.mxu0 %v513
      %1483 = vmatpush.msra.mxu0 %v511
      %1484 = vmatpush.msra.mxu0 %v509
      %1485 = vmatmul.f32.gmra.mxu0 %v289
      %v1486 = vpop.f32.mrf.mxu0
      %v1487 = vadd.f32 %v1458, %v1486
      %1488 = vmatmul.f32.gmra.mxu0 %v305
      %v1489 = vpop.f32.mrf.mxu0
      %v1490 = vadd.f32 %v1461, %v1489
      %1491 = vmatmul.f32.gmra.mxu0 %v321
      %v1492 = vpop.f32.mrf.mxu0
      %v1493 = vadd.f32 %v1464, %v1492
      %1494 = vmatmul.f32.gmra.mxu0 %v337
      %v1495 = vpop.f32.mrf.mxu0
      %v1496 = vadd.f32 %v1467, %v1495
      %1497 = vdwg.mxu0
      %1498 = vmatpush.msra.mxu0 %v571
      %1499 = vmatpush.msra.mxu0 %v569
      %1500 = vmatpush.msra.mxu0 %v567
      %1501 = vmatpush.msra.mxu0 %v565
      %1502 = vmatpush.msra.mxu0 %v563
      %1503 = vmatpush.msra.mxu0 %v561
      %1504 = vmatpush.msra.mxu0 %v559
      %1505 = vmatpush.msra.mxu0 %v557
      %1506 = vmatpush.msra.mxu0 %v555
      %1507 = vmatpush.msra.mxu0 %v553
      %1508 = vmatpush.msra.mxu0 %v551
      %1509 = vmatpush.msra.mxu0 %v549
      %1510 = vmatpush.msra.mxu0 %v547
      %1511 = vmatpush.msra.mxu0 %v545
      %1512 = vmatpush.msra.mxu0 %v543
      %1513 = vmatpush.msra.mxu0 %v541
      %1514 = vmatmul.f32.gmra.mxu0 %v290
      %v1515 = vpop.f32.mrf.mxu0
      %v1516 = vadd.f32 %v1487, %v1515
      %1517 = vmatmul.f32.gmra.mxu0 %v306
      %v1518 = vpop.f32.mrf.mxu0
      %v1519 = vadd.f32 %v1490, %v1518
      %1520 = vmatmul.f32.gmra.mxu0 %v322
      %v1521 = vpop.f32.mrf.mxu0
      %v1522 = vadd.f32 %v1493, %v1521
      %1523 = vmatmul.f32.gmra.mxu0 %v338
      %v1524 = vpop.f32.mrf.mxu0
      %v1525 = vadd.f32 %v1496, %v1524
      %1526 = vdwg.mxu0
      %1527 = vmatpush.msra.mxu0 %v603
      %1528 = vmatpush.msra.mxu0 %v601
      %1529 = vmatpush.msra.mxu0 %v599
      %1530 = vmatpush.msra.mxu0 %v597
      %1531 = vmatpush.msra.mxu0 %v595
      %1532 = vmatpush.msra.mxu0 %v593
      %1533 = vmatpush.msra.mxu0 %v591
      %1534 = vmatpush.msra.mxu0 %v589
      %1535 = vmatpush.msra.mxu0 %v587
      %1536 = vmatpush.msra.mxu0 %v585
      %1537 = vmatpush.msra.mxu0 %v583
      %1538 = vmatpush.msra.mxu0 %v581
      %1539 = vmatpush.msra.mxu0 %v579
      %1540 = vmatpush.msra.mxu0 %v577
      %1541 = vmatpush.msra.mxu0 %v575
      %1542 = vmatpush.msra.mxu0 %v573
      %1543 = vmatmul.f32.gmra.mxu0 %v291
      %v1544 = vpop.f32.mrf.mxu0
      %v1545 = vadd.f32 %v1516, %v1544
      %1546 = vmatmul.f32.gmra.mxu0 %v307
      %v1547 = vpop.f32.mrf.mxu0
      %v1548 = vadd.f32 %v1519, %v1547
      %1549 = vmatmul.f32.gmra.mxu0 %v323
      %v1550 = vpop.f32.mrf.mxu0
      %v1551 = vadd.f32 %v1522, %v1550
      %1552 = vmatmul.f32.gmra.mxu0 %v339
      %v1553 = vpop.f32.mrf.mxu0
      %v1554 = vadd.f32 %v1525, %v1553
      %1555 = vdwg.mxu0
      %1556 = vmatpush.msra.mxu0 %v635
      %1557 = vmatpush.msra.mxu0 %v633
      %1558 = vmatpush.msra.mxu0 %v631
      %1559 = vmatpush.msra.mxu0 %v629
      %1560 = vmatpush.msra.mxu0 %v627
      %1561 = vmatpush.msra.mxu0 %v625
      %1562 = vmatpush.msra.mxu0 %v623
      %1563 = vmatpush.msra.mxu0 %v621
      %1564 = vmatpush.msra.mxu0 %v619
      %1565 = vmatpush.msra.mxu0 %v617
      %1566 = vmatpush.msra.mxu0 %v615
      %1567 = vmatpush.msra.mxu0 %v613
      %1568 = vmatpush.msra.mxu0 %v611
      %1569 = vmatpush.msra.mxu0 %v609
      %1570 = vmatpush.msra.mxu0 %v607
      %1571 = vmatpush.msra.mxu0 %v605
      %1572 = vmatmul.f32.gmra.mxu0 %v292
      %v1573 = vpop.f32.mrf.mxu0
      %v1574 = vadd.f32 %v1545, %v1573
      %1575 = vmatmul.f32.gmra.mxu0 %v308
      %v1576 = vpop.f32.mrf.mxu0
      %v1577 = vadd.f32 %v1548, %v1576
      %1578 = vmatmul.f32.gmra.mxu0 %v324
      %v1579 = vpop.f32.mrf.mxu0
      %v1580 = vadd.f32 %v1551, %v1579
      %1581 = vmatmul.f32.gmra.mxu0 %v340
      %v1582 = vpop.f32.mrf.mxu0
      %v1583 = vadd.f32 %v1554, %v1582
      %1584 = vdwg.mxu0
      %1585 = vmatpush.msra.mxu0 %v667
      %1586 = vmatpush.msra.mxu0 %v665
      %1587 = vmatpush.msra.mxu0 %v663
      %1588 = vmatpush.msra.mxu0 %v661
      %1589 = vmatpush.msra.mxu0 %v659
      %1590 = vmatpush.msra.mxu0 %v657
      %1591 = vmatpush.msra.mxu0 %v655
      %1592 = vmatpush.msra.mxu0 %v653
      %1593 = vmatpush.msra.mxu0 %v651
      %1594 = vmatpush.msra.mxu0 %v649
      %1595 = vmatpush.msra.mxu0 %v647
      %1596 = vmatpush.msra.mxu0 %v645
      %1597 = vmatpush.msra.mxu0 %v643
      %1598 = vmatpush.msra.mxu0 %v641
      %1599 = vmatpush.msra.mxu0 %v639
      %1600 = vmatpush.msra.mxu0 %v637
      %1601 = vmatmul.f32.gmra.mxu0 %v293
      %v1602 = vpop.f32.mrf.mxu0
      %v1603 = vadd.f32 %v1574, %v1602
      %1604 = vmatmul.f32.gmra.mxu0 %v309
      %v1605 = vpop.f32.mrf.mxu0
      %v1606 = vadd.f32 %v1577, %v1605
      %1607 = vmatmul.f32.gmra.mxu0 %v325
      %v1608 = vpop.f32.mrf.mxu0
      %v1609 = vadd.f32 %v1580, %v1608
      %1610 = vmatmul.f32.gmra.mxu0 %v341
      %v1611 = vpop.f32.mrf.mxu0
      %v1612 = vadd.f32 %v1583, %v1611
      %1613 = vdwg.mxu0
      %1614 = vmatpush.msra.mxu0 %v699
      %1615 = vmatpush.msra.mxu0 %v697
      %1616 = vmatpush.msra.mxu0 %v695
      %1617 = vmatpush.msra.mxu0 %v693
      %1618 = vmatpush.msra.mxu0 %v691
      %1619 = vmatpush.msra.mxu0 %v689
      %1620 = vmatpush.msra.mxu0 %v687
      %1621 = vmatpush.msra.mxu0 %v685
      %1622 = vmatpush.msra.mxu0 %v683
      %1623 = vmatpush.msra.mxu0 %v681
      %1624 = vmatpush.msra.mxu0 %v679
      %1625 = vmatpush.msra.mxu0 %v677
      %1626 = vmatpush.msra.mxu0 %v675
      %1627 = vmatpush.msra.mxu0 %v673
      %1628 = vmatpush.msra.mxu0 %v671
      %1629 = vmatpush.msra.mxu0 %v669
      %1630 = vmatmul.f32.gmra.mxu0 %v294
      %v1631 = vpop.f32.mrf.mxu0
      %v1632 = vadd.f32 %v1603, %v1631
      %1633 = vmatmul.f32.gmra.mxu0 %v310
      %v1634 = vpop.f32.mrf.mxu0
      %v1635 = vadd.f32 %v1606, %v1634
      %1636 = vmatmul.f32.gmra.mxu0 %v326
      %v1637 = vpop.f32.mrf.mxu0
      %v1638 = vadd.f32 %v1609, %v1637
      %1639 = vmatmul.f32.gmra.mxu0 %v342
      %v1640 = vpop.f32.mrf.mxu0
      %v1641 = vadd.f32 %v1612, %v1640
      %1642 = vdwg.mxu0
      %1643 = vmatpush.msra.mxu0 %v731
      %1644 = vmatpush.msra.mxu0 %v729
      %1645 = vmatpush.msra.mxu0 %v727
      %1646 = vmatpush.msra.mxu0 %v725
      %1647 = vmatpush.msra.mxu0 %v723
      %1648 = vmatpush.msra.mxu0 %v721
      %1649 = vmatpush.msra.mxu0 %v719
      %1650 = vmatpush.msra.mxu0 %v717
      %1651 = vmatpush.msra.mxu0 %v715
      %1652 = vmatpush.msra.mxu0 %v713
      %1653 = vmatpush.msra.mxu0 %v711
      %1654 = vmatpush.msra.mxu0 %v709
      %1655 = vmatpush.msra.mxu0 %v707
      %1656 = vmatpush.msra.mxu0 %v705
      %1657 = vmatpush.msra.mxu0 %v703
      %1658 = vmatpush.msra.mxu0 %v701
      %1659 = vmatmul.f32.gmra.mxu0 %v295
      %v1660 = vpop.f32.mrf.mxu0
      %v1661 = vadd.f32 %v1632, %v1660
      %1662 = vmatmul.f32.gmra.mxu0 %v311
      %v1663 = vpop.f32.mrf.mxu0
      %v1664 = vadd.f32 %v1635, %v1663
      %1665 = vmatmul.f32.gmra.mxu0 %v327
      %v1666 = vpop.f32.mrf.mxu0
      %v1667 = vadd.f32 %v1638, %v1666
      %1668 = vmatmul.f32.gmra.mxu0 %v343
      %v1669 = vpop.f32.mrf.mxu0
      %v1670 = vadd.f32 %v1641, %v1669
      %1671 = vdwg.mxu0
      %1672 = vmatpush.msra.mxu0 %v763
      %1673 = vmatpush.msra.mxu0 %v761
      %1674 = vmatpush.msra.mxu0 %v759
      %1675 = vmatpush.msra.mxu0 %v757
      %1676 = vmatpush.msra.mxu0 %v755
      %1677 = vmatpush.msra.mxu0 %v753
      %1678 = vmatpush.msra.mxu0 %v751
      %1679 = vmatpush.msra.mxu0 %v749
      %1680 = vmatpush.msra.mxu0 %v747
      %1681 = vmatpush.msra.mxu0 %v745
      %1682 = vmatpush.msra.mxu0 %v743
      %1683 = vmatpush.msra.mxu0 %v741
      %1684 = vmatpush.msra.mxu0 %v739
      %1685 = vmatpush.msra.mxu0 %v737
      %1686 = vmatpush.msra.mxu0 %v735
      %1687 = vmatpush.msra.mxu0 %v733
      %1688 = vmatmul.f32.gmra.mxu0 %v296
      %v1689 = vpop.f32.mrf.mxu0
      %v1690 = vadd.f32 %v1661, %v1689
      %1691 = vmatmul.f32.gmra.mxu0 %v312
      %v1692 = vpop.f32.mrf.mxu0
      %v1693 = vadd.f32 %v1664, %v1692
      %1694 = vmatmul.f32.gmra.mxu0 %v328
      %v1695 = vpop.f32.mrf.mxu0
      %v1696 = vadd.f32 %v1667, %v1695
      %1697 = vmatmul.f32.gmra.mxu0 %v344
      %v1698 = vpop.f32.mrf.mxu0
      %v1699 = vadd.f32 %v1670, %v1698
      %1700 = vdwg.mxu0
      %1701 = vmatpush.msra.mxu0 %v795
      %1702 = vmatpush.msra.mxu0 %v793
      %1703 = vmatpush.msra.mxu0 %v791
      %1704 = vmatpush.msra.mxu0 %v789
      %1705 = vmatpush.msra.mxu0 %v787
      %1706 = vmatpush.msra.mxu0 %v785
      %1707 = vmatpush.msra.mxu0 %v783
      %1708 = vmatpush.msra.mxu0 %v781
      %1709 = vmatpush.msra.mxu0 %v779
      %1710 = vmatpush.msra.mxu0 %v777
      %1711 = vmatpush.msra.mxu0 %v775
      %1712 = vmatpush.msra.mxu0 %v773
      %1713 = vmatpush.msra.mxu0 %v771
      %1714 = vmatpush.msra.mxu0 %v769
      %1715 = vmatpush.msra.mxu0 %v767
      %1716 = vmatpush.msra.mxu0 %v765
      %1717 = vmatmul.f32.gmra.mxu0 %v297
      %v1718 = vpop.f32.mrf.mxu0
      %v1719 = vadd.f32 %v1690, %v1718
      %1720 = vmatmul.f32.gmra.mxu0 %v313
      %v1721 = vpop.f32.mrf.mxu0
      %v1722 = vadd.f32 %v1693, %v1721
      %1723 = vmatmul.f32.gmra.mxu0 %v329
      %v1724 = vpop.f32.mrf.mxu0
      %v1725 = vadd.f32 %v1696, %v1724
      %1726 = vmatmul.f32.gmra.mxu0 %v345
      %v1727 = vpop.f32.mrf.mxu0
      %v1728 = vadd.f32 %v1699, %v1727
      %1729 = vdwg.mxu0
      %1730 = vmatpush.msra.mxu0 %v827
      %1731 = vmatpush.msra.mxu0 %v825
      %1732 = vmatpush.msra.mxu0 %v823
      %1733 = vmatpush.msra.mxu0 %v821
      %1734 = vmatpush.msra.mxu0 %v819
      %1735 = vmatpush.msra.mxu0 %v817
      %1736 = vmatpush.msra.mxu0 %v815
      %1737 = vmatpush.msra.mxu0 %v813
      %1738 = vmatpush.msra.mxu0 %v811
      %1739 = vmatpush.msra.mxu0 %v809
      %1740 = vmatpush.msra.mxu0 %v807
      %1741 = vmatpush.msra.mxu0 %v805
      %1742 = vmatpush.msra.mxu0 %v803
      %1743 = vmatpush.msra.mxu0 %v801
      %1744 = vmatpush.msra.mxu0 %v799
      %1745 = vmatpush.msra.mxu0 %v797
      %1746 = vmatmul.f32.gmra.mxu0 %v298
      %v1747 = vpop.f32.mrf.mxu0
      %v1748 = vadd.f32 %v1719, %v1747
      %1749 = vmatmul.f32.gmra.mxu0 %v314
      %v1750 = vpop.f32.mrf.mxu0
      %v1751 = vadd.f32 %v1722, %v1750
      %1752 = vmatmul.f32.gmra.mxu0 %v330
      %v1753 = vpop.f32.mrf.mxu0
      %v1754 = vadd.f32 %v1725, %v1753
      %1755 = vmatmul.f32.gmra.mxu0 %v346
      %v1756 = vpop.f32.mrf.mxu0
      %v1757 = vadd.f32 %v1728, %v1756
      %1758 = vdwg.mxu0
      %1759 = vmatpush.msra.mxu0 %v859
      %1760 = vmatpush.msra.mxu0 %v857
      %1761 = vmatpush.msra.mxu0 %v855
      %1762 = vmatpush.msra.mxu0 %v853
      %1763 = vmatpush.msra.mxu0 %v851
      %1764 = vmatpush.msra.mxu0 %v849
      %1765 = vmatpush.msra.mxu0 %v847
      %1766 = vmatpush.msra.mxu0 %v845
      %1767 = vmatpush.msra.mxu0 %v843
      %1768 = vmatpush.msra.mxu0 %v841
      %1769 = vmatpush.msra.mxu0 %v839
      %1770 = vmatpush.msra.mxu0 %v837
      %1771 = vmatpush.msra.mxu0 %v835
      %1772 = vmatpush.msra.mxu0 %v833
      %1773 = vmatpush.msra.mxu0 %v831
      %1774 = vmatpush.msra.mxu0 %v829
      %1775 = vmatmul.f32.gmra.mxu0 %v299
      %v1776 = vpop.f32.mrf.mxu0
      %v1777 = vadd.f32 %v1748, %v1776
      %1778 = vmatmul.f32.gmra.mxu0 %v315
      %v1779 = vpop.f32.mrf.mxu0
      %v1780 = vadd.f32 %v1751, %v1779
      %1781 = vmatmul.f32.gmra.mxu0 %v331
      %v1782 = vpop.f32.mrf.mxu0
      %v1783 = vadd.f32 %v1754, %v1782
      %1784 = vmatmul.f32.gmra.mxu0 %v347
      %v1785 = vpop.f32.mrf.mxu0
      %v1786 = vadd.f32 %v1757, %v1785
      %1787 = vdwg.mxu0
      %1788 = vst [vmem:[%s281] sm:$0xff] %v1313
      %1789 = vst [vmem:[%s281 + $0x8] sm:$0xff] %v1777
      %1790 = vst [vmem:[%s281 + $0x10] sm:$0xff] %v1316
      %1791 = vst [vmem:[%s281 + $0x18] sm:$0xff] %v1780
      %1792 = vst [vmem:[%s281 + $0x20] sm:$0xff] %v1319
      %1793 = vst [vmem:[%s281 + $0x28] sm:$0xff] %v1783
      %1794 = vst [vmem:[%s281 + $0x30] sm:$0xff] %v1322
      %1795 = vst [vmem:[%s281 + $0x38] sm:$0xff] %v1786
      %s1796 = smul.u32 4, %s20
      %s1797 = smul.u32 2, %s21
      %p1798 = scmp.lt.s32.totalorder %s19, 3
      %s1799 = scalar_select %p1798, %s19, 3
      %p1800 = scmp.lt.s32.totalorder %s1796, 3
      %s1801 = scalar_select %p1800, %s1796, 3
      %p1802 = scmp.lt.s32.totalorder %s1797, 1
      %s1803 = scalar_select %p1802, %s1797, 1
      %s1804 = smul.addr %s1801, 2
      %s1805 = sadd.s32 %s1803, %s1804
      %s1806 = smul.addr %s1799, 8
      %s1807 = sadd.s32 %s1805, %s1806
      %s1808 = smul.addr %s1807, 8
      %s1809 = scalar_lea.vmem %s2, %s1808
      // Predicated region
      $region29: #{generator_forward.16} parent=27 // pred_check
        %p1810 = pneg %p121
      $region30: #{generator_forward.16} parent=27 // pred_check_branch
        %1812 = sbr.rel (%p1810) target = $region32
      $region31: #{generator_forward.16} parent=27 // pred_region
        %s1813 = smul.u32 4, %s20
        %s1814 = smul.u32 2, %s21
      $region32: #{generator_forward.16} parent=27 // pred_fallthru
        _
    $region28: #{generator_forward.16} parent=5 // pred_fallthru
      _
    %p1815 = scmp.le.s32.totalorder 2, %s8
    // Predicated region
    $region33: #{generator_forward.16} parent=5 // pred_check
      %p1816 = pneg %p1815
    $region34: #{generator_forward.16} parent=5 // pred_check_branch
      %1818 = sbr.rel (%p1816) target = $region36
    $region35: #{generator_forward.16} parent=5 // pred_region
      %s1819 = ssub.s32 %s8, 2
      // Predicated region
      $region37: #{generator_forward.16} parent=35 // pred_check
        %p1820 = pneg %p127
      $region38: #{generator_forward.16} parent=35 // pred_check_branch
        %1822 = sbr.rel (%p1820) target = $region40
      $region39: #{generator_forward.16} parent=35 // pred_region
        %s1823 = smul.u32 4, %s24
        %s1824 = smul.u32 2, %s25
        %p1825 = scmp.lt.s32.totalorder %s23, 3
        %s1826 = scalar_select %p1825, %s23, 3
        %p1827 = scmp.lt.s32.totalorder %s1823, 3
        %s1828 = scalar_select %p1827, %s1823, 3
        %p1829 = scmp.lt.s32.totalorder %s1824, 1
        %s1830 = scalar_select %p1829, %s1824, 1
        %s1831 = smul.addr %s1828, 2
        %s1832 = sadd.s32 %s1830, %s1831
        %s1833 = smul.addr %s1826, 8
        %s1834 = sadd.s32 %s1832, %s1833
        %s1835 = smul.addr %s1834, 8
        %s1836 = scalar_lea.vmem %s2, %s1835
      $region40: #{generator_forward.16} parent=35 // pred_fallthru
        _
    $region36: #{generator_forward.16} parent=5 // pred_fallthru
      _
  $region6: #{generator_forward.16} parent=0 // loop_footer
    %s12 = sadd.s32 1, %s8
  $region7: #{generator_forward.16} parent=0 // loop_footer_branch
    %7 = sbr.rel target = $region3
  $region8: #{generator_forward.16} parent=0 // loop_exit
    _

// kernel: generator_forward.19
$region0: #{generator_forward.19}
  #allocation0 [shape = 'u32[]', space=smem, size = 0x4, offset = 0x4, fixed_abs, tag = 'smem constant byte address 0x4 - core index']
  #allocation1 [shape = 'u32[72,128]{1,0:T(1,128)}', space=vmem, size = 0x9000, scoped, tag = 'internal scratch']
  %s0 = inlined_call_operand.vmem [shape: f32[4,128,1024], index: 0, kind: input, shape index: {}]
  %s1 = inlined_call_operand.vmem [shape: f32[4,1024,128], index: 1, kind: input, shape index: {}]
  %s2 = inlined_call_operand.vmem [shape: f32[4,128,128], index: 2, kind: output, shape index: {}]
  %s3 = sld [smem:[#allocation0]]
  $region41: #{generator_forward.19} parent=0
    _
  %s5 = ssub.s32 1, %s3
  %s6 = scalar_select 0, %s5, %s3
  loop: start=0, step=1, limit=6
  $region2: #{generator_forward.19} parent=0 // loop_pre_header
    _
  $region3: #{generator_forward.19} parent=0 // loop_header
    %s8 = sphi 0, %s12
    %p9 = scmp.ge.s32.totalorder %s8, 6
    %s15 = sphi 0, %s41
    %s16 = sphi 0, %s37
    %s17 = sphi 0, %s33
    %s18 = sphi 0, %s29
    %s19 = sphi 0, %s15
    %s20 = sphi 0, %s16
    %s21 = sphi 0, %s17
    %s22 = sphi 0, %s18
    %s23 = sphi 0, %s19
    %s24 = sphi 0, %s20
    %s25 = sphi 0, %s21
    %s26 = sphi 0, %s22
    %s48 = sphi 0, %s50
    %s51 = sphi 0, %s48
    %s52 = sphi 0, %s51
    %s68 = sphi 0, %s52
    %s78 = sphi 0, %s80
    %s81 = sphi 0, %s78
    %s82 = sphi 0, %s81
    %s98 = sphi 0, %s82
    %s108 = sphi 0, %s110
    %s111 = sphi 0, %s108
    %s112 = sphi 0, %s111
    %s128 = sphi 0, %s112
  $region4: #{generator_forward.19} parent=0 // loop_header_branch
    %11 = sbr.rel (%p9) target = $region8
  $region5: #{generator_forward.19} parent=0 // loop_body
    %s13 = ssub.s32 %s8, 1
    %s14 = ssub.s32 %s8, 2
    %s27 = sadd.s32 1, %s18
    %p28 = scmp.ge.s32.totalorder %s27, 1
    %s29 = scalar_select %p28, 0, %s27
    %s30 = sadd.s32 1, %s17
    %s31 = scalar_select %p28, %s30, %s17
    %p32 = scmp.ge.s32.totalorder %s31, 1
    %s33 = scalar_select %p32, 0, %s31
    %s34 = sadd.s32 1, %s16
    %s35 = scalar_select %p32, %s34, %s16
    %p36 = scmp.ge.s32.totalorder %s35, 1
    %s37 = scalar_select %p36, 0, %s35
    %s38 = sadd.s32 1, %s15
    %s39 = scalar_select %p36, %s38, %s15
    %p40 = scmp.ge.s32.totalorder %s39, 4
    %s41 = scalar_select %p40, 0, %s39
    %s42 = ssub.s32 %s15, %s41
    %s43 = ssub.s32 %s16, %s37
    %s44 = sor.u32 %s42, %s43
    %s45 = ssub.s32 %s18, %s29
    %s46 = sor.u32 %s44, %s45
    %p47 = scmp.eq.s32.totalorder %s46, 0
    %s49 = sadd.s32 %s48, 1
    %s50 = scalar_select %p47, %s48, %s49
    %p53 = pneg %p47
    %p54 = scmp.eq.s32.totalorder %s8, 3
    %p55 = por %p53, %p54
    %p56 = scmp.ne.s32.totalorder %s48, %s51
    %p57 = scmp.eq.s32.totalorder %s8, 0
    %p58 = por %p56, %p57
    %p59 = scmp.ne.s32.totalorder %s48, %s51
    %p60 = scmp.eq.s32.totalorder %s13, 3
    %p61 = por %p59, %p60
    %p62 = scmp.ne.s32.totalorder %s51, %s52
    %p63 = scmp.eq.s32.totalorder %s13, 0
    %p64 = por %p62, %p63
    %p65 = scmp.ne.s32.totalorder %s51, %s52
    %p66 = scmp.eq.s32.totalorder %s14, 3
    %p67 = por %p65, %p66
    %p69 = scmp.ne.s32.totalorder %s52, %s68
    %p70 = scmp.eq.s32.totalorder %s14, 0
    %p71 = por %p69, %p70
    %s72 = ssub.s32 %s15, %s41
    %s73 = ssub.s32 %s18, %s29
    %s74 = sor.u32 %s72, %s73
    %s75 = ssub.s32 %s17, %s33
    %s76 = sor.u32 %s74, %s75
    %p77 = scmp.eq.s32.totalorder %s76, 0
    %s79 = sadd.s32 %s78, 1
    %s80 = scalar_select %p77, %s78, %s79
    %p83 = pneg %p77
    %p84 = scmp.eq.s32.totalorder %s8, 3
    %p85 = por %p83, %p84
    %p86 = scmp.ne.s32.totalorder %s78, %s81
    %p87 = scmp.eq.s32.totalorder %s8, 0
    %p88 = por %p86, %p87
    %p89 = scmp.ne.s32.totalorder %s78, %s81
    %p90 = scmp.eq.s32.totalorder %s13, 3
    %p91 = por %p89, %p90
    %p92 = scmp.ne.s32.totalorder %s81, %s82
    %p93 = scmp.eq.s32.totalorder %s13, 0
    %p94 = por %p92, %p93
    %p95 = scmp.ne.s32.totalorder %s81, %s82
    %p96 = scmp.eq.s32.totalorder %s14, 3
    %p97 = por %p95, %p96
    %p99 = scmp.ne.s32.totalorder %s82, %s98
    %p100 = scmp.eq.s32.totalorder %s14, 0
    %p101 = por %p99, %p100
    %s102 = ssub.s32 %s15, %s41
    %s103 = ssub.s32 %s16, %s37
    %s104 = sor.u32 %s102, %s103
    %s105 = ssub.s32 %s17, %s33
    %s106 = sor.u32 %s104, %s105
    %p107 = scmp.eq.s32.totalorder %s106, 0
    %s109 = sadd.s32 %s108, 1
    %s110 = scalar_select %p107, %s108, %s109
    %p113 = pneg %p107
    %p114 = scmp.eq.s32.totalorder %s8, 3
    %p115 = por %p113, %p114
    %p116 = scmp.ne.s32.totalorder %s108, %s111
    %p117 = scmp.eq.s32.totalorder %s8, 0
    %p118 = por %p116, %p117
    %p119 = scmp.ne.s32.totalorder %s108, %s111
    %p120 = scmp.eq.s32.totalorder %s13, 3
    %p121 = por %p119, %p120
    %p122 = scmp.ne.s32.totalorder %s111, %s112
    %p123 = scmp.eq.s32.totalorder %s13, 0
    %p124 = por %p122, %p123
    %p125 = scmp.ne.s32.totalorder %s111, %s112
    %p126 = scmp.eq.s32.totalorder %s14, 3
    %p127 = por %p125, %p126
    %p129 = scmp.ne.s32.totalorder %s112, %s128
    %p130 = scmp.eq.s32.totalorder %s14, 0
    %p131 = por %p129, %p130
    %p132 = scmp.le.s32.totalorder 1, %s8
    %p133 = scmp.lt.s32.totalorder %s8, 5
    %p134 = pnand %p132, %p133
    %p135 = pneg %p134
    // Predicated region
    $region9: #{generator_forward.19} parent=5 // pred_check
      _
    $region10: #{generator_forward.19} parent=5 // pred_check_branch
      %137 = sbr.rel (%p134) target = $region12
    $region11: #{generator_forward.19} parent=5 // pred_region
      %s138 = ssub.s32 %s8, 1
    $region12: #{generator_forward.19} parent=5 // pred_fallthru
      _
    %p139 = scmp.lt.s32.totalorder %s8, 4
    // Predicated region
    $region13: #{generator_forward.19} parent=5 // pred_check
      %p140 = pneg %p139
    $region14: #{generator_forward.19} parent=5 // pred_check_branch
      %142 = sbr.rel (%p140) target = $region16
    $region15: #{generator_forward.19} parent=5 // pred_region
      // Predicated region
      $region17: #{generator_forward.19} parent=15 // pred_check
        %p143 = pneg %p58
      $region18: #{generator_forward.19} parent=15 // pred_check_branch
        %145 = sbr.rel (%p143) target = $region20
      $region19: #{generator_forward.19} parent=15 // pred_region
        %s146 = smul.u32 16, %s16
        %s147 = smul.u32 8, %s18
        %p148 = scmp.lt.s32.totalorder %s15, 3
        %s149 = scalar_select %p148, %s15, 3
        %p150 = scmp.lt.s32.totalorder %s146, 15
        %s151 = scalar_select %p150, %s146, 15
        %p152 = scmp.lt.s32.totalorder %s147, 7
        %s153 = scalar_select %p152, %s147, 7
        %s154 = smul.addr %s151, 8
        %s155 = sadd.s32 %s153, %s154
        %s156 = smul.addr %s149, 128
        %s157 = sadd.s32 %s155, %s156
        %s158 = smul.addr %s157, 8
        %s159 = scalar_lea.vmem %s0, %s158
        %s160 = smul.u32 16, %s16
        %s161 = smul.u32 8, %s18
      $region20: #{generator_forward.19} parent=15 // pred_fallthru
        _
      // Predicated region
      $region21: #{generator_forward.19} parent=15 // pred_check
        %p162 = pneg %p88
      $region22: #{generator_forward.19} parent=15 // pred_check_branch
        %164 = sbr.rel (%p162) target = $region24
      $region23: #{generator_forward.19} parent=15 // pred_region
        %s165 = smul.u32 128, %s18
        %p166 = scmp.lt.s32.totalorder %s15, 3
        %s167 = scalar_select %p166, %s15, 3
        %p168 = scmp.lt.s32.totalorder %s165, 127
        %s169 = scalar_select %p168, %s165, 127
        %p170 = scmp.lt.s32.totalorder %s17, 0
        %s171 = scalar_select %p170, %s17, 0
        %s172 = sadd.s32 %s171, %s169
        %s173 = smul.addr %s167, 128
        %s174 = sadd.s32 %s172, %s173
        %s175 = smul.addr %s174, 8
        %s176 = scalar_lea.vmem %s1, %s175
        %s177 = smul.u32 128, %s18
      $region24: #{generator_forward.19} parent=15 // pred_fallthru
        _
    $region16: #{generator_forward.19} parent=5 // pred_fallthru
      _
    %p178 = scmp.le.s32.totalorder 1, %s8
    %p179 = scmp.lt.s32.totalorder %s8, 5
    %p180 = pnand %p178, %p179
    %p181 = pneg %p180
    // Predicated region
    $region25: #{generator_forward.19} parent=5 // pred_check
      _
    $region26: #{generator_forward.19} parent=5 // pred_check_branch
      %183 = sbr.rel (%p180) target = $region28
    $region27: #{generator_forward.19} parent=5 // pred_region
      %s184 = ssub.s32 %s8, 1
      %s185 = smul.u32 16, %s20
      %s186 = smul.u32 8, %s22
      %p187 = scmp.lt.s32.totalorder %s19, 3
      %s188 = scalar_select %p187, %s19, 3
      %p189 = scmp.lt.s32.totalorder %s185, 15
      %s190 = scalar_select %p189, %s185, 15
      %p191 = scmp.lt.s32.totalorder %s186, 7
      %s192 = scalar_select %p191, %s186, 7
      %s193 = smul.addr %s190, 8
      %s194 = sadd.s32 %s192, %s193
      %s195 = smul.addr %s188, 128
      %s196 = sadd.s32 %s194, %s195
      %s197 = smul.addr %s196, 8
      %s198 = scalar_lea.vmem %s0, %s197
      %p199 = pneg %p64
      %p200 = pneg %p61
      %s201 = smul.u32 128, %s22
      %p202 = scmp.lt.s32.totalorder %s19, 3
      %s203 = scalar_select %p202, %s19, 3
      %p204 = scmp.lt.s32.totalorder %s201, 127
      %s205 = scalar_select %p204, %s201, 127
      %p206 = scmp.lt.s32.totalorder %s21, 0
      %s207 = scalar_select %p206, %s21, 0
      %s208 = sadd.s32 %s207, %s205
      %s209 = smul.addr %s203, 128
      %s210 = sadd.s32 %s208, %s209
      %s211 = smul.addr %s210, 8
      %s212 = scalar_lea.vmem %s1, %s211
      %p213 = pneg %p94
      %p214 = pneg %p91
      %p215 = pneg %p124
      %p216 = pneg %p121
      %s217 = smul.u32 16, %s20
      %p218 = scmp.lt.s32.totalorder %s19, 3
      %s219 = scalar_select %p218, %s19, 3
      %p220 = scmp.lt.s32.totalorder %s217, 15
      %s221 = scalar_select %p220, %s217, 15
      %p222 = scmp.lt.s32.totalorder %s21, 0
      %s223 = scalar_select %p222, %s21, 0
      %s224 = sadd.s32 %s223, %s221
      %s225 = smul.addr %s219, 16
      %s226 = sadd.s32 %s224, %s225
      %s227 = smul.addr %s226, 8
      %s228 = scalar_lea.vmem %s2, %s227
      %s229 = smul.u32 16, %s20
      %s230 = smul.u32 8, %s22
      %p231 = scmp.lt.s32.totalorder %s19, 3
      %s232 = scalar_select %p231, %s19, 3
      %p233 = scmp.lt.s32.totalorder %s229, 15
      %s234 = scalar_select %p233, %s229, 15
      %p235 = scmp.lt.s32.totalorder %s230, 7
      %s236 = scalar_select %p235, %s230, 7
      %s237 = smul.addr %s234, 8
      %s238 = sadd.s32 %s236, %s237
      %s239 = smul.addr %s232, 128
      %s240 = sadd.s32 %s238, %s239
      %s241 = smul.addr %s240, 8
      %s242 = scalar_lea.vmem %s0, %s241
      %s243 = smul.u32 16, %s20
      %s244 = smul.u32 8, %s22
      %s245 = smul.u32 128, %s22
      %p246 = scmp.lt.s32.totalorder %s19, 3
      %s247 = scalar_select %p246, %s19, 3
      %p248 = scmp.lt.s32.totalorder %s245, 127
      %s249 = scalar_select %p248, %s245, 127
      %p250 = scmp.lt.s32.totalorder %s21, 0
      %s251 = scalar_select %p250, %s21, 0
      %s252 = sadd.s32 %s251, %s249
      %s253 = smul.addr %s247, 128
      %s254 = sadd.s32 %s252, %s253
      %s255 = smul.addr %s254, 8
      %s256 = scalar_lea.vmem %s1, %s255
      %s257 = smul.u32 128, %s22
      %s258 = smul.u32 16, %s20
      %p259 = scmp.lt.s32.totalorder %s19, 3
      %s260 = scalar_select %p259, %s19, 3
      %p261 = scmp.lt.s32.totalorder %s258, 15
      %s262 = scalar_select %p261, %s258, 15
      %p263 = scmp.lt.s32.totalorder %s21, 0
      %s264 = scalar_select %p263, %s21, 0
      %s265 = sadd.s32 %s264, %s262
      %s266 = smul.addr %s260, 16
      %s267 = sadd.s32 %s265, %s266
      %s268 = smul.addr %s267, 8
      %s269 = scalar_lea.vmem %s2, %s268
      %s270 = smul.u32 16, %s20
      %v271 = vld [vmem:[%s242] sm:$0xff]
      %v272 = vld [vmem:[%s242 + $0x8] sm:$0xff]
      %v273 = vld [vmem:[%s242 + $0x10] sm:$0xff]
      %v274 = vld [vmem:[%s242 + $0x18] sm:$0xff]
      %v275 = vld [vmem:[%s242 + $0x20] sm:$0xff]
      %v276 = vld [vmem:[%s242 + $0x28] sm:$0xff]
      %v277 = vld [vmem:[%s242 + $0x30] sm:$0xff]
      %v278 = vld [vmem:[%s242 + $0x38] sm:$0xff]
      %v279 = vld [vmem:[%s242 + $0x40] sm:$0xff]
      %v280 = vld [vmem:[%s242 + $0x48] sm:$0xff]
      %v281 = vld [vmem:[%s242 + $0x50] sm:$0xff]
      %v282 = vld [vmem:[%s242 + $0x58] sm:$0xff]
      %v283 = vld [vmem:[%s242 + $0x60] sm:$0xff]
      %v284 = vld [vmem:[%s242 + $0x68] sm:$0xff]
      %v285 = vld [vmem:[%s242 + $0x70] sm:$0xff]
      %v286 = vld [vmem:[%s242 + $0x78] sm:$0xff]
      %v287 = vld [vmem:[%s242 + $0x80] sm:$0xff]
      %v288 = vld [vmem:[%s242 + $0x88] sm:$0xff]
      %v289 = vld [vmem:[%s242 + $0x90] sm:$0xff]
      %v290 = vld [vmem:[%s242 + $0x98] sm:$0xff]
      %v291 = vld [vmem:[%s242 + $0xa0] sm:$0xff]
      %v292 = vld [vmem:[%s242 + $0xa8] sm:$0xff]
      %v293 = vld [vmem:[%s242 + $0xb0] sm:$0xff]
      %v294 = vld [vmem:[%s242 + $0xb8] sm:$0xff]
      %v295 = vld [vmem:[%s242 + $0xc0] sm:$0xff]
      %v296 = vld [vmem:[%s242 + $0xc8] sm:$0xff]
      %v297 = vld [vmem:[%s242 + $0xd0] sm:$0xff]
      %v298 = vld [vmem:[%s242 + $0xd8] sm:$0xff]
      %v299 = vld [vmem:[%s242 + $0xe0] sm:$0xff]
      %v300 = vld [vmem:[%s242 + $0xe8] sm:$0xff]
      %v301 = vld [vmem:[%s242 + $0xf0] sm:$0xff]
      %v302 = vld [vmem:[%s242 + $0xf8] sm:$0xff]
      %v303 = vld [vmem:[%s242 + $0x100] sm:$0xff]
      %v304 = vld [vmem:[%s242 + $0x108] sm:$0xff]
      %v305 = vld [vmem:[%s242 + $0x110] sm:$0xff]
      %v306 = vld [vmem:[%s242 + $0x118] sm:$0xff]
      %v307 = vld [vmem:[%s242 + $0x120] sm:$0xff]
      %v308 = vld [vmem:[%s242 + $0x128] sm:$0xff]
      %v309 = vld [vmem:[%s242 + $0x130] sm:$0xff]
      %v310 = vld [vmem:[%s242 + $0x138] sm:$0xff]
      %v311 = vld [vmem:[%s242 + $0x140] sm:$0xff]
      %v312 = vld [vmem:[%s242 + $0x148] sm:$0xff]
      %v313 = vld [vmem:[%s242 + $0x150] sm:$0xff]
      %v314 = vld [vmem:[%s242 + $0x158] sm:$0xff]
      %v315 = vld [vmem:[%s242 + $0x160] sm:$0xff]
      %v316 = vld [vmem:[%s242 + $0x168] sm:$0xff]
      %v317 = vld [vmem:[%s242 + $0x170] sm:$0xff]
      %v318 = vld [vmem:[%s242 + $0x178] sm:$0xff]
      %v319 = vld [vmem:[%s242 + $0x180] sm:$0xff]
      %v320 = vld [vmem:[%s242 + $0x188] sm:$0xff]
      %v321 = vld [vmem:[%s242 + $0x190] sm:$0xff]
      %v322 = vld [vmem:[%s242 + $0x198] sm:$0xff]
      %v323 = vld [vmem:[%s242 + $0x1a0] sm:$0xff]
      %v324 = vld [vmem:[%s242 + $0x1a8] sm:$0xff]
      %v325 = vld [vmem:[%s242 + $0x1b0] sm:$0xff]
      %v326 = vld [vmem:[%s242 + $0x1b8] sm:$0xff]
      %v327 = vld [vmem:[%s242 + $0x1c0] sm:$0xff]
      %v328 = vld [vmem:[%s242 + $0x1c8] sm:$0xff]
      %v329 = vld [vmem:[%s242 + $0x1d0] sm:$0xff]
      %v330 = vld [vmem:[%s242 + $0x1d8] sm:$0xff]
      %v331 = vld [vmem:[%s242 + $0x1e0] sm:$0xff]
      %v332 = vld [vmem:[%s242 + $0x1e8] sm:$0xff]
      %v333 = vld [vmem:[%s242 + $0x1f0] sm:$0xff]
      %v334 = vld [vmem:[%s242 + $0x1f8] sm:$0xff]
      %v335 = vld [vmem:[%s242 + $0x200] sm:$0xff]
      %v336 = vld [vmem:[%s242 + $0x208] sm:$0xff]
      %v337 = vld [vmem:[%s242 + $0x210] sm:$0xff]
      %v338 = vld [vmem:[%s242 + $0x218] sm:$0xff]
      %v339 = vld [vmem:[%s242 + $0x220] sm:$0xff]
      %v340 = vld [vmem:[%s242 + $0x228] sm:$0xff]
      %v341 = vld [vmem:[%s242 + $0x230] sm:$0xff]
      %v342 = vld [vmem:[%s242 + $0x238] sm:$0xff]
      %v343 = vld [vmem:[%s242 + $0x240] sm:$0xff]
      %v344 = vld [vmem:[%s242 + $0x248] sm:$0xff]
      %v345 = vld [vmem:[%s242 + $0x250] sm:$0xff]
      %v346 = vld [vmem:[%s242 + $0x258] sm:$0xff]
      %v347 = vld [vmem:[%s242 + $0x260] sm:$0xff]
      %v348 = vld [vmem:[%s242 + $0x268] sm:$0xff]
      %v349 = vld [vmem:[%s242 + $0x270] sm:$0xff]
      %v350 = vld [vmem:[%s242 + $0x278] sm:$0xff]
      %v351 = vld [vmem:[%s242 + $0x280] sm:$0xff]
      %v352 = vld [vmem:[%s242 + $0x288] sm:$0xff]
      %v353 = vld [vmem:[%s242 + $0x290] sm:$0xff]
      %v354 = vld [vmem:[%s242 + $0x298] sm:$0xff]
      %v355 = vld [vmem:[%s242 + $0x2a0] sm:$0xff]
      %v356 = vld [vmem:[%s242 + $0x2a8] sm:$0xff]
      %v357 = vld [vmem:[%s242 + $0x2b0] sm:$0xff]
      %v358 = vld [vmem:[%s242 + $0x2b8] sm:$0xff]
      %v359 = vld [vmem:[%s242 + $0x2c0] sm:$0xff]
      %v360 = vld [vmem:[%s242 + $0x2c8] sm:$0xff]
      %v361 = vld [vmem:[%s242 + $0x2d0] sm:$0xff]
      %v362 = vld [vmem:[%s242 + $0x2d8] sm:$0xff]
      %v363 = vld [vmem:[%s242 + $0x2e0] sm:$0xff]
      %v364 = vld [vmem:[%s242 + $0x2e8] sm:$0xff]
      %v365 = vld [vmem:[%s242 + $0x2f0] sm:$0xff]
      %v366 = vld [vmem:[%s242 + $0x2f8] sm:$0xff]
      %v367 = vld [vmem:[%s242 + $0x300] sm:$0xff]
      %v368 = vld [vmem:[%s242 + $0x308] sm:$0xff]
      %v369 = vld [vmem:[%s242 + $0x310] sm:$0xff]
      %v370 = vld [vmem:[%s242 + $0x318] sm:$0xff]
      %v371 = vld [vmem:[%s242 + $0x320] sm:$0xff]
      %v372 = vld [vmem:[%s242 + $0x328] sm:$0xff]
      %v373 = vld [vmem:[%s242 + $0x330] sm:$0xff]
      %v374 = vld [vmem:[%s242 + $0x338] sm:$0xff]
      %v375 = vld [vmem:[%s242 + $0x340] sm:$0xff]
      %v376 = vld [vmem:[%s242 + $0x348] sm:$0xff]
      %v377 = vld [vmem:[%s242 + $0x350] sm:$0xff]
      %v378 = vld [vmem:[%s242 + $0x358] sm:$0xff]
      %v379 = vld [vmem:[%s242 + $0x360] sm:$0xff]
      %v380 = vld [vmem:[%s242 + $0x368] sm:$0xff]
      %v381 = vld [vmem:[%s242 + $0x370] sm:$0xff]
      %v382 = vld [vmem:[%s242 + $0x378] sm:$0xff]
      %v383 = vld [vmem:[%s242 + $0x380] sm:$0xff]
      %v384 = vld [vmem:[%s242 + $0x388] sm:$0xff]
      %v385 = vld [vmem:[%s242 + $0x390] sm:$0xff]
      %v386 = vld [vmem:[%s242 + $0x398] sm:$0xff]
      %v387 = vld [vmem:[%s242 + $0x3a0] sm:$0xff]
      %v388 = vld [vmem:[%s242 + $0x3a8] sm:$0xff]
      %v389 = vld [vmem:[%s242 + $0x3b0] sm:$0xff]
      %v390 = vld [vmem:[%s242 + $0x3b8] sm:$0xff]
      %v391 = vld [vmem:[%s242 + $0x3c0] sm:$0xff]
      %v392 = vld [vmem:[%s242 + $0x3c8] sm:$0xff]
      %v393 = vld [vmem:[%s242 + $0x3d0] sm:$0xff]
      %v394 = vld [vmem:[%s242 + $0x3d8] sm:$0xff]
      %v395 = vld [vmem:[%s242 + $0x3e0] sm:$0xff]
      %v396 = vld [vmem:[%s242 + $0x3e8] sm:$0xff]
      %v397 = vld [vmem:[%s242 + $0x3f0] sm:$0xff]
      %v398 = vld [vmem:[%s242 + $0x3f8] sm:$0xff]
      %v399 = vld [vmem:[%s256] sm:$0xff]
      %v400 = vld [vmem:[%s256 + $0x8] sm:$0xff]
      %v401 = vld [vmem:[%s256 + $0x10] sm:$0xff]
      %v402 = vld [vmem:[%s256 + $0x18] sm:$0xff]
      %v403 = vld [vmem:[%s256 + $0x20] sm:$0xff]
      %v404 = vld [vmem:[%s256 + $0x28] sm:$0xff]
      %v405 = vld [vmem:[%s256 + $0x30] sm:$0xff]
      %v406 = vld [vmem:[%s256 + $0x38] sm:$0xff]
      %v407 = vld [vmem:[%s256 + $0x40] sm:$0xff]
      %v408 = vld [vmem:[%s256 + $0x48] sm:$0xff]
      %v409 = vld [vmem:[%s256 + $0x50] sm:$0xff]
      %v410 = vld [vmem:[%s256 + $0x58] sm:$0xff]
      %v411 = vld [vmem:[%s256 + $0x60] sm:$0xff]
      %v412 = vld [vmem:[%s256 + $0x68] sm:$0xff]
      %v413 = vld [vmem:[%s256 + $0x70] sm:$0xff]
      %v414 = vld [vmem:[%s256 + $0x78] sm:$0xff]
      %v415 = vld [vmem:[%s256 + $0x80] sm:$0xff]
      %v416 = vld [vmem:[%s256 + $0x88] sm:$0xff]
      %v417 = vld [vmem:[%s256 + $0x90] sm:$0xff]
      %v418 = vld [vmem:[%s256 + $0x98] sm:$0xff]
      %v419 = vld [vmem:[%s256 + $0xa0] sm:$0xff]
      %v420 = vld [vmem:[%s256 + $0xa8] sm:$0xff]
      %v421 = vld [vmem:[%s256 + $0xb0] sm:$0xff]
      %v422 = vld [vmem:[%s256 + $0xb8] sm:$0xff]
      %v423 = vld [vmem:[%s256 + $0xc0] sm:$0xff]
      %v424 = vld [vmem:[%s256 + $0xc8] sm:$0xff]
      %v425 = vld [vmem:[%s256 + $0xd0] sm:$0xff]
      %v426 = vld [vmem:[%s256 + $0xd8] sm:$0xff]
      %v427 = vld [vmem:[%s256 + $0xe0] sm:$0xff]
      %v428 = vld [vmem:[%s256 + $0xe8] sm:$0xff]
      %v429 = vld [vmem:[%s256 + $0xf0] sm:$0xff]
      %v430 = vld [vmem:[%s256 + $0xf8] sm:$0xff]
      %v431 = vld [vmem:[%s256 + $0x100] sm:$0xff]
      %v432 = vld [vmem:[%s256 + $0x108] sm:$0xff]
      %v433 = vld [vmem:[%s256 + $0x110] sm:$0xff]
      %v434 = vld [vmem:[%s256 + $0x118] sm:$0xff]
      %v435 = vld [vmem:[%s256 + $0x120] sm:$0xff]
      %v436 = vld [vmem:[%s256 + $0x128] sm:$0xff]
      %v437 = vld [vmem:[%s256 + $0x130] sm:$0xff]
      %v438 = vld [vmem:[%s256 + $0x138] sm:$0xff]
      %v439 = vld [vmem:[%s256 + $0x140] sm:$0xff]
      %v440 = vld [vmem:[%s256 + $0x148] sm:$0xff]
      %v441 = vld [vmem:[%s256 + $0x150] sm:$0xff]
      %v442 = vld [vmem:[%s256 + $0x158] sm:$0xff]
      %v443 = vld [vmem:[%s256 + $0x160] sm:$0xff]
      %v444 = vld [vmem:[%s256 + $0x168] sm:$0xff]
      %v445 = vld [vmem:[%s256 + $0x170] sm:$0xff]
      %v446 = vld [vmem:[%s256 + $0x178] sm:$0xff]
      %v447 = vld [vmem:[%s256 + $0x180] sm:$0xff]
      %v448 = vld [vmem:[%s256 + $0x188] sm:$0xff]
      %v449 = vld [vmem:[%s256 + $0x190] sm:$0xff]
      %v450 = vld [vmem:[%s256 + $0x198] sm:$0xff]
      %v451 = vld [vmem:[%s256 + $0x1a0] sm:$0xff]
      %v452 = vld [vmem:[%s256 + $0x1a8] sm:$0xff]
      %v453 = vld [vmem:[%s256 + $0x1b0] sm:$0xff]
      %v454 = vld [vmem:[%s256 + $0x1b8] sm:$0xff]
      %v455 = vld [vmem:[%s256 + $0x1c0] sm:$0xff]
      %v456 = vld [vmem:[%s256 + $0x1c8] sm:$0xff]
      %v457 = vld [vmem:[%s256 + $0x1d0] sm:$0xff]
      %v458 = vld [vmem:[%s256 + $0x1d8] sm:$0xff]
      %v459 = vld [vmem:[%s256 + $0x1e0] sm:$0xff]
      %v460 = vld [vmem:[%s256 + $0x1e8] sm:$0xff]
      %v461 = vld [vmem:[%s256 + $0x1f0] sm:$0xff]
      %v462 = vld [vmem:[%s256 + $0x1f8] sm:$0xff]
      %v463 = vld [vmem:[%s256 + $0x200] sm:$0xff]
      %v464 = vld [vmem:[%s256 + $0x208] sm:$0xff]
      %v465 = vld [vmem:[%s256 + $0x210] sm:$0xff]
      %v466 = vld [vmem:[%s256 + $0x218] sm:$0xff]
      %v467 = vld [vmem:[%s256 + $0x220] sm:$0xff]
      %v468 = vld [vmem:[%s256 + $0x228] sm:$0xff]
      %v469 = vld [vmem:[%s256 + $0x230] sm:$0xff]
      %v470 = vld [vmem:[%s256 + $0x238] sm:$0xff]
      %v471 = vld [vmem:[%s256 + $0x240] sm:$0xff]
      %v472 = vld [vmem:[%s256 + $0x248] sm:$0xff]
      %v473 = vld [vmem:[%s256 + $0x250] sm:$0xff]
      %v474 = vld [vmem:[%s256 + $0x258] sm:$0xff]
      %v475 = vld [vmem:[%s256 + $0x260] sm:$0xff]
      %v476 = vld [vmem:[%s256 + $0x268] sm:$0xff]
      %v477 = vld [vmem:[%s256 + $0x270] sm:$0xff]
      %v478 = vld [vmem:[%s256 + $0x278] sm:$0xff]
      %v479 = vld [vmem:[%s256 + $0x280] sm:$0xff]
      %v480 = vld [vmem:[%s256 + $0x288] sm:$0xff]
      %v481 = vld [vmem:[%s256 + $0x290] sm:$0xff]
      %v482 = vld [vmem:[%s256 + $0x298] sm:$0xff]
      %v483 = vld [vmem:[%s256 + $0x2a0] sm:$0xff]
      %v484 = vld [vmem:[%s256 + $0x2a8] sm:$0xff]
      %v485 = vld [vmem:[%s256 + $0x2b0] sm:$0xff]
      %v486 = vld [vmem:[%s256 + $0x2b8] sm:$0xff]
      %v487 = vld [vmem:[%s256 + $0x2c0] sm:$0xff]
      %v488 = vld [vmem:[%s256 + $0x2c8] sm:$0xff]
      %v489 = vld [vmem:[%s256 + $0x2d0] sm:$0xff]
      %v490 = vld [vmem:[%s256 + $0x2d8] sm:$0xff]
      %v491 = vld [vmem:[%s256 + $0x2e0] sm:$0xff]
      %v492 = vld [vmem:[%s256 + $0x2e8] sm:$0xff]
      %v493 = vld [vmem:[%s256 + $0x2f0] sm:$0xff]
      %v494 = vld [vmem:[%s256 + $0x2f8] sm:$0xff]
      %v495 = vld [vmem:[%s256 + $0x300] sm:$0xff]
      %v496 = vld [vmem:[%s256 + $0x308] sm:$0xff]
      %v497 = vld [vmem:[%s256 + $0x310] sm:$0xff]
      %v498 = vld [vmem:[%s256 + $0x318] sm:$0xff]
      %v499 = vld [vmem:[%s256 + $0x320] sm:$0xff]
      %v500 = vld [vmem:[%s256 + $0x328] sm:$0xff]
      %v501 = vld [vmem:[%s256 + $0x330] sm:$0xff]
      %v502 = vld [vmem:[%s256 + $0x338] sm:$0xff]
      %v503 = vld [vmem:[%s256 + $0x340] sm:$0xff]
      %v504 = vld [vmem:[%s256 + $0x348] sm:$0xff]
      %v505 = vld [vmem:[%s256 + $0x350] sm:$0xff]
      %v506 = vld [vmem:[%s256 + $0x358] sm:$0xff]
      %v507 = vld [vmem:[%s256 + $0x360] sm:$0xff]
      %v508 = vld [vmem:[%s256 + $0x368] sm:$0xff]
      %v509 = vld [vmem:[%s256 + $0x370] sm:$0xff]
      %v510 = vld [vmem:[%s256 + $0x378] sm:$0xff]
      %v511 = vld [vmem:[%s256 + $0x380] sm:$0xff]
      %v512 = vld [vmem:[%s256 + $0x388] sm:$0xff]
      %v513 = vld [vmem:[%s256 + $0x390] sm:$0xff]
      %v514 = vld [vmem:[%s256 + $0x398] sm:$0xff]
      %v515 = vld [vmem:[%s256 + $0x3a0] sm:$0xff]
      %v516 = vld [vmem:[%s256 + $0x3a8] sm:$0xff]
      %v517 = vld [vmem:[%s256 + $0x3b0] sm:$0xff]
      %v518 = vld [vmem:[%s256 + $0x3b8] sm:$0xff]
      %v519 = vld [vmem:[%s256 + $0x3c0] sm:$0xff]
      %v520 = vld [vmem:[%s256 + $0x3c8] sm:$0xff]
      %v521 = vld [vmem:[%s256 + $0x3d0] sm:$0xff]
      %v522 = vld [vmem:[%s256 + $0x3d8] sm:$0xff]
      %v523 = vld [vmem:[%s256 + $0x3e0] sm:$0xff]
      %v524 = vld [vmem:[%s256 + $0x3e8] sm:$0xff]
      %v525 = vld [vmem:[%s256 + $0x3f0] sm:$0xff]
      %v526 = vld [vmem:[%s256 + $0x3f8] sm:$0xff]
      %527 = vmatpush.msra.mxu0 %v414
      %528 = vmatpush.msra.mxu0 %v413
      %529 = vmatpush.msra.mxu0 %v412
      %530 = vmatpush.msra.mxu0 %v411
      %531 = vmatpush.msra.mxu0 %v410
      %532 = vmatpush.msra.mxu0 %v409
      %533 = vmatpush.msra.mxu0 %v408
      %534 = vmatpush.msra.mxu0 %v407
      %535 = vmatpush.msra.mxu0 %v406
      %536 = vmatpush.msra.mxu0 %v405
      %537 = vmatpush.msra.mxu0 %v404
      %538 = vmatpush.msra.mxu0 %v403
      %539 = vmatpush.msra.mxu0 %v402
      %540 = vmatpush.msra.mxu0 %v401
      %541 = vmatpush.msra.mxu0 %v400
      %542 = vmatpush.msra.mxu0 %v399
      %543 = vmatmul.f32.gmra.mxu0 %v271
      %v544 = vpop.f32.mrf.mxu0
      %v545 = vadd.f32 0.0, %v544
      %546 = vmatmul.f32.gmra.mxu0 %v279
      %v547 = vpop.f32.mrf.mxu0
      %v548 = vadd.f32 0.0, %v547
      %549 = vmatmul.f32.gmra.mxu0 %v287
      %v550 = vpop.f32.mrf.mxu0
      %v551 = vadd.f32 0.0, %v550
      %552 = vmatmul.f32.gmra.mxu0 %v295
      %v553 = vpop.f32.mrf.mxu0
      %v554 = vadd.f32 0.0, %v553
      %555 = vmatmul.f32.gmra.mxu0 %v303
      %v556 = vpop.f32.mrf.mxu0
      %v557 = vadd.f32 0.0, %v556
      %558 = vmatmul.f32.gmra.mxu0 %v311
      %v559 = vpop.f32.mrf.mxu0
      %v560 = vadd.f32 0.0, %v559
      %561 = vmatmul.f32.gmra.mxu0 %v319
      %v562 = vpop.f32.mrf.mxu0
      %v563 = vadd.f32 0.0, %v562
      %564 = vmatmul.f32.gmra.mxu0 %v327
      %v565 = vpop.f32.mrf.mxu0
      %v566 = vadd.f32 0.0, %v565
      %567 = vmatmul.f32.gmra.mxu0 %v335
      %v568 = vpop.f32.mrf.mxu0
      %v569 = vadd.f32 0.0, %v568
      %570 = vmatmul.f32.gmra.mxu0 %v343
      %v571 = vpop.f32.mrf.mxu0
      %v572 = vadd.f32 0.0, %v571
      %573 = vmatmul.f32.gmra.mxu0 %v351
      %v574 = vpop.f32.mrf.mxu0
      %v575 = vadd.f32 0.0, %v574
      %576 = vmatmul.f32.gmra.mxu0 %v359
      %v577 = vpop.f32.mrf.mxu0
      %v578 = vadd.f32 0.0, %v577
      %579 = vmatmul.f32.gmra.mxu0 %v367
      %v580 = vpop.f32.mrf.mxu0
      %v581 = vadd.f32 0.0, %v580
      %582 = vmatmul.f32.gmra.mxu0 %v375
      %v583 = vpop.f32.mrf.mxu0
      %v584 = vadd.f32 0.0, %v583
      %585 = vmatmul.f32.gmra.mxu0 %v383
      %v586 = vpop.f32.mrf.mxu0
      %v587 = vadd.f32 0.0, %v586
      %588 = vmatmul.f32.gmra.mxu0 %v391
      %v589 = vpop.f32.mrf.mxu0
      %v590 = vadd.f32 0.0, %v589
      %591 = vdwg.mxu0
      %592 = vmatpush.msra.mxu0 %v430
      %593 = vmatpush.msra.mxu0 %v429
      %594 = vmatpush.msra.mxu0 %v428
      %595 = vmatpush.msra.mxu0 %v427
      %596 = vmatpush.msra.mxu0 %v426
      %597 = vmatpush.msra.mxu0 %v425
      %598 = vmatpush.msra.mxu0 %v424
      %599 = vmatpush.msra.mxu0 %v423
      %600 = vmatpush.msra.mxu0 %v422
      %601 = vmatpush.msra.mxu0 %v421
      %602 = vmatpush.msra.mxu0 %v420
      %603 = vmatpush.msra.mxu0 %v419
      %604 = vmatpush.msra.mxu0 %v418
      %605 = vmatpush.msra.mxu0 %v417
      %606 = vmatpush.msra.mxu0 %v416
      %607 = vmatpush.msra.mxu0 %v415
      %608 = vmatmul.f32.gmra.mxu0 %v272
      %v609 = vpop.f32.mrf.mxu0
      %v610 = vadd.f32 %v545, %v609
      %611 = vmatmul.f32.gmra.mxu0 %v280
      %v612 = vpop.f32.mrf.mxu0
      %v613 = vadd.f32 %v548, %v612
      %614 = vmatmul.f32.gmra.mxu0 %v288
      %v615 = vpop.f32.mrf.mxu0
      %v616 = vadd.f32 %v551, %v615
      %617 = vmatmul.f32.gmra.mxu0 %v296
      %v618 = vpop.f32.mrf.mxu0
      %v619 = vadd.f32 %v554, %v618
      %620 = vmatmul.f32.gmra.mxu0 %v304
      %v621 = vpop.f32.mrf.mxu0
      %v622 = vadd.f32 %v557, %v621
      %623 = vmatmul.f32.gmra.mxu0 %v312
      %v624 = vpop.f32.mrf.mxu0
      %v625 = vadd.f32 %v560, %v624
      %626 = vmatmul.f32.gmra.mxu0 %v320
      %v627 = vpop.f32.mrf.mxu0
      %v628 = vadd.f32 %v563, %v627
      %629 = vmatmul.f32.gmra.mxu0 %v328
      %v630 = vpop.f32.mrf.mxu0
      %v631 = vadd.f32 %v566, %v630
      %632 = vmatmul.f32.gmra.mxu0 %v336
      %v633 = vpop.f32.mrf.mxu0
      %v634 = vadd.f32 %v569, %v633
      %635 = vmatmul.f32.gmra.mxu0 %v344
      %v636 = vpop.f32.mrf.mxu0
      %v637 = vadd.f32 %v572, %v636
      %638 = vmatmul.f32.gmra.mxu0 %v352
      %v639 = vpop.f32.mrf.mxu0
      %v640 = vadd.f32 %v575, %v639
      %641 = vmatmul.f32.gmra.mxu0 %v360
      %v642 = vpop.f32.mrf.mxu0
      %v643 = vadd.f32 %v578, %v642
      %644 = vmatmul.f32.gmra.mxu0 %v368
      %v645 = vpop.f32.mrf.mxu0
      %v646 = vadd.f32 %v581, %v645
      %647 = vmatmul.f32.gmra.mxu0 %v376
      %v648 = vpop.f32.mrf.mxu0
      %v649 = vadd.f32 %v584, %v648
      %650 = vmatmul.f32.gmra.mxu0 %v384
      %v651 = vpop.f32.mrf.mxu0
      %v652 = vadd.f32 %v587, %v651
      %653 = vmatmul.f32.gmra.mxu0 %v392
      %v654 = vpop.f32.mrf.mxu0
      %v655 = vadd.f32 %v590, %v654
      %656 = vdwg.mxu0
      %657 = vmatpush.msra.mxu0 %v446
      %658 = vmatpush.msra.mxu0 %v445
      %659 = vmatpush.msra.mxu0 %v444
      %660 = vmatpush.msra.mxu0 %v443
      %661 = vmatpush.msra.mxu0 %v442
      %662 = vmatpush.msra.mxu0 %v441
      %663 = vmatpush.msra.mxu0 %v440
      %664 = vmatpush.msra.mxu0 %v439
      %665 = vmatpush.msra.mxu0 %v438
      %666 = vmatpush.msra.mxu0 %v437
      %667 = vmatpush.msra.mxu0 %v436
      %668 = vmatpush.msra.mxu0 %v435
      %669 = vmatpush.msra.mxu0 %v434
      %670 = vmatpush.msra.mxu0 %v433
      %671 = vmatpush.msra.mxu0 %v432
      %672 = vmatpush.msra.mxu0 %v431
      %673 = vmatmul.f32.gmra.mxu0 %v273
      %v674 = vpop.f32.mrf.mxu0
      %v675 = vadd.f32 %v610, %v674
      %676 = vmatmul.f32.gmra.mxu0 %v281
      %v677 = vpop.f32.mrf.mxu0
      %v678 = vadd.f32 %v613, %v677
      %679 = vmatmul.f32.gmra.mxu0 %v289
      %v680 = vpop.f32.mrf.mxu0
      %v681 = vadd.f32 %v616, %v680
      %682 = vmatmul.f32.gmra.mxu0 %v297
      %v683 = vpop.f32.mrf.mxu0
      %v684 = vadd.f32 %v619, %v683
      %685 = vmatmul.f32.gmra.mxu0 %v305
      %v686 = vpop.f32.mrf.mxu0
      %v687 = vadd.f32 %v622, %v686
      %688 = vmatmul.f32.gmra.mxu0 %v313
      %v689 = vpop.f32.mrf.mxu0
      %v690 = vadd.f32 %v625, %v689
      %691 = vmatmul.f32.gmra.mxu0 %v321
      %v692 = vpop.f32.mrf.mxu0
      %v693 = vadd.f32 %v628, %v692
      %694 = vmatmul.f32.gmra.mxu0 %v329
      %v695 = vpop.f32.mrf.mxu0
      %v696 = vadd.f32 %v631, %v695
      %697 = vmatmul.f32.gmra.mxu0 %v337
      %v698 = vpop.f32.mrf.mxu0
      %v699 = vadd.f32 %v634, %v698
      %700 = vmatmul.f32.gmra.mxu0 %v345
      %v701 = vpop.f32.mrf.mxu0
      %v702 = vadd.f32 %v637, %v701
      %703 = vmatmul.f32.gmra.mxu0 %v353
      %v704 = vpop.f32.mrf.mxu0
      %v705 = vadd.f32 %v640, %v704
      %706 = vmatmul.f32.gmra.mxu0 %v361
      %v707 = vpop.f32.mrf.mxu0
      %v708 = vadd.f32 %v643, %v707
      %709 = vmatmul.f32.gmra.mxu0 %v369
      %v710 = vpop.f32.mrf.mxu0
      %v711 = vadd.f32 %v646, %v710
      %712 = vmatmul.f32.gmra.mxu0 %v377
      %v713 = vpop.f32.mrf.mxu0
      %v714 = vadd.f32 %v649, %v713
      %715 = vmatmul.f32.gmra.mxu0 %v385
      %v716 = vpop.f32.mrf.mxu0
      %v717 = vadd.f32 %v652, %v716
      %718 = vmatmul.f32.gmra.mxu0 %v393
      %v719 = vpop.f32.mrf.mxu0
      %v720 = vadd.f32 %v655, %v719
      %721 = vdwg.mxu0
      %722 = vmatpush.msra.mxu0 %v462
      %723 = vmatpush.msra.mxu0 %v461
      %724 = vmatpush.msra.mxu0 %v460
      %725 = vmatpush.msra.mxu0 %v459
      %726 = vmatpush.msra.mxu0 %v458
      %727 = vmatpush.msra.mxu0 %v457
      %728 = vmatpush.msra.mxu0 %v456
      %729 = vmatpush.msra.mxu0 %v455
      %730 = vmatpush.msra.mxu0 %v454
      %731 = vmatpush.msra.mxu0 %v453
      %732 = vmatpush.msra.mxu0 %v452
      %733 = vmatpush.msra.mxu0 %v451
      %734 = vmatpush.msra.mxu0 %v450
      %735 = vmatpush.msra.mxu0 %v449
      %736 = vmatpush.msra.mxu0 %v448
      %737 = vmatpush.msra.mxu0 %v447
      %738 = vmatmul.f32.gmra.mxu0 %v274
      %v739 = vpop.f32.mrf.mxu0
      %v740 = vadd.f32 %v675, %v739
      %741 = vmatmul.f32.gmra.mxu0 %v282
      %v742 = vpop.f32.mrf.mxu0
      %v743 = vadd.f32 %v678, %v742
      %744 = vmatmul.f32.gmra.mxu0 %v290
      %v745 = vpop.f32.mrf.mxu0
      %v746 = vadd.f32 %v681, %v745
      %747 = vmatmul.f32.gmra.mxu0 %v298
      %v748 = vpop.f32.mrf.mxu0
      %v749 = vadd.f32 %v684, %v748
      %750 = vmatmul.f32.gmra.mxu0 %v306
      %v751 = vpop.f32.mrf.mxu0
      %v752 = vadd.f32 %v687, %v751
      %753 = vmatmul.f32.gmra.mxu0 %v314
      %v754 = vpop.f32.mrf.mxu0
      %v755 = vadd.f32 %v690, %v754
      %756 = vmatmul.f32.gmra.mxu0 %v322
      %v757 = vpop.f32.mrf.mxu0
      %v758 = vadd.f32 %v693, %v757
      %759 = vmatmul.f32.gmra.mxu0 %v330
      %v760 = vpop.f32.mrf.mxu0
      %v761 = vadd.f32 %v696, %v760
      %762 = vmatmul.f32.gmra.mxu0 %v338
      %v763 = vpop.f32.mrf.mxu0
      %v764 = vadd.f32 %v699, %v763
      %765 = vmatmul.f32.gmra.mxu0 %v346
      %v766 = vpop.f32.mrf.mxu0
      %v767 = vadd.f32 %v702, %v766
      %768 = vmatmul.f32.gmra.mxu0 %v354
      %v769 = vpop.f32.mrf.mxu0
      %v770 = vadd.f32 %v705, %v769
      %771 = vmatmul.f32.gmra.mxu0 %v362
      %v772 = vpop.f32.mrf.mxu0
      %v773 = vadd.f32 %v708, %v772
      %774 = vmatmul.f32.gmra.mxu0 %v370
      %v775 = vpop.f32.mrf.mxu0
      %v776 = vadd.f32 %v711, %v775
      %777 = vmatmul.f32.gmra.mxu0 %v378
      %v778 = vpop.f32.mrf.mxu0
      %v779 = vadd.f32 %v714, %v778
      %780 = vmatmul.f32.gmra.mxu0 %v386
      %v781 = vpop.f32.mrf.mxu0
      %v782 = vadd.f32 %v717, %v781
      %783 = vmatmul.f32.gmra.mxu0 %v394
      %v784 = vpop.f32.mrf.mxu0
      %v785 = vadd.f32 %v720, %v784
      %786 = vdwg.mxu0
      %787 = vmatpush.msra.mxu0 %v478
      %788 = vmatpush.msra.mxu0 %v477
      %789 = vmatpush.msra.mxu0 %v476
      %790 = vmatpush.msra.mxu0 %v475
      %791 = vmatpush.msra.mxu0 %v474
      %792 = vmatpush.msra.mxu0 %v473
      %793 = vmatpush.msra.mxu0 %v472
      %794 = vmatpush.msra.mxu0 %v471
      %795 = vmatpush.msra.mxu0 %v470
      %796 = vmatpush.msra.mxu0 %v469
      %797 = vmatpush.msra.mxu0 %v468
      %798 = vmatpush.msra.mxu0 %v467
      %799 = vmatpush.msra.mxu0 %v466
      %800 = vmatpush.msra.mxu0 %v465
      %801 = vmatpush.msra.mxu0 %v464
      %802 = vmatpush.msra.mxu0 %v463
      %803 = vmatmul.f32.gmra.mxu0 %v275
      %v804 = vpop.f32.mrf.mxu0
      %v805 = vadd.f32 %v740, %v804
      %806 = vmatmul.f32.gmra.mxu0 %v283
      %v807 = vpop.f32.mrf.mxu0
      %v808 = vadd.f32 %v743, %v807
      %809 = vmatmul.f32.gmra.mxu0 %v291
      %v810 = vpop.f32.mrf.mxu0
      %v811 = vadd.f32 %v746, %v810
      %812 = vmatmul.f32.gmra.mxu0 %v299
      %v813 = vpop.f32.mrf.mxu0
      %v814 = vadd.f32 %v749, %v813
      %815 = vmatmul.f32.gmra.mxu0 %v307
      %v816 = vpop.f32.mrf.mxu0
      %v817 = vadd.f32 %v752, %v816
      %818 = vmatmul.f32.gmra.mxu0 %v315
      %v819 = vpop.f32.mrf.mxu0
      %v820 = vadd.f32 %v755, %v819
      %821 = vmatmul.f32.gmra.mxu0 %v323
      %v822 = vpop.f32.mrf.mxu0
      %v823 = vadd.f32 %v758, %v822
      %824 = vmatmul.f32.gmra.mxu0 %v331
      %v825 = vpop.f32.mrf.mxu0
      %v826 = vadd.f32 %v761, %v825
      %827 = vmatmul.f32.gmra.mxu0 %v339
      %v828 = vpop.f32.mrf.mxu0
      %v829 = vadd.f32 %v764, %v828
      %830 = vmatmul.f32.gmra.mxu0 %v347
      %v831 = vpop.f32.mrf.mxu0
      %v832 = vadd.f32 %v767, %v831
      %833 = vmatmul.f32.gmra.mxu0 %v355
      %v834 = vpop.f32.mrf.mxu0
      %v835 = vadd.f32 %v770, %v834
      %836 = vmatmul.f32.gmra.mxu0 %v363
      %v837 = vpop.f32.mrf.mxu0
      %v838 = vadd.f32 %v773, %v837
      %839 = vmatmul.f32.gmra.mxu0 %v371
      %v840 = vpop.f32.mrf.mxu0
      %v841 = vadd.f32 %v776, %v840
      %842 = vmatmul.f32.gmra.mxu0 %v379
      %v843 = vpop.f32.mrf.mxu0
      %v844 = vadd.f32 %v779, %v843
      %845 = vmatmul.f32.gmra.mxu0 %v387
      %v846 = vpop.f32.mrf.mxu0
      %v847 = vadd.f32 %v782, %v846
      %848 = vmatmul.f32.gmra.mxu0 %v395
      %v849 = vpop.f32.mrf.mxu0
      %v850 = vadd.f32 %v785, %v849
      %851 = vdwg.mxu0
      %852 = vmatpush.msra.mxu0 %v494
      %853 = vmatpush.msra.mxu0 %v493
      %854 = vmatpush.msra.mxu0 %v492
      %855 = vmatpush.msra.mxu0 %v491
      %856 = vmatpush.msra.mxu0 %v490
      %857 = vmatpush.msra.mxu0 %v489
      %858 = vmatpush.msra.mxu0 %v488
      %859 = vmatpush.msra.mxu0 %v487
      %860 = vmatpush.msra.mxu0 %v486
      %861 = vmatpush.msra.mxu0 %v485
      %862 = vmatpush.msra.mxu0 %v484
      %863 = vmatpush.msra.mxu0 %v483
      %864 = vmatpush.msra.mxu0 %v482
      %865 = vmatpush.msra.mxu0 %v481
      %866 = vmatpush.msra.mxu0 %v480
      %867 = vmatpush.msra.mxu0 %v479
      %868 = vmatmul.f32.gmra.mxu0 %v276
      %v869 = vpop.f32.mrf.mxu0
      %v870 = vadd.f32 %v805, %v869
      %871 = vmatmul.f32.gmra.mxu0 %v284
      %v872 = vpop.f32.mrf.mxu0
      %v873 = vadd.f32 %v808, %v872
      %874 = vmatmul.f32.gmra.mxu0 %v292
      %v875 = vpop.f32.mrf.mxu0
      %v876 = vadd.f32 %v811, %v875
      %877 = vmatmul.f32.gmra.mxu0 %v300
      %v878 = vpop.f32.mrf.mxu0
      %v879 = vadd.f32 %v814, %v878
      %880 = vmatmul.f32.gmra.mxu0 %v308
      %v881 = vpop.f32.mrf.mxu0
      %v882 = vadd.f32 %v817, %v881
      %883 = vmatmul.f32.gmra.mxu0 %v316
      %v884 = vpop.f32.mrf.mxu0
      %v885 = vadd.f32 %v820, %v884
      %886 = vmatmul.f32.gmra.mxu0 %v324
      %v887 = vpop.f32.mrf.mxu0
      %v888 = vadd.f32 %v823, %v887
      %889 = vmatmul.f32.gmra.mxu0 %v332
      %v890 = vpop.f32.mrf.mxu0
      %v891 = vadd.f32 %v826, %v890
      %892 = vmatmul.f32.gmra.mxu0 %v340
      %v893 = vpop.f32.mrf.mxu0
      %v894 = vadd.f32 %v829, %v893
      %895 = vmatmul.f32.gmra.mxu0 %v348
      %v896 = vpop.f32.mrf.mxu0
      %v897 = vadd.f32 %v832, %v896
      %898 = vmatmul.f32.gmra.mxu0 %v356
      %v899 = vpop.f32.mrf.mxu0
      %v900 = vadd.f32 %v835, %v899
      %901 = vmatmul.f32.gmra.mxu0 %v364
      %v902 = vpop.f32.mrf.mxu0
      %v903 = vadd.f32 %v838, %v902
      %904 = vmatmul.f32.gmra.mxu0 %v372
      %v905 = vpop.f32.mrf.mxu0
      %v906 = vadd.f32 %v841, %v905
      %907 = vmatmul.f32.gmra.mxu0 %v380
      %v908 = vpop.f32.mrf.mxu0
      %v909 = vadd.f32 %v844, %v908
      %910 = vmatmul.f32.gmra.mxu0 %v388
      %v911 = vpop.f32.mrf.mxu0
      %v912 = vadd.f32 %v847, %v911
      %913 = vmatmul.f32.gmra.mxu0 %v396
      %v914 = vpop.f32.mrf.mxu0
      %v915 = vadd.f32 %v850, %v914
      %916 = vdwg.mxu0
      %917 = vmatpush.msra.mxu0 %v510
      %918 = vmatpush.msra.mxu0 %v509
      %919 = vmatpush.msra.mxu0 %v508
      %920 = vmatpush.msra.mxu0 %v507
      %921 = vmatpush.msra.mxu0 %v506
      %922 = vmatpush.msra.mxu0 %v505
      %923 = vmatpush.msra.mxu0 %v504
      %924 = vmatpush.msra.mxu0 %v503
      %925 = vmatpush.msra.mxu0 %v502
      %926 = vmatpush.msra.mxu0 %v501
      %927 = vmatpush.msra.mxu0 %v500
      %928 = vmatpush.msra.mxu0 %v499
      %929 = vmatpush.msra.mxu0 %v498
      %930 = vmatpush.msra.mxu0 %v497
      %931 = vmatpush.msra.mxu0 %v496
      %932 = vmatpush.msra.mxu0 %v495
      %933 = vmatmul.f32.gmra.mxu0 %v277
      %v934 = vpop.f32.mrf.mxu0
      %v935 = vadd.f32 %v870, %v934
      %936 = vmatmul.f32.gmra.mxu0 %v285
      %v937 = vpop.f32.mrf.mxu0
      %v938 = vadd.f32 %v873, %v937
      %939 = vmatmul.f32.gmra.mxu0 %v293
      %v940 = vpop.f32.mrf.mxu0
      %v941 = vadd.f32 %v876, %v940
      %942 = vmatmul.f32.gmra.mxu0 %v301
      %v943 = vpop.f32.mrf.mxu0
      %v944 = vadd.f32 %v879, %v943
      %945 = vmatmul.f32.gmra.mxu0 %v309
      %v946 = vpop.f32.mrf.mxu0
      %v947 = vadd.f32 %v882, %v946
      %948 = vmatmul.f32.gmra.mxu0 %v317
      %v949 = vpop.f32.mrf.mxu0
      %v950 = vadd.f32 %v885, %v949
      %951 = vmatmul.f32.gmra.mxu0 %v325
      %v952 = vpop.f32.mrf.mxu0
      %v953 = vadd.f32 %v888, %v952
      %954 = vmatmul.f32.gmra.mxu0 %v333
      %v955 = vpop.f32.mrf.mxu0
      %v956 = vadd.f32 %v891, %v955
      %957 = vmatmul.f32.gmra.mxu0 %v341
      %v958 = vpop.f32.mrf.mxu0
      %v959 = vadd.f32 %v894, %v958
      %960 = vmatmul.f32.gmra.mxu0 %v349
      %v961 = vpop.f32.mrf.mxu0
      %v962 = vadd.f32 %v897, %v961
      %963 = vmatmul.f32.gmra.mxu0 %v357
      %v964 = vpop.f32.mrf.mxu0
      %v965 = vadd.f32 %v900, %v964
      %966 = vmatmul.f32.gmra.mxu0 %v365
      %v967 = vpop.f32.mrf.mxu0
      %v968 = vadd.f32 %v903, %v967
      %969 = vmatmul.f32.gmra.mxu0 %v373
      %v970 = vpop.f32.mrf.mxu0
      %v971 = vadd.f32 %v906, %v970
      %972 = vmatmul.f32.gmra.mxu0 %v381
      %v973 = vpop.f32.mrf.mxu0
      %v974 = vadd.f32 %v909, %v973
      %975 = vmatmul.f32.gmra.mxu0 %v389
      %v976 = vpop.f32.mrf.mxu0
      %v977 = vadd.f32 %v912, %v976
      %978 = vmatmul.f32.gmra.mxu0 %v397
      %v979 = vpop.f32.mrf.mxu0
      %v980 = vadd.f32 %v915, %v979
      %981 = vdwg.mxu0
      %982 = vmatpush.msra.mxu0 %v526
      %983 = vmatpush.msra.mxu0 %v525
      %984 = vmatpush.msra.mxu0 %v524
      %985 = vmatpush.msra.mxu0 %v523
      %986 = vmatpush.msra.mxu0 %v522
      %987 = vmatpush.msra.mxu0 %v521
      %988 = vmatpush.msra.mxu0 %v520
      %989 = vmatpush.msra.mxu0 %v519
      %990 = vmatpush.msra.mxu0 %v518
      %991 = vmatpush.msra.mxu0 %v517
      %992 = vmatpush.msra.mxu0 %v516
      %993 = vmatpush.msra.mxu0 %v515
      %994 = vmatpush.msra.mxu0 %v514
      %995 = vmatpush.msra.mxu0 %v513
      %996 = vmatpush.msra.mxu0 %v512
      %997 = vmatpush.msra.mxu0 %v511
      %998 = vmatmul.f32.gmra.mxu0 %v278
      %v999 = vpop.f32.mrf.mxu0
      %v1000 = vadd.f32 %v935, %v999
      %1001 = vmatmul.f32.gmra.mxu0 %v286
      %v1002 = vpop.f32.mrf.mxu0
      %v1003 = vadd.f32 %v938, %v1002
      %1004 = vmatmul.f32.gmra.mxu0 %v294
      %v1005 = vpop.f32.mrf.mxu0
      %v1006 = vadd.f32 %v941, %v1005
      %1007 = vmatmul.f32.gmra.mxu0 %v302
      %v1008 = vpop.f32.mrf.mxu0
      %v1009 = vadd.f32 %v944, %v1008
      %1010 = vmatmul.f32.gmra.mxu0 %v310
      %v1011 = vpop.f32.mrf.mxu0
      %v1012 = vadd.f32 %v947, %v1011
      %1013 = vmatmul.f32.gmra.mxu0 %v318
      %v1014 = vpop.f32.mrf.mxu0
      %v1015 = vadd.f32 %v950, %v1014
      %1016 = vmatmul.f32.gmra.mxu0 %v326
      %v1017 = vpop.f32.mrf.mxu0
      %v1018 = vadd.f32 %v953, %v1017
      %1019 = vmatmul.f32.gmra.mxu0 %v334
      %v1020 = vpop.f32.mrf.mxu0
      %v1021 = vadd.f32 %v956, %v1020
      %1022 = vmatmul.f32.gmra.mxu0 %v342
      %v1023 = vpop.f32.mrf.mxu0
      %v1024 = vadd.f32 %v959, %v1023
      %1025 = vmatmul.f32.gmra.mxu0 %v350
      %v1026 = vpop.f32.mrf.mxu0
      %v1027 = vadd.f32 %v962, %v1026
      %1028 = vmatmul.f32.gmra.mxu0 %v358
      %v1029 = vpop.f32.mrf.mxu0
      %v1030 = vadd.f32 %v965, %v1029
      %1031 = vmatmul.f32.gmra.mxu0 %v366
      %v1032 = vpop.f32.mrf.mxu0
      %v1033 = vadd.f32 %v968, %v1032
      %1034 = vmatmul.f32.gmra.mxu0 %v374
      %v1035 = vpop.f32.mrf.mxu0
      %v1036 = vadd.f32 %v971, %v1035
      %1037 = vmatmul.f32.gmra.mxu0 %v382
      %v1038 = vpop.f32.mrf.mxu0
      %v1039 = vadd.f32 %v974, %v1038
      %1040 = vmatmul.f32.gmra.mxu0 %v390
      %v1041 = vpop.f32.mrf.mxu0
      %v1042 = vadd.f32 %v977, %v1041
      %1043 = vmatmul.f32.gmra.mxu0 %v398
      %v1044 = vpop.f32.mrf.mxu0
      %v1045 = vadd.f32 %v980, %v1044
      %1046 = vdwg.mxu0
      %1047 = vst [vmem:[%s269] sm:$0xff] %v1000
      %1048 = vst [vmem:[%s269 + $0x8] sm:$0xff] %v1003
      %1049 = vst [vmem:[%s269 + $0x10] sm:$0xff] %v1006
      %1050 = vst [vmem:[%s269 + $0x18] sm:$0xff] %v1009
      %1051 = vst [vmem:[%s269 + $0x20] sm:$0xff] %v1012
      %1052 = vst [vmem:[%s269 + $0x28] sm:$0xff] %v1015
      %1053 = vst [vmem:[%s269 + $0x30] sm:$0xff] %v1018
      %1054 = vst [vmem:[%s269 + $0x38] sm:$0xff] %v1021
      %1055 = vst [vmem:[%s269 + $0x40] sm:$0xff] %v1024
      %1056 = vst [vmem:[%s269 + $0x48] sm:$0xff] %v1027
      %1057 = vst [vmem:[%s269 + $0x50] sm:$0xff] %v1030
      %1058 = vst [vmem:[%s269 + $0x58] sm:$0xff] %v1033
      %1059 = vst [vmem:[%s269 + $0x60] sm:$0xff] %v1036
      %1060 = vst [vmem:[%s269 + $0x68] sm:$0xff] %v1039
      %1061 = vst [vmem:[%s269 + $0x70] sm:$0xff] %v1042
      %1062 = vst [vmem:[%s269 + $0x78] sm:$0xff] %v1045
      %s1063 = smul.u32 16, %s20
      %p1064 = scmp.lt.s32.totalorder %s19, 3
      %s1065 = scalar_select %p1064, %s19, 3
      %p1066 = scmp.lt.s32.totalorder %s1063, 15
      %s1067 = scalar_select %p1066, %s1063, 15
      %p1068 = scmp.lt.s32.totalorder %s21, 0
      %s1069 = scalar_select %p1068, %s21, 0
      %s1070 = sadd.s32 %s1069, %s1067
      %s1071 = smul.addr %s1065, 16
      %s1072 = sadd.s32 %s1070, %s1071
      %s1073 = smul.addr %s1072, 8
      %s1074 = scalar_lea.vmem %s2, %s1073
      // Predicated region
      $region29: #{generator_forward.19} parent=27 // pred_check
        %p1075 = pneg %p121
      $region30: #{generator_forward.19} parent=27 // pred_check_branch
        %1077 = sbr.rel (%p1075) target = $region32
      $region31: #{generator_forward.19} parent=27 // pred_region
        %s1078 = smul.u32 16, %s20
      $region32: #{generator_forward.19} parent=27 // pred_fallthru
        _
    $region28: #{generator_forward.19} parent=5 // pred_fallthru
      _
    %p1079 = scmp.le.s32.totalorder 2, %s8
    // Predicated region
    $region33: #{generator_forward.19} parent=5 // pred_check
      %p1080 = pneg %p1079
    $region34: #{generator_forward.19} parent=5 // pred_check_branch
      %1082 = sbr.rel (%p1080) target = $region36
    $region35: #{generator_forward.19} parent=5 // pred_region
      %s1083 = ssub.s32 %s8, 2
      // Predicated region
      $region37: #{generator_forward.19} parent=35 // pred_check
        %p1084 = pneg %p127
      $region38: #{generator_forward.19} parent=35 // pred_check_branch
        %1086 = sbr.rel (%p1084) target = $region40
      $region39: #{generator_forward.19} parent=35 // pred_region
        %s1087 = smul.u32 16, %s24
        %p1088 = scmp.lt.s32.totalorder %s23, 3
        %s1089 = scalar_select %p1088, %s23, 3
        %p1090 = scmp.lt.s32.totalorder %s1087, 15
        %s1091 = scalar_select %p1090, %s1087, 15
        %p1092 = scmp.lt.s32.totalorder %s25, 0
        %s1093 = scalar_select %p1092, %s25, 0
        %s1094 = sadd.s32 %s1093, %s1091
        %s1095 = smul.addr %s1089, 16
        %s1096 = sadd.s32 %s1094, %s1095
        %s1097 = smul.addr %s1096, 8
        %s1098 = scalar_lea.vmem %s2, %s1097
      $region40: #{generator_forward.19} parent=35 // pred_fallthru
        _
    $region36: #{generator_forward.19} parent=5 // pred_fallthru
      _
  $region6: #{generator_forward.19} parent=0 // loop_footer
    %s12 = sadd.s32 1, %s8
  $region7: #{generator_forward.19} parent=0 // loop_footer_branch
    %7 = sbr.rel target = $region3
  $region8: #{generator_forward.19} parent=0 // loop_exit
    _

// kernel: generator_forward.20
$region0: #{generator_forward.20}
  #allocation0 [shape = 'u32[]', space=smem, size = 0x4, offset = 0x4, fixed_abs, tag = 'smem constant byte address 0x4 - core index']
  #allocation1 [shape = 'u32[72,128]{1,0:T(1,128)}', space=vmem, size = 0x9000, scoped, tag = 'internal scratch']
  %s0 = inlined_call_operand.vmem [shape: f32[512,128], index: 0, kind: input, shape index: {}]
  %s1 = inlined_call_operand.vmem [shape: f32[1,128], index: 1, kind: output, shape index: {0}]
  %s2 = inlined_call_operand.vmem [shape: f32[1,128], index: 2, kind: output, shape index: {1}]
  %3 = xla_tuple %s1, %s2
  %s4 = sld [smem:[#allocation0]]
  $region26: #{generator_forward.20} parent=0
    _
  %s6 = ssub.s32 1, %s4
  %s7 = scalar_select 0, %s6, %s4
  // Predicated region
  $region2: #{generator_forward.20} parent=0 // pred_check
    _
  $region3: #{generator_forward.20} parent=0 // pred_check_branch
    %9 = sbr.rel (0) target = $region5
  $region4: #{generator_forward.20} parent=0 // pred_region
    _
  $region5: #{generator_forward.20} parent=0 // pred_fallthru
    _
  %p10 = scmp.eq.s32.totalorder 0, 0
  // Predicated region
  $region6: #{generator_forward.20} parent=0 // pred_check
    %p11 = pneg %p10
  $region7: #{generator_forward.20} parent=0 // pred_check_branch
    %13 = sbr.rel (%p11) target = $region9
  $region8: #{generator_forward.20} parent=0 // pred_region
    %14 = vst [vmem:[%s1] sm:$0x1] 0.0
    %15 = vst [vmem:[%s2] sm:$0x1] 0.0
  $region9: #{generator_forward.20} parent=0 // pred_fallthru
    _
  %v16 = vld [vmem:[%s0] sm:$0xff]
  %v17 = vld [vmem:[%s0 + $0x8] sm:$0xff]
  %v18 = vld [vmem:[%s0 + $0x10] sm:$0xff]
  %v19 = vld [vmem:[%s0 + $0x18] sm:$0xff]
  %v20 = vld [vmem:[%s0 + $0x20] sm:$0xff]
  %v21 = vld [vmem:[%s0 + $0x28] sm:$0xff]
  %v22 = vld [vmem:[%s0 + $0x30] sm:$0xff]
  %v23 = vld [vmem:[%s0 + $0x38] sm:$0xff]
  %v24 = vld [vmem:[%s0 + $0x40] sm:$0xff]
  %v25 = vld [vmem:[%s0 + $0x48] sm:$0xff]
  %v26 = vld [vmem:[%s0 + $0x50] sm:$0xff]
  %v27 = vld [vmem:[%s0 + $0x58] sm:$0xff]
  %v28 = vld [vmem:[%s0 + $0x60] sm:$0xff]
  %v29 = vld [vmem:[%s0 + $0x68] sm:$0xff]
  %v30 = vld [vmem:[%s0 + $0x70] sm:$0xff]
  %v31 = vld [vmem:[%s0 + $0x78] sm:$0xff]
  %v32 = vld [vmem:[%s0 + $0x80] sm:$0xff]
  %v33 = vld [vmem:[%s0 + $0x88] sm:$0xff]
  %v34 = vld [vmem:[%s0 + $0x90] sm:$0xff]
  %v35 = vld [vmem:[%s0 + $0x98] sm:$0xff]
  %v36 = vld [vmem:[%s0 + $0xa0] sm:$0xff]
  %v37 = vld [vmem:[%s0 + $0xa8] sm:$0xff]
  %v38 = vld [vmem:[%s0 + $0xb0] sm:$0xff]
  %v39 = vld [vmem:[%s0 + $0xb8] sm:$0xff]
  %v40 = vld [vmem:[%s0 + $0xc0] sm:$0xff]
  %v41 = vld [vmem:[%s0 + $0xc8] sm:$0xff]
  %v42 = vld [vmem:[%s0 + $0xd0] sm:$0xff]
  %v43 = vld [vmem:[%s0 + $0xd8] sm:$0xff]
  %v44 = vld [vmem:[%s0 + $0xe0] sm:$0xff]
  %v45 = vld [vmem:[%s0 + $0xe8] sm:$0xff]
  %v46 = vld [vmem:[%s0 + $0xf0] sm:$0xff]
  %v47 = vld [vmem:[%s0 + $0xf8] sm:$0xff]
  %v48 = vld [vmem:[%s0 + $0x100] sm:$0xff]
  %v49 = vld [vmem:[%s0 + $0x108] sm:$0xff]
  %v50 = vld [vmem:[%s0 + $0x110] sm:$0xff]
  %v51 = vld [vmem:[%s0 + $0x118] sm:$0xff]
  %v52 = vld [vmem:[%s0 + $0x120] sm:$0xff]
  %v53 = vld [vmem:[%s0 + $0x128] sm:$0xff]
  %v54 = vld [vmem:[%s0 + $0x130] sm:$0xff]
  %v55 = vld [vmem:[%s0 + $0x138] sm:$0xff]
  %v56 = vld [vmem:[%s0 + $0x140] sm:$0xff]
  %v57 = vld [vmem:[%s0 + $0x148] sm:$0xff]
  %v58 = vld [vmem:[%s0 + $0x150] sm:$0xff]
  %v59 = vld [vmem:[%s0 + $0x158] sm:$0xff]
  %v60 = vld [vmem:[%s0 + $0x160] sm:$0xff]
  %v61 = vld [vmem:[%s0 + $0x168] sm:$0xff]
  %v62 = vld [vmem:[%s0 + $0x170] sm:$0xff]
  %v63 = vld [vmem:[%s0 + $0x178] sm:$0xff]
  %v64 = vld [vmem:[%s0 + $0x180] sm:$0xff]
  %v65 = vld [vmem:[%s0 + $0x188] sm:$0xff]
  %v66 = vld [vmem:[%s0 + $0x190] sm:$0xff]
  %v67 = vld [vmem:[%s0 + $0x198] sm:$0xff]
  %v68 = vld [vmem:[%s0 + $0x1a0] sm:$0xff]
  %v69 = vld [vmem:[%s0 + $0x1a8] sm:$0xff]
  %v70 = vld [vmem:[%s0 + $0x1b0] sm:$0xff]
  %v71 = vld [vmem:[%s0 + $0x1b8] sm:$0xff]
  %v72 = vld [vmem:[%s0 + $0x1c0] sm:$0xff]
  %v73 = vld [vmem:[%s0 + $0x1c8] sm:$0xff]
  %v74 = vld [vmem:[%s0 + $0x1d0] sm:$0xff]
  %v75 = vld [vmem:[%s0 + $0x1d8] sm:$0xff]
  %v76 = vld [vmem:[%s0 + $0x1e0] sm:$0xff]
  %v77 = vld [vmem:[%s0 + $0x1e8] sm:$0xff]
  %v78 = vld [vmem:[%s0 + $0x1f0] sm:$0xff]
  %v79 = vld [vmem:[%s0 + $0x1f8] sm:$0xff]
  %v80 = vld [vmem:[%s1] sm:$0x1]
  %v81 = vadd.f32 %v16, %v17
  %v82 = vadd.f32 %v81, %v18
  %v83 = vadd.f32 %v82, %v19
  %v84 = vadd.f32 %v83, %v20
  %v85 = vadd.f32 %v84, %v21
  %v86 = vadd.f32 %v85, %v22
  %v87 = vadd.f32 %v86, %v23
  %v88 = vadd.f32 %v87, %v24
  %v89 = vadd.f32 %v88, %v25
  %v90 = vadd.f32 %v89, %v26
  %v91 = vadd.f32 %v90, %v27
  %v92 = vadd.f32 %v91, %v28
  %v93 = vadd.f32 %v92, %v29
  %v94 = vadd.f32 %v93, %v30
  %v95 = vadd.f32 %v94, %v31
  %v96 = vadd.f32 %v95, %v32
  %v97 = vadd.f32 %v96, %v33
  %v98 = vadd.f32 %v97, %v34
  %v99 = vadd.f32 %v98, %v35
  %v100 = vadd.f32 %v99, %v36
  %v101 = vadd.f32 %v100, %v37
  %v102 = vadd.f32 %v101, %v38
  %v103 = vadd.f32 %v102, %v39
  %v104 = vadd.f32 %v103, %v40
  %v105 = vadd.f32 %v104, %v41
  %v106 = vadd.f32 %v105, %v42
  %v107 = vadd.f32 %v106, %v43
  %v108 = vadd.f32 %v107, %v44
  %v109 = vadd.f32 %v108, %v45
  %v110 = vadd.f32 %v109, %v46
  %v111 = vadd.f32 %v110, %v47
  %v112 = vadd.f32 %v111, %v48
  %v113 = vadd.f32 %v112, %v49
  %v114 = vadd.f32 %v113, %v50
  %v115 = vadd.f32 %v114, %v51
  %v116 = vadd.f32 %v115, %v52
  %v117 = vadd.f32 %v116, %v53
  %v118 = vadd.f32 %v117, %v54
  %v119 = vadd.f32 %v118, %v55
  %v120 = vadd.f32 %v119, %v56
  %v121 = vadd.f32 %v120, %v57
  %v122 = vadd.f32 %v121, %v58
  %v123 = vadd.f32 %v122, %v59
  %v124 = vadd.f32 %v123, %v60
  %v125 = vadd.f32 %v124, %v61
  %v126 = vadd.f32 %v125, %v62
  %v127 = vadd.f32 %v126, %v63
  %v128 = vadd.f32 %v127, %v64
  %v129 = vadd.f32 %v128, %v65
  %v130 = vadd.f32 %v129, %v66
  %v131 = vadd.f32 %v130, %v67
  %v132 = vadd.f32 %v131, %v68
  %v133 = vadd.f32 %v132, %v69
  %v134 = vadd.f32 %v133, %v70
  %v135 = vadd.f32 %v134, %v71
  %v136 = vadd.f32 %v135, %v72
  %v137 = vadd.f32 %v136, %v73
  %v138 = vadd.f32 %v137, %v74
  %v139 = vadd.f32 %v138, %v75
  %v140 = vadd.f32 %v139, %v76
  %v141 = vadd.f32 %v140, %v77
  %v142 = vadd.f32 %v141, %v78
  %v143 = vadd.f32 %v142, %v79
  %v144 = vrot.slane %v143, 4
  %v145 = vadd.f32 %v143, %v144
  %v146 = vrot.slane %v145, 2
  %v147 = vadd.f32 %v145, %v146
  %v148 = vrot.slane %v147, 1
  %v149 = vadd.f32 %v147, %v148
  %v150 = vadd.f32 %v80, %v149
  %151 = vst [vmem:[%s1] sm:$0x1] %v150
  %v152 = vld [vmem:[%s2] sm:$0x1]
  %v153 = vmul.f32 %v16, %v16
  %v154 = vmul.f32 %v17, %v17
  %v155 = vmul.f32 %v18, %v18
  %v156 = vmul.f32 %v19, %v19
  %v157 = vmul.f32 %v20, %v20
  %v158 = vmul.f32 %v21, %v21
  %v159 = vmul.f32 %v22, %v22
  %v160 = vmul.f32 %v23, %v23
  %v161 = vmul.f32 %v24, %v24
  %v162 = vmul.f32 %v25, %v25
  %v163 = vmul.f32 %v26, %v26
  %v164 = vmul.f32 %v27, %v27
  %v165 = vmul.f32 %v28, %v28
  %v166 = vmul.f32 %v29, %v29
  %v167 = vmul.f32 %v30, %v30
  %v168 = vmul.f32 %v31, %v31
  %v169 = vmul.f32 %v32, %v32
  %v170 = vmul.f32 %v33, %v33
  %v171 = vmul.f32 %v34, %v34
  %v172 = vmul.f32 %v35, %v35
  %v173 = vmul.f32 %v36, %v36
  %v174 = vmul.f32 %v37, %v37
  %v175 = vmul.f32 %v38, %v38
  %v176 = vmul.f32 %v39, %v39
  %v177 = vmul.f32 %v40, %v40
  %v178 = vmul.f32 %v41, %v41
  %v179 = vmul.f32 %v42, %v42
  %v180 = vmul.f32 %v43, %v43
  %v181 = vmul.f32 %v44, %v44
  %v182 = vmul.f32 %v45, %v45
  %v183 = vmul.f32 %v46, %v46
  %v184 = vmul.f32 %v47, %v47
  %v185 = vmul.f32 %v48, %v48
  %v186 = vmul.f32 %v49, %v49
  %v187 = vmul.f32 %v50, %v50
  %v188 = vmul.f32 %v51, %v51
  %v189 = vmul.f32 %v52, %v52
  %v190 = vmul.f32 %v53, %v53
  %v191 = vmul.f32 %v54, %v54
  %v192 = vmul.f32 %v55, %v55
  %v193 = vmul.f32 %v56, %v56
  %v194 = vmul.f32 %v57, %v57
  %v195 = vmul.f32 %v58, %v58
  %v196 = vmul.f32 %v59, %v59
  %v197 = vmul.f32 %v60, %v60
  %v198 = vmul.f32 %v61, %v61
  %v199 = vmul.f32 %v62, %v62
  %v200 = vmul.f32 %v63, %v63
  %v201 = vmul.f32 %v64, %v64
  %v202 = vmul.f32 %v65, %v65
  %v203 = vmul.f32 %v66, %v66
  %v204 = vmul.f32 %v67, %v67
  %v205 = vmul.f32 %v68, %v68
  %v206 = vmul.f32 %v69, %v69
  %v207 = vmul.f32 %v70, %v70
  %v208 = vmul.f32 %v71, %v71
  %v209 = vmul.f32 %v72, %v72
  %v210 = vmul.f32 %v73, %v73
  %v211 = vmul.f32 %v74, %v74
  %v212 = vmul.f32 %v75, %v75
  %v213 = vmul.f32 %v76, %v76
  %v214 = vmul.f32 %v77, %v77
  %v215 = vmul.f32 %v78, %v78
  %v216 = vmul.f32 %v79, %v79
  %v217 = vadd.f32 %v153, %v154
  %v218 = vadd.f32 %v217, %v155
  %v219 = vadd.f32 %v218, %v156
  %v220 = vadd.f32 %v219, %v157
  %v221 = vadd.f32 %v220, %v158
  %v222 = vadd.f32 %v221, %v159
  %v223 = vadd.f32 %v222, %v160
  %v224 = vadd.f32 %v223, %v161
  %v225 = vadd.f32 %v224, %v162
  %v226 = vadd.f32 %v225, %v163
  %v227 = vadd.f32 %v226, %v164
  %v228 = vadd.f32 %v227, %v165
  %v229 = vadd.f32 %v228, %v166
  %v230 = vadd.f32 %v229, %v167
  %v231 = vadd.f32 %v230, %v168
  %v232 = vadd.f32 %v231, %v169
  %v233 = vadd.f32 %v232, %v170
  %v234 = vadd.f32 %v233, %v171
  %v235 = vadd.f32 %v234, %v172
  %v236 = vadd.f32 %v235, %v173
  %v237 = vadd.f32 %v236, %v174
  %v238 = vadd.f32 %v237, %v175
  %v239 = vadd.f32 %v238, %v176
  %v240 = vadd.f32 %v239, %v177
  %v241 = vadd.f32 %v240, %v178
  %v242 = vadd.f32 %v241, %v179
  %v243 = vadd.f32 %v242, %v180
  %v244 = vadd.f32 %v243, %v181
  %v245 = vadd.f32 %v244, %v182
  %v246 = vadd.f32 %v245, %v183
  %v247 = vadd.f32 %v246, %v184
  %v248 = vadd.f32 %v247, %v185
  %v249 = vadd.f32 %v248, %v186
  %v250 = vadd.f32 %v249, %v187
  %v251 = vadd.f32 %v250, %v188
  %v252 = vadd.f32 %v251, %v189
  %v253 = vadd.f32 %v252, %v190
  %v254 = vadd.f32 %v253, %v191
  %v255 = vadd.f32 %v254, %v192
  %v256 = vadd.f32 %v255, %v193
  %v257 = vadd.f32 %v256, %v194
  %v258 = vadd.f32 %v257, %v195
  %v259 = vadd.f32 %v258, %v196
  %v260 = vadd.f32 %v259, %v197
  %v261 = vadd.f32 %v260, %v198
  %v262 = vadd.f32 %v261, %v199
  %v263 = vadd.f32 %v262, %v200
  %v264 = vadd.f32 %v263, %v201
  %v265 = vadd.f32 %v264, %v202
  %v266 = vadd.f32 %v265, %v203
  %v267 = vadd.f32 %v266, %v204
  %v268 = vadd.f32 %v267, %v205
  %v269 = vadd.f32 %v268, %v206
  %v270 = vadd.f32 %v269, %v207
  %v271 = vadd.f32 %v270, %v208
  %v272 = vadd.f32 %v271, %v209
  %v273 = vadd.f32 %v272, %v210
  %v274 = vadd.f32 %v273, %v211
  %v275 = vadd.f32 %v274, %v212
  %v276 = vadd.f32 %v275, %v213
  %v277 = vadd.f32 %v276, %v214
  %v278 = vadd.f32 %v277, %v215
  %v279 = vadd.f32 %v278, %v216
  %v280 = vrot.slane %v279, 4
  %v281 = vadd.f32 %v279, %v280
  %v282 = vrot.slane %v281, 2
  %v283 = vadd.f32 %v281, %v282
  %v284 = vrot.slane %v283, 1
  %v285 = vadd.f32 %v283, %v284
  %v286 = vadd.f32 %v152, %v285
  %287 = vst [vmem:[%s2] sm:$0x1] %v286
  // Predicated region
  $region10: #{generator_forward.20} parent=0 // pred_check
    _
  $region11: #{generator_forward.20} parent=0 // pred_check_branch
    %289 = sbr.rel (0) target = $region13
  $region12: #{generator_forward.20} parent=0 // pred_region
    _
  $region13: #{generator_forward.20} parent=0 // pred_fallthru
    _
  // Predicated region
  $region14: #{generator_forward.20} parent=0 // pred_check
    _
  $region15: #{generator_forward.20} parent=0 // pred_check_branch
    %291 = sbr.rel (0) target = $region17
  $region16: #{generator_forward.20} parent=0 // pred_region
    _
  $region17: #{generator_forward.20} parent=0 // pred_fallthru
    _
  // Predicated region
  $region18: #{generator_forward.20} parent=0 // pred_check
    _
  $region19: #{generator_forward.20} parent=0 // pred_check_branch
    %293 = sbr.rel (0) target = $region21
  $region20: #{generator_forward.20} parent=0 // pred_region
    _
  $region21: #{generator_forward.20} parent=0 // pred_fallthru
    _
  // Predicated region
  $region22: #{generator_forward.20} parent=0 // pred_check
    _
  $region23: #{generator_forward.20} parent=0 // pred_check_branch
    %295 = sbr.rel (0) target = $region25
  $region24: #{generator_forward.20} parent=0 // pred_region
    _
  $region25: #{generator_forward.20} parent=0 // pred_fallthru
    _

// kernel: generator_forward.21
$region0: #{generator_forward.21}
  #allocation0 [shape = 'u32[]', space=smem, size = 0x4, offset = 0x4, fixed_abs, tag = 'smem constant byte address 0x4 - core index']
  #allocation1 [shape = 'u32[72,128]{1,0:T(1,128)}', space=vmem, size = 0x9000, scoped, tag = 'internal scratch']
  %s0 = inlined_call_operand.vmem [shape: f32[512,128], index: 0, kind: input, shape index: {}]
  %s1 = inlined_call_operand.vmem [shape: f32[1,128], index: 1, kind: input, shape index: {}]
  %s2 = inlined_call_operand.vmem [shape: f32[1,128], index: 2, kind: input, shape index: {}]
  %s3 = inlined_call_operand.vmem [shape: f32[512,128], index: 3, kind: output, shape index: {}]
  %s4 = sld [smem:[#allocation0]]
  $region22: #{generator_forward.21} parent=0
    _
  %s6 = ssub.s32 1, %s4
  %s7 = scalar_select 0, %s6, %s4
  // Predicated region
  $region2: #{generator_forward.21} parent=0 // pred_check
    _
  $region3: #{generator_forward.21} parent=0 // pred_check_branch
    %9 = sbr.rel (0) target = $region5
  $region4: #{generator_forward.21} parent=0 // pred_region
    _
  $region5: #{generator_forward.21} parent=0 // pred_fallthru
    _
  // Predicated region
  $region6: #{generator_forward.21} parent=0 // pred_check
    _
  $region7: #{generator_forward.21} parent=0 // pred_check_branch
    %11 = sbr.rel (0) target = $region9
  $region8: #{generator_forward.21} parent=0 // pred_region
    _
  $region9: #{generator_forward.21} parent=0 // pred_fallthru
    _
  // Predicated region
  $region10: #{generator_forward.21} parent=0 // pred_check
    _
  $region11: #{generator_forward.21} parent=0 // pred_check_branch
    %13 = sbr.rel (0) target = $region13
  $region12: #{generator_forward.21} parent=0 // pred_region
    _
  $region13: #{generator_forward.21} parent=0 // pred_fallthru
    _
  %v14 = vld [vmem:[%s0] sm:$0xff]
  %v15 = vld [vmem:[%s0 + $0x8] sm:$0xff]
  %v16 = vld [vmem:[%s0 + $0x10] sm:$0xff]
  %v17 = vld [vmem:[%s0 + $0x18] sm:$0xff]
  %v18 = vld [vmem:[%s0 + $0x20] sm:$0xff]
  %v19 = vld [vmem:[%s0 + $0x28] sm:$0xff]
  %v20 = vld [vmem:[%s0 + $0x30] sm:$0xff]
  %v21 = vld [vmem:[%s0 + $0x38] sm:$0xff]
  %v22 = vld [vmem:[%s0 + $0x40] sm:$0xff]
  %v23 = vld [vmem:[%s0 + $0x48] sm:$0xff]
  %v24 = vld [vmem:[%s0 + $0x50] sm:$0xff]
  %v25 = vld [vmem:[%s0 + $0x58] sm:$0xff]
  %v26 = vld [vmem:[%s0 + $0x60] sm:$0xff]
  %v27 = vld [vmem:[%s0 + $0x68] sm:$0xff]
  %v28 = vld [vmem:[%s0 + $0x70] sm:$0xff]
  %v29 = vld [vmem:[%s0 + $0x78] sm:$0xff]
  %v30 = vld [vmem:[%s0 + $0x80] sm:$0xff]
  %v31 = vld [vmem:[%s0 + $0x88] sm:$0xff]
  %v32 = vld [vmem:[%s0 + $0x90] sm:$0xff]
  %v33 = vld [vmem:[%s0 + $0x98] sm:$0xff]
  %v34 = vld [vmem:[%s0 + $0xa0] sm:$0xff]
  %v35 = vld [vmem:[%s0 + $0xa8] sm:$0xff]
  %v36 = vld [vmem:[%s0 + $0xb0] sm:$0xff]
  %v37 = vld [vmem:[%s0 + $0xb8] sm:$0xff]
  %v38 = vld [vmem:[%s0 + $0xc0] sm:$0xff]
  %v39 = vld [vmem:[%s0 + $0xc8] sm:$0xff]
  %v40 = vld [vmem:[%s0 + $0xd0] sm:$0xff]
  %v41 = vld [vmem:[%s0 + $0xd8] sm:$0xff]
  %v42 = vld [vmem:[%s0 + $0xe0] sm:$0xff]
  %v43 = vld [vmem:[%s0 + $0xe8] sm:$0xff]
  %v44 = vld [vmem:[%s0 + $0xf0] sm:$0xff]
  %v45 = vld [vmem:[%s0 + $0xf8] sm:$0xff]
  %v46 = vld [vmem:[%s0 + $0x100] sm:$0xff]
  %v47 = vld [vmem:[%s0 + $0x108] sm:$0xff]
  %v48 = vld [vmem:[%s0 + $0x110] sm:$0xff]
  %v49 = vld [vmem:[%s0 + $0x118] sm:$0xff]
  %v50 = vld [vmem:[%s0 + $0x120] sm:$0xff]
  %v51 = vld [vmem:[%s0 + $0x128] sm:$0xff]
  %v52 = vld [vmem:[%s0 + $0x130] sm:$0xff]
  %v53 = vld [vmem:[%s0 + $0x138] sm:$0xff]
  %v54 = vld [vmem:[%s0 + $0x140] sm:$0xff]
  %v55 = vld [vmem:[%s0 + $0x148] sm:$0xff]
  %v56 = vld [vmem:[%s0 + $0x150] sm:$0xff]
  %v57 = vld [vmem:[%s0 + $0x158] sm:$0xff]
  %v58 = vld [vmem:[%s0 + $0x160] sm:$0xff]
  %v59 = vld [vmem:[%s0 + $0x168] sm:$0xff]
  %v60 = vld [vmem:[%s0 + $0x170] sm:$0xff]
  %v61 = vld [vmem:[%s0 + $0x178] sm:$0xff]
  %v62 = vld [vmem:[%s0 + $0x180] sm:$0xff]
  %v63 = vld [vmem:[%s0 + $0x188] sm:$0xff]
  %v64 = vld [vmem:[%s0 + $0x190] sm:$0xff]
  %v65 = vld [vmem:[%s0 + $0x198] sm:$0xff]
  %v66 = vld [vmem:[%s0 + $0x1a0] sm:$0xff]
  %v67 = vld [vmem:[%s0 + $0x1a8] sm:$0xff]
  %v68 = vld [vmem:[%s0 + $0x1b0] sm:$0xff]
  %v69 = vld [vmem:[%s0 + $0x1b8] sm:$0xff]
  %v70 = vld [vmem:[%s0 + $0x1c0] sm:$0xff]
  %v71 = vld [vmem:[%s0 + $0x1c8] sm:$0xff]
  %v72 = vld [vmem:[%s0 + $0x1d0] sm:$0xff]
  %v73 = vld [vmem:[%s0 + $0x1d8] sm:$0xff]
  %v74 = vld [vmem:[%s0 + $0x1e0] sm:$0xff]
  %v75 = vld [vmem:[%s0 + $0x1e8] sm:$0xff]
  %v76 = vld [vmem:[%s0 + $0x1f0] sm:$0xff]
  %v77 = vld [vmem:[%s0 + $0x1f8] sm:$0xff]
  %v78 = vld [vmem:[%s1] sm:$0x1]
  %v80 = vperm.slane %v78, 0
  %v82 = vmul.f32 %v14, %v80
  %v83 = vmul.f32 %v15, %v80
  %v84 = vmul.f32 %v16, %v80
  %v85 = vmul.f32 %v17, %v80
  %v86 = vmul.f32 %v18, %v80
  %v87 = vmul.f32 %v19, %v80
  %v88 = vmul.f32 %v20, %v80
  %v89 = vmul.f32 %v21, %v80
  %v90 = vmul.f32 %v22, %v80
  %v91 = vmul.f32 %v23, %v80
  %v92 = vmul.f32 %v24, %v80
  %v93 = vmul.f32 %v25, %v80
  %v94 = vmul.f32 %v26, %v80
  %v95 = vmul.f32 %v27, %v80
  %v96 = vmul.f32 %v28, %v80
  %v97 = vmul.f32 %v29, %v80
  %v98 = vmul.f32 %v30, %v80
  %v99 = vmul.f32 %v31, %v80
  %v100 = vmul.f32 %v32, %v80
  %v101 = vmul.f32 %v33, %v80
  %v102 = vmul.f32 %v34, %v80
  %v103 = vmul.f32 %v35, %v80
  %v104 = vmul.f32 %v36, %v80
  %v105 = vmul.f32 %v37, %v80
  %v106 = vmul.f32 %v38, %v80
  %v107 = vmul.f32 %v39, %v80
  %v108 = vmul.f32 %v40, %v80
  %v109 = vmul.f32 %v41, %v80
  %v110 = vmul.f32 %v42, %v80
  %v111 = vmul.f32 %v43, %v80
  %v112 = vmul.f32 %v44, %v80
  %v113 = vmul.f32 %v45, %v80
  %v114 = vmul.f32 %v46, %v80
  %v115 = vmul.f32 %v47, %v80
  %v116 = vmul.f32 %v48, %v80
  %v117 = vmul.f32 %v49, %v80
  %v118 = vmul.f32 %v50, %v80
  %v119 = vmul.f32 %v51, %v80
  %v120 = vmul.f32 %v52, %v80
  %v121 = vmul.f32 %v53, %v80
  %v122 = vmul.f32 %v54, %v80
  %v123 = vmul.f32 %v55, %v80
  %v124 = vmul.f32 %v56, %v80
  %v125 = vmul.f32 %v57, %v80
  %v126 = vmul.f32 %v58, %v80
  %v127 = vmul.f32 %v59, %v80
  %v128 = vmul.f32 %v60, %v80
  %v129 = vmul.f32 %v61, %v80
  %v130 = vmul.f32 %v62, %v80
  %v131 = vmul.f32 %v63, %v80
  %v132 = vmul.f32 %v64, %v80
  %v133 = vmul.f32 %v65, %v80
  %v134 = vmul.f32 %v66, %v80
  %v135 = vmul.f32 %v67, %v80
  %v136 = vmul.f32 %v68, %v80
  %v137 = vmul.f32 %v69, %v80
  %v138 = vmul.f32 %v70, %v80
  %v139 = vmul.f32 %v71, %v80
  %v140 = vmul.f32 %v72, %v80
  %v141 = vmul.f32 %v73, %v80
  %v142 = vmul.f32 %v74, %v80
  %v143 = vmul.f32 %v75, %v80
  %v144 = vmul.f32 %v76, %v80
  %v145 = vmul.f32 %v77, %v80
  %v146 = vld [vmem:[%s2] sm:$0x1]
  %v148 = vperm.slane %v146, 0
  %v150 = vadd.f32 %v82, %v148
  %v151 = vadd.f32 %v83, %v148
  %v152 = vadd.f32 %v84, %v148
  %v153 = vadd.f32 %v85, %v148
  %v154 = vadd.f32 %v86, %v148
  %v155 = vadd.f32 %v87, %v148
  %v156 = vadd.f32 %v88, %v148
  %v157 = vadd.f32 %v89, %v148
  %v158 = vadd.f32 %v90, %v148
  %v159 = vadd.f32 %v91, %v148
  %v160 = vadd.f32 %v92, %v148
  %v161 = vadd.f32 %v93, %v148
  %v162 = vadd.f32 %v94, %v148
  %v163 = vadd.f32 %v95, %v148
  %v164 = vadd.f32 %v96, %v148
  %v165 = vadd.f32 %v97, %v148
  %v166 = vadd.f32 %v98, %v148
  %v167 = vadd.f32 %v99, %v148
  %v168 = vadd.f32 %v100, %v148
  %v169 = vadd.f32 %v101, %v148
  %v170 = vadd.f32 %v102, %v148
  %v171 = vadd.f32 %v103, %v148
  %v172 = vadd.f32 %v104, %v148
  %v173 = vadd.f32 %v105, %v148
  %v174 = vadd.f32 %v106, %v148
  %v175 = vadd.f32 %v107, %v148
  %v176 = vadd.f32 %v108, %v148
  %v177 = vadd.f32 %v109, %v148
  %v178 = vadd.f32 %v110, %v148
  %v179 = vadd.f32 %v111, %v148
  %v180 = vadd.f32 %v112, %v148
  %v181 = vadd.f32 %v113, %v148
  %v182 = vadd.f32 %v114, %v148
  %v183 = vadd.f32 %v115, %v148
  %v184 = vadd.f32 %v116, %v148
  %v185 = vadd.f32 %v117, %v148
  %v186 = vadd.f32 %v118, %v148
  %v187 = vadd.f32 %v119, %v148
  %v188 = vadd.f32 %v120, %v148
  %v189 = vadd.f32 %v121, %v148
  %v190 = vadd.f32 %v122, %v148
  %v191 = vadd.f32 %v123, %v148
  %v192 = vadd.f32 %v124, %v148
  %v193 = vadd.f32 %v125, %v148
  %v194 = vadd.f32 %v126, %v148
  %v195 = vadd.f32 %v127, %v148
  %v196 = vadd.f32 %v128, %v148
  %v197 = vadd.f32 %v129, %v148
  %v198 = vadd.f32 %v130, %v148
  %v199 = vadd.f32 %v131, %v148
  %v200 = vadd.f32 %v132, %v148
  %v201 = vadd.f32 %v133, %v148
  %v202 = vadd.f32 %v134, %v148
  %v203 = vadd.f32 %v135, %v148
  %v204 = vadd.f32 %v136, %v148
  %v205 = vadd.f32 %v137, %v148
  %v206 = vadd.f32 %v138, %v148
  %v207 = vadd.f32 %v139, %v148
  %v208 = vadd.f32 %v140, %v148
  %v209 = vadd.f32 %v141, %v148
  %v210 = vadd.f32 %v142, %v148
  %v211 = vadd.f32 %v143, %v148
  %v212 = vadd.f32 %v144, %v148
  %v213 = vadd.f32 %v145, %v148
  %v214 = vmax.f32 %v150, 0.0
  %v215 = vmax.f32 %v151, 0.0
  %v216 = vmax.f32 %v152, 0.0
  %v217 = vmax.f32 %v153, 0.0
  %v218 = vmax.f32 %v154, 0.0
  %v219 = vmax.f32 %v155, 0.0
  %v220 = vmax.f32 %v156, 0.0
  %v221 = vmax.f32 %v157, 0.0
  %v222 = vmax.f32 %v158, 0.0
  %v223 = vmax.f32 %v159, 0.0
  %v224 = vmax.f32 %v160, 0.0
  %v225 = vmax.f32 %v161, 0.0
  %v226 = vmax.f32 %v162, 0.0
  %v227 = vmax.f32 %v163, 0.0
  %v228 = vmax.f32 %v164, 0.0
  %v229 = vmax.f32 %v165, 0.0
  %v230 = vmax.f32 %v166, 0.0
  %v231 = vmax.f32 %v167, 0.0
  %v232 = vmax.f32 %v168, 0.0
  %v233 = vmax.f32 %v169, 0.0
  %v234 = vmax.f32 %v170, 0.0
  %v235 = vmax.f32 %v171, 0.0
  %v236 = vmax.f32 %v172, 0.0
  %v237 = vmax.f32 %v173, 0.0
  %v238 = vmax.f32 %v174, 0.0
  %v239 = vmax.f32 %v175, 0.0
  %v240 = vmax.f32 %v176, 0.0
  %v241 = vmax.f32 %v177, 0.0
  %v242 = vmax.f32 %v178, 0.0
  %v243 = vmax.f32 %v179, 0.0
  %v244 = vmax.f32 %v180, 0.0
  %v245 = vmax.f32 %v181, 0.0
  %v246 = vmax.f32 %v182, 0.0
  %v247 = vmax.f32 %v183, 0.0
  %v248 = vmax.f32 %v184, 0.0
  %v249 = vmax.f32 %v185, 0.0
  %v250 = vmax.f32 %v186, 0.0
  %v251 = vmax.f32 %v187, 0.0
  %v252 = vmax.f32 %v188, 0.0
  %v253 = vmax.f32 %v189, 0.0
  %v254 = vmax.f32 %v190, 0.0
  %v255 = vmax.f32 %v191, 0.0
  %v256 = vmax.f32 %v192, 0.0
  %v257 = vmax.f32 %v193, 0.0
  %v258 = vmax.f32 %v194, 0.0
  %v259 = vmax.f32 %v195, 0.0
  %v260 = vmax.f32 %v196, 0.0
  %v261 = vmax.f32 %v197, 0.0
  %v262 = vmax.f32 %v198, 0.0
  %v263 = vmax.f32 %v199, 0.0
  %v264 = vmax.f32 %v200, 0.0
  %v265 = vmax.f32 %v201, 0.0
  %v266 = vmax.f32 %v202, 0.0
  %v267 = vmax.f32 %v203, 0.0
  %v268 = vmax.f32 %v204, 0.0
  %v269 = vmax.f32 %v205, 0.0
  %v270 = vmax.f32 %v206, 0.0
  %v271 = vmax.f32 %v207, 0.0
  %v272 = vmax.f32 %v208, 0.0
  %v273 = vmax.f32 %v209, 0.0
  %v274 = vmax.f32 %v210, 0.0
  %v275 = vmax.f32 %v211, 0.0
  %v276 = vmax.f32 %v212, 0.0
  %v277 = vmax.f32 %v213, 0.0
  %278 = vst [vmem:[%s3] sm:$0xff] %v214
  %279 = vst [vmem:[%s3 + $0x8] sm:$0xff] %v215
  %280 = vst [vmem:[%s3 + $0x10] sm:$0xff] %v216
  %281 = vst [vmem:[%s3 + $0x18] sm:$0xff] %v217
  %282 = vst [vmem:[%s3 + $0x20] sm:$0xff] %v218
  %283 = vst [vmem:[%s3 + $0x28] sm:$0xff] %v219
  %284 = vst [vmem:[%s3 + $0x30] sm:$0xff] %v220
  %285 = vst [vmem:[%s3 + $0x38] sm:$0xff] %v221
  %286 = vst [vmem:[%s3 + $0x40] sm:$0xff] %v222
  %287 = vst [vmem:[%s3 + $0x48] sm:$0xff] %v223
  %288 = vst [vmem:[%s3 + $0x50] sm:$0xff] %v224
  %289 = vst [vmem:[%s3 + $0x58] sm:$0xff] %v225
  %290 = vst [vmem:[%s3 + $0x60] sm:$0xff] %v226
  %291 = vst [vmem:[%s3 + $0x68] sm:$0xff] %v227
  %292 = vst [vmem:[%s3 + $0x70] sm:$0xff] %v228
  %293 = vst [vmem:[%s3 + $0x78] sm:$0xff] %v229
  %294 = vst [vmem:[%s3 + $0x80] sm:$0xff] %v230
  %295 = vst [vmem:[%s3 + $0x88] sm:$0xff] %v231
  %296 = vst [vmem:[%s3 + $0x90] sm:$0xff] %v232
  %297 = vst [vmem:[%s3 + $0x98] sm:$0xff] %v233
  %298 = vst [vmem:[%s3 + $0xa0] sm:$0xff] %v234
  %299 = vst [vmem:[%s3 + $0xa8] sm:$0xff] %v235
  %300 = vst [vmem:[%s3 + $0xb0] sm:$0xff] %v236
  %301 = vst [vmem:[%s3 + $0xb8] sm:$0xff] %v237
  %302 = vst [vmem:[%s3 + $0xc0] sm:$0xff] %v238
  %303 = vst [vmem:[%s3 + $0xc8] sm:$0xff] %v239
  %304 = vst [vmem:[%s3 + $0xd0] sm:$0xff] %v240
  %305 = vst [vmem:[%s3 + $0xd8] sm:$0xff] %v241
  %306 = vst [vmem:[%s3 + $0xe0] sm:$0xff] %v242
  %307 = vst [vmem:[%s3 + $0xe8] sm:$0xff] %v243
  %308 = vst [vmem:[%s3 + $0xf0] sm:$0xff] %v244
  %309 = vst [vmem:[%s3 + $0xf8] sm:$0xff] %v245
  %310 = vst [vmem:[%s3 + $0x100] sm:$0xff] %v246
  %311 = vst [vmem:[%s3 + $0x108] sm:$0xff] %v247
  %312 = vst [vmem:[%s3 + $0x110] sm:$0xff] %v248
  %313 = vst [vmem:[%s3 + $0x118] sm:$0xff] %v249
  %314 = vst [vmem:[%s3 + $0x120] sm:$0xff] %v250
  %315 = vst [vmem:[%s3 + $0x128] sm:$0xff] %v251
  %316 = vst [vmem:[%s3 + $0x130] sm:$0xff] %v252
  %317 = vst [vmem:[%s3 + $0x138] sm:$0xff] %v253
  %318 = vst [vmem:[%s3 + $0x140] sm:$0xff] %v254
  %319 = vst [vmem:[%s3 + $0x148] sm:$0xff] %v255
  %320 = vst [vmem:[%s3 + $0x150] sm:$0xff] %v256
  %321 = vst [vmem:[%s3 + $0x158] sm:$0xff] %v257
  %322 = vst [vmem:[%s3 + $0x160] sm:$0xff] %v258
  %323 = vst [vmem:[%s3 + $0x168] sm:$0xff] %v259
  %324 = vst [vmem:[%s3 + $0x170] sm:$0xff] %v260
  %325 = vst [vmem:[%s3 + $0x178] sm:$0xff] %v261
  %326 = vst [vmem:[%s3 + $0x180] sm:$0xff] %v262
  %327 = vst [vmem:[%s3 + $0x188] sm:$0xff] %v263
  %328 = vst [vmem:[%s3 + $0x190] sm:$0xff] %v264
  %329 = vst [vmem:[%s3 + $0x198] sm:$0xff] %v265
  %330 = vst [vmem:[%s3 + $0x1a0] sm:$0xff] %v266
  %331 = vst [vmem:[%s3 + $0x1a8] sm:$0xff] %v267
  %332 = vst [vmem:[%s3 + $0x1b0] sm:$0xff] %v268
  %333 = vst [vmem:[%s3 + $0x1b8] sm:$0xff] %v269
  %334 = vst [vmem:[%s3 + $0x1c0] sm:$0xff] %v270
  %335 = vst [vmem:[%s3 + $0x1c8] sm:$0xff] %v271
  %336 = vst [vmem:[%s3 + $0x1d0] sm:$0xff] %v272
  %337 = vst [vmem:[%s3 + $0x1d8] sm:$0xff] %v273
  %338 = vst [vmem:[%s3 + $0x1e0] sm:$0xff] %v274
  %339 = vst [vmem:[%s3 + $0x1e8] sm:$0xff] %v275
  %340 = vst [vmem:[%s3 + $0x1f0] sm:$0xff] %v276
  %341 = vst [vmem:[%s3 + $0x1f8] sm:$0xff] %v277
  // Predicated region
  $region14: #{generator_forward.21} parent=0 // pred_check
    _
  $region15: #{generator_forward.21} parent=0 // pred_check_branch
    %343 = sbr.rel (0) target = $region17
  $region16: #{generator_forward.21} parent=0 // pred_region
    _
  $region17: #{generator_forward.21} parent=0 // pred_fallthru
    _
  // Predicated region
  $region18: #{generator_forward.21} parent=0 // pred_check
    _
  $region19: #{generator_forward.21} parent=0 // pred_check_branch
    %345 = sbr.rel (0) target = $region21
  $region20: #{generator_forward.21} parent=0 // pred_region
    _
  $region21: #{generator_forward.21} parent=0 // pred_fallthru
    _

// kernel: generator_forward.22
$region0: #{generator_forward.22}
  #allocation0 [shape = 'u32[]', space=smem, size = 0x4, offset = 0x4, fixed_abs, tag = 'smem constant byte address 0x4 - core index']
  #allocation1 [shape = 'u32[72,128]{1,0:T(1,128)}', space=vmem, size = 0x9000, scoped, tag = 'internal scratch']
  %s0 = inlined_call_operand.vmem [shape: f32[4,512,512], index: 0, kind: input, shape index: {}]
  %s1 = inlined_call_operand.vmem [shape: f32[4,512,128], index: 1, kind: input, shape index: {}]
  %s2 = inlined_call_operand.vmem [shape: f32[4,512,128], index: 2, kind: output, shape index: {}]
  %s3 = sld [smem:[#allocation0]]
  $region41: #{generator_forward.22} parent=0
    _
  %s5 = ssub.s32 1, %s3
  %s6 = scalar_select 0, %s5, %s3
  loop: start=0, step=1, limit=10
  $region2: #{generator_forward.22} parent=0 // loop_pre_header
    _
  $region3: #{generator_forward.22} parent=0 // loop_header
    %s8 = sphi 0, %s12
    %p9 = scmp.ge.s32.totalorder %s8, 10
    %s15 = sphi 0, %s41
    %s16 = sphi 0, %s37
    %s17 = sphi 0, %s33
    %s18 = sphi 0, %s29
    %s19 = sphi 0, %s15
    %s20 = sphi 0, %s16
    %s21 = sphi 0, %s17
    %s22 = sphi 0, %s18
    %s23 = sphi 0, %s19
    %s24 = sphi 0, %s20
    %s25 = sphi 0, %s21
    %s26 = sphi 0, %s22
    %s48 = sphi 0, %s50
    %s51 = sphi 0, %s48
    %s52 = sphi 0, %s51
    %s68 = sphi 0, %s52
    %s78 = sphi 0, %s80
    %s81 = sphi 0, %s78
    %s82 = sphi 0, %s81
    %s98 = sphi 0, %s82
    %s108 = sphi 0, %s110
    %s111 = sphi 0, %s108
    %s112 = sphi 0, %s111
    %s128 = sphi 0, %s112
  $region4: #{generator_forward.22} parent=0 // loop_header_branch
    %11 = sbr.rel (%p9) target = $region8
  $region5: #{generator_forward.22} parent=0 // loop_body
    %s13 = ssub.s32 %s8, 1
    %s14 = ssub.s32 %s8, 2
    %s27 = sadd.s32 1, %s18
    %p28 = scmp.ge.s32.totalorder %s27, 1
    %s29 = scalar_select %p28, 0, %s27
    %s30 = sadd.s32 1, %s17
    %s31 = scalar_select %p28, %s30, %s17
    %p32 = scmp.ge.s32.totalorder %s31, 1
    %s33 = scalar_select %p32, 0, %s31
    %s34 = sadd.s32 1, %s16
    %s35 = scalar_select %p32, %s34, %s16
    %p36 = scmp.ge.s32.totalorder %s35, 2
    %s37 = scalar_select %p36, 0, %s35
    %s38 = sadd.s32 1, %s15
    %s39 = scalar_select %p36, %s38, %s15
    %p40 = scmp.ge.s32.totalorder %s39, 4
    %s41 = scalar_select %p40, 0, %s39
    %s42 = ssub.s32 %s15, %s41
    %s43 = ssub.s32 %s16, %s37
    %s44 = sor.u32 %s42, %s43
    %s45 = ssub.s32 %s18, %s29
    %s46 = sor.u32 %s44, %s45
    %p47 = scmp.eq.s32.totalorder %s46, 0
    %s49 = sadd.s32 %s48, 1
    %s50 = scalar_select %p47, %s48, %s49
    %p53 = pneg %p47
    %p54 = scmp.eq.s32.totalorder %s8, 7
    %p55 = por %p53, %p54
    %p56 = scmp.ne.s32.totalorder %s48, %s51
    %p57 = scmp.eq.s32.totalorder %s8, 0
    %p58 = por %p56, %p57
    %p59 = scmp.ne.s32.totalorder %s48, %s51
    %p60 = scmp.eq.s32.totalorder %s13, 7
    %p61 = por %p59, %p60
    %p62 = scmp.ne.s32.totalorder %s51, %s52
    %p63 = scmp.eq.s32.totalorder %s13, 0
    %p64 = por %p62, %p63
    %p65 = scmp.ne.s32.totalorder %s51, %s52
    %p66 = scmp.eq.s32.totalorder %s14, 7
    %p67 = por %p65, %p66
    %p69 = scmp.ne.s32.totalorder %s52, %s68
    %p70 = scmp.eq.s32.totalorder %s14, 0
    %p71 = por %p69, %p70
    %s72 = ssub.s32 %s15, %s41
    %s73 = ssub.s32 %s18, %s29
    %s74 = sor.u32 %s72, %s73
    %s75 = ssub.s32 %s17, %s33
    %s76 = sor.u32 %s74, %s75
    %p77 = scmp.eq.s32.totalorder %s76, 0
    %s79 = sadd.s32 %s78, 1
    %s80 = scalar_select %p77, %s78, %s79
    %p83 = pneg %p77
    %p84 = scmp.eq.s32.totalorder %s8, 7
    %p85 = por %p83, %p84
    %p86 = scmp.ne.s32.totalorder %s78, %s81
    %p87 = scmp.eq.s32.totalorder %s8, 0
    %p88 = por %p86, %p87
    %p89 = scmp.ne.s32.totalorder %s78, %s81
    %p90 = scmp.eq.s32.totalorder %s13, 7
    %p91 = por %p89, %p90
    %p92 = scmp.ne.s32.totalorder %s81, %s82
    %p93 = scmp.eq.s32.totalorder %s13, 0
    %p94 = por %p92, %p93
    %p95 = scmp.ne.s32.totalorder %s81, %s82
    %p96 = scmp.eq.s32.totalorder %s14, 7
    %p97 = por %p95, %p96
    %p99 = scmp.ne.s32.totalorder %s82, %s98
    %p100 = scmp.eq.s32.totalorder %s14, 0
    %p101 = por %p99, %p100
    %s102 = ssub.s32 %s15, %s41
    %s103 = ssub.s32 %s16, %s37
    %s104 = sor.u32 %s102, %s103
    %s105 = ssub.s32 %s17, %s33
    %s106 = sor.u32 %s104, %s105
    %p107 = scmp.eq.s32.totalorder %s106, 0
    %s109 = sadd.s32 %s108, 1
    %s110 = scalar_select %p107, %s108, %s109
    %p113 = pneg %p107
    %p114 = scmp.eq.s32.totalorder %s8, 7
    %p115 = por %p113, %p114
    %p116 = scmp.ne.s32.totalorder %s108, %s111
    %p117 = scmp.eq.s32.totalorder %s8, 0
    %p118 = por %p116, %p117
    %p119 = scmp.ne.s32.totalorder %s108, %s111
    %p120 = scmp.eq.s32.totalorder %s13, 7
    %p121 = por %p119, %p120
    %p122 = scmp.ne.s32.totalorder %s111, %s112
    %p123 = scmp.eq.s32.totalorder %s13, 0
    %p124 = por %p122, %p123
    %p125 = scmp.ne.s32.totalorder %s111, %s112
    %p126 = scmp.eq.s32.totalorder %s14, 7
    %p127 = por %p125, %p126
    %p129 = scmp.ne.s32.totalorder %s112, %s128
    %p130 = scmp.eq.s32.totalorder %s14, 0
    %p131 = por %p129, %p130
    %p132 = scmp.le.s32.totalorder 1, %s8
    %p133 = scmp.lt.s32.totalorder %s8, 9
    %p134 = pnand %p132, %p133
    %p135 = pneg %p134
    // Predicated region
    $region9: #{generator_forward.22} parent=5 // pred_check
      _
    $region10: #{generator_forward.22} parent=5 // pred_check_branch
      %137 = sbr.rel (%p134) target = $region12
    $region11: #{generator_forward.22} parent=5 // pred_region
      %s138 = ssub.s32 %s8, 1
    $region12: #{generator_forward.22} parent=5 // pred_fallthru
      _
    %p139 = scmp.lt.s32.totalorder %s8, 8
    // Predicated region
    $region13: #{generator_forward.22} parent=5 // pred_check
      %p140 = pneg %p139
    $region14: #{generator_forward.22} parent=5 // pred_check_branch
      %142 = sbr.rel (%p140) target = $region16
    $region15: #{generator_forward.22} parent=5 // pred_region
      // Predicated region
      $region17: #{generator_forward.22} parent=15 // pred_check
        %p143 = pneg %p58
      $region18: #{generator_forward.22} parent=15 // pred_check_branch
        %145 = sbr.rel (%p143) target = $region20
      $region19: #{generator_forward.22} parent=15 // pred_region
        %s146 = smul.u32 32, %s16
        %s147 = smul.u32 4, %s18
        %p148 = scmp.lt.s32.totalorder %s15, 3
        %s149 = scalar_select %p148, %s15, 3
        %p150 = scmp.lt.s32.totalorder %s146, 63
        %s151 = scalar_select %p150, %s146, 63
        %p152 = scmp.lt.s32.totalorder %s147, 3
        %s153 = scalar_select %p152, %s147, 3
        %s154 = smul.addr %s151, 4
        %s155 = sadd.s32 %s153, %s154
        %s156 = smul.addr %s149, 256
        %s157 = sadd.s32 %s155, %s156
        %s158 = smul.addr %s157, 8
        %s159 = scalar_lea.vmem %s0, %s158
        %s160 = smul.u32 32, %s16
        %s161 = smul.u32 4, %s18
      $region20: #{generator_forward.22} parent=15 // pred_fallthru
        _
      // Predicated region
      $region21: #{generator_forward.22} parent=15 // pred_check
        %p162 = pneg %p88
      $region22: #{generator_forward.22} parent=15 // pred_check_branch
        %164 = sbr.rel (%p162) target = $region24
      $region23: #{generator_forward.22} parent=15 // pred_region
        %s165 = smul.u32 64, %s18
        %p166 = scmp.lt.s32.totalorder %s15, 3
        %s167 = scalar_select %p166, %s15, 3
        %p168 = scmp.lt.s32.totalorder %s165, 63
        %s169 = scalar_select %p168, %s165, 63
        %p170 = scmp.lt.s32.totalorder %s17, 0
        %s171 = scalar_select %p170, %s17, 0
        %s172 = sadd.s32 %s171, %s169
        %s173 = smul.addr %s167, 64
        %s174 = sadd.s32 %s172, %s173
        %s175 = smul.addr %s174, 8
        %s176 = scalar_lea.vmem %s1, %s175
        %s177 = smul.u32 64, %s18
      $region24: #{generator_forward.22} parent=15 // pred_fallthru
        _
    $region16: #{generator_forward.22} parent=5 // pred_fallthru
      _
    %p178 = scmp.le.s32.totalorder 1, %s8
    %p179 = scmp.lt.s32.totalorder %s8, 9
    %p180 = pnand %p178, %p179
    %p181 = pneg %p180
    // Predicated region
    $region25: #{generator_forward.22} parent=5 // pred_check
      _
    $region26: #{generator_forward.22} parent=5 // pred_check_branch
      %183 = sbr.rel (%p180) target = $region28
    $region27: #{generator_forward.22} parent=5 // pred_region
      %s184 = ssub.s32 %s8, 1
      %s185 = smul.u32 32, %s20
      %s186 = smul.u32 4, %s22
      %p187 = scmp.lt.s32.totalorder %s19, 3
      %s188 = scalar_select %p187, %s19, 3
      %p189 = scmp.lt.s32.totalorder %s185, 63
      %s190 = scalar_select %p189, %s185, 63
      %p191 = scmp.lt.s32.totalorder %s186, 3
      %s192 = scalar_select %p191, %s186, 3
      %s193 = smul.addr %s190, 4
      %s194 = sadd.s32 %s192, %s193
      %s195 = smul.addr %s188, 256
      %s196 = sadd.s32 %s194, %s195
      %s197 = smul.addr %s196, 8
      %s198 = scalar_lea.vmem %s0, %s197
      %p199 = pneg %p64
      %p200 = pneg %p61
      %s201 = smul.u32 64, %s22
      %p202 = scmp.lt.s32.totalorder %s19, 3
      %s203 = scalar_select %p202, %s19, 3
      %p204 = scmp.lt.s32.totalorder %s201, 63
      %s205 = scalar_select %p204, %s201, 63
      %p206 = scmp.lt.s32.totalorder %s21, 0
      %s207 = scalar_select %p206, %s21, 0
      %s208 = sadd.s32 %s207, %s205
      %s209 = smul.addr %s203, 64
      %s210 = sadd.s32 %s208, %s209
      %s211 = smul.addr %s210, 8
      %s212 = scalar_lea.vmem %s1, %s211
      %p213 = pneg %p94
      %p214 = pneg %p91
      %p215 = pneg %p124
      %p216 = pneg %p121
      %s217 = smul.u32 32, %s20
      %p218 = scmp.lt.s32.totalorder %s19, 3
      %s219 = scalar_select %p218, %s19, 3
      %p220 = scmp.lt.s32.totalorder %s217, 63
      %s221 = scalar_select %p220, %s217, 63
      %p222 = scmp.lt.s32.totalorder %s21, 0
      %s223 = scalar_select %p222, %s21, 0
      %s224 = sadd.s32 %s223, %s221
      %s225 = smul.addr %s219, 64
      %s226 = sadd.s32 %s224, %s225
      %s227 = smul.addr %s226, 8
      %s228 = scalar_lea.vmem %s2, %s227
      %s229 = smul.u32 32, %s20
      %s230 = smul.u32 4, %s22
      %p231 = scmp.lt.s32.totalorder %s19, 3
      %s232 = scalar_select %p231, %s19, 3
      %p233 = scmp.lt.s32.totalorder %s229, 63
      %s234 = scalar_select %p233, %s229, 63
      %p235 = scmp.lt.s32.totalorder %s230, 3
      %s236 = scalar_select %p235, %s230, 3
      %s237 = smul.addr %s234, 4
      %s238 = sadd.s32 %s236, %s237
      %s239 = smul.addr %s232, 256
      %s240 = sadd.s32 %s238, %s239
      %s241 = smul.addr %s240, 8
      %s242 = scalar_lea.vmem %s0, %s241
      %s243 = smul.u32 32, %s20
      %s244 = smul.u32 4, %s22
      %s245 = smul.u32 64, %s22
      %p246 = scmp.lt.s32.totalorder %s19, 3
      %s247 = scalar_select %p246, %s19, 3
      %p248 = scmp.lt.s32.totalorder %s245, 63
      %s249 = scalar_select %p248, %s245, 63
      %p250 = scmp.lt.s32.totalorder %s21, 0
      %s251 = scalar_select %p250, %s21, 0
      %s252 = sadd.s32 %s251, %s249
      %s253 = smul.addr %s247, 64
      %s254 = sadd.s32 %s252, %s253
      %s255 = smul.addr %s254, 8
      %s256 = scalar_lea.vmem %s1, %s255
      %s257 = smul.u32 64, %s22
      %s258 = smul.u32 32, %s20
      %p259 = scmp.lt.s32.totalorder %s19, 3
      %s260 = scalar_select %p259, %s19, 3
      %p261 = scmp.lt.s32.totalorder %s258, 63
      %s262 = scalar_select %p261, %s258, 63
      %p263 = scmp.lt.s32.totalorder %s21, 0
      %s264 = scalar_select %p263, %s21, 0
      %s265 = sadd.s32 %s264, %s262
      %s266 = smul.addr %s260, 64
      %s267 = sadd.s32 %s265, %s266
      %s268 = smul.addr %s267, 8
      %s269 = scalar_lea.vmem %s2, %s268
      %s270 = smul.u32 32, %s20
      %v271 = vld [vmem:[%s242] sm:$0xff]
      %v272 = vld [vmem:[%s242 + $0x8] sm:$0xff]
      %v273 = vld [vmem:[%s242 + $0x10] sm:$0xff]
      %v274 = vld [vmem:[%s242 + $0x18] sm:$0xff]
      %v275 = vld [vmem:[%s242 + $0x20] sm:$0xff]
      %v276 = vld [vmem:[%s242 + $0x28] sm:$0xff]
      %v277 = vld [vmem:[%s242 + $0x30] sm:$0xff]
      %v278 = vld [vmem:[%s242 + $0x38] sm:$0xff]
      %v279 = vld [vmem:[%s242 + $0x40] sm:$0xff]
      %v280 = vld [vmem:[%s242 + $0x48] sm:$0xff]
      %v281 = vld [vmem:[%s242 + $0x50] sm:$0xff]
      %v282 = vld [vmem:[%s242 + $0x58] sm:$0xff]
      %v283 = vld [vmem:[%s242 + $0x60] sm:$0xff]
      %v284 = vld [vmem:[%s242 + $0x68] sm:$0xff]
      %v285 = vld [vmem:[%s242 + $0x70] sm:$0xff]
      %v286 = vld [vmem:[%s242 + $0x78] sm:$0xff]
      %v287 = vld [vmem:[%s242 + $0x80] sm:$0xff]
      %v288 = vld [vmem:[%s242 + $0x88] sm:$0xff]
      %v289 = vld [vmem:[%s242 + $0x90] sm:$0xff]
      %v290 = vld [vmem:[%s242 + $0x98] sm:$0xff]
      %v291 = vld [vmem:[%s242 + $0xa0] sm:$0xff]
      %v292 = vld [vmem:[%s242 + $0xa8] sm:$0xff]
      %v293 = vld [vmem:[%s242 + $0xb0] sm:$0xff]
      %v294 = vld [vmem:[%s242 + $0xb8] sm:$0xff]
      %v295 = vld [vmem:[%s242 + $0xc0] sm:$0xff]
      %v296 = vld [vmem:[%s242 + $0xc8] sm:$0xff]
      %v297 = vld [vmem:[%s242 + $0xd0] sm:$0xff]
      %v298 = vld [vmem:[%s242 + $0xd8] sm:$0xff]
      %v299 = vld [vmem:[%s242 + $0xe0] sm:$0xff]
      %v300 = vld [vmem:[%s242 + $0xe8] sm:$0xff]
      %v301 = vld [vmem:[%s242 + $0xf0] sm:$0xff]
      %v302 = vld [vmem:[%s242 + $0xf8] sm:$0xff]
      %v303 = vld [vmem:[%s242 + $0x100] sm:$0xff]
      %v304 = vld [vmem:[%s242 + $0x108] sm:$0xff]
      %v305 = vld [vmem:[%s242 + $0x110] sm:$0xff]
      %v306 = vld [vmem:[%s242 + $0x118] sm:$0xff]
      %v307 = vld [vmem:[%s242 + $0x120] sm:$0xff]
      %v308 = vld [vmem:[%s242 + $0x128] sm:$0xff]
      %v309 = vld [vmem:[%s242 + $0x130] sm:$0xff]
      %v310 = vld [vmem:[%s242 + $0x138] sm:$0xff]
      %v311 = vld [vmem:[%s242 + $0x140] sm:$0xff]
      %v312 = vld [vmem:[%s242 + $0x148] sm:$0xff]
      %v313 = vld [vmem:[%s242 + $0x150] sm:$0xff]
      %v314 = vld [vmem:[%s242 + $0x158] sm:$0xff]
      %v315 = vld [vmem:[%s242 + $0x160] sm:$0xff]
      %v316 = vld [vmem:[%s242 + $0x168] sm:$0xff]
      %v317 = vld [vmem:[%s242 + $0x170] sm:$0xff]
      %v318 = vld [vmem:[%s242 + $0x178] sm:$0xff]
      %v319 = vld [vmem:[%s242 + $0x180] sm:$0xff]
      %v320 = vld [vmem:[%s242 + $0x188] sm:$0xff]
      %v321 = vld [vmem:[%s242 + $0x190] sm:$0xff]
      %v322 = vld [vmem:[%s242 + $0x198] sm:$0xff]
      %v323 = vld [vmem:[%s242 + $0x1a0] sm:$0xff]
      %v324 = vld [vmem:[%s242 + $0x1a8] sm:$0xff]
      %v325 = vld [vmem:[%s242 + $0x1b0] sm:$0xff]
      %v326 = vld [vmem:[%s242 + $0x1b8] sm:$0xff]
      %v327 = vld [vmem:[%s242 + $0x1c0] sm:$0xff]
      %v328 = vld [vmem:[%s242 + $0x1c8] sm:$0xff]
      %v329 = vld [vmem:[%s242 + $0x1d0] sm:$0xff]
      %v330 = vld [vmem:[%s242 + $0x1d8] sm:$0xff]
      %v331 = vld [vmem:[%s242 + $0x1e0] sm:$0xff]
      %v332 = vld [vmem:[%s242 + $0x1e8] sm:$0xff]
      %v333 = vld [vmem:[%s242 + $0x1f0] sm:$0xff]
      %v334 = vld [vmem:[%s242 + $0x1f8] sm:$0xff]
      %v335 = vld [vmem:[%s242 + $0x200] sm:$0xff]
      %v336 = vld [vmem:[%s242 + $0x208] sm:$0xff]
      %v337 = vld [vmem:[%s242 + $0x210] sm:$0xff]
      %v338 = vld [vmem:[%s242 + $0x218] sm:$0xff]
      %v339 = vld [vmem:[%s242 + $0x220] sm:$0xff]
      %v340 = vld [vmem:[%s242 + $0x228] sm:$0xff]
      %v341 = vld [vmem:[%s242 + $0x230] sm:$0xff]
      %v342 = vld [vmem:[%s242 + $0x238] sm:$0xff]
      %v343 = vld [vmem:[%s242 + $0x240] sm:$0xff]
      %v344 = vld [vmem:[%s242 + $0x248] sm:$0xff]
      %v345 = vld [vmem:[%s242 + $0x250] sm:$0xff]
      %v346 = vld [vmem:[%s242 + $0x258] sm:$0xff]
      %v347 = vld [vmem:[%s242 + $0x260] sm:$0xff]
      %v348 = vld [vmem:[%s242 + $0x268] sm:$0xff]
      %v349 = vld [vmem:[%s242 + $0x270] sm:$0xff]
      %v350 = vld [vmem:[%s242 + $0x278] sm:$0xff]
      %v351 = vld [vmem:[%s242 + $0x280] sm:$0xff]
      %v352 = vld [vmem:[%s242 + $0x288] sm:$0xff]
      %v353 = vld [vmem:[%s242 + $0x290] sm:$0xff]
      %v354 = vld [vmem:[%s242 + $0x298] sm:$0xff]
      %v355 = vld [vmem:[%s242 + $0x2a0] sm:$0xff]
      %v356 = vld [vmem:[%s242 + $0x2a8] sm:$0xff]
      %v357 = vld [vmem:[%s242 + $0x2b0] sm:$0xff]
      %v358 = vld [vmem:[%s242 + $0x2b8] sm:$0xff]
      %v359 = vld [vmem:[%s242 + $0x2c0] sm:$0xff]
      %v360 = vld [vmem:[%s242 + $0x2c8] sm:$0xff]
      %v361 = vld [vmem:[%s242 + $0x2d0] sm:$0xff]
      %v362 = vld [vmem:[%s242 + $0x2d8] sm:$0xff]
      %v363 = vld [vmem:[%s242 + $0x2e0] sm:$0xff]
      %v364 = vld [vmem:[%s242 + $0x2e8] sm:$0xff]
      %v365 = vld [vmem:[%s242 + $0x2f0] sm:$0xff]
      %v366 = vld [vmem:[%s242 + $0x2f8] sm:$0xff]
      %v367 = vld [vmem:[%s242 + $0x300] sm:$0xff]
      %v368 = vld [vmem:[%s242 + $0x308] sm:$0xff]
      %v369 = vld [vmem:[%s242 + $0x310] sm:$0xff]
      %v370 = vld [vmem:[%s242 + $0x318] sm:$0xff]
      %v371 = vld [vmem:[%s242 + $0x320] sm:$0xff]
      %v372 = vld [vmem:[%s242 + $0x328] sm:$0xff]
      %v373 = vld [vmem:[%s242 + $0x330] sm:$0xff]
      %v374 = vld [vmem:[%s242 + $0x338] sm:$0xff]
      %v375 = vld [vmem:[%s242 + $0x340] sm:$0xff]
      %v376 = vld [vmem:[%s242 + $0x348] sm:$0xff]
      %v377 = vld [vmem:[%s242 + $0x350] sm:$0xff]
      %v378 = vld [vmem:[%s242 + $0x358] sm:$0xff]
      %v379 = vld [vmem:[%s242 + $0x360] sm:$0xff]
      %v380 = vld [vmem:[%s242 + $0x368] sm:$0xff]
      %v381 = vld [vmem:[%s242 + $0x370] sm:$0xff]
      %v382 = vld [vmem:[%s242 + $0x378] sm:$0xff]
      %v383 = vld [vmem:[%s242 + $0x380] sm:$0xff]
      %v384 = vld [vmem:[%s242 + $0x388] sm:$0xff]
      %v385 = vld [vmem:[%s242 + $0x390] sm:$0xff]
      %v386 = vld [vmem:[%s242 + $0x398] sm:$0xff]
      %v387 = vld [vmem:[%s242 + $0x3a0] sm:$0xff]
      %v388 = vld [vmem:[%s242 + $0x3a8] sm:$0xff]
      %v389 = vld [vmem:[%s242 + $0x3b0] sm:$0xff]
      %v390 = vld [vmem:[%s242 + $0x3b8] sm:$0xff]
      %v391 = vld [vmem:[%s242 + $0x3c0] sm:$0xff]
      %v392 = vld [vmem:[%s242 + $0x3c8] sm:$0xff]
      %v393 = vld [vmem:[%s242 + $0x3d0] sm:$0xff]
      %v394 = vld [vmem:[%s242 + $0x3d8] sm:$0xff]
      %v395 = vld [vmem:[%s242 + $0x3e0] sm:$0xff]
      %v396 = vld [vmem:[%s242 + $0x3e8] sm:$0xff]
      %v397 = vld [vmem:[%s242 + $0x3f0] sm:$0xff]
      %v398 = vld [vmem:[%s242 + $0x3f8] sm:$0xff]
      %v399 = vld [vmem:[%s256] sm:$0xff]
      %v400 = vld [vmem:[%s256 + $0x8] sm:$0xff]
      %v401 = vld [vmem:[%s256 + $0x10] sm:$0xff]
      %v402 = vld [vmem:[%s256 + $0x18] sm:$0xff]
      %v403 = vld [vmem:[%s256 + $0x20] sm:$0xff]
      %v404 = vld [vmem:[%s256 + $0x28] sm:$0xff]
      %v405 = vld [vmem:[%s256 + $0x30] sm:$0xff]
      %v406 = vld [vmem:[%s256 + $0x38] sm:$0xff]
      %v407 = vld [vmem:[%s256 + $0x40] sm:$0xff]
      %v408 = vld [vmem:[%s256 + $0x48] sm:$0xff]
      %v409 = vld [vmem:[%s256 + $0x50] sm:$0xff]
      %v410 = vld [vmem:[%s256 + $0x58] sm:$0xff]
      %v411 = vld [vmem:[%s256 + $0x60] sm:$0xff]
      %v412 = vld [vmem:[%s256 + $0x68] sm:$0xff]
      %v413 = vld [vmem:[%s256 + $0x70] sm:$0xff]
      %v414 = vld [vmem:[%s256 + $0x78] sm:$0xff]
      %v415 = vld [vmem:[%s256 + $0x80] sm:$0xff]
      %v416 = vld [vmem:[%s256 + $0x88] sm:$0xff]
      %v417 = vld [vmem:[%s256 + $0x90] sm:$0xff]
      %v418 = vld [vmem:[%s256 + $0x98] sm:$0xff]
      %v419 = vld [vmem:[%s256 + $0xa0] sm:$0xff]
      %v420 = vld [vmem:[%s256 + $0xa8] sm:$0xff]
      %v421 = vld [vmem:[%s256 + $0xb0] sm:$0xff]
      %v422 = vld [vmem:[%s256 + $0xb8] sm:$0xff]
      %v423 = vld [vmem:[%s256 + $0xc0] sm:$0xff]
      %v424 = vld [vmem:[%s256 + $0xc8] sm:$0xff]
      %v425 = vld [vmem:[%s256 + $0xd0] sm:$0xff]
      %v426 = vld [vmem:[%s256 + $0xd8] sm:$0xff]
      %v427 = vld [vmem:[%s256 + $0xe0] sm:$0xff]
      %v428 = vld [vmem:[%s256 + $0xe8] sm:$0xff]
      %v429 = vld [vmem:[%s256 + $0xf0] sm:$0xff]
      %v430 = vld [vmem:[%s256 + $0xf8] sm:$0xff]
      %v431 = vld [vmem:[%s256 + $0x100] sm:$0xff]
      %v432 = vld [vmem:[%s256 + $0x108] sm:$0xff]
      %v433 = vld [vmem:[%s256 + $0x110] sm:$0xff]
      %v434 = vld [vmem:[%s256 + $0x118] sm:$0xff]
      %v435 = vld [vmem:[%s256 + $0x120] sm:$0xff]
      %v436 = vld [vmem:[%s256 + $0x128] sm:$0xff]
      %v437 = vld [vmem:[%s256 + $0x130] sm:$0xff]
      %v438 = vld [vmem:[%s256 + $0x138] sm:$0xff]
      %v439 = vld [vmem:[%s256 + $0x140] sm:$0xff]
      %v440 = vld [vmem:[%s256 + $0x148] sm:$0xff]
      %v441 = vld [vmem:[%s256 + $0x150] sm:$0xff]
      %v442 = vld [vmem:[%s256 + $0x158] sm:$0xff]
      %v443 = vld [vmem:[%s256 + $0x160] sm:$0xff]
      %v444 = vld [vmem:[%s256 + $0x168] sm:$0xff]
      %v445 = vld [vmem:[%s256 + $0x170] sm:$0xff]
      %v446 = vld [vmem:[%s256 + $0x178] sm:$0xff]
      %v447 = vld [vmem:[%s256 + $0x180] sm:$0xff]
      %v448 = vld [vmem:[%s256 + $0x188] sm:$0xff]
      %v449 = vld [vmem:[%s256 + $0x190] sm:$0xff]
      %v450 = vld [vmem:[%s256 + $0x198] sm:$0xff]
      %v451 = vld [vmem:[%s256 + $0x1a0] sm:$0xff]
      %v452 = vld [vmem:[%s256 + $0x1a8] sm:$0xff]
      %v453 = vld [vmem:[%s256 + $0x1b0] sm:$0xff]
      %v454 = vld [vmem:[%s256 + $0x1b8] sm:$0xff]
      %v455 = vld [vmem:[%s256 + $0x1c0] sm:$0xff]
      %v456 = vld [vmem:[%s256 + $0x1c8] sm:$0xff]
      %v457 = vld [vmem:[%s256 + $0x1d0] sm:$0xff]
      %v458 = vld [vmem:[%s256 + $0x1d8] sm:$0xff]
      %v459 = vld [vmem:[%s256 + $0x1e0] sm:$0xff]
      %v460 = vld [vmem:[%s256 + $0x1e8] sm:$0xff]
      %v461 = vld [vmem:[%s256 + $0x1f0] sm:$0xff]
      %v462 = vld [vmem:[%s256 + $0x1f8] sm:$0xff]
      %463 = vmatpush.msra.mxu0 %v414
      %464 = vmatpush.msra.mxu0 %v413
      %465 = vmatpush.msra.mxu0 %v412
      %466 = vmatpush.msra.mxu0 %v411
      %467 = vmatpush.msra.mxu0 %v410
      %468 = vmatpush.msra.mxu0 %v409
      %469 = vmatpush.msra.mxu0 %v408
      %470 = vmatpush.msra.mxu0 %v407
      %471 = vmatpush.msra.mxu0 %v406
      %472 = vmatpush.msra.mxu0 %v405
      %473 = vmatpush.msra.mxu0 %v404
      %474 = vmatpush.msra.mxu0 %v403
      %475 = vmatpush.msra.mxu0 %v402
      %476 = vmatpush.msra.mxu0 %v401
      %477 = vmatpush.msra.mxu0 %v400
      %478 = vmatpush.msra.mxu0 %v399
      %479 = vmatmul.f32.gmra.mxu0 %v271
      %v480 = vpop.f32.mrf.mxu0
      %v481 = vadd.f32 0.0, %v480
      %482 = vmatmul.f32.gmra.mxu0 %v275
      %v483 = vpop.f32.mrf.mxu0
      %v484 = vadd.f32 0.0, %v483
      %485 = vmatmul.f32.gmra.mxu0 %v279
      %v486 = vpop.f32.mrf.mxu0
      %v487 = vadd.f32 0.0, %v486
      %488 = vmatmul.f32.gmra.mxu0 %v283
      %v489 = vpop.f32.mrf.mxu0
      %v490 = vadd.f32 0.0, %v489
      %491 = vmatmul.f32.gmra.mxu0 %v287
      %v492 = vpop.f32.mrf.mxu0
      %v493 = vadd.f32 0.0, %v492
      %494 = vmatmul.f32.gmra.mxu0 %v291
      %v495 = vpop.f32.mrf.mxu0
      %v496 = vadd.f32 0.0, %v495
      %497 = vmatmul.f32.gmra.mxu0 %v295
      %v498 = vpop.f32.mrf.mxu0
      %v499 = vadd.f32 0.0, %v498
      %500 = vmatmul.f32.gmra.mxu0 %v299
      %v501 = vpop.f32.mrf.mxu0
      %v502 = vadd.f32 0.0, %v501
      %503 = vmatmul.f32.gmra.mxu0 %v303
      %v504 = vpop.f32.mrf.mxu0
      %v505 = vadd.f32 0.0, %v504
      %506 = vmatmul.f32.gmra.mxu0 %v307
      %v507 = vpop.f32.mrf.mxu0
      %v508 = vadd.f32 0.0, %v507
      %509 = vmatmul.f32.gmra.mxu0 %v311
      %v510 = vpop.f32.mrf.mxu0
      %v511 = vadd.f32 0.0, %v510
      %512 = vmatmul.f32.gmra.mxu0 %v315
      %v513 = vpop.f32.mrf.mxu0
      %v514 = vadd.f32 0.0, %v513
      %515 = vmatmul.f32.gmra.mxu0 %v319
      %v516 = vpop.f32.mrf.mxu0
      %v517 = vadd.f32 0.0, %v516
      %518 = vmatmul.f32.gmra.mxu0 %v323
      %v519 = vpop.f32.mrf.mxu0
      %v520 = vadd.f32 0.0, %v519
      %521 = vmatmul.f32.gmra.mxu0 %v327
      %v522 = vpop.f32.mrf.mxu0
      %v523 = vadd.f32 0.0, %v522
      %524 = vmatmul.f32.gmra.mxu0 %v331
      %v525 = vpop.f32.mrf.mxu0
      %v526 = vadd.f32 0.0, %v525
      %527 = vmatmul.f32.gmra.mxu0 %v335
      %v528 = vpop.f32.mrf.mxu0
      %v529 = vadd.f32 0.0, %v528
      %530 = vmatmul.f32.gmra.mxu0 %v339
      %v531 = vpop.f32.mrf.mxu0
      %v532 = vadd.f32 0.0, %v531
      %533 = vmatmul.f32.gmra.mxu0 %v343
      %v534 = vpop.f32.mrf.mxu0
      %v535 = vadd.f32 0.0, %v534
      %536 = vmatmul.f32.gmra.mxu0 %v347
      %v537 = vpop.f32.mrf.mxu0
      %v538 = vadd.f32 0.0, %v537
      %539 = vmatmul.f32.gmra.mxu0 %v351
      %v540 = vpop.f32.mrf.mxu0
      %v541 = vadd.f32 0.0, %v540
      %542 = vmatmul.f32.gmra.mxu0 %v355
      %v543 = vpop.f32.mrf.mxu0
      %v544 = vadd.f32 0.0, %v543
      %545 = vmatmul.f32.gmra.mxu0 %v359
      %v546 = vpop.f32.mrf.mxu0
      %v547 = vadd.f32 0.0, %v546
      %548 = vmatmul.f32.gmra.mxu0 %v363
      %v549 = vpop.f32.mrf.mxu0
      %v550 = vadd.f32 0.0, %v549
      %551 = vmatmul.f32.gmra.mxu0 %v367
      %v552 = vpop.f32.mrf.mxu0
      %v553 = vadd.f32 0.0, %v552
      %554 = vmatmul.f32.gmra.mxu0 %v371
      %v555 = vpop.f32.mrf.mxu0
      %v556 = vadd.f32 0.0, %v555
      %557 = vmatmul.f32.gmra.mxu0 %v375
      %v558 = vpop.f32.mrf.mxu0
      %v559 = vadd.f32 0.0, %v558
      %560 = vmatmul.f32.gmra.mxu0 %v379
      %v561 = vpop.f32.mrf.mxu0
      %v562 = vadd.f32 0.0, %v561
      %563 = vmatmul.f32.gmra.mxu0 %v383
      %v564 = vpop.f32.mrf.mxu0
      %v565 = vadd.f32 0.0, %v564
      %566 = vmatmul.f32.gmra.mxu0 %v387
      %v567 = vpop.f32.mrf.mxu0
      %v568 = vadd.f32 0.0, %v567
      %569 = vmatmul.f32.gmra.mxu0 %v391
      %v570 = vpop.f32.mrf.mxu0
      %v571 = vadd.f32 0.0, %v570
      %572 = vmatmul.f32.gmra.mxu0 %v395
      %v573 = vpop.f32.mrf.mxu0
      %v574 = vadd.f32 0.0, %v573
      %575 = vdwg.mxu0
      %576 = vmatpush.msra.mxu0 %v430
      %577 = vmatpush.msra.mxu0 %v429
      %578 = vmatpush.msra.mxu0 %v428
      %579 = vmatpush.msra.mxu0 %v427
      %580 = vmatpush.msra.mxu0 %v426
      %581 = vmatpush.msra.mxu0 %v425
      %582 = vmatpush.msra.mxu0 %v424
      %583 = vmatpush.msra.mxu0 %v423
      %584 = vmatpush.msra.mxu0 %v422
      %585 = vmatpush.msra.mxu0 %v421
      %586 = vmatpush.msra.mxu0 %v420
      %587 = vmatpush.msra.mxu0 %v419
      %588 = vmatpush.msra.mxu0 %v418
      %589 = vmatpush.msra.mxu0 %v417
      %590 = vmatpush.msra.mxu0 %v416
      %591 = vmatpush.msra.mxu0 %v415
      %592 = vmatmul.f32.gmra.mxu0 %v272
      %v593 = vpop.f32.mrf.mxu0
      %v594 = vadd.f32 %v481, %v593
      %595 = vmatmul.f32.gmra.mxu0 %v276
      %v596 = vpop.f32.mrf.mxu0
      %v597 = vadd.f32 %v484, %v596
      %598 = vmatmul.f32.gmra.mxu0 %v280
      %v599 = vpop.f32.mrf.mxu0
      %v600 = vadd.f32 %v487, %v599
      %601 = vmatmul.f32.gmra.mxu0 %v284
      %v602 = vpop.f32.mrf.mxu0
      %v603 = vadd.f32 %v490, %v602
      %604 = vmatmul.f32.gmra.mxu0 %v288
      %v605 = vpop.f32.mrf.mxu0
      %v606 = vadd.f32 %v493, %v605
      %607 = vmatmul.f32.gmra.mxu0 %v292
      %v608 = vpop.f32.mrf.mxu0
      %v609 = vadd.f32 %v496, %v608
      %610 = vmatmul.f32.gmra.mxu0 %v296
      %v611 = vpop.f32.mrf.mxu0
      %v612 = vadd.f32 %v499, %v611
      %613 = vmatmul.f32.gmra.mxu0 %v300
      %v614 = vpop.f32.mrf.mxu0
      %v615 = vadd.f32 %v502, %v614
      %616 = vmatmul.f32.gmra.mxu0 %v304
      %v617 = vpop.f32.mrf.mxu0
      %v618 = vadd.f32 %v505, %v617
      %619 = vmatmul.f32.gmra.mxu0 %v308
      %v620 = vpop.f32.mrf.mxu0
      %v621 = vadd.f32 %v508, %v620
      %622 = vmatmul.f32.gmra.mxu0 %v312
      %v623 = vpop.f32.mrf.mxu0
      %v624 = vadd.f32 %v511, %v623
      %625 = vmatmul.f32.gmra.mxu0 %v316
      %v626 = vpop.f32.mrf.mxu0
      %v627 = vadd.f32 %v514, %v626
      %628 = vmatmul.f32.gmra.mxu0 %v320
      %v629 = vpop.f32.mrf.mxu0
      %v630 = vadd.f32 %v517, %v629
      %631 = vmatmul.f32.gmra.mxu0 %v324
      %v632 = vpop.f32.mrf.mxu0
      %v633 = vadd.f32 %v520, %v632
      %634 = vmatmul.f32.gmra.mxu0 %v328
      %v635 = vpop.f32.mrf.mxu0
      %v636 = vadd.f32 %v523, %v635
      %637 = vmatmul.f32.gmra.mxu0 %v332
      %v638 = vpop.f32.mrf.mxu0
      %v639 = vadd.f32 %v526, %v638
      %640 = vmatmul.f32.gmra.mxu0 %v336
      %v641 = vpop.f32.mrf.mxu0
      %v642 = vadd.f32 %v529, %v641
      %643 = vmatmul.f32.gmra.mxu0 %v340
      %v644 = vpop.f32.mrf.mxu0
      %v645 = vadd.f32 %v532, %v644
      %646 = vmatmul.f32.gmra.mxu0 %v344
      %v647 = vpop.f32.mrf.mxu0
      %v648 = vadd.f32 %v535, %v647
      %649 = vmatmul.f32.gmra.mxu0 %v348
      %v650 = vpop.f32.mrf.mxu0
      %v651 = vadd.f32 %v538, %v650
      %652 = vmatmul.f32.gmra.mxu0 %v352
      %v653 = vpop.f32.mrf.mxu0
      %v654 = vadd.f32 %v541, %v653
      %655 = vmatmul.f32.gmra.mxu0 %v356
      %v656 = vpop.f32.mrf.mxu0
      %v657 = vadd.f32 %v544, %v656
      %658 = vmatmul.f32.gmra.mxu0 %v360
      %v659 = vpop.f32.mrf.mxu0
      %v660 = vadd.f32 %v547, %v659
      %661 = vmatmul.f32.gmra.mxu0 %v364
      %v662 = vpop.f32.mrf.mxu0
      %v663 = vadd.f32 %v550, %v662
      %664 = vmatmul.f32.gmra.mxu0 %v368
      %v665 = vpop.f32.mrf.mxu0
      %v666 = vadd.f32 %v553, %v665
      %667 = vmatmul.f32.gmra.mxu0 %v372
      %v668 = vpop.f32.mrf.mxu0
      %v669 = vadd.f32 %v556, %v668
      %670 = vmatmul.f32.gmra.mxu0 %v376
      %v671 = vpop.f32.mrf.mxu0
      %v672 = vadd.f32 %v559, %v671
      %673 = vmatmul.f32.gmra.mxu0 %v380
      %v674 = vpop.f32.mrf.mxu0
      %v675 = vadd.f32 %v562, %v674
      %676 = vmatmul.f32.gmra.mxu0 %v384
      %v677 = vpop.f32.mrf.mxu0
      %v678 = vadd.f32 %v565, %v677
      %679 = vmatmul.f32.gmra.mxu0 %v388
      %v680 = vpop.f32.mrf.mxu0
      %v681 = vadd.f32 %v568, %v680
      %682 = vmatmul.f32.gmra.mxu0 %v392
      %v683 = vpop.f32.mrf.mxu0
      %v684 = vadd.f32 %v571, %v683
      %685 = vmatmul.f32.gmra.mxu0 %v396
      %v686 = vpop.f32.mrf.mxu0
      %v687 = vadd.f32 %v574, %v686
      %688 = vdwg.mxu0
      %689 = vmatpush.msra.mxu0 %v446
      %690 = vmatpush.msra.mxu0 %v445
      %691 = vmatpush.msra.mxu0 %v444
      %692 = vmatpush.msra.mxu0 %v443
      %693 = vmatpush.msra.mxu0 %v442
      %694 = vmatpush.msra.mxu0 %v441
      %695 = vmatpush.msra.mxu0 %v440
      %696 = vmatpush.msra.mxu0 %v439
      %697 = vmatpush.msra.mxu0 %v438
      %698 = vmatpush.msra.mxu0 %v437
      %699 = vmatpush.msra.mxu0 %v436
      %700 = vmatpush.msra.mxu0 %v435
      %701 = vmatpush.msra.mxu0 %v434
      %702 = vmatpush.msra.mxu0 %v433
      %703 = vmatpush.msra.mxu0 %v432
      %704 = vmatpush.msra.mxu0 %v431
      %705 = vmatmul.f32.gmra.mxu0 %v273
      %v706 = vpop.f32.mrf.mxu0
      %v707 = vadd.f32 %v594, %v706
      %708 = vmatmul.f32.gmra.mxu0 %v277
      %v709 = vpop.f32.mrf.mxu0
      %v710 = vadd.f32 %v597, %v709
      %711 = vmatmul.f32.gmra.mxu0 %v281
      %v712 = vpop.f32.mrf.mxu0
      %v713 = vadd.f32 %v600, %v712
      %714 = vmatmul.f32.gmra.mxu0 %v285
      %v715 = vpop.f32.mrf.mxu0
      %v716 = vadd.f32 %v603, %v715
      %717 = vmatmul.f32.gmra.mxu0 %v289
      %v718 = vpop.f32.mrf.mxu0
      %v719 = vadd.f32 %v606, %v718
      %720 = vmatmul.f32.gmra.mxu0 %v293
      %v721 = vpop.f32.mrf.mxu0
      %v722 = vadd.f32 %v609, %v721
      %723 = vmatmul.f32.gmra.mxu0 %v297
      %v724 = vpop.f32.mrf.mxu0
      %v725 = vadd.f32 %v612, %v724
      %726 = vmatmul.f32.gmra.mxu0 %v301
      %v727 = vpop.f32.mrf.mxu0
      %v728 = vadd.f32 %v615, %v727
      %729 = vmatmul.f32.gmra.mxu0 %v305
      %v730 = vpop.f32.mrf.mxu0
      %v731 = vadd.f32 %v618, %v730
      %732 = vmatmul.f32.gmra.mxu0 %v309
      %v733 = vpop.f32.mrf.mxu0
      %v734 = vadd.f32 %v621, %v733
      %735 = vmatmul.f32.gmra.mxu0 %v313
      %v736 = vpop.f32.mrf.mxu0
      %v737 = vadd.f32 %v624, %v736
      %738 = vmatmul.f32.gmra.mxu0 %v317
      %v739 = vpop.f32.mrf.mxu0
      %v740 = vadd.f32 %v627, %v739
      %741 = vmatmul.f32.gmra.mxu0 %v321
      %v742 = vpop.f32.mrf.mxu0
      %v743 = vadd.f32 %v630, %v742
      %744 = vmatmul.f32.gmra.mxu0 %v325
      %v745 = vpop.f32.mrf.mxu0
      %v746 = vadd.f32 %v633, %v745
      %747 = vmatmul.f32.gmra.mxu0 %v329
      %v748 = vpop.f32.mrf.mxu0
      %v749 = vadd.f32 %v636, %v748
      %750 = vmatmul.f32.gmra.mxu0 %v333
      %v751 = vpop.f32.mrf.mxu0
      %v752 = vadd.f32 %v639, %v751
      %753 = vmatmul.f32.gmra.mxu0 %v337
      %v754 = vpop.f32.mrf.mxu0
      %v755 = vadd.f32 %v642, %v754
      %756 = vmatmul.f32.gmra.mxu0 %v341
      %v757 = vpop.f32.mrf.mxu0
      %v758 = vadd.f32 %v645, %v757
      %759 = vmatmul.f32.gmra.mxu0 %v345
      %v760 = vpop.f32.mrf.mxu0
      %v761 = vadd.f32 %v648, %v760
      %762 = vmatmul.f32.gmra.mxu0 %v349
      %v763 = vpop.f32.mrf.mxu0
      %v764 = vadd.f32 %v651, %v763
      %765 = vmatmul.f32.gmra.mxu0 %v353
      %v766 = vpop.f32.mrf.mxu0
      %v767 = vadd.f32 %v654, %v766
      %768 = vmatmul.f32.gmra.mxu0 %v357
      %v769 = vpop.f32.mrf.mxu0
      %v770 = vadd.f32 %v657, %v769
      %771 = vmatmul.f32.gmra.mxu0 %v361
      %v772 = vpop.f32.mrf.mxu0
      %v773 = vadd.f32 %v660, %v772
      %774 = vmatmul.f32.gmra.mxu0 %v365
      %v775 = vpop.f32.mrf.mxu0
      %v776 = vadd.f32 %v663, %v775
      %777 = vmatmul.f32.gmra.mxu0 %v369
      %v778 = vpop.f32.mrf.mxu0
      %v779 = vadd.f32 %v666, %v778
      %780 = vmatmul.f32.gmra.mxu0 %v373
      %v781 = vpop.f32.mrf.mxu0
      %v782 = vadd.f32 %v669, %v781
      %783 = vmatmul.f32.gmra.mxu0 %v377
      %v784 = vpop.f32.mrf.mxu0
      %v785 = vadd.f32 %v672, %v784
      %786 = vmatmul.f32.gmra.mxu0 %v381
      %v787 = vpop.f32.mrf.mxu0
      %v788 = vadd.f32 %v675, %v787
      %789 = vmatmul.f32.gmra.mxu0 %v385
      %v790 = vpop.f32.mrf.mxu0
      %v791 = vadd.f32 %v678, %v790
      %792 = vmatmul.f32.gmra.mxu0 %v389
      %v793 = vpop.f32.mrf.mxu0
      %v794 = vadd.f32 %v681, %v793
      %795 = vmatmul.f32.gmra.mxu0 %v393
      %v796 = vpop.f32.mrf.mxu0
      %v797 = vadd.f32 %v684, %v796
      %798 = vmatmul.f32.gmra.mxu0 %v397
      %v799 = vpop.f32.mrf.mxu0
      %v800 = vadd.f32 %v687, %v799
      %801 = vdwg.mxu0
      %802 = vmatpush.msra.mxu0 %v462
      %803 = vmatpush.msra.mxu0 %v461
      %804 = vmatpush.msra.mxu0 %v460
      %805 = vmatpush.msra.mxu0 %v459
      %806 = vmatpush.msra.mxu0 %v458
      %807 = vmatpush.msra.mxu0 %v457
      %808 = vmatpush.msra.mxu0 %v456
      %809 = vmatpush.msra.mxu0 %v455
      %810 = vmatpush.msra.mxu0 %v454
      %811 = vmatpush.msra.mxu0 %v453
      %812 = vmatpush.msra.mxu0 %v452
      %813 = vmatpush.msra.mxu0 %v451
      %814 = vmatpush.msra.mxu0 %v450
      %815 = vmatpush.msra.mxu0 %v449
      %816 = vmatpush.msra.mxu0 %v448
      %817 = vmatpush.msra.mxu0 %v447
      %818 = vmatmul.f32.gmra.mxu0 %v274
      %v819 = vpop.f32.mrf.mxu0
      %v820 = vadd.f32 %v707, %v819
      %821 = vmatmul.f32.gmra.mxu0 %v278
      %v822 = vpop.f32.mrf.mxu0
      %v823 = vadd.f32 %v710, %v822
      %824 = vmatmul.f32.gmra.mxu0 %v282
      %v825 = vpop.f32.mrf.mxu0
      %v826 = vadd.f32 %v713, %v825
      %827 = vmatmul.f32.gmra.mxu0 %v286
      %v828 = vpop.f32.mrf.mxu0
      %v829 = vadd.f32 %v716, %v828
      %830 = vmatmul.f32.gmra.mxu0 %v290
      %v831 = vpop.f32.mrf.mxu0
      %v832 = vadd.f32 %v719, %v831
      %833 = vmatmul.f32.gmra.mxu0 %v294
      %v834 = vpop.f32.mrf.mxu0
      %v835 = vadd.f32 %v722, %v834
      %836 = vmatmul.f32.gmra.mxu0 %v298
      %v837 = vpop.f32.mrf.mxu0
      %v838 = vadd.f32 %v725, %v837
      %839 = vmatmul.f32.gmra.mxu0 %v302
      %v840 = vpop.f32.mrf.mxu0
      %v841 = vadd.f32 %v728, %v840
      %842 = vmatmul.f32.gmra.mxu0 %v306
      %v843 = vpop.f32.mrf.mxu0
      %v844 = vadd.f32 %v731, %v843
      %845 = vmatmul.f32.gmra.mxu0 %v310
      %v846 = vpop.f32.mrf.mxu0
      %v847 = vadd.f32 %v734, %v846
      %848 = vmatmul.f32.gmra.mxu0 %v314
      %v849 = vpop.f32.mrf.mxu0
      %v850 = vadd.f32 %v737, %v849
      %851 = vmatmul.f32.gmra.mxu0 %v318
      %v852 = vpop.f32.mrf.mxu0
      %v853 = vadd.f32 %v740, %v852
      %854 = vmatmul.f32.gmra.mxu0 %v322
      %v855 = vpop.f32.mrf.mxu0
      %v856 = vadd.f32 %v743, %v855
      %857 = vmatmul.f32.gmra.mxu0 %v326
      %v858 = vpop.f32.mrf.mxu0
      %v859 = vadd.f32 %v746, %v858
      %860 = vmatmul.f32.gmra.mxu0 %v330
      %v861 = vpop.f32.mrf.mxu0
      %v862 = vadd.f32 %v749, %v861
      %863 = vmatmul.f32.gmra.mxu0 %v334
      %v864 = vpop.f32.mrf.mxu0
      %v865 = vadd.f32 %v752, %v864
      %866 = vmatmul.f32.gmra.mxu0 %v338
      %v867 = vpop.f32.mrf.mxu0
      %v868 = vadd.f32 %v755, %v867
      %869 = vmatmul.f32.gmra.mxu0 %v342
      %v870 = vpop.f32.mrf.mxu0
      %v871 = vadd.f32 %v758, %v870
      %872 = vmatmul.f32.gmra.mxu0 %v346
      %v873 = vpop.f32.mrf.mxu0
      %v874 = vadd.f32 %v761, %v873
      %875 = vmatmul.f32.gmra.mxu0 %v350
      %v876 = vpop.f32.mrf.mxu0
      %v877 = vadd.f32 %v764, %v876
      %878 = vmatmul.f32.gmra.mxu0 %v354
      %v879 = vpop.f32.mrf.mxu0
      %v880 = vadd.f32 %v767, %v879
      %881 = vmatmul.f32.gmra.mxu0 %v358
      %v882 = vpop.f32.mrf.mxu0
      %v883 = vadd.f32 %v770, %v882
      %884 = vmatmul.f32.gmra.mxu0 %v362
      %v885 = vpop.f32.mrf.mxu0
      %v886 = vadd.f32 %v773, %v885
      %887 = vmatmul.f32.gmra.mxu0 %v366
      %v888 = vpop.f32.mrf.mxu0
      %v889 = vadd.f32 %v776, %v888
      %890 = vmatmul.f32.gmra.mxu0 %v370
      %v891 = vpop.f32.mrf.mxu0
      %v892 = vadd.f32 %v779, %v891
      %893 = vmatmul.f32.gmra.mxu0 %v374
      %v894 = vpop.f32.mrf.mxu0
      %v895 = vadd.f32 %v782, %v894
      %896 = vmatmul.f32.gmra.mxu0 %v378
      %v897 = vpop.f32.mrf.mxu0
      %v898 = vadd.f32 %v785, %v897
      %899 = vmatmul.f32.gmra.mxu0 %v382
      %v900 = vpop.f32.mrf.mxu0
      %v901 = vadd.f32 %v788, %v900
      %902 = vmatmul.f32.gmra.mxu0 %v386
      %v903 = vpop.f32.mrf.mxu0
      %v904 = vadd.f32 %v791, %v903
      %905 = vmatmul.f32.gmra.mxu0 %v390
      %v906 = vpop.f32.mrf.mxu0
      %v907 = vadd.f32 %v794, %v906
      %908 = vmatmul.f32.gmra.mxu0 %v394
      %v909 = vpop.f32.mrf.mxu0
      %v910 = vadd.f32 %v797, %v909
      %911 = vmatmul.f32.gmra.mxu0 %v398
      %v912 = vpop.f32.mrf.mxu0
      %v913 = vadd.f32 %v800, %v912
      %914 = vdwg.mxu0
      %915 = vst [vmem:[%s269] sm:$0xff] %v820
      %916 = vst [vmem:[%s269 + $0x8] sm:$0xff] %v823
      %917 = vst [vmem:[%s269 + $0x10] sm:$0xff] %v826
      %918 = vst [vmem:[%s269 + $0x18] sm:$0xff] %v829
      %919 = vst [vmem:[%s269 + $0x20] sm:$0xff] %v832
      %920 = vst [vmem:[%s269 + $0x28] sm:$0xff] %v835
      %921 = vst [vmem:[%s269 + $0x30] sm:$0xff] %v838
      %922 = vst [vmem:[%s269 + $0x38] sm:$0xff] %v841
      %923 = vst [vmem:[%s269 + $0x40] sm:$0xff] %v844
      %924 = vst [vmem:[%s269 + $0x48] sm:$0xff] %v847
      %925 = vst [vmem:[%s269 + $0x50] sm:$0xff] %v850
      %926 = vst [vmem:[%s269 + $0x58] sm:$0xff] %v853
      %927 = vst [vmem:[%s269 + $0x60] sm:$0xff] %v856
      %928 = vst [vmem:[%s269 + $0x68] sm:$0xff] %v859
      %929 = vst [vmem:[%s269 + $0x70] sm:$0xff] %v862
      %930 = vst [vmem:[%s269 + $0x78] sm:$0xff] %v865
      %931 = vst [vmem:[%s269 + $0x80] sm:$0xff] %v868
      %932 = vst [vmem:[%s269 + $0x88] sm:$0xff] %v871
      %933 = vst [vmem:[%s269 + $0x90] sm:$0xff] %v874
      %934 = vst [vmem:[%s269 + $0x98] sm:$0xff] %v877
      %935 = vst [vmem:[%s269 + $0xa0] sm:$0xff] %v880
      %936 = vst [vmem:[%s269 + $0xa8] sm:$0xff] %v883
      %937 = vst [vmem:[%s269 + $0xb0] sm:$0xff] %v886
      %938 = vst [vmem:[%s269 + $0xb8] sm:$0xff] %v889
      %939 = vst [vmem:[%s269 + $0xc0] sm:$0xff] %v892
      %940 = vst [vmem:[%s269 + $0xc8] sm:$0xff] %v895
      %941 = vst [vmem:[%s269 + $0xd0] sm:$0xff] %v898
      %942 = vst [vmem:[%s269 + $0xd8] sm:$0xff] %v901
      %943 = vst [vmem:[%s269 + $0xe0] sm:$0xff] %v904
      %944 = vst [vmem:[%s269 + $0xe8] sm:$0xff] %v907
      %945 = vst [vmem:[%s269 + $0xf0] sm:$0xff] %v910
      %946 = vst [vmem:[%s269 + $0xf8] sm:$0xff] %v913
      %s947 = smul.u32 32, %s20
      %p948 = scmp.lt.s32.totalorder %s19, 3
      %s949 = scalar_select %p948, %s19, 3
      %p950 = scmp.lt.s32.totalorder %s947, 63
      %s951 = scalar_select %p950, %s947, 63
      %p952 = scmp.lt.s32.totalorder %s21, 0
      %s953 = scalar_select %p952, %s21, 0
      %s954 = sadd.s32 %s953, %s951
      %s955 = smul.addr %s949, 64
      %s956 = sadd.s32 %s954, %s955
      %s957 = smul.addr %s956, 8
      %s958 = scalar_lea.vmem %s2, %s957
      // Predicated region
      $region29: #{generator_forward.22} parent=27 // pred_check
        %p959 = pneg %p121
      $region30: #{generator_forward.22} parent=27 // pred_check_branch
        %961 = sbr.rel (%p959) target = $region32
      $region31: #{generator_forward.22} parent=27 // pred_region
        %s962 = smul.u32 32, %s20
      $region32: #{generator_forward.22} parent=27 // pred_fallthru
        _
    $region28: #{generator_forward.22} parent=5 // pred_fallthru
      _
    %p963 = scmp.le.s32.totalorder 2, %s8
    // Predicated region
    $region33: #{generator_forward.22} parent=5 // pred_check
      %p964 = pneg %p963
    $region34: #{generator_forward.22} parent=5 // pred_check_branch
      %966 = sbr.rel (%p964) target = $region36
    $region35: #{generator_forward.22} parent=5 // pred_region
      %s967 = ssub.s32 %s8, 2
      // Predicated region
      $region37: #{generator_forward.22} parent=35 // pred_check
        %p968 = pneg %p127
      $region38: #{generator_forward.22} parent=35 // pred_check_branch
        %970 = sbr.rel (%p968) target = $region40
      $region39: #{generator_forward.22} parent=35 // pred_region
        %s971 = smul.u32 32, %s24
        %p972 = scmp.lt.s32.totalorder %s23, 3
        %s973 = scalar_select %p972, %s23, 3
        %p974 = scmp.lt.s32.totalorder %s971, 63
        %s975 = scalar_select %p974, %s971, 63
        %p976 = scmp.lt.s32.totalorder %s25, 0
        %s977 = scalar_select %p976, %s25, 0
        %s978 = sadd.s32 %s977, %s975
        %s979 = smul.addr %s973, 64
        %s980 = sadd.s32 %s978, %s979
        %s981 = smul.addr %s980, 8
        %s982 = scalar_lea.vmem %s2, %s981
      $region40: #{generator_forward.22} parent=35 // pred_fallthru
        _
    $region36: #{generator_forward.22} parent=5 // pred_fallthru
      _
  $region6: #{generator_forward.22} parent=0 // loop_footer
    %s12 = sadd.s32 1, %s8
  $region7: #{generator_forward.22} parent=0 // loop_footer_branch
    %7 = sbr.rel target = $region3
  $region8: #{generator_forward.22} parent=0 // loop_exit
    _

// kernel: generator_forward.23
$region0: #{generator_forward.23}
  #allocation0 [shape = 'u32[]', space=smem, size = 0x4, offset = 0x4, fixed_abs, tag = 'smem constant byte address 0x4 - core index']
  #allocation1 [shape = 'u32[72,128]{1,0:T(1,128)}', space=vmem, size = 0x9000, scoped, tag = 'internal scratch']
  %s0 = inlined_call_operand.vmem [shape: f32[1024,128], index: 0, kind: input, shape index: {}]
  %s1 = inlined_call_operand.vmem [shape: f32[1,128], index: 1, kind: output, shape index: {0}]
  %s2 = inlined_call_operand.vmem [shape: f32[1,128], index: 2, kind: output, shape index: {1}]
  %3 = xla_tuple %s1, %s2
  %s4 = sld [smem:[#allocation0]]
  $region49: #{generator_forward.23} parent=0
    _
  %s6 = ssub.s32 1, %s4
  %s7 = scalar_select 0, %s6, %s4
  loop: start=0, step=1, limit=4
  $region2: #{generator_forward.23} parent=0 // loop_pre_header
    _
  $region3: #{generator_forward.23} parent=0 // loop_header
    %s9 = sphi 0, %s13
    %p10 = scmp.ge.s32.totalorder %s9, 4
    %s19 = sphi 0, %s21
    %s22 = sphi 0, %s19
    %s23 = sphi 0, %s22
    %s39 = sphi 0, %s23
    %s43 = sphi 0, %s43
    %s45 = sphi 0, %s43
    %s46 = sphi 0, %s45
    %s60 = sphi 0, %s46
    %s64 = sphi 0, %s64
    %s66 = sphi 0, %s64
    %s67 = sphi 0, %s66
    %s81 = sphi 0, %s67
  $region4: #{generator_forward.23} parent=0 // loop_header_branch
    %12 = sbr.rel (%p10) target = $region8
  $region5: #{generator_forward.23} parent=0 // loop_body
    %s14 = ssub.s32 %s9, 1
    %s15 = ssub.s32 %s9, 2
    %s16 = sadd.s32 %s9, 1
    %s17 = ssub.s32 %s9, %s16
    %p18 = scmp.eq.s32.totalorder %s17, 0
    %s20 = sadd.s32 %s19, 1
    %s21 = scalar_select %p18, %s19, %s20
    %p24 = pneg %p18
    %p25 = scmp.eq.s32.totalorder %s9, 1
    %p26 = por %p24, %p25
    %p27 = scmp.ne.s32.totalorder %s19, %s22
    %p28 = scmp.eq.s32.totalorder %s9, 0
    %p29 = por %p27, %p28
    %p30 = scmp.ne.s32.totalorder %s19, %s22
    %p31 = scmp.eq.s32.totalorder %s14, 1
    %p32 = por %p30, %p31
    %p33 = scmp.ne.s32.totalorder %s22, %s23
    %p34 = scmp.eq.s32.totalorder %s14, 0
    %p35 = por %p33, %p34
    %p36 = scmp.ne.s32.totalorder %s22, %s23
    %p37 = scmp.eq.s32.totalorder %s15, 1
    %p38 = por %p36, %p37
    %p40 = scmp.ne.s32.totalorder %s23, %s39
    %p41 = scmp.eq.s32.totalorder %s15, 0
    %p42 = por %p40, %p41
    %s44 = sadd.s32 %s43, 1
    %p47 = scmp.eq.s32.totalorder %s9, 1
    %p48 = scmp.ne.s32.totalorder %s43, %s45
    %p49 = scmp.eq.s32.totalorder %s9, 0
    %p50 = por %p48, %p49
    %p51 = scmp.ne.s32.totalorder %s43, %s45
    %p52 = scmp.eq.s32.totalorder %s14, 1
    %p53 = por %p51, %p52
    %p54 = scmp.ne.s32.totalorder %s45, %s46
    %p55 = scmp.eq.s32.totalorder %s14, 0
    %p56 = por %p54, %p55
    %p57 = scmp.ne.s32.totalorder %s45, %s46
    %p58 = scmp.eq.s32.totalorder %s15, 1
    %p59 = por %p57, %p58
    %p61 = scmp.ne.s32.totalorder %s46, %s60
    %p62 = scmp.eq.s32.totalorder %s15, 0
    %p63 = por %p61, %p62
    %s65 = sadd.s32 %s64, 1
    %p68 = scmp.eq.s32.totalorder %s9, 1
    %p69 = scmp.ne.s32.totalorder %s64, %s66
    %p70 = scmp.eq.s32.totalorder %s9, 0
    %p71 = por %p69, %p70
    %p72 = scmp.ne.s32.totalorder %s64, %s66
    %p73 = scmp.eq.s32.totalorder %s14, 1
    %p74 = por %p72, %p73
    %p75 = scmp.ne.s32.totalorder %s66, %s67
    %p76 = scmp.eq.s32.totalorder %s14, 0
    %p77 = por %p75, %p76
    %p78 = scmp.ne.s32.totalorder %s66, %s67
    %p79 = scmp.eq.s32.totalorder %s15, 1
    %p80 = por %p78, %p79
    %p82 = scmp.ne.s32.totalorder %s67, %s81
    %p83 = scmp.eq.s32.totalorder %s15, 0
    %p84 = por %p82, %p83
    %p85 = scmp.le.s32.totalorder 1, %s9
    %p86 = scmp.lt.s32.totalorder %s9, 3
    %p87 = pnand %p85, %p86
    %p88 = pneg %p87
    // Predicated region
    $region9: #{generator_forward.23} parent=5 // pred_check
      _
    $region10: #{generator_forward.23} parent=5 // pred_check_branch
      %90 = sbr.rel (%p87) target = $region12
    $region11: #{generator_forward.23} parent=5 // pred_region
      %s91 = ssub.s32 %s9, 1
    $region12: #{generator_forward.23} parent=5 // pred_fallthru
      _
    %p92 = scmp.lt.s32.totalorder %s9, 2
    // Predicated region
    $region13: #{generator_forward.23} parent=5 // pred_check
      %p93 = pneg %p92
    $region14: #{generator_forward.23} parent=5 // pred_check_branch
      %95 = sbr.rel (%p93) target = $region16
    $region15: #{generator_forward.23} parent=5 // pred_region
      // Predicated region
      $region17: #{generator_forward.23} parent=15 // pred_check
        %p96 = pneg %p29
      $region18: #{generator_forward.23} parent=15 // pred_check_branch
        %98 = sbr.rel (%p96) target = $region20
      $region19: #{generator_forward.23} parent=15 // pred_region
        %s99 = smul.u32 64, %s9
        %p100 = scmp.lt.s32.totalorder %s99, 127
        %s101 = scalar_select %p100, %s99, 127
        %s102 = smul.addr %s101, 8
        %s103 = scalar_lea.vmem %s0, %s102
        %s104 = smul.u32 64, %s9
      $region20: #{generator_forward.23} parent=15 // pred_fallthru
        _
    $region16: #{generator_forward.23} parent=5 // pred_fallthru
      _
    %p105 = scmp.le.s32.totalorder 1, %s9
    %p106 = scmp.lt.s32.totalorder %s9, 3
    %p107 = pnand %p105, %p106
    %p108 = pneg %p107
    // Predicated region
    $region21: #{generator_forward.23} parent=5 // pred_check
      _
    $region22: #{generator_forward.23} parent=5 // pred_check_branch
      %110 = sbr.rel (%p107) target = $region24
    $region23: #{generator_forward.23} parent=5 // pred_region
      %s111 = ssub.s32 %s9, 1
      %s112 = smul.u32 64, %s14
      %p113 = scmp.lt.s32.totalorder %s112, 127
      %s114 = scalar_select %p113, %s112, 127
      %s115 = smul.addr %s114, 8
      %s116 = scalar_lea.vmem %s0, %s115
      %p117 = pneg %p35
      %p118 = pneg %p32
      %p119 = pneg %p56
      %p120 = pneg %p53
      %p121 = pneg %p77
      %p122 = pneg %p74
      %s123 = smul.u32 64, %s14
      %p124 = scmp.lt.s32.totalorder %s123, 127
      %s125 = scalar_select %p124, %s123, 127
      %s126 = smul.addr %s125, 8
      %s127 = scalar_lea.vmem %s0, %s126
      %s128 = smul.u32 64, %s14
      %p129 = scmp.eq.s32.totalorder %s14, 0
      // Predicated region
      $region25: #{generator_forward.23} parent=23 // pred_check
        %p130 = pneg %p129
      $region26: #{generator_forward.23} parent=23 // pred_check_branch
        %132 = sbr.rel (%p130) target = $region28
      $region27: #{generator_forward.23} parent=23 // pred_region
        %133 = vst [vmem:[%s1] sm:$0x1] 0.0
        %134 = vst [vmem:[%s2] sm:$0x1] 0.0
      $region28: #{generator_forward.23} parent=23 // pred_fallthru
        _
      %v135 = vld [vmem:[%s127] sm:$0xff]
      %v136 = vld [vmem:[%s127 + $0x8] sm:$0xff]
      %v137 = vld [vmem:[%s127 + $0x10] sm:$0xff]
      %v138 = vld [vmem:[%s127 + $0x18] sm:$0xff]
      %v139 = vld [vmem:[%s127 + $0x20] sm:$0xff]
      %v140 = vld [vmem:[%s127 + $0x28] sm:$0xff]
      %v141 = vld [vmem:[%s127 + $0x30] sm:$0xff]
      %v142 = vld [vmem:[%s127 + $0x38] sm:$0xff]
      %v143 = vld [vmem:[%s127 + $0x40] sm:$0xff]
      %v144 = vld [vmem:[%s127 + $0x48] sm:$0xff]
      %v145 = vld [vmem:[%s127 + $0x50] sm:$0xff]
      %v146 = vld [vmem:[%s127 + $0x58] sm:$0xff]
      %v147 = vld [vmem:[%s127 + $0x60] sm:$0xff]
      %v148 = vld [vmem:[%s127 + $0x68] sm:$0xff]
      %v149 = vld [vmem:[%s127 + $0x70] sm:$0xff]
      %v150 = vld [vmem:[%s127 + $0x78] sm:$0xff]
      %v151 = vld [vmem:[%s127 + $0x80] sm:$0xff]
      %v152 = vld [vmem:[%s127 + $0x88] sm:$0xff]
      %v153 = vld [vmem:[%s127 + $0x90] sm:$0xff]
      %v154 = vld [vmem:[%s127 + $0x98] sm:$0xff]
      %v155 = vld [vmem:[%s127 + $0xa0] sm:$0xff]
      %v156 = vld [vmem:[%s127 + $0xa8] sm:$0xff]
      %v157 = vld [vmem:[%s127 + $0xb0] sm:$0xff]
      %v158 = vld [vmem:[%s127 + $0xb8] sm:$0xff]
      %v159 = vld [vmem:[%s127 + $0xc0] sm:$0xff]
      %v160 = vld [vmem:[%s127 + $0xc8] sm:$0xff]
      %v161 = vld [vmem:[%s127 + $0xd0] sm:$0xff]
      %v162 = vld [vmem:[%s127 + $0xd8] sm:$0xff]
      %v163 = vld [vmem:[%s127 + $0xe0] sm:$0xff]
      %v164 = vld [vmem:[%s127 + $0xe8] sm:$0xff]
      %v165 = vld [vmem:[%s127 + $0xf0] sm:$0xff]
      %v166 = vld [vmem:[%s127 + $0xf8] sm:$0xff]
      %v167 = vld [vmem:[%s127 + $0x100] sm:$0xff]
      %v168 = vld [vmem:[%s127 + $0x108] sm:$0xff]
      %v169 = vld [vmem:[%s127 + $0x110] sm:$0xff]
      %v170 = vld [vmem:[%s127 + $0x118] sm:$0xff]
      %v171 = vld [vmem:[%s127 + $0x120] sm:$0xff]
      %v172 = vld [vmem:[%s127 + $0x128] sm:$0xff]
      %v173 = vld [vmem:[%s127 + $0x130] sm:$0xff]
      %v174 = vld [vmem:[%s127 + $0x138] sm:$0xff]
      %v175 = vld [vmem:[%s127 + $0x140] sm:$0xff]
      %v176 = vld [vmem:[%s127 + $0x148] sm:$0xff]
      %v177 = vld [vmem:[%s127 + $0x150] sm:$0xff]
      %v178 = vld [vmem:[%s127 + $0x158] sm:$0xff]
      %v179 = vld [vmem:[%s127 + $0x160] sm:$0xff]
      %v180 = vld [vmem:[%s127 + $0x168] sm:$0xff]
      %v181 = vld [vmem:[%s127 + $0x170] sm:$0xff]
      %v182 = vld [vmem:[%s127 + $0x178] sm:$0xff]
      %v183 = vld [vmem:[%s127 + $0x180] sm:$0xff]
      %v184 = vld [vmem:[%s127 + $0x188] sm:$0xff]
      %v185 = vld [vmem:[%s127 + $0x190] sm:$0xff]
      %v186 = vld [vmem:[%s127 + $0x198] sm:$0xff]
      %v187 = vld [vmem:[%s127 + $0x1a0] sm:$0xff]
      %v188 = vld [vmem:[%s127 + $0x1a8] sm:$0xff]
      %v189 = vld [vmem:[%s127 + $0x1b0] sm:$0xff]
      %v190 = vld [vmem:[%s127 + $0x1b8] sm:$0xff]
      %v191 = vld [vmem:[%s127 + $0x1c0] sm:$0xff]
      %v192 = vld [vmem:[%s127 + $0x1c8] sm:$0xff]
      %v193 = vld [vmem:[%s127 + $0x1d0] sm:$0xff]
      %v194 = vld [vmem:[%s127 + $0x1d8] sm:$0xff]
      %v195 = vld [vmem:[%s127 + $0x1e0] sm:$0xff]
      %v196 = vld [vmem:[%s127 + $0x1e8] sm:$0xff]
      %v197 = vld [vmem:[%s127 + $0x1f0] sm:$0xff]
      %v198 = vld [vmem:[%s127 + $0x1f8] sm:$0xff]
      %v199 = vld [vmem:[%s1] sm:$0x1]
      %v200 = vadd.f32 %v135, %v136
      %v201 = vadd.f32 %v200, %v137
      %v202 = vadd.f32 %v201, %v138
      %v203 = vadd.f32 %v202, %v139
      %v204 = vadd.f32 %v203, %v140
      %v205 = vadd.f32 %v204, %v141
      %v206 = vadd.f32 %v205, %v142
      %v207 = vadd.f32 %v206, %v143
      %v208 = vadd.f32 %v207, %v144
      %v209 = vadd.f32 %v208, %v145
      %v210 = vadd.f32 %v209, %v146
      %v211 = vadd.f32 %v210, %v147
      %v212 = vadd.f32 %v211, %v148
      %v213 = vadd.f32 %v212, %v149
      %v214 = vadd.f32 %v213, %v150
      %v215 = vadd.f32 %v214, %v151
      %v216 = vadd.f32 %v215, %v152
      %v217 = vadd.f32 %v216, %v153
      %v218 = vadd.f32 %v217, %v154
      %v219 = vadd.f32 %v218, %v155
      %v220 = vadd.f32 %v219, %v156
      %v221 = vadd.f32 %v220, %v157
      %v222 = vadd.f32 %v221, %v158
      %v223 = vadd.f32 %v222, %v159
      %v224 = vadd.f32 %v223, %v160
      %v225 = vadd.f32 %v224, %v161
      %v226 = vadd.f32 %v225, %v162
      %v227 = vadd.f32 %v226, %v163
      %v228 = vadd.f32 %v227, %v164
      %v229 = vadd.f32 %v228, %v165
      %v230 = vadd.f32 %v229, %v166
      %v231 = vadd.f32 %v230, %v167
      %v232 = vadd.f32 %v231, %v168
      %v233 = vadd.f32 %v232, %v169
      %v234 = vadd.f32 %v233, %v170
      %v235 = vadd.f32 %v234, %v171
      %v236 = vadd.f32 %v235, %v172
      %v237 = vadd.f32 %v236, %v173
      %v238 = vadd.f32 %v237, %v174
      %v239 = vadd.f32 %v238, %v175
      %v240 = vadd.f32 %v239, %v176
      %v241 = vadd.f32 %v240, %v177
      %v242 = vadd.f32 %v241, %v178
      %v243 = vadd.f32 %v242, %v179
      %v244 = vadd.f32 %v243, %v180
      %v245 = vadd.f32 %v244, %v181
      %v246 = vadd.f32 %v245, %v182
      %v247 = vadd.f32 %v246, %v183
      %v248 = vadd.f32 %v247, %v184
      %v249 = vadd.f32 %v248, %v185
      %v250 = vadd.f32 %v249, %v186
      %v251 = vadd.f32 %v250, %v187
      %v252 = vadd.f32 %v251, %v188
      %v253 = vadd.f32 %v252, %v189
      %v254 = vadd.f32 %v253, %v190
      %v255 = vadd.f32 %v254, %v191
      %v256 = vadd.f32 %v255, %v192
      %v257 = vadd.f32 %v256, %v193
      %v258 = vadd.f32 %v257, %v194
      %v259 = vadd.f32 %v258, %v195
      %v260 = vadd.f32 %v259, %v196
      %v261 = vadd.f32 %v260, %v197
      %v262 = vadd.f32 %v261, %v198
      %v263 = vrot.slane %v262, 4
      %v264 = vadd.f32 %v262, %v263
      %v265 = vrot.slane %v264, 2
      %v266 = vadd.f32 %v264, %v265
      %v267 = vrot.slane %v266, 1
      %v268 = vadd.f32 %v266, %v267
      %v269 = vadd.f32 %v199, %v268
      %270 = vst [vmem:[%s1] sm:$0x1] %v269
      %v271 = vld [vmem:[%s2] sm:$0x1]
      %v272 = vmul.f32 %v135, %v135
      %v273 = vmul.f32 %v136, %v136
      %v274 = vmul.f32 %v137, %v137
      %v275 = vmul.f32 %v138, %v138
      %v276 = vmul.f32 %v139, %v139
      %v277 = vmul.f32 %v140, %v140
      %v278 = vmul.f32 %v141, %v141
      %v279 = vmul.f32 %v142, %v142
      %v280 = vmul.f32 %v143, %v143
      %v281 = vmul.f32 %v144, %v144
      %v282 = vmul.f32 %v145, %v145
      %v283 = vmul.f32 %v146, %v146
      %v284 = vmul.f32 %v147, %v147
      %v285 = vmul.f32 %v148, %v148
      %v286 = vmul.f32 %v149, %v149
      %v287 = vmul.f32 %v150, %v150
      %v288 = vmul.f32 %v151, %v151
      %v289 = vmul.f32 %v152, %v152
      %v290 = vmul.f32 %v153, %v153
      %v291 = vmul.f32 %v154, %v154
      %v292 = vmul.f32 %v155, %v155
      %v293 = vmul.f32 %v156, %v156
      %v294 = vmul.f32 %v157, %v157
      %v295 = vmul.f32 %v158, %v158
      %v296 = vmul.f32 %v159, %v159
      %v297 = vmul.f32 %v160, %v160
      %v298 = vmul.f32 %v161, %v161
      %v299 = vmul.f32 %v162, %v162
      %v300 = vmul.f32 %v163, %v163
      %v301 = vmul.f32 %v164, %v164
      %v302 = vmul.f32 %v165, %v165
      %v303 = vmul.f32 %v166, %v166
      %v304 = vmul.f32 %v167, %v167
      %v305 = vmul.f32 %v168, %v168
      %v306 = vmul.f32 %v169, %v169
      %v307 = vmul.f32 %v170, %v170
      %v308 = vmul.f32 %v171, %v171
      %v309 = vmul.f32 %v172, %v172
      %v310 = vmul.f32 %v173, %v173
      %v311 = vmul.f32 %v174, %v174
      %v312 = vmul.f32 %v175, %v175
      %v313 = vmul.f32 %v176, %v176
      %v314 = vmul.f32 %v177, %v177
      %v315 = vmul.f32 %v178, %v178
      %v316 = vmul.f32 %v179, %v179
      %v317 = vmul.f32 %v180, %v180
      %v318 = vmul.f32 %v181, %v181
      %v319 = vmul.f32 %v182, %v182
      %v320 = vmul.f32 %v183, %v183
      %v321 = vmul.f32 %v184, %v184
      %v322 = vmul.f32 %v185, %v185
      %v323 = vmul.f32 %v186, %v186
      %v324 = vmul.f32 %v187, %v187
      %v325 = vmul.f32 %v188, %v188
      %v326 = vmul.f32 %v189, %v189
      %v327 = vmul.f32 %v190, %v190
      %v328 = vmul.f32 %v191, %v191
      %v329 = vmul.f32 %v192, %v192
      %v330 = vmul.f32 %v193, %v193
      %v331 = vmul.f32 %v194, %v194
      %v332 = vmul.f32 %v195, %v195
      %v333 = vmul.f32 %v196, %v196
      %v334 = vmul.f32 %v197, %v197
      %v335 = vmul.f32 %v198, %v198
      %v336 = vadd.f32 %v272, %v273
      %v337 = vadd.f32 %v336, %v274
      %v338 = vadd.f32 %v337, %v275
      %v339 = vadd.f32 %v338, %v276
      %v340 = vadd.f32 %v339, %v277
      %v341 = vadd.f32 %v340, %v278
      %v342 = vadd.f32 %v341, %v279
      %v343 = vadd.f32 %v342, %v280
      %v344 = vadd.f32 %v343, %v281
      %v345 = vadd.f32 %v344, %v282
      %v346 = vadd.f32 %v345, %v283
      %v347 = vadd.f32 %v346, %v284
      %v348 = vadd.f32 %v347, %v285
      %v349 = vadd.f32 %v348, %v286
      %v350 = vadd.f32 %v349, %v287
      %v351 = vadd.f32 %v350, %v288
      %v352 = vadd.f32 %v351, %v289
      %v353 = vadd.f32 %v352, %v290
      %v354 = vadd.f32 %v353, %v291
      %v355 = vadd.f32 %v354, %v292
      %v356 = vadd.f32 %v355, %v293
      %v357 = vadd.f32 %v356, %v294
      %v358 = vadd.f32 %v357, %v295
      %v359 = vadd.f32 %v358, %v296
      %v360 = vadd.f32 %v359, %v297
      %v361 = vadd.f32 %v360, %v298
      %v362 = vadd.f32 %v361, %v299
      %v363 = vadd.f32 %v362, %v300
      %v364 = vadd.f32 %v363, %v301
      %v365 = vadd.f32 %v364, %v302
      %v366 = vadd.f32 %v365, %v303
      %v367 = vadd.f32 %v366, %v304
      %v368 = vadd.f32 %v367, %v305
      %v369 = vadd.f32 %v368, %v306
      %v370 = vadd.f32 %v369, %v307
      %v371 = vadd.f32 %v370, %v308
      %v372 = vadd.f32 %v371, %v309
      %v373 = vadd.f32 %v372, %v310
      %v374 = vadd.f32 %v373, %v311
      %v375 = vadd.f32 %v374, %v312
      %v376 = vadd.f32 %v375, %v313
      %v377 = vadd.f32 %v376, %v314
      %v378 = vadd.f32 %v377, %v315
      %v379 = vadd.f32 %v378, %v316
      %v380 = vadd.f32 %v379, %v317
      %v381 = vadd.f32 %v380, %v318
      %v382 = vadd.f32 %v381, %v319
      %v383 = vadd.f32 %v382, %v320
      %v384 = vadd.f32 %v383, %v321
      %v385 = vadd.f32 %v384, %v322
      %v386 = vadd.f32 %v385, %v323
      %v387 = vadd.f32 %v386, %v324
      %v388 = vadd.f32 %v387, %v325
      %v389 = vadd.f32 %v388, %v326
      %v390 = vadd.f32 %v389, %v327
      %v391 = vadd.f32 %v390, %v328
      %v392 = vadd.f32 %v391, %v329
      %v393 = vadd.f32 %v392, %v330
      %v394 = vadd.f32 %v393, %v331
      %v395 = vadd.f32 %v394, %v332
      %v396 = vadd.f32 %v395, %v333
      %v397 = vadd.f32 %v396, %v334
      %v398 = vadd.f32 %v397, %v335
      %v399 = vrot.slane %v398, 4
      %v400 = vadd.f32 %v398, %v399
      %v401 = vrot.slane %v400, 2
      %v402 = vadd.f32 %v400, %v401
      %v403 = vrot.slane %v402, 1
      %v404 = vadd.f32 %v402, %v403
      %v405 = vadd.f32 %v271, %v404
      %406 = vst [vmem:[%s2] sm:$0x1] %v405
      // Predicated region
      $region29: #{generator_forward.23} parent=23 // pred_check
        %p407 = pneg %p53
      $region30: #{generator_forward.23} parent=23 // pred_check_branch
        %409 = sbr.rel (%p407) target = $region32
      $region31: #{generator_forward.23} parent=23 // pred_region
        _
      $region32: #{generator_forward.23} parent=23 // pred_fallthru
        _
      // Predicated region
      $region33: #{generator_forward.23} parent=23 // pred_check
        %p410 = pneg %p74
      $region34: #{generator_forward.23} parent=23 // pred_check_branch
        %412 = sbr.rel (%p410) target = $region36
      $region35: #{generator_forward.23} parent=23 // pred_region
        _
      $region36: #{generator_forward.23} parent=23 // pred_fallthru
        _
      // Predicated region
      $region37: #{generator_forward.23} parent=23 // pred_check
        %p413 = pneg %p53
      $region38: #{generator_forward.23} parent=23 // pred_check_branch
        %415 = sbr.rel (%p413) target = $region40
      $region39: #{generator_forward.23} parent=23 // pred_region
        _
      $region40: #{generator_forward.23} parent=23 // pred_fallthru
        _
      // Predicated region
      $region41: #{generator_forward.23} parent=23 // pred_check
        %p416 = pneg %p74
      $region42: #{generator_forward.23} parent=23 // pred_check_branch
        %418 = sbr.rel (%p416) target = $region44
      $region43: #{generator_forward.23} parent=23 // pred_region
        _
      $region44: #{generator_forward.23} parent=23 // pred_fallthru
        _
    $region24: #{generator_forward.23} parent=5 // pred_fallthru
      _
    %p419 = scmp.le.s32.totalorder 2, %s9
    // Predicated region
    $region45: #{generator_forward.23} parent=5 // pred_check
      %p420 = pneg %p419
    $region46: #{generator_forward.23} parent=5 // pred_check_branch
      %422 = sbr.rel (%p420) target = $region48
    $region47: #{generator_forward.23} parent=5 // pred_region
      %s423 = ssub.s32 %s9, 2
    $region48: #{generator_forward.23} parent=5 // pred_fallthru
      _
  $region6: #{generator_forward.23} parent=0 // loop_footer
    %s13 = sadd.s32 1, %s9
  $region7: #{generator_forward.23} parent=0 // loop_footer_branch
    %8 = sbr.rel target = $region3
  $region8: #{generator_forward.23} parent=0 // loop_exit
    _

// kernel: squeeze.4
$region0: #{squeeze.4}
  %s0 = inlined_call_operand.vmem [shape: f32[128], index: 0, kind: input, shape index: {}]
  %s1 = inlined_call_operand.vmem [shape: f32[2,64], index: 1, kind: output, shape index: {}]
  $region1: #{squeeze.4} parent=0
    #allocation0 [shape = 'u8[4096]{0}', space=vmem, size = 0x1000, scoped, tag = 'scoped mem for output reshape']
    #allocation1 [shape = 'u8[4096]{0}', space=vmem, size = 0x1000, scoped, tag = 'scoped mem for input reshape']
    %s3 = ssub.s32 2, 1
    %v4 = vld [vmem:[%s0] sm:%s3]
    %5 = vst [vmem:[#allocation1] sm:%s3] %v4
    %v6 = vld [vmem:[#allocation1] sm:$0x1]
    %vm7 = vcmask 523264
    %8 = vst.msk [vmem:[#allocation0] sm:$0x1] %vm7, %v6
    %v9 = vld [vmem:[#allocation1] sm:$0x1]
    %10 = vrot.lane.b32.xlu0 %v9, 64
    %v11 = vpop.permute.xlu0 %10
    %vm12 = vcmask 523264
    %s13 = scalar_lea.vmem [#allocation0], 1
    %14 = vst.msk [vmem:[%s13] sm:$0x1] %vm12, %v11
    %s16 = ssub.s32 4, 1
    %v17 = vld [vmem:[#allocation0] sm:%s16]
    %s19 = ssub.s32 4, 1
    %20 = vst [vmem:[%s1] sm:%s19] %v17

// kernel: tile.29
$region0: #{tile.29}
  #allocation0 [shape = 's32[1]{0}', space=sflag, size = 0x4, scoped, tag = 'scoped memory for tile.29']
  %s0 = inlined_call_operand.vmem [shape: f32[64], index: 0, kind: input, shape index: {}]
  %s1 = inlined_call_operand.vmem [shape: f32[2,64], index: 1, kind: output, shape index: {}]
  // Predicated region
  $region2: #{tile.29} parent=0 // pred_check
    _
  $region3: #{tile.29} parent=0 // pred_check_branch
    %3 = sbr.rel (0) target = $region5
  $region4: #{tile.29} parent=0 // pred_region
    _
  $region5: #{tile.29} parent=0 // pred_fallthru
    _
  %v4 = vld [vmem:[%s0] ss:$0 sm:$0xff]
  %5 = vst [vmem:[%s1] sm:$0x3] %v4

// kernel: tile.31
$region0: #{tile.31}
  %s0 = inlined_call_operand.vmem [shape: f32[2,64], index: 0, kind: input, shape index: {}]
  %s1 = inlined_call_operand.vmem [shape: f32[1,128], index: 1, kind: output, shape index: {}]
  $region1: #{tile.31} parent=0
    #allocation0 [shape = 'u8[4096]{0}', space=vmem, size = 0x1000, scoped, tag = 'scoped mem for output reshape']
    #allocation1 [shape = 'u8[4096]{0}', space=vmem, size = 0x1000, scoped, tag = 'scoped mem for input reshape']
    %s3 = ssub.s32 4, 1
    %v4 = vld [vmem:[%s0] sm:%s3]
    %5 = vst [vmem:[#allocation1] sm:%s3] %v4
    %v6 = vld [vmem:[#allocation1] sm:$0x1]
    %vm7 = vcmask 523264
    %8 = vst.msk [vmem:[#allocation0] sm:$0x1] %vm7, %v6
    %s9 = scalar_lea.vmem [#allocation1], 1
    %v10 = vld [vmem:[%s9] sm:$0x1]
    %11 = vrot.lane.b32.xlu0 %v10, 64
    %v12 = vpop.permute.xlu0 %11
    %vm13 = vcmask 1048064
    %14 = vst.msk [vmem:[#allocation0] sm:$0x1] %vm13, %v12
    %s16 = ssub.s32 2, 1
    %v17 = vld [vmem:[#allocation0] sm:%s16]
    %s19 = ssub.s32 2, 1
    %20 = vst [vmem:[%s1] sm:%s19] %v17

// kernel: generator_forward.24
$region0: #{generator_forward.24}
  #allocation0 [shape = 'u32[]', space=smem, size = 0x4, offset = 0x4, fixed_abs, tag = 'smem constant byte address 0x4 - core index']
  #allocation1 [shape = 'u32[72,128]{1,0:T(1,128)}', space=vmem, size = 0x9000, scoped, tag = 'internal scratch']
  %s0 = inlined_call_operand.vmem [shape: f32[1024,128], index: 0, kind: input, shape index: {}]
  %s1 = inlined_call_operand.vmem [shape: f32[1,128], index: 1, kind: input, shape index: {}]
  %s2 = inlined_call_operand.vmem [shape: f32[1,128], index: 2, kind: input, shape index: {}]
  %s3 = inlined_call_operand.vmem [shape: f32[1024,128], index: 3, kind: output, shape index: {}]
  %s4 = sld [smem:[#allocation0]]
  $region45: #{generator_forward.24} parent=0
    _
  %s6 = ssub.s32 1, %s4
  %s7 = scalar_select 0, %s6, %s4
  loop: start=0, step=1, limit=4
  $region2: #{generator_forward.24} parent=0 // loop_pre_header
    _
  $region3: #{generator_forward.24} parent=0 // loop_header
    %s9 = sphi 0, %s13
    %p10 = scmp.ge.s32.totalorder %s9, 4
    %s19 = sphi 0, %s21
    %s22 = sphi 0, %s19
    %s23 = sphi 0, %s22
    %s39 = sphi 0, %s23
    %s43 = sphi 0, %s43
    %s45 = sphi 0, %s43
    %s46 = sphi 0, %s45
    %s60 = sphi 0, %s46
    %s64 = sphi 0, %s64
    %s66 = sphi 0, %s64
    %s67 = sphi 0, %s66
    %s81 = sphi 0, %s67
    %s87 = sphi 0, %s89
    %s90 = sphi 0, %s87
    %s91 = sphi 0, %s90
    %s107 = sphi 0, %s91
  $region4: #{generator_forward.24} parent=0 // loop_header_branch
    %12 = sbr.rel (%p10) target = $region8
  $region5: #{generator_forward.24} parent=0 // loop_body
    %s14 = ssub.s32 %s9, 1
    %s15 = ssub.s32 %s9, 2
    %s16 = sadd.s32 %s9, 1
    %s17 = ssub.s32 %s9, %s16
    %p18 = scmp.eq.s32.totalorder %s17, 0
    %s20 = sadd.s32 %s19, 1
    %s21 = scalar_select %p18, %s19, %s20
    %p24 = pneg %p18
    %p25 = scmp.eq.s32.totalorder %s9, 1
    %p26 = por %p24, %p25
    %p27 = scmp.ne.s32.totalorder %s19, %s22
    %p28 = scmp.eq.s32.totalorder %s9, 0
    %p29 = por %p27, %p28
    %p30 = scmp.ne.s32.totalorder %s19, %s22
    %p31 = scmp.eq.s32.totalorder %s14, 1
    %p32 = por %p30, %p31
    %p33 = scmp.ne.s32.totalorder %s22, %s23
    %p34 = scmp.eq.s32.totalorder %s14, 0
    %p35 = por %p33, %p34
    %p36 = scmp.ne.s32.totalorder %s22, %s23
    %p37 = scmp.eq.s32.totalorder %s15, 1
    %p38 = por %p36, %p37
    %p40 = scmp.ne.s32.totalorder %s23, %s39
    %p41 = scmp.eq.s32.totalorder %s15, 0
    %p42 = por %p40, %p41
    %s44 = sadd.s32 %s43, 1
    %p47 = scmp.eq.s32.totalorder %s9, 1
    %p48 = scmp.ne.s32.totalorder %s43, %s45
    %p49 = scmp.eq.s32.totalorder %s9, 0
    %p50 = por %p48, %p49
    %p51 = scmp.ne.s32.totalorder %s43, %s45
    %p52 = scmp.eq.s32.totalorder %s14, 1
    %p53 = por %p51, %p52
    %p54 = scmp.ne.s32.totalorder %s45, %s46
    %p55 = scmp.eq.s32.totalorder %s14, 0
    %p56 = por %p54, %p55
    %p57 = scmp.ne.s32.totalorder %s45, %s46
    %p58 = scmp.eq.s32.totalorder %s15, 1
    %p59 = por %p57, %p58
    %p61 = scmp.ne.s32.totalorder %s46, %s60
    %p62 = scmp.eq.s32.totalorder %s15, 0
    %p63 = por %p61, %p62
    %s65 = sadd.s32 %s64, 1
    %p68 = scmp.eq.s32.totalorder %s9, 1
    %p69 = scmp.ne.s32.totalorder %s64, %s66
    %p70 = scmp.eq.s32.totalorder %s9, 0
    %p71 = por %p69, %p70
    %p72 = scmp.ne.s32.totalorder %s64, %s66
    %p73 = scmp.eq.s32.totalorder %s14, 1
    %p74 = por %p72, %p73
    %p75 = scmp.ne.s32.totalorder %s66, %s67
    %p76 = scmp.eq.s32.totalorder %s14, 0
    %p77 = por %p75, %p76
    %p78 = scmp.ne.s32.totalorder %s66, %s67
    %p79 = scmp.eq.s32.totalorder %s15, 1
    %p80 = por %p78, %p79
    %p82 = scmp.ne.s32.totalorder %s67, %s81
    %p83 = scmp.eq.s32.totalorder %s15, 0
    %p84 = por %p82, %p83
    %s85 = ssub.s32 %s9, %s16
    %p86 = scmp.eq.s32.totalorder %s85, 0
    %s88 = sadd.s32 %s87, 1
    %s89 = scalar_select %p86, %s87, %s88
    %p92 = pneg %p86
    %p93 = scmp.eq.s32.totalorder %s9, 1
    %p94 = por %p92, %p93
    %p95 = scmp.ne.s32.totalorder %s87, %s90
    %p96 = scmp.eq.s32.totalorder %s9, 0
    %p97 = por %p95, %p96
    %p98 = scmp.ne.s32.totalorder %s87, %s90
    %p99 = scmp.eq.s32.totalorder %s14, 1
    %p100 = por %p98, %p99
    %p101 = scmp.ne.s32.totalorder %s90, %s91
    %p102 = scmp.eq.s32.totalorder %s14, 0
    %p103 = por %p101, %p102
    %p104 = scmp.ne.s32.totalorder %s90, %s91
    %p105 = scmp.eq.s32.totalorder %s15, 1
    %p106 = por %p104, %p105
    %p108 = scmp.ne.s32.totalorder %s91, %s107
    %p109 = scmp.eq.s32.totalorder %s15, 0
    %p110 = por %p108, %p109
    %p111 = scmp.le.s32.totalorder 1, %s9
    %p112 = scmp.lt.s32.totalorder %s9, 3
    %p113 = pnand %p111, %p112
    %p114 = pneg %p113
    // Predicated region
    $region9: #{generator_forward.24} parent=5 // pred_check
      _
    $region10: #{generator_forward.24} parent=5 // pred_check_branch
      %116 = sbr.rel (%p113) target = $region12
    $region11: #{generator_forward.24} parent=5 // pred_region
      %s117 = ssub.s32 %s9, 1
      // Predicated region
      $region13: #{generator_forward.24} parent=11 // pred_check
        %p118 = pneg %p56
      $region14: #{generator_forward.24} parent=11 // pred_check_branch
        %120 = sbr.rel (%p118) target = $region16
      $region15: #{generator_forward.24} parent=11 // pred_region
        _
      $region16: #{generator_forward.24} parent=11 // pred_fallthru
        _
      // Predicated region
      $region17: #{generator_forward.24} parent=11 // pred_check
        %p121 = pneg %p77
      $region18: #{generator_forward.24} parent=11 // pred_check_branch
        %123 = sbr.rel (%p121) target = $region20
      $region19: #{generator_forward.24} parent=11 // pred_region
        _
      $region20: #{generator_forward.24} parent=11 // pred_fallthru
        _
    $region12: #{generator_forward.24} parent=5 // pred_fallthru
      _
    %p124 = scmp.lt.s32.totalorder %s9, 2
    // Predicated region
    $region21: #{generator_forward.24} parent=5 // pred_check
      %p125 = pneg %p124
    $region22: #{generator_forward.24} parent=5 // pred_check_branch
      %127 = sbr.rel (%p125) target = $region24
    $region23: #{generator_forward.24} parent=5 // pred_region
      // Predicated region
      $region25: #{generator_forward.24} parent=23 // pred_check
        %p128 = pneg %p29
      $region26: #{generator_forward.24} parent=23 // pred_check_branch
        %130 = sbr.rel (%p128) target = $region28
      $region27: #{generator_forward.24} parent=23 // pred_region
        %s131 = smul.u32 64, %s9
        %p132 = scmp.lt.s32.totalorder %s131, 127
        %s133 = scalar_select %p132, %s131, 127
        %s134 = smul.addr %s133, 8
        %s135 = scalar_lea.vmem %s0, %s134
        %s136 = smul.u32 64, %s9
      $region28: #{generator_forward.24} parent=23 // pred_fallthru
        _
    $region24: #{generator_forward.24} parent=5 // pred_fallthru
      _
    %p137 = scmp.le.s32.totalorder 1, %s9
    %p138 = scmp.lt.s32.totalorder %s9, 3
    %p139 = pnand %p137, %p138
    %p140 = pneg %p139
    // Predicated region
    $region29: #{generator_forward.24} parent=5 // pred_check
      _
    $region30: #{generator_forward.24} parent=5 // pred_check_branch
      %142 = sbr.rel (%p139) target = $region32
    $region31: #{generator_forward.24} parent=5 // pred_region
      %s143 = ssub.s32 %s9, 1
      %s144 = smul.u32 64, %s14
      %p145 = scmp.lt.s32.totalorder %s144, 127
      %s146 = scalar_select %p145, %s144, 127
      %s147 = smul.addr %s146, 8
      %s148 = scalar_lea.vmem %s0, %s147
      %p149 = pneg %p35
      %p150 = pneg %p32
      %p151 = pneg %p56
      %p152 = pneg %p53
      %p153 = pneg %p77
      %p154 = pneg %p74
      %p155 = pneg %p103
      %p156 = pneg %p100
      %s157 = smul.u32 64, %s14
      %p158 = scmp.lt.s32.totalorder %s157, 127
      %s159 = scalar_select %p158, %s157, 127
      %s160 = smul.addr %s159, 8
      %s161 = scalar_lea.vmem %s3, %s160
      %s162 = smul.u32 64, %s14
      %p163 = scmp.lt.s32.totalorder %s162, 127
      %s164 = scalar_select %p163, %s162, 127
      %s165 = smul.addr %s164, 8
      %s166 = scalar_lea.vmem %s0, %s165
      %s167 = smul.u32 64, %s14
      %s168 = smul.u32 64, %s14
      %p169 = scmp.lt.s32.totalorder %s168, 127
      %s170 = scalar_select %p169, %s168, 127
      %s171 = smul.addr %s170, 8
      %s172 = scalar_lea.vmem %s3, %s171
      %s173 = smul.u32 64, %s14
      %v174 = vld [vmem:[%s166] sm:$0xff]
      %v175 = vld [vmem:[%s166 + $0x8] sm:$0xff]
      %v176 = vld [vmem:[%s166 + $0x10] sm:$0xff]
      %v177 = vld [vmem:[%s166 + $0x18] sm:$0xff]
      %v178 = vld [vmem:[%s166 + $0x20] sm:$0xff]
      %v179 = vld [vmem:[%s166 + $0x28] sm:$0xff]
      %v180 = vld [vmem:[%s166 + $0x30] sm:$0xff]
      %v181 = vld [vmem:[%s166 + $0x38] sm:$0xff]
      %v182 = vld [vmem:[%s166 + $0x40] sm:$0xff]
      %v183 = vld [vmem:[%s166 + $0x48] sm:$0xff]
      %v184 = vld [vmem:[%s166 + $0x50] sm:$0xff]
      %v185 = vld [vmem:[%s166 + $0x58] sm:$0xff]
      %v186 = vld [vmem:[%s166 + $0x60] sm:$0xff]
      %v187 = vld [vmem:[%s166 + $0x68] sm:$0xff]
      %v188 = vld [vmem:[%s166 + $0x70] sm:$0xff]
      %v189 = vld [vmem:[%s166 + $0x78] sm:$0xff]
      %v190 = vld [vmem:[%s166 + $0x80] sm:$0xff]
      %v191 = vld [vmem:[%s166 + $0x88] sm:$0xff]
      %v192 = vld [vmem:[%s166 + $0x90] sm:$0xff]
      %v193 = vld [vmem:[%s166 + $0x98] sm:$0xff]
      %v194 = vld [vmem:[%s166 + $0xa0] sm:$0xff]
      %v195 = vld [vmem:[%s166 + $0xa8] sm:$0xff]
      %v196 = vld [vmem:[%s166 + $0xb0] sm:$0xff]
      %v197 = vld [vmem:[%s166 + $0xb8] sm:$0xff]
      %v198 = vld [vmem:[%s166 + $0xc0] sm:$0xff]
      %v199 = vld [vmem:[%s166 + $0xc8] sm:$0xff]
      %v200 = vld [vmem:[%s166 + $0xd0] sm:$0xff]
      %v201 = vld [vmem:[%s166 + $0xd8] sm:$0xff]
      %v202 = vld [vmem:[%s166 + $0xe0] sm:$0xff]
      %v203 = vld [vmem:[%s166 + $0xe8] sm:$0xff]
      %v204 = vld [vmem:[%s166 + $0xf0] sm:$0xff]
      %v205 = vld [vmem:[%s166 + $0xf8] sm:$0xff]
      %v206 = vld [vmem:[%s166 + $0x100] sm:$0xff]
      %v207 = vld [vmem:[%s166 + $0x108] sm:$0xff]
      %v208 = vld [vmem:[%s166 + $0x110] sm:$0xff]
      %v209 = vld [vmem:[%s166 + $0x118] sm:$0xff]
      %v210 = vld [vmem:[%s166 + $0x120] sm:$0xff]
      %v211 = vld [vmem:[%s166 + $0x128] sm:$0xff]
      %v212 = vld [vmem:[%s166 + $0x130] sm:$0xff]
      %v213 = vld [vmem:[%s166 + $0x138] sm:$0xff]
      %v214 = vld [vmem:[%s166 + $0x140] sm:$0xff]
      %v215 = vld [vmem:[%s166 + $0x148] sm:$0xff]
      %v216 = vld [vmem:[%s166 + $0x150] sm:$0xff]
      %v217 = vld [vmem:[%s166 + $0x158] sm:$0xff]
      %v218 = vld [vmem:[%s166 + $0x160] sm:$0xff]
      %v219 = vld [vmem:[%s166 + $0x168] sm:$0xff]
      %v220 = vld [vmem:[%s166 + $0x170] sm:$0xff]
      %v221 = vld [vmem:[%s166 + $0x178] sm:$0xff]
      %v222 = vld [vmem:[%s166 + $0x180] sm:$0xff]
      %v223 = vld [vmem:[%s166 + $0x188] sm:$0xff]
      %v224 = vld [vmem:[%s166 + $0x190] sm:$0xff]
      %v225 = vld [vmem:[%s166 + $0x198] sm:$0xff]
      %v226 = vld [vmem:[%s166 + $0x1a0] sm:$0xff]
      %v227 = vld [vmem:[%s166 + $0x1a8] sm:$0xff]
      %v228 = vld [vmem:[%s166 + $0x1b0] sm:$0xff]
      %v229 = vld [vmem:[%s166 + $0x1b8] sm:$0xff]
      %v230 = vld [vmem:[%s166 + $0x1c0] sm:$0xff]
      %v231 = vld [vmem:[%s166 + $0x1c8] sm:$0xff]
      %v232 = vld [vmem:[%s166 + $0x1d0] sm:$0xff]
      %v233 = vld [vmem:[%s166 + $0x1d8] sm:$0xff]
      %v234 = vld [vmem:[%s166 + $0x1e0] sm:$0xff]
      %v235 = vld [vmem:[%s166 + $0x1e8] sm:$0xff]
      %v236 = vld [vmem:[%s166 + $0x1f0] sm:$0xff]
      %v237 = vld [vmem:[%s166 + $0x1f8] sm:$0xff]
      %v238 = vld [vmem:[%s1] sm:$0x1]
      %v240 = vperm.slane %v238, 0
      %v242 = vmul.f32 %v174, %v240
      %v243 = vmul.f32 %v175, %v240
      %v244 = vmul.f32 %v176, %v240
      %v245 = vmul.f32 %v177, %v240
      %v246 = vmul.f32 %v178, %v240
      %v247 = vmul.f32 %v179, %v240
      %v248 = vmul.f32 %v180, %v240
      %v249 = vmul.f32 %v181, %v240
      %v250 = vmul.f32 %v182, %v240
      %v251 = vmul.f32 %v183, %v240
      %v252 = vmul.f32 %v184, %v240
      %v253 = vmul.f32 %v185, %v240
      %v254 = vmul.f32 %v186, %v240
      %v255 = vmul.f32 %v187, %v240
      %v256 = vmul.f32 %v188, %v240
      %v257 = vmul.f32 %v189, %v240
      %v258 = vmul.f32 %v190, %v240
      %v259 = vmul.f32 %v191, %v240
      %v260 = vmul.f32 %v192, %v240
      %v261 = vmul.f32 %v193, %v240
      %v262 = vmul.f32 %v194, %v240
      %v263 = vmul.f32 %v195, %v240
      %v264 = vmul.f32 %v196, %v240
      %v265 = vmul.f32 %v197, %v240
      %v266 = vmul.f32 %v198, %v240
      %v267 = vmul.f32 %v199, %v240
      %v268 = vmul.f32 %v200, %v240
      %v269 = vmul.f32 %v201, %v240
      %v270 = vmul.f32 %v202, %v240
      %v271 = vmul.f32 %v203, %v240
      %v272 = vmul.f32 %v204, %v240
      %v273 = vmul.f32 %v205, %v240
      %v274 = vmul.f32 %v206, %v240
      %v275 = vmul.f32 %v207, %v240
      %v276 = vmul.f32 %v208, %v240
      %v277 = vmul.f32 %v209, %v240
      %v278 = vmul.f32 %v210, %v240
      %v279 = vmul.f32 %v211, %v240
      %v280 = vmul.f32 %v212, %v240
      %v281 = vmul.f32 %v213, %v240
      %v282 = vmul.f32 %v214, %v240
      %v283 = vmul.f32 %v215, %v240
      %v284 = vmul.f32 %v216, %v240
      %v285 = vmul.f32 %v217, %v240
      %v286 = vmul.f32 %v218, %v240
      %v287 = vmul.f32 %v219, %v240
      %v288 = vmul.f32 %v220, %v240
      %v289 = vmul.f32 %v221, %v240
      %v290 = vmul.f32 %v222, %v240
      %v291 = vmul.f32 %v223, %v240
      %v292 = vmul.f32 %v224, %v240
      %v293 = vmul.f32 %v225, %v240
      %v294 = vmul.f32 %v226, %v240
      %v295 = vmul.f32 %v227, %v240
      %v296 = vmul.f32 %v228, %v240
      %v297 = vmul.f32 %v229, %v240
      %v298 = vmul.f32 %v230, %v240
      %v299 = vmul.f32 %v231, %v240
      %v300 = vmul.f32 %v232, %v240
      %v301 = vmul.f32 %v233, %v240
      %v302 = vmul.f32 %v234, %v240
      %v303 = vmul.f32 %v235, %v240
      %v304 = vmul.f32 %v236, %v240
      %v305 = vmul.f32 %v237, %v240
      %v306 = vld [vmem:[%s2] sm:$0x1]
      %v308 = vperm.slane %v306, 0
      %v310 = vadd.f32 %v242, %v308
      %v311 = vadd.f32 %v243, %v308
      %v312 = vadd.f32 %v244, %v308
      %v313 = vadd.f32 %v245, %v308
      %v314 = vadd.f32 %v246, %v308
      %v315 = vadd.f32 %v247, %v308
      %v316 = vadd.f32 %v248, %v308
      %v317 = vadd.f32 %v249, %v308
      %v318 = vadd.f32 %v250, %v308
      %v319 = vadd.f32 %v251, %v308
      %v320 = vadd.f32 %v252, %v308
      %v321 = vadd.f32 %v253, %v308
      %v322 = vadd.f32 %v254, %v308
      %v323 = vadd.f32 %v255, %v308
      %v324 = vadd.f32 %v256, %v308
      %v325 = vadd.f32 %v257, %v308
      %v326 = vadd.f32 %v258, %v308
      %v327 = vadd.f32 %v259, %v308
      %v328 = vadd.f32 %v260, %v308
      %v329 = vadd.f32 %v261, %v308
      %v330 = vadd.f32 %v262, %v308
      %v331 = vadd.f32 %v263, %v308
      %v332 = vadd.f32 %v264, %v308
      %v333 = vadd.f32 %v265, %v308
      %v334 = vadd.f32 %v266, %v308
      %v335 = vadd.f32 %v267, %v308
      %v336 = vadd.f32 %v268, %v308
      %v337 = vadd.f32 %v269, %v308
      %v338 = vadd.f32 %v270, %v308
      %v339 = vadd.f32 %v271, %v308
      %v340 = vadd.f32 %v272, %v308
      %v341 = vadd.f32 %v273, %v308
      %v342 = vadd.f32 %v274, %v308
      %v343 = vadd.f32 %v275, %v308
      %v344 = vadd.f32 %v276, %v308
      %v345 = vadd.f32 %v277, %v308
      %v346 = vadd.f32 %v278, %v308
      %v347 = vadd.f32 %v279, %v308
      %v348 = vadd.f32 %v280, %v308
      %v349 = vadd.f32 %v281, %v308
      %v350 = vadd.f32 %v282, %v308
      %v351 = vadd.f32 %v283, %v308
      %v352 = vadd.f32 %v284, %v308
      %v353 = vadd.f32 %v285, %v308
      %v354 = vadd.f32 %v286, %v308
      %v355 = vadd.f32 %v287, %v308
      %v356 = vadd.f32 %v288, %v308
      %v357 = vadd.f32 %v289, %v308
      %v358 = vadd.f32 %v290, %v308
      %v359 = vadd.f32 %v291, %v308
      %v360 = vadd.f32 %v292, %v308
      %v361 = vadd.f32 %v293, %v308
      %v362 = vadd.f32 %v294, %v308
      %v363 = vadd.f32 %v295, %v308
      %v364 = vadd.f32 %v296, %v308
      %v365 = vadd.f32 %v297, %v308
      %v366 = vadd.f32 %v298, %v308
      %v367 = vadd.f32 %v299, %v308
      %v368 = vadd.f32 %v300, %v308
      %v369 = vadd.f32 %v301, %v308
      %v370 = vadd.f32 %v302, %v308
      %v371 = vadd.f32 %v303, %v308
      %v372 = vadd.f32 %v304, %v308
      %v373 = vadd.f32 %v305, %v308
      %v374 = vmax.f32 %v310, 0.0
      %v375 = vmax.f32 %v311, 0.0
      %v376 = vmax.f32 %v312, 0.0
      %v377 = vmax.f32 %v313, 0.0
      %v378 = vmax.f32 %v314, 0.0
      %v379 = vmax.f32 %v315, 0.0
      %v380 = vmax.f32 %v316, 0.0
      %v381 = vmax.f32 %v317, 0.0
      %v382 = vmax.f32 %v318, 0.0
      %v383 = vmax.f32 %v319, 0.0
      %v384 = vmax.f32 %v320, 0.0
      %v385 = vmax.f32 %v321, 0.0
      %v386 = vmax.f32 %v322, 0.0
      %v387 = vmax.f32 %v323, 0.0
      %v388 = vmax.f32 %v324, 0.0
      %v389 = vmax.f32 %v325, 0.0
      %v390 = vmax.f32 %v326, 0.0
      %v391 = vmax.f32 %v327, 0.0
      %v392 = vmax.f32 %v328, 0.0
      %v393 = vmax.f32 %v329, 0.0
      %v394 = vmax.f32 %v330, 0.0
      %v395 = vmax.f32 %v331, 0.0
      %v396 = vmax.f32 %v332, 0.0
      %v397 = vmax.f32 %v333, 0.0
      %v398 = vmax.f32 %v334, 0.0
      %v399 = vmax.f32 %v335, 0.0
      %v400 = vmax.f32 %v336, 0.0
      %v401 = vmax.f32 %v337, 0.0
      %v402 = vmax.f32 %v338, 0.0
      %v403 = vmax.f32 %v339, 0.0
      %v404 = vmax.f32 %v340, 0.0
      %v405 = vmax.f32 %v341, 0.0
      %v406 = vmax.f32 %v342, 0.0
      %v407 = vmax.f32 %v343, 0.0
      %v408 = vmax.f32 %v344, 0.0
      %v409 = vmax.f32 %v345, 0.0
      %v410 = vmax.f32 %v346, 0.0
      %v411 = vmax.f32 %v347, 0.0
      %v412 = vmax.f32 %v348, 0.0
      %v413 = vmax.f32 %v349, 0.0
      %v414 = vmax.f32 %v350, 0.0
      %v415 = vmax.f32 %v351, 0.0
      %v416 = vmax.f32 %v352, 0.0
      %v417 = vmax.f32 %v353, 0.0
      %v418 = vmax.f32 %v354, 0.0
      %v419 = vmax.f32 %v355, 0.0
      %v420 = vmax.f32 %v356, 0.0
      %v421 = vmax.f32 %v357, 0.0
      %v422 = vmax.f32 %v358, 0.0
      %v423 = vmax.f32 %v359, 0.0
      %v424 = vmax.f32 %v360, 0.0
      %v425 = vmax.f32 %v361, 0.0
      %v426 = vmax.f32 %v362, 0.0
      %v427 = vmax.f32 %v363, 0.0
      %v428 = vmax.f32 %v364, 0.0
      %v429 = vmax.f32 %v365, 0.0
      %v430 = vmax.f32 %v366, 0.0
      %v431 = vmax.f32 %v367, 0.0
      %v432 = vmax.f32 %v368, 0.0
      %v433 = vmax.f32 %v369, 0.0
      %v434 = vmax.f32 %v370, 0.0
      %v435 = vmax.f32 %v371, 0.0
      %v436 = vmax.f32 %v372, 0.0
      %v437 = vmax.f32 %v373, 0.0
      %438 = vst [vmem:[%s172] sm:$0xff] %v374
      %439 = vst [vmem:[%s172 + $0x8] sm:$0xff] %v375
      %440 = vst [vmem:[%s172 + $0x10] sm:$0xff] %v376
      %441 = vst [vmem:[%s172 + $0x18] sm:$0xff] %v377
      %442 = vst [vmem:[%s172 + $0x20] sm:$0xff] %v378
      %443 = vst [vmem:[%s172 + $0x28] sm:$0xff] %v379
      %444 = vst [vmem:[%s172 + $0x30] sm:$0xff] %v380
      %445 = vst [vmem:[%s172 + $0x38] sm:$0xff] %v381
      %446 = vst [vmem:[%s172 + $0x40] sm:$0xff] %v382
      %447 = vst [vmem:[%s172 + $0x48] sm:$0xff] %v383
      %448 = vst [vmem:[%s172 + $0x50] sm:$0xff] %v384
      %449 = vst [vmem:[%s172 + $0x58] sm:$0xff] %v385
      %450 = vst [vmem:[%s172 + $0x60] sm:$0xff] %v386
      %451 = vst [vmem:[%s172 + $0x68] sm:$0xff] %v387
      %452 = vst [vmem:[%s172 + $0x70] sm:$0xff] %v388
      %453 = vst [vmem:[%s172 + $0x78] sm:$0xff] %v389
      %454 = vst [vmem:[%s172 + $0x80] sm:$0xff] %v390
      %455 = vst [vmem:[%s172 + $0x88] sm:$0xff] %v391
      %456 = vst [vmem:[%s172 + $0x90] sm:$0xff] %v392
      %457 = vst [vmem:[%s172 + $0x98] sm:$0xff] %v393
      %458 = vst [vmem:[%s172 + $0xa0] sm:$0xff] %v394
      %459 = vst [vmem:[%s172 + $0xa8] sm:$0xff] %v395
      %460 = vst [vmem:[%s172 + $0xb0] sm:$0xff] %v396
      %461 = vst [vmem:[%s172 + $0xb8] sm:$0xff] %v397
      %462 = vst [vmem:[%s172 + $0xc0] sm:$0xff] %v398
      %463 = vst [vmem:[%s172 + $0xc8] sm:$0xff] %v399
      %464 = vst [vmem:[%s172 + $0xd0] sm:$0xff] %v400
      %465 = vst [vmem:[%s172 + $0xd8] sm:$0xff] %v401
      %466 = vst [vmem:[%s172 + $0xe0] sm:$0xff] %v402
      %467 = vst [vmem:[%s172 + $0xe8] sm:$0xff] %v403
      %468 = vst [vmem:[%s172 + $0xf0] sm:$0xff] %v404
      %469 = vst [vmem:[%s172 + $0xf8] sm:$0xff] %v405
      %470 = vst [vmem:[%s172 + $0x100] sm:$0xff] %v406
      %471 = vst [vmem:[%s172 + $0x108] sm:$0xff] %v407
      %472 = vst [vmem:[%s172 + $0x110] sm:$0xff] %v408
      %473 = vst [vmem:[%s172 + $0x118] sm:$0xff] %v409
      %474 = vst [vmem:[%s172 + $0x120] sm:$0xff] %v410
      %475 = vst [vmem:[%s172 + $0x128] sm:$0xff] %v411
      %476 = vst [vmem:[%s172 + $0x130] sm:$0xff] %v412
      %477 = vst [vmem:[%s172 + $0x138] sm:$0xff] %v413
      %478 = vst [vmem:[%s172 + $0x140] sm:$0xff] %v414
      %479 = vst [vmem:[%s172 + $0x148] sm:$0xff] %v415
      %480 = vst [vmem:[%s172 + $0x150] sm:$0xff] %v416
      %481 = vst [vmem:[%s172 + $0x158] sm:$0xff] %v417
      %482 = vst [vmem:[%s172 + $0x160] sm:$0xff] %v418
      %483 = vst [vmem:[%s172 + $0x168] sm:$0xff] %v419
      %484 = vst [vmem:[%s172 + $0x170] sm:$0xff] %v420
      %485 = vst [vmem:[%s172 + $0x178] sm:$0xff] %v421
      %486 = vst [vmem:[%s172 + $0x180] sm:$0xff] %v422
      %487 = vst [vmem:[%s172 + $0x188] sm:$0xff] %v423
      %488 = vst [vmem:[%s172 + $0x190] sm:$0xff] %v424
      %489 = vst [vmem:[%s172 + $0x198] sm:$0xff] %v425
      %490 = vst [vmem:[%s172 + $0x1a0] sm:$0xff] %v426
      %491 = vst [vmem:[%s172 + $0x1a8] sm:$0xff] %v427
      %492 = vst [vmem:[%s172 + $0x1b0] sm:$0xff] %v428
      %493 = vst [vmem:[%s172 + $0x1b8] sm:$0xff] %v429
      %494 = vst [vmem:[%s172 + $0x1c0] sm:$0xff] %v430
      %495 = vst [vmem:[%s172 + $0x1c8] sm:$0xff] %v431
      %496 = vst [vmem:[%s172 + $0x1d0] sm:$0xff] %v432
      %497 = vst [vmem:[%s172 + $0x1d8] sm:$0xff] %v433
      %498 = vst [vmem:[%s172 + $0x1e0] sm:$0xff] %v434
      %499 = vst [vmem:[%s172 + $0x1e8] sm:$0xff] %v435
      %500 = vst [vmem:[%s172 + $0x1f0] sm:$0xff] %v436
      %501 = vst [vmem:[%s172 + $0x1f8] sm:$0xff] %v437
      %s502 = smul.u32 64, %s14
      %p503 = scmp.lt.s32.totalorder %s502, 127
      %s504 = scalar_select %p503, %s502, 127
      %s505 = smul.addr %s504, 8
      %s506 = scalar_lea.vmem %s3, %s505
      // Predicated region
      $region33: #{generator_forward.24} parent=31 // pred_check
        %p507 = pneg %p100
      $region34: #{generator_forward.24} parent=31 // pred_check_branch
        %509 = sbr.rel (%p507) target = $region36
      $region35: #{generator_forward.24} parent=31 // pred_region
        %s510 = smul.u32 64, %s14
      $region36: #{generator_forward.24} parent=31 // pred_fallthru
        _
    $region32: #{generator_forward.24} parent=5 // pred_fallthru
      _
    %p511 = scmp.le.s32.totalorder 2, %s9
    // Predicated region
    $region37: #{generator_forward.24} parent=5 // pred_check
      %p512 = pneg %p511
    $region38: #{generator_forward.24} parent=5 // pred_check_branch
      %514 = sbr.rel (%p512) target = $region40
    $region39: #{generator_forward.24} parent=5 // pred_region
      %s515 = ssub.s32 %s9, 2
      // Predicated region
      $region41: #{generator_forward.24} parent=39 // pred_check
        %p516 = pneg %p106
      $region42: #{generator_forward.24} parent=39 // pred_check_branch
        %518 = sbr.rel (%p516) target = $region44
      $region43: #{generator_forward.24} parent=39 // pred_region
        %s519 = smul.u32 64, %s15
        %p520 = scmp.lt.s32.totalorder %s519, 127
        %s521 = scalar_select %p520, %s519, 127
        %s522 = smul.addr %s521, 8
        %s523 = scalar_lea.vmem %s3, %s522
      $region44: #{generator_forward.24} parent=39 // pred_fallthru
        _
    $region40: #{generator_forward.24} parent=5 // pred_fallthru
      _
  $region6: #{generator_forward.24} parent=0 // loop_footer
    %s13 = sadd.s32 1, %s9
  $region7: #{generator_forward.24} parent=0 // loop_footer_branch
    %8 = sbr.rel target = $region3
  $region8: #{generator_forward.24} parent=0 // loop_exit
    _

// kernel: generator_forward.25
$region0: #{generator_forward.25}
  #allocation0 [shape = 'u32[]', space=smem, size = 0x4, offset = 0x4, fixed_abs, tag = 'smem constant byte address 0x4 - core index']
  #allocation1 [shape = 'u32[72,128]{1,0:T(1,128)}', space=vmem, size = 0x9000, scoped, tag = 'internal scratch']
  %s0 = inlined_call_operand.vmem [shape: f32[4,2048,256], index: 0, kind: input, shape index: {}]
  %s1 = inlined_call_operand.vmem [shape: f32[4,256,128], index: 1, kind: input, shape index: {}]
  %s2 = inlined_call_operand.vmem [shape: f32[4,2048,128], index: 2, kind: output, shape index: {}]
  %s3 = sld [smem:[#allocation0]]
  $region41: #{generator_forward.25} parent=0
    _
  %s5 = ssub.s32 1, %s3
  %s6 = scalar_select 0, %s5, %s3
  loop: start=0, step=1, limit=34
  $region2: #{generator_forward.25} parent=0 // loop_pre_header
    _
  $region3: #{generator_forward.25} parent=0 // loop_header
    %s8 = sphi 0, %s12
    %p9 = scmp.ge.s32.totalorder %s8, 34
    %s15 = sphi 0, %s41
    %s16 = sphi 0, %s37
    %s17 = sphi 0, %s33
    %s18 = sphi 0, %s29
    %s19 = sphi 0, %s15
    %s20 = sphi 0, %s16
    %s21 = sphi 0, %s17
    %s22 = sphi 0, %s18
    %s23 = sphi 0, %s19
    %s24 = sphi 0, %s20
    %s25 = sphi 0, %s21
    %s26 = sphi 0, %s22
    %s48 = sphi 0, %s50
    %s51 = sphi 0, %s48
    %s52 = sphi 0, %s51
    %s68 = sphi 0, %s52
    %s78 = sphi 0, %s80
    %s81 = sphi 0, %s78
    %s82 = sphi 0, %s81
    %s98 = sphi 0, %s82
    %s108 = sphi 0, %s110
    %s111 = sphi 0, %s108
    %s112 = sphi 0, %s111
    %s128 = sphi 0, %s112
  $region4: #{generator_forward.25} parent=0 // loop_header_branch
    %11 = sbr.rel (%p9) target = $region8
  $region5: #{generator_forward.25} parent=0 // loop_body
    %s13 = ssub.s32 %s8, 1
    %s14 = ssub.s32 %s8, 2
    %s27 = sadd.s32 1, %s18
    %p28 = scmp.ge.s32.totalorder %s27, 1
    %s29 = scalar_select %p28, 0, %s27
    %s30 = sadd.s32 1, %s17
    %s31 = scalar_select %p28, %s30, %s17
    %p32 = scmp.ge.s32.totalorder %s31, 1
    %s33 = scalar_select %p32, 0, %s31
    %s34 = sadd.s32 1, %s16
    %s35 = scalar_select %p32, %s34, %s16
    %p36 = scmp.ge.s32.totalorder %s35, 8
    %s37 = scalar_select %p36, 0, %s35
    %s38 = sadd.s32 1, %s15
    %s39 = scalar_select %p36, %s38, %s15
    %p40 = scmp.ge.s32.totalorder %s39, 4
    %s41 = scalar_select %p40, 0, %s39
    %s42 = ssub.s32 %s15, %s41
    %s43 = ssub.s32 %s16, %s37
    %s44 = sor.u32 %s42, %s43
    %s45 = ssub.s32 %s18, %s29
    %s46 = sor.u32 %s44, %s45
    %p47 = scmp.eq.s32.totalorder %s46, 0
    %s49 = sadd.s32 %s48, 1
    %s50 = scalar_select %p47, %s48, %s49
    %p53 = pneg %p47
    %p54 = scmp.eq.s32.totalorder %s8, 31
    %p55 = por %p53, %p54
    %p56 = scmp.ne.s32.totalorder %s48, %s51
    %p57 = scmp.eq.s32.totalorder %s8, 0
    %p58 = por %p56, %p57
    %p59 = scmp.ne.s32.totalorder %s48, %s51
    %p60 = scmp.eq.s32.totalorder %s13, 31
    %p61 = por %p59, %p60
    %p62 = scmp.ne.s32.totalorder %s51, %s52
    %p63 = scmp.eq.s32.totalorder %s13, 0
    %p64 = por %p62, %p63
    %p65 = scmp.ne.s32.totalorder %s51, %s52
    %p66 = scmp.eq.s32.totalorder %s14, 31
    %p67 = por %p65, %p66
    %p69 = scmp.ne.s32.totalorder %s52, %s68
    %p70 = scmp.eq.s32.totalorder %s14, 0
    %p71 = por %p69, %p70
    %s72 = ssub.s32 %s15, %s41
    %s73 = ssub.s32 %s18, %s29
    %s74 = sor.u32 %s72, %s73
    %s75 = ssub.s32 %s17, %s33
    %s76 = sor.u32 %s74, %s75
    %p77 = scmp.eq.s32.totalorder %s76, 0
    %s79 = sadd.s32 %s78, 1
    %s80 = scalar_select %p77, %s78, %s79
    %p83 = pneg %p77
    %p84 = scmp.eq.s32.totalorder %s8, 31
    %p85 = por %p83, %p84
    %p86 = scmp.ne.s32.totalorder %s78, %s81
    %p87 = scmp.eq.s32.totalorder %s8, 0
    %p88 = por %p86, %p87
    %p89 = scmp.ne.s32.totalorder %s78, %s81
    %p90 = scmp.eq.s32.totalorder %s13, 31
    %p91 = por %p89, %p90
    %p92 = scmp.ne.s32.totalorder %s81, %s82
    %p93 = scmp.eq.s32.totalorder %s13, 0
    %p94 = por %p92, %p93
    %p95 = scmp.ne.s32.totalorder %s81, %s82
    %p96 = scmp.eq.s32.totalorder %s14, 31
    %p97 = por %p95, %p96
    %p99 = scmp.ne.s32.totalorder %s82, %s98
    %p100 = scmp.eq.s32.totalorder %s14, 0
    %p101 = por %p99, %p100
    %s102 = ssub.s32 %s15, %s41
    %s103 = ssub.s32 %s16, %s37
    %s104 = sor.u32 %s102, %s103
    %s105 = ssub.s32 %s17, %s33
    %s106 = sor.u32 %s104, %s105
    %p107 = scmp.eq.s32.totalorder %s106, 0
    %s109 = sadd.s32 %s108, 1
    %s110 = scalar_select %p107, %s108, %s109
    %p113 = pneg %p107
    %p114 = scmp.eq.s32.totalorder %s8, 31
    %p115 = por %p113, %p114
    %p116 = scmp.ne.s32.totalorder %s108, %s111
    %p117 = scmp.eq.s32.totalorder %s8, 0
    %p118 = por %p116, %p117
    %p119 = scmp.ne.s32.totalorder %s108, %s111
    %p120 = scmp.eq.s32.totalorder %s13, 31
    %p121 = por %p119, %p120
    %p122 = scmp.ne.s32.totalorder %s111, %s112
    %p123 = scmp.eq.s32.totalorder %s13, 0
    %p124 = por %p122, %p123
    %p125 = scmp.ne.s32.totalorder %s111, %s112
    %p126 = scmp.eq.s32.totalorder %s14, 31
    %p127 = por %p125, %p126
    %p129 = scmp.ne.s32.totalorder %s112, %s128
    %p130 = scmp.eq.s32.totalorder %s14, 0
    %p131 = por %p129, %p130
    %p132 = scmp.le.s32.totalorder 1, %s8
    %p133 = scmp.lt.s32.totalorder %s8, 33
    %p134 = pnand %p132, %p133
    %p135 = pneg %p134
    // Predicated region
    $region9: #{generator_forward.25} parent=5 // pred_check
      _
    $region10: #{generator_forward.25} parent=5 // pred_check_branch
      %137 = sbr.rel (%p134) target = $region12
    $region11: #{generator_forward.25} parent=5 // pred_region
      %s138 = ssub.s32 %s8, 1
    $region12: #{generator_forward.25} parent=5 // pred_fallthru
      _
    %p139 = scmp.lt.s32.totalorder %s8, 32
    // Predicated region
    $region13: #{generator_forward.25} parent=5 // pred_check
      %p140 = pneg %p139
    $region14: #{generator_forward.25} parent=5 // pred_check_branch
      %142 = sbr.rel (%p140) target = $region16
    $region15: #{generator_forward.25} parent=5 // pred_region
      // Predicated region
      $region17: #{generator_forward.25} parent=15 // pred_check
        %p143 = pneg %p58
      $region18: #{generator_forward.25} parent=15 // pred_check_branch
        %145 = sbr.rel (%p143) target = $region20
      $region19: #{generator_forward.25} parent=15 // pred_region
        %s146 = smul.u32 32, %s16
        %s147 = smul.u32 2, %s18
        %p148 = scmp.lt.s32.totalorder %s15, 3
        %s149 = scalar_select %p148, %s15, 3
        %p150 = scmp.lt.s32.totalorder %s146, 255
        %s151 = scalar_select %p150, %s146, 255
        %p152 = scmp.lt.s32.totalorder %s147, 1
        %s153 = scalar_select %p152, %s147, 1
        %s154 = smul.addr %s151, 2
        %s155 = sadd.s32 %s153, %s154
        %s156 = smul.addr %s149, 512
        %s157 = sadd.s32 %s155, %s156
        %s158 = smul.addr %s157, 8
        %s159 = scalar_lea.vmem %s0, %s158
        %s160 = smul.u32 32, %s16
        %s161 = smul.u32 2, %s18
      $region20: #{generator_forward.25} parent=15 // pred_fallthru
        _
      // Predicated region
      $region21: #{generator_forward.25} parent=15 // pred_check
        %p162 = pneg %p88
      $region22: #{generator_forward.25} parent=15 // pred_check_branch
        %164 = sbr.rel (%p162) target = $region24
      $region23: #{generator_forward.25} parent=15 // pred_region
        %s165 = smul.u32 32, %s18
        %p166 = scmp.lt.s32.totalorder %s15, 3
        %s167 = scalar_select %p166, %s15, 3
        %p168 = scmp.lt.s32.totalorder %s165, 31
        %s169 = scalar_select %p168, %s165, 31
        %p170 = scmp.lt.s32.totalorder %s17, 0
        %s171 = scalar_select %p170, %s17, 0
        %s172 = sadd.s32 %s171, %s169
        %s173 = smul.addr %s167, 32
        %s174 = sadd.s32 %s172, %s173
        %s175 = smul.addr %s174, 8
        %s176 = scalar_lea.vmem %s1, %s175
        %s177 = smul.u32 32, %s18
      $region24: #{generator_forward.25} parent=15 // pred_fallthru
        _
    $region16: #{generator_forward.25} parent=5 // pred_fallthru
      _
    %p178 = scmp.le.s32.totalorder 1, %s8
    %p179 = scmp.lt.s32.totalorder %s8, 33
    %p180 = pnand %p178, %p179
    %p181 = pneg %p180
    // Predicated region
    $region25: #{generator_forward.25} parent=5 // pred_check
      _
    $region26: #{generator_forward.25} parent=5 // pred_check_branch
      %183 = sbr.rel (%p180) target = $region28
    $region27: #{generator_forward.25} parent=5 // pred_region
      %s184 = ssub.s32 %s8, 1
      %s185 = smul.u32 32, %s20
      %s186 = smul.u32 2, %s22
      %p187 = scmp.lt.s32.totalorder %s19, 3
      %s188 = scalar_select %p187, %s19, 3
      %p189 = scmp.lt.s32.totalorder %s185, 255
      %s190 = scalar_select %p189, %s185, 255
      %p191 = scmp.lt.s32.totalorder %s186, 1
      %s192 = scalar_select %p191, %s186, 1
      %s193 = smul.addr %s190, 2
      %s194 = sadd.s32 %s192, %s193
      %s195 = smul.addr %s188, 512
      %s196 = sadd.s32 %s194, %s195
      %s197 = smul.addr %s196, 8
      %s198 = scalar_lea.vmem %s0, %s197
      %p199 = pneg %p64
      %p200 = pneg %p61
      %s201 = smul.u32 32, %s22
      %p202 = scmp.lt.s32.totalorder %s19, 3
      %s203 = scalar_select %p202, %s19, 3
      %p204 = scmp.lt.s32.totalorder %s201, 31
      %s205 = scalar_select %p204, %s201, 31
      %p206 = scmp.lt.s32.totalorder %s21, 0
      %s207 = scalar_select %p206, %s21, 0
      %s208 = sadd.s32 %s207, %s205
      %s209 = smul.addr %s203, 32
      %s210 = sadd.s32 %s208, %s209
      %s211 = smul.addr %s210, 8
      %s212 = scalar_lea.vmem %s1, %s211
      %p213 = pneg %p94
      %p214 = pneg %p91
      %p215 = pneg %p124
      %p216 = pneg %p121
      %s217 = smul.u32 32, %s20
      %p218 = scmp.lt.s32.totalorder %s19, 3
      %s219 = scalar_select %p218, %s19, 3
      %p220 = scmp.lt.s32.totalorder %s217, 255
      %s221 = scalar_select %p220, %s217, 255
      %p222 = scmp.lt.s32.totalorder %s21, 0
      %s223 = scalar_select %p222, %s21, 0
      %s224 = sadd.s32 %s223, %s221
      %s225 = smul.addr %s219, 256
      %s226 = sadd.s32 %s224, %s225
      %s227 = smul.addr %s226, 8
      %s228 = scalar_lea.vmem %s2, %s227
      %s229 = smul.u32 32, %s20
      %s230 = smul.u32 2, %s22
      %p231 = scmp.lt.s32.totalorder %s19, 3
      %s232 = scalar_select %p231, %s19, 3
      %p233 = scmp.lt.s32.totalorder %s229, 255
      %s234 = scalar_select %p233, %s229, 255
      %p235 = scmp.lt.s32.totalorder %s230, 1
      %s236 = scalar_select %p235, %s230, 1
      %s237 = smul.addr %s234, 2
      %s238 = sadd.s32 %s236, %s237
      %s239 = smul.addr %s232, 512
      %s240 = sadd.s32 %s238, %s239
      %s241 = smul.addr %s240, 8
      %s242 = scalar_lea.vmem %s0, %s241
      %s243 = smul.u32 32, %s20
      %s244 = smul.u32 2, %s22
      %s245 = smul.u32 32, %s22
      %p246 = scmp.lt.s32.totalorder %s19, 3
      %s247 = scalar_select %p246, %s19, 3
      %p248 = scmp.lt.s32.totalorder %s245, 31
      %s249 = scalar_select %p248, %s245, 31
      %p250 = scmp.lt.s32.totalorder %s21, 0
      %s251 = scalar_select %p250, %s21, 0
      %s252 = sadd.s32 %s251, %s249
      %s253 = smul.addr %s247, 32
      %s254 = sadd.s32 %s252, %s253
      %s255 = smul.addr %s254, 8
      %s256 = scalar_lea.vmem %s1, %s255
      %s257 = smul.u32 32, %s22
      %s258 = smul.u32 32, %s20
      %p259 = scmp.lt.s32.totalorder %s19, 3
      %s260 = scalar_select %p259, %s19, 3
      %p261 = scmp.lt.s32.totalorder %s258, 255
      %s262 = scalar_select %p261, %s258, 255
      %p263 = scmp.lt.s32.totalorder %s21, 0
      %s264 = scalar_select %p263, %s21, 0
      %s265 = sadd.s32 %s264, %s262
      %s266 = smul.addr %s260, 256
      %s267 = sadd.s32 %s265, %s266
      %s268 = smul.addr %s267, 8
      %s269 = scalar_lea.vmem %s2, %s268
      %s270 = smul.u32 32, %s20
      %v271 = vld [vmem:[%s242] sm:$0xff]
      %v272 = vld [vmem:[%s242 + $0x8] sm:$0xff]
      %v273 = vld [vmem:[%s242 + $0x10] sm:$0xff]
      %v274 = vld [vmem:[%s242 + $0x18] sm:$0xff]
      %v275 = vld [vmem:[%s242 + $0x20] sm:$0xff]
      %v276 = vld [vmem:[%s242 + $0x28] sm:$0xff]
      %v277 = vld [vmem:[%s242 + $0x30] sm:$0xff]
      %v278 = vld [vmem:[%s242 + $0x38] sm:$0xff]
      %v279 = vld [vmem:[%s242 + $0x40] sm:$0xff]
      %v280 = vld [vmem:[%s242 + $0x48] sm:$0xff]
      %v281 = vld [vmem:[%s242 + $0x50] sm:$0xff]
      %v282 = vld [vmem:[%s242 + $0x58] sm:$0xff]
      %v283 = vld [vmem:[%s242 + $0x60] sm:$0xff]
      %v284 = vld [vmem:[%s242 + $0x68] sm:$0xff]
      %v285 = vld [vmem:[%s242 + $0x70] sm:$0xff]
      %v286 = vld [vmem:[%s242 + $0x78] sm:$0xff]
      %v287 = vld [vmem:[%s242 + $0x80] sm:$0xff]
      %v288 = vld [vmem:[%s242 + $0x88] sm:$0xff]
      %v289 = vld [vmem:[%s242 + $0x90] sm:$0xff]
      %v290 = vld [vmem:[%s242 + $0x98] sm:$0xff]
      %v291 = vld [vmem:[%s242 + $0xa0] sm:$0xff]
      %v292 = vld [vmem:[%s242 + $0xa8] sm:$0xff]
      %v293 = vld [vmem:[%s242 + $0xb0] sm:$0xff]
      %v294 = vld [vmem:[%s242 + $0xb8] sm:$0xff]
      %v295 = vld [vmem:[%s242 + $0xc0] sm:$0xff]
      %v296 = vld [vmem:[%s242 + $0xc8] sm:$0xff]
      %v297 = vld [vmem:[%s242 + $0xd0] sm:$0xff]
      %v298 = vld [vmem:[%s242 + $0xd8] sm:$0xff]
      %v299 = vld [vmem:[%s242 + $0xe0] sm:$0xff]
      %v300 = vld [vmem:[%s242 + $0xe8] sm:$0xff]
      %v301 = vld [vmem:[%s242 + $0xf0] sm:$0xff]
      %v302 = vld [vmem:[%s242 + $0xf8] sm:$0xff]
      %v303 = vld [vmem:[%s242 + $0x100] sm:$0xff]
      %v304 = vld [vmem:[%s242 + $0x108] sm:$0xff]
      %v305 = vld [vmem:[%s242 + $0x110] sm:$0xff]
      %v306 = vld [vmem:[%s242 + $0x118] sm:$0xff]
      %v307 = vld [vmem:[%s242 + $0x120] sm:$0xff]
      %v308 = vld [vmem:[%s242 + $0x128] sm:$0xff]
      %v309 = vld [vmem:[%s242 + $0x130] sm:$0xff]
      %v310 = vld [vmem:[%s242 + $0x138] sm:$0xff]
      %v311 = vld [vmem:[%s242 + $0x140] sm:$0xff]
      %v312 = vld [vmem:[%s242 + $0x148] sm:$0xff]
      %v313 = vld [vmem:[%s242 + $0x150] sm:$0xff]
      %v314 = vld [vmem:[%s242 + $0x158] sm:$0xff]
      %v315 = vld [vmem:[%s242 + $0x160] sm:$0xff]
      %v316 = vld [vmem:[%s242 + $0x168] sm:$0xff]
      %v317 = vld [vmem:[%s242 + $0x170] sm:$0xff]
      %v318 = vld [vmem:[%s242 + $0x178] sm:$0xff]
      %v319 = vld [vmem:[%s242 + $0x180] sm:$0xff]
      %v320 = vld [vmem:[%s242 + $0x188] sm:$0xff]
      %v321 = vld [vmem:[%s242 + $0x190] sm:$0xff]
      %v322 = vld [vmem:[%s242 + $0x198] sm:$0xff]
      %v323 = vld [vmem:[%s242 + $0x1a0] sm:$0xff]
      %v324 = vld [vmem:[%s242 + $0x1a8] sm:$0xff]
      %v325 = vld [vmem:[%s242 + $0x1b0] sm:$0xff]
      %v326 = vld [vmem:[%s242 + $0x1b8] sm:$0xff]
      %v327 = vld [vmem:[%s242 + $0x1c0] sm:$0xff]
      %v328 = vld [vmem:[%s242 + $0x1c8] sm:$0xff]
      %v329 = vld [vmem:[%s242 + $0x1d0] sm:$0xff]
      %v330 = vld [vmem:[%s242 + $0x1d8] sm:$0xff]
      %v331 = vld [vmem:[%s242 + $0x1e0] sm:$0xff]
      %v332 = vld [vmem:[%s242 + $0x1e8] sm:$0xff]
      %v333 = vld [vmem:[%s242 + $0x1f0] sm:$0xff]
      %v334 = vld [vmem:[%s242 + $0x1f8] sm:$0xff]
      %v335 = vld [vmem:[%s256] sm:$0xff]
      %v336 = vld [vmem:[%s256 + $0x8] sm:$0xff]
      %v337 = vld [vmem:[%s256 + $0x10] sm:$0xff]
      %v338 = vld [vmem:[%s256 + $0x18] sm:$0xff]
      %v339 = vld [vmem:[%s256 + $0x20] sm:$0xff]
      %v340 = vld [vmem:[%s256 + $0x28] sm:$0xff]
      %v341 = vld [vmem:[%s256 + $0x30] sm:$0xff]
      %v342 = vld [vmem:[%s256 + $0x38] sm:$0xff]
      %v343 = vld [vmem:[%s256 + $0x40] sm:$0xff]
      %v344 = vld [vmem:[%s256 + $0x48] sm:$0xff]
      %v345 = vld [vmem:[%s256 + $0x50] sm:$0xff]
      %v346 = vld [vmem:[%s256 + $0x58] sm:$0xff]
      %v347 = vld [vmem:[%s256 + $0x60] sm:$0xff]
      %v348 = vld [vmem:[%s256 + $0x68] sm:$0xff]
      %v349 = vld [vmem:[%s256 + $0x70] sm:$0xff]
      %v350 = vld [vmem:[%s256 + $0x78] sm:$0xff]
      %v351 = vld [vmem:[%s256 + $0x80] sm:$0xff]
      %v352 = vld [vmem:[%s256 + $0x88] sm:$0xff]
      %v353 = vld [vmem:[%s256 + $0x90] sm:$0xff]
      %v354 = vld [vmem:[%s256 + $0x98] sm:$0xff]
      %v355 = vld [vmem:[%s256 + $0xa0] sm:$0xff]
      %v356 = vld [vmem:[%s256 + $0xa8] sm:$0xff]
      %v357 = vld [vmem:[%s256 + $0xb0] sm:$0xff]
      %v358 = vld [vmem:[%s256 + $0xb8] sm:$0xff]
      %v359 = vld [vmem:[%s256 + $0xc0] sm:$0xff]
      %v360 = vld [vmem:[%s256 + $0xc8] sm:$0xff]
      %v361 = vld [vmem:[%s256 + $0xd0] sm:$0xff]
      %v362 = vld [vmem:[%s256 + $0xd8] sm:$0xff]
      %v363 = vld [vmem:[%s256 + $0xe0] sm:$0xff]
      %v364 = vld [vmem:[%s256 + $0xe8] sm:$0xff]
      %v365 = vld [vmem:[%s256 + $0xf0] sm:$0xff]
      %v366 = vld [vmem:[%s256 + $0xf8] sm:$0xff]
      %367 = vmatpush.msra.mxu0 %v350
      %368 = vmatpush.msra.mxu0 %v349
      %369 = vmatpush.msra.mxu0 %v348
      %370 = vmatpush.msra.mxu0 %v347
      %371 = vmatpush.msra.mxu0 %v346
      %372 = vmatpush.msra.mxu0 %v345
      %373 = vmatpush.msra.mxu0 %v344
      %374 = vmatpush.msra.mxu0 %v343
      %375 = vmatpush.msra.mxu0 %v342
      %376 = vmatpush.msra.mxu0 %v341
      %377 = vmatpush.msra.mxu0 %v340
      %378 = vmatpush.msra.mxu0 %v339
      %379 = vmatpush.msra.mxu0 %v338
      %380 = vmatpush.msra.mxu0 %v337
      %381 = vmatpush.msra.mxu0 %v336
      %382 = vmatpush.msra.mxu0 %v335
      %383 = vmatmul.f32.gmra.mxu0 %v271
      %v384 = vpop.f32.mrf.mxu0
      %v385 = vadd.f32 0.0, %v384
      %386 = vmatmul.f32.gmra.mxu0 %v273
      %v387 = vpop.f32.mrf.mxu0
      %v388 = vadd.f32 0.0, %v387
      %389 = vmatmul.f32.gmra.mxu0 %v275
      %v390 = vpop.f32.mrf.mxu0
      %v391 = vadd.f32 0.0, %v390
      %392 = vmatmul.f32.gmra.mxu0 %v277
      %v393 = vpop.f32.mrf.mxu0
      %v394 = vadd.f32 0.0, %v393
      %395 = vmatmul.f32.gmra.mxu0 %v279
      %v396 = vpop.f32.mrf.mxu0
      %v397 = vadd.f32 0.0, %v396
      %398 = vmatmul.f32.gmra.mxu0 %v281
      %v399 = vpop.f32.mrf.mxu0
      %v400 = vadd.f32 0.0, %v399
      %401 = vmatmul.f32.gmra.mxu0 %v283
      %v402 = vpop.f32.mrf.mxu0
      %v403 = vadd.f32 0.0, %v402
      %404 = vmatmul.f32.gmra.mxu0 %v285
      %v405 = vpop.f32.mrf.mxu0
      %v406 = vadd.f32 0.0, %v405
      %407 = vmatmul.f32.gmra.mxu0 %v287
      %v408 = vpop.f32.mrf.mxu0
      %v409 = vadd.f32 0.0, %v408
      %410 = vmatmul.f32.gmra.mxu0 %v289
      %v411 = vpop.f32.mrf.mxu0
      %v412 = vadd.f32 0.0, %v411
      %413 = vmatmul.f32.gmra.mxu0 %v291
      %v414 = vpop.f32.mrf.mxu0
      %v415 = vadd.f32 0.0, %v414
      %416 = vmatmul.f32.gmra.mxu0 %v293
      %v417 = vpop.f32.mrf.mxu0
      %v418 = vadd.f32 0.0, %v417
      %419 = vmatmul.f32.gmra.mxu0 %v295
      %v420 = vpop.f32.mrf.mxu0
      %v421 = vadd.f32 0.0, %v420
      %422 = vmatmul.f32.gmra.mxu0 %v297
      %v423 = vpop.f32.mrf.mxu0
      %v424 = vadd.f32 0.0, %v423
      %425 = vmatmul.f32.gmra.mxu0 %v299
      %v426 = vpop.f32.mrf.mxu0
      %v427 = vadd.f32 0.0, %v426
      %428 = vmatmul.f32.gmra.mxu0 %v301
      %v429 = vpop.f32.mrf.mxu0
      %v430 = vadd.f32 0.0, %v429
      %431 = vmatmul.f32.gmra.mxu0 %v303
      %v432 = vpop.f32.mrf.mxu0
      %v433 = vadd.f32 0.0, %v432
      %434 = vmatmul.f32.gmra.mxu0 %v305
      %v435 = vpop.f32.mrf.mxu0
      %v436 = vadd.f32 0.0, %v435
      %437 = vmatmul.f32.gmra.mxu0 %v307
      %v438 = vpop.f32.mrf.mxu0
      %v439 = vadd.f32 0.0, %v438
      %440 = vmatmul.f32.gmra.mxu0 %v309
      %v441 = vpop.f32.mrf.mxu0
      %v442 = vadd.f32 0.0, %v441
      %443 = vmatmul.f32.gmra.mxu0 %v311
      %v444 = vpop.f32.mrf.mxu0
      %v445 = vadd.f32 0.0, %v444
      %446 = vmatmul.f32.gmra.mxu0 %v313
      %v447 = vpop.f32.mrf.mxu0
      %v448 = vadd.f32 0.0, %v447
      %449 = vmatmul.f32.gmra.mxu0 %v315
      %v450 = vpop.f32.mrf.mxu0
      %v451 = vadd.f32 0.0, %v450
      %452 = vmatmul.f32.gmra.mxu0 %v317
      %v453 = vpop.f32.mrf.mxu0
      %v454 = vadd.f32 0.0, %v453
      %455 = vmatmul.f32.gmra.mxu0 %v319
      %v456 = vpop.f32.mrf.mxu0
      %v457 = vadd.f32 0.0, %v456
      %458 = vmatmul.f32.gmra.mxu0 %v321
      %v459 = vpop.f32.mrf.mxu0
      %v460 = vadd.f32 0.0, %v459
      %461 = vmatmul.f32.gmra.mxu0 %v323
      %v462 = vpop.f32.mrf.mxu0
      %v463 = vadd.f32 0.0, %v462
      %464 = vmatmul.f32.gmra.mxu0 %v325
      %v465 = vpop.f32.mrf.mxu0
      %v466 = vadd.f32 0.0, %v465
      %467 = vmatmul.f32.gmra.mxu0 %v327
      %v468 = vpop.f32.mrf.mxu0
      %v469 = vadd.f32 0.0, %v468
      %470 = vmatmul.f32.gmra.mxu0 %v329
      %v471 = vpop.f32.mrf.mxu0
      %v472 = vadd.f32 0.0, %v471
      %473 = vmatmul.f32.gmra.mxu0 %v331
      %v474 = vpop.f32.mrf.mxu0
      %v475 = vadd.f32 0.0, %v474
      %476 = vmatmul.f32.gmra.mxu0 %v333
      %v477 = vpop.f32.mrf.mxu0
      %v478 = vadd.f32 0.0, %v477
      %479 = vdwg.mxu0
      %480 = vmatpush.msra.mxu0 %v366
      %481 = vmatpush.msra.mxu0 %v365
      %482 = vmatpush.msra.mxu0 %v364
      %483 = vmatpush.msra.mxu0 %v363
      %484 = vmatpush.msra.mxu0 %v362
      %485 = vmatpush.msra.mxu0 %v361
      %486 = vmatpush.msra.mxu0 %v360
      %487 = vmatpush.msra.mxu0 %v359
      %488 = vmatpush.msra.mxu0 %v358
      %489 = vmatpush.msra.mxu0 %v357
      %490 = vmatpush.msra.mxu0 %v356
      %491 = vmatpush.msra.mxu0 %v355
      %492 = vmatpush.msra.mxu0 %v354
      %493 = vmatpush.msra.mxu0 %v353
      %494 = vmatpush.msra.mxu0 %v352
      %495 = vmatpush.msra.mxu0 %v351
      %496 = vmatmul.f32.gmra.mxu0 %v272
      %v497 = vpop.f32.mrf.mxu0
      %v498 = vadd.f32 %v385, %v497
      %499 = vmatmul.f32.gmra.mxu0 %v274
      %v500 = vpop.f32.mrf.mxu0
      %v501 = vadd.f32 %v388, %v500
      %502 = vmatmul.f32.gmra.mxu0 %v276
      %v503 = vpop.f32.mrf.mxu0
      %v504 = vadd.f32 %v391, %v503
      %505 = vmatmul.f32.gmra.mxu0 %v278
      %v506 = vpop.f32.mrf.mxu0
      %v507 = vadd.f32 %v394, %v506
      %508 = vmatmul.f32.gmra.mxu0 %v280
      %v509 = vpop.f32.mrf.mxu0
      %v510 = vadd.f32 %v397, %v509
      %511 = vmatmul.f32.gmra.mxu0 %v282
      %v512 = vpop.f32.mrf.mxu0
      %v513 = vadd.f32 %v400, %v512
      %514 = vmatmul.f32.gmra.mxu0 %v284
      %v515 = vpop.f32.mrf.mxu0
      %v516 = vadd.f32 %v403, %v515
      %517 = vmatmul.f32.gmra.mxu0 %v286
      %v518 = vpop.f32.mrf.mxu0
      %v519 = vadd.f32 %v406, %v518
      %520 = vmatmul.f32.gmra.mxu0 %v288
      %v521 = vpop.f32.mrf.mxu0
      %v522 = vadd.f32 %v409, %v521
      %523 = vmatmul.f32.gmra.mxu0 %v290
      %v524 = vpop.f32.mrf.mxu0
      %v525 = vadd.f32 %v412, %v524
      %526 = vmatmul.f32.gmra.mxu0 %v292
      %v527 = vpop.f32.mrf.mxu0
      %v528 = vadd.f32 %v415, %v527
      %529 = vmatmul.f32.gmra.mxu0 %v294
      %v530 = vpop.f32.mrf.mxu0
      %v531 = vadd.f32 %v418, %v530
      %532 = vmatmul.f32.gmra.mxu0 %v296
      %v533 = vpop.f32.mrf.mxu0
      %v534 = vadd.f32 %v421, %v533
      %535 = vmatmul.f32.gmra.mxu0 %v298
      %v536 = vpop.f32.mrf.mxu0
      %v537 = vadd.f32 %v424, %v536
      %538 = vmatmul.f32.gmra.mxu0 %v300
      %v539 = vpop.f32.mrf.mxu0
      %v540 = vadd.f32 %v427, %v539
      %541 = vmatmul.f32.gmra.mxu0 %v302
      %v542 = vpop.f32.mrf.mxu0
      %v543 = vadd.f32 %v430, %v542
      %544 = vmatmul.f32.gmra.mxu0 %v304
      %v545 = vpop.f32.mrf.mxu0
      %v546 = vadd.f32 %v433, %v545
      %547 = vmatmul.f32.gmra.mxu0 %v306
      %v548 = vpop.f32.mrf.mxu0
      %v549 = vadd.f32 %v436, %v548
      %550 = vmatmul.f32.gmra.mxu0 %v308
      %v551 = vpop.f32.mrf.mxu0
      %v552 = vadd.f32 %v439, %v551
      %553 = vmatmul.f32.gmra.mxu0 %v310
      %v554 = vpop.f32.mrf.mxu0
      %v555 = vadd.f32 %v442, %v554
      %556 = vmatmul.f32.gmra.mxu0 %v312
      %v557 = vpop.f32.mrf.mxu0
      %v558 = vadd.f32 %v445, %v557
      %559 = vmatmul.f32.gmra.mxu0 %v314
      %v560 = vpop.f32.mrf.mxu0
      %v561 = vadd.f32 %v448, %v560
      %562 = vmatmul.f32.gmra.mxu0 %v316
      %v563 = vpop.f32.mrf.mxu0
      %v564 = vadd.f32 %v451, %v563
      %565 = vmatmul.f32.gmra.mxu0 %v318
      %v566 = vpop.f32.mrf.mxu0
      %v567 = vadd.f32 %v454, %v566
      %568 = vmatmul.f32.gmra.mxu0 %v320
      %v569 = vpop.f32.mrf.mxu0
      %v570 = vadd.f32 %v457, %v569
      %571 = vmatmul.f32.gmra.mxu0 %v322
      %v572 = vpop.f32.mrf.mxu0
      %v573 = vadd.f32 %v460, %v572
      %574 = vmatmul.f32.gmra.mxu0 %v324
      %v575 = vpop.f32.mrf.mxu0
      %v576 = vadd.f32 %v463, %v575
      %577 = vmatmul.f32.gmra.mxu0 %v326
      %v578 = vpop.f32.mrf.mxu0
      %v579 = vadd.f32 %v466, %v578
      %580 = vmatmul.f32.gmra.mxu0 %v328
      %v581 = vpop.f32.mrf.mxu0
      %v582 = vadd.f32 %v469, %v581
      %583 = vmatmul.f32.gmra.mxu0 %v330
      %v584 = vpop.f32.mrf.mxu0
      %v585 = vadd.f32 %v472, %v584
      %586 = vmatmul.f32.gmra.mxu0 %v332
      %v587 = vpop.f32.mrf.mxu0
      %v588 = vadd.f32 %v475, %v587
      %589 = vmatmul.f32.gmra.mxu0 %v334
      %v590 = vpop.f32.mrf.mxu0
      %v591 = vadd.f32 %v478, %v590
      %592 = vdwg.mxu0
      %v593 = vtanh.pop %v498
      %v594 = vtanh.pop %v501
      %v595 = vtanh.pop %v504
      %v596 = vtanh.pop %v507
      %v597 = vtanh.pop %v510
      %v598 = vtanh.pop %v513
      %v599 = vtanh.pop %v516
      %v600 = vtanh.pop %v519
      %v601 = vtanh.pop %v522
      %v602 = vtanh.pop %v525
      %v603 = vtanh.pop %v528
      %v604 = vtanh.pop %v531
      %v605 = vtanh.pop %v534
      %v606 = vtanh.pop %v537
      %v607 = vtanh.pop %v540
      %v608 = vtanh.pop %v543
      %v609 = vtanh.pop %v546
      %v610 = vtanh.pop %v549
      %v611 = vtanh.pop %v552
      %v612 = vtanh.pop %v555
      %v613 = vtanh.pop %v558
      %v614 = vtanh.pop %v561
      %v615 = vtanh.pop %v564
      %v616 = vtanh.pop %v567
      %v617 = vtanh.pop %v570
      %v618 = vtanh.pop %v573
      %v619 = vtanh.pop %v576
      %v620 = vtanh.pop %v579
      %v621 = vtanh.pop %v582
      %v622 = vtanh.pop %v585
      %v623 = vtanh.pop %v588
      %v624 = vtanh.pop %v591
      %625 = vst [vmem:[%s269] sm:$0xff] %v593
      %626 = vst [vmem:[%s269 + $0x8] sm:$0xff] %v594
      %627 = vst [vmem:[%s269 + $0x10] sm:$0xff] %v595
      %628 = vst [vmem:[%s269 + $0x18] sm:$0xff] %v596
      %629 = vst [vmem:[%s269 + $0x20] sm:$0xff] %v597
      %630 = vst [vmem:[%s269 + $0x28] sm:$0xff] %v598
      %631 = vst [vmem:[%s269 + $0x30] sm:$0xff] %v599
      %632 = vst [vmem:[%s269 + $0x38] sm:$0xff] %v600
      %633 = vst [vmem:[%s269 + $0x40] sm:$0xff] %v601
      %634 = vst [vmem:[%s269 + $0x48] sm:$0xff] %v602
      %635 = vst [vmem:[%s269 + $0x50] sm:$0xff] %v603
      %636 = vst [vmem:[%s269 + $0x58] sm:$0xff] %v604
      %637 = vst [vmem:[%s269 + $0x60] sm:$0xff] %v605
      %638 = vst [vmem:[%s269 + $0x68] sm:$0xff] %v606
      %639 = vst [vmem:[%s269 + $0x70] sm:$0xff] %v607
      %640 = vst [vmem:[%s269 + $0x78] sm:$0xff] %v608
      %641 = vst [vmem:[%s269 + $0x80] sm:$0xff] %v609
      %642 = vst [vmem:[%s269 + $0x88] sm:$0xff] %v610
      %643 = vst [vmem:[%s269 + $0x90] sm:$0xff] %v611
      %644 = vst [vmem:[%s269 + $0x98] sm:$0xff] %v612
      %645 = vst [vmem:[%s269 + $0xa0] sm:$0xff] %v613
      %646 = vst [vmem:[%s269 + $0xa8] sm:$0xff] %v614
      %647 = vst [vmem:[%s269 + $0xb0] sm:$0xff] %v615
      %648 = vst [vmem:[%s269 + $0xb8] sm:$0xff] %v616
      %649 = vst [vmem:[%s269 + $0xc0] sm:$0xff] %v617
      %650 = vst [vmem:[%s269 + $0xc8] sm:$0xff] %v618
      %651 = vst [vmem:[%s269 + $0xd0] sm:$0xff] %v619
      %652 = vst [vmem:[%s269 + $0xd8] sm:$0xff] %v620
      %653 = vst [vmem:[%s269 + $0xe0] sm:$0xff] %v621
      %654 = vst [vmem:[%s269 + $0xe8] sm:$0xff] %v622
      %655 = vst [vmem:[%s269 + $0xf0] sm:$0xff] %v623
      %656 = vst [vmem:[%s269 + $0xf8] sm:$0xff] %v624
      %s657 = smul.u32 32, %s20
      %p658 = scmp.lt.s32.totalorder %s19, 3
      %s659 = scalar_select %p658, %s19, 3
      %p660 = scmp.lt.s32.totalorder %s657, 255
      %s661 = scalar_select %p660, %s657, 255
      %p662 = scmp.lt.s32.totalorder %s21, 0
      %s663 = scalar_select %p662, %s21, 0
      %s664 = sadd.s32 %s663, %s661
      %s665 = smul.addr %s659, 256
      %s666 = sadd.s32 %s664, %s665
      %s667 = smul.addr %s666, 8
      %s668 = scalar_lea.vmem %s2, %s667
      // Predicated region
      $region29: #{generator_forward.25} parent=27 // pred_check
        %p669 = pneg %p121
      $region30: #{generator_forward.25} parent=27 // pred_check_branch
        %671 = sbr.rel (%p669) target = $region32
      $region31: #{generator_forward.25} parent=27 // pred_region
        %s672 = smul.u32 32, %s20
      $region32: #{generator_forward.25} parent=27 // pred_fallthru
        _
    $region28: #{generator_forward.25} parent=5 // pred_fallthru
      _
    %p673 = scmp.le.s32.totalorder 2, %s8
    // Predicated region
    $region33: #{generator_forward.25} parent=5 // pred_check
      %p674 = pneg %p673
    $region34: #{generator_forward.25} parent=5 // pred_check_branch
      %676 = sbr.rel (%p674) target = $region36
    $region35: #{generator_forward.25} parent=5 // pred_region
      %s677 = ssub.s32 %s8, 2
      // Predicated region
      $region37: #{generator_forward.25} parent=35 // pred_check
        %p678 = pneg %p127
      $region38: #{generator_forward.25} parent=35 // pred_check_branch
        %680 = sbr.rel (%p678) target = $region40
      $region39: #{generator_forward.25} parent=35 // pred_region
        %s681 = smul.u32 32, %s24
        %p682 = scmp.lt.s32.totalorder %s23, 3
        %s683 = scalar_select %p682, %s23, 3
        %p684 = scmp.lt.s32.totalorder %s681, 255
        %s685 = scalar_select %p684, %s681, 255
        %p686 = scmp.lt.s32.totalorder %s25, 0
        %s687 = scalar_select %p686, %s25, 0
        %s688 = sadd.s32 %s687, %s685
        %s689 = smul.addr %s683, 256
        %s690 = sadd.s32 %s688, %s689
        %s691 = smul.addr %s690, 8
        %s692 = scalar_lea.vmem %s2, %s691
      $region40: #{generator_forward.25} parent=35 // pred_fallthru
        _
    $region36: #{generator_forward.25} parent=5 // pred_fallthru
      _
  $region6: #{generator_forward.25} parent=0 // loop_footer
    %s12 = sadd.s32 1, %s8
  $region7: #{generator_forward.25} parent=0 // loop_footer_branch
    %7 = sbr.rel target = $region3
  $region8: #{generator_forward.25} parent=0 // loop_exit
    _

</llo_original>
